<compile_context>
chip_gen: v7x
topology: tpu7x:2x2x1
jax: 0.10.0
libtpu: 0.0.40
codegen_flags: <defaults>
</compile_context>

<pallas_src>
import functools
import math

import jax
import jax.numpy as jnp
from jax import lax
from jax.experimental import pallas as pl
from jax.experimental.pallas import tpu as pltpu


def _round_up(x, m):
    return ((x + m - 1) // m) * m


# ----------------------------------------------------------------------------
# Fused per-level head kernel:
#   x -> [cls_tower || bbox_tower] (num_convs fused conv+ReLU layers)
#     -> [cls_logits | bbox_pred | zero-pad]  (one lane-dense output slab)
# ----------------------------------------------------------------------------
def _retina_head_level_kernel(x_ref, wt_ref, bt_ref, wf_ref, bf_ref, o_ref,
                              xpad_ref, col_ref, *, H, W, Cin, num_convs, tap):
    C2 = xpad_ref.shape[-1]        # 2*Cin: lanes [0:Cin]=cls branch, [Cin:]=bbox
    KP = col_ref.shape[-1]         # 9 * tap
    HW = H * W
    L = 8                          # sublane-pair-aligned interior column offset

    # One-time scratch zero (grid step 0 only).  Halo rows/cols of xpad and
    # the per-tap padding lanes [t*tap + C2, (t+1)*tap) of col are never
    # written again; the interior is fully rewritten every grid step.
    # NOTE: on steps n > 0 the bbox half of the xpad interior holds the
    # previous batch element's (finite, post-ReLU) activations by design; the
    # layer-0 weight rows for those lanes are zero, so the result is exact.
    @pl.when(pl.program_id(0) == 0)
    def _init():
        xpad_ref[...] = jnp.zeros_like(xpad_ref)
        col_ref[...] = jnp.zeros_like(col_ref)

    # Input arrives channel-major (Cin, H*W); transpose to pixel-major inside
    # the kernel (2-D XLU transpose, the XLU slot has slack) so the wrapper
    # needs no standalone HBM transpose per level.  cls half only; the bbox
    # half's layer-0 weight rows are zero.
    x_hwc = jnp.transpose(x_ref[...], (1, 0)).reshape(H, W, Cin)
    xpad_ref[1:H + 1, L:L + W, :Cin] = x_hwc.astype(xpad_ref.dtype)

    def im2col():
        # One window read per dy; the dx = 0/1/2 taps are slices of that value.
        # Tap t = dy*3 + dx occupies lanes [t*tap, t*tap + C2) of the slab
        # (tap is a multiple of 128 -> aligned stores, no patch reshape).
        for dy in range(3):
            win = xpad_ref[dy:dy + H, L - 1:L + 1 + W, :]        # (H, W+2, C2)
            for dx in range(3):
                t = dy * 3 + dx
                col_ref[:, :, t * tap:t * tap + C2] = win[:, dx:dx + W, :]
        # Merging leading dims (lane dim unchanged) is free.
        return col_ref[...].reshape(HW, KP)

    # Fused cls/bbox towers: 3x3 conv (bf16 MXU operands, f32 accumulate)
    # + bias + ReLU in f32; block-diagonal weights; activations stay in VMEM.
    for i in range(num_convs):
        slab = im2col()                                           # (HW, KP) bf16
        act = jnp.dot(slab, wt_ref[i], preferred_element_type=jnp.float32)
        act = jnp.maximum(act + bt_ref[i], 0.0)                   # (HW, C2) f32
        xpad_ref[1:H + 1, L:L + W, :] = act.reshape(H, W, C2).astype(
            xpad_ref.dtype)

    # Final heads: one big-K matmul into a lane-dense (multiple-of-128) slab.
    slab = im2col()
    out = jnp.dot(slab, wf_ref[...], preferred_element_type=jnp.float32)
    out = out + bf_ref[...]
    o_ref[...] = out.reshape(H, W, o_ref.shape[-1]).astype(o_ref.dtype)


def _head_level(x_nchw, fused):
    """Run the fused head on one FPN level. x is NCHW; returns (cls, reg) NCHW."""
    N, Cin, H, W = x_nchw.shape
    num_convs = fused["num_convs"]
    C2 = 2 * Cin
    Cpad = fused["Cpad"]
    tap = fused["tap"]
    KP = 9 * tap
    WP = W + 16                    # interior at columns [8, 8+W); reads [7, 9+W)

    # Free metadata reshape only; the NCHW -> HWC relayout runs in-kernel.
    x = x_nchw.reshape(N, Cin, H * W)

    kern = functools.partial(_retina_head_level_kernel,
                             H=H, W=W, Cin=Cin, num_convs=num_convs, tap=tap)
    out = pl.pallas_call(
        kern,
        out_shape=jax.ShapeDtypeStruct((N, H, W, Cpad), x_nchw.dtype),
        grid=(N,),
        in_specs=[
            pl.BlockSpec((None, Cin, H * W), lambda n: (n, 0, 0)),
            # Constant index maps -> weights/biases stay VMEM-resident.
            pl.BlockSpec((num_convs, KP, C2), lambda n: (0, 0, 0)),
            pl.BlockSpec((num_convs, 1, C2), lambda n: (0, 0, 0)),
            pl.BlockSpec((KP, Cpad), lambda n: (0, 0)),
            pl.BlockSpec((1, Cpad), lambda n: (0, 0)),
        ],
        out_specs=pl.BlockSpec((None, H, W, Cpad), lambda n: (n, 0, 0, 0)),
        scratch_shapes=[
            pltpu.VMEM((H + 2, WP, C2), jnp.bfloat16),   # padded activations
            pltpu.VMEM((H, W, KP), jnp.bfloat16),        # im2col slab
        ],
        # "arbitrary": the step-0 scratch init must run on the executing core
        # before any other step; measured cost vs "parallel" is ~0.  Megacore
        # parallelism should come from a row-tiled axis (see TODO above).
        compiler_params=pltpu.CompilerParams(
            dimension_semantics=("arbitrary",),
            vmem_limit_bytes=96 * 1024 * 1024),
    )(x, fused["wt"], fused["bt"], fused["wf"], fused["bf"])

    # Single transpose of the lane-dense slab, then two cheap channel slices
    # (instead of two separate slice+transpose HBM round trips).
    out_t = jnp.transpose(out, (0, 3, 1, 2))               # (N, Cpad, H, W)
    n_cls, n_reg = fused["n_cls"], fused["n_reg"]
    cls = out_t[:, :n_cls]
    reg = out_t[:, n_cls:n_cls + n_reg]
    return cls, reg


# ----------------------------------------------------------------------------
# Parameter construction (mirrors RetinaNetHead.__init__) + fused packing
# ----------------------------------------------------------------------------
def make_head_params(key, *, in_channels, num_convs, num_anchors, num_classes,
                     prior_prob=0.01, dtype=jnp.float32):
    def conv_weight(k, cin, cout):
        # torch.nn.init.normal_(weight, std=0.01), bias = 0
        w = 0.01 * jax.random.normal(k, (3, 3, cin, cout), dtype)
        return w.reshape(9, cin, cout), jnp.zeros((cout,), dtype)

    keys = jax.random.split(key, 2 * num_convs + 2)
    params = {"cls_tower": [], "bbox_tower": []}
    for i in range(num_convs):
        params["cls_tower"].append(conv_weight(keys[i], in_channels, in_channels))
        params["bbox_tower"].append(
            conv_weight(keys[num_convs + i], in_channels, in_channels))
    params["cls_logits"] = conv_weight(
        keys[2 * num_convs], in_channels, num_anchors * num_classes)
    params["bbox_pred"] = conv_weight(
        keys[2 * num_convs + 1], in_channels, num_anchors * 4)
    # cls_logits bias = -log((1-p)/p)
    bias_value = -math.log((1.0 - prior_prob) / prior_prob)
    w_cls, b_cls = params["cls_logits"]
    params["cls_logits"] = (w_cls, jnp.full_like(b_cls, bias_value))
    return params


def pack_fused_params(params, *, in_channels, num_convs, num_anchors,
                      num_classes, compute_dtype=jnp.bfloat16):
    """Pack raw conv weights into the fused / lane-padded kernel layout."""
    Cin = in_channels
    C2 = 2 * Cin
    tap = _round_up(C2, 128)          # lane-padded width of one 3x3 tap block
    KP = 9 * tap
    n_cls = num_anchors * num_classes
    n_reg = num_anchors * 4
    Cpad = _round_up(n_cls + n_reg, 128)

    def scatter(dst, w9, ci_off, co_off):
        cin, cout = w9.shape[1], w9.shape[2]
        for t in range(9):
            dst = dst.at[t * tap + ci_off:t * tap + ci_off + cin,
                         co_off:co_off + cout].set(w9[t].astype(dst.dtype))
        return dst

    wt, bt = [], []
    for i in range(num_convs):
        w_c, b_c = params["cls_tower"][i]
        w_b, b_b = params["bbox_tower"][i]
        dst = jnp.zeros((KP, C2), compute_dtype)
        dst = scatter(dst, w_c, 0, 0)                  # cls: in[:Cin] -> out[:Cin]
        ci_b = 0 if i == 0 else Cin                    # layer 0 reads raw input
        dst = scatter(dst, w_b, ci_b, Cin)             # bbox half
        wt.append(dst)
        bt.append(jnp.concatenate([b_c, b_b]).astype(jnp.float32).reshape(1, C2))
    wt = jnp.stack(wt)                                 # (num_convs, KP, 2Cin) bf16
    bt = jnp.stack(bt)                                 # (num_convs, 1, 2Cin)  f32

    w_cl, b_cl = params["cls_logits"]
    w_bp, b_bp = params["bbox_pred"]
    wf = jnp.zeros((KP, Cpad), compute_dtype)
    wf = scatter(wf, w_cl, 0, 0)                       # cls branch -> [:n_cls]
    wf = scatter(wf, w_bp, Cin, n_cls)                 # bbox branch -> next n_reg
    bf = jnp.zeros((Cpad,), jnp.float32)
    bf = bf.at[:n_cls].set(b_cl).at[n_cls:n_cls + n_reg].set(b_bp)

    return dict(wt=wt, bt=bt, wf=wf, bf=bf.reshape(1, Cpad),
                n_cls=n_cls, n_reg=n_reg, Cin=Cin,
                num_convs=num_convs, Cpad=Cpad, tap=tap)


# ----------------------------------------------------------------------------
# RetinaNetHead.forward / RetinaNetModule.forward
# ----------------------------------------------------------------------------
def retinanet_head_forward(features_nchw, fused):
    logits, bbox_reg = [], []
    for feat in features_nchw:
        cls, reg = _head_level(feat, fused)
        logits.append(cls)
        bbox_reg.append(reg)
    return logits, bbox_reg


def retinanet_module_forward(features_nchw, fused):
    box_cls, box_regression = retinanet_head_forward(features_nchw, fused)
    # TODO(synk): anchor generation + box_selector_test (decode/NMS) omitted.
    return box_cls, box_regression


# ----------------------------------------------------------------------------
# Pure-JAX reference (raw, unfused f32 params) for correctness checking
# ----------------------------------------------------------------------------
def conv3x3_ref(x_nhwc, w9, b, *, relu):
    cin, cout = w9.shape[1], w9.shape[2]
    w = w9.reshape(3, 3, cin, cout)
    y = lax.conv_general_dilated(
        x_nhwc, w, window_strides=(1, 1), padding=((1, 1), (1, 1)),
        dimension_numbers=("NHWC", "HWIO", "NHWC"))
    y = y + b
    return jnp.maximum(y, 0.0) if relu else y


def retinanet_head_ref(features_nchw, params):
    logits, bbox_reg = [], []
    for feat in features_nchw:
        x = jnp.transpose(feat, (0, 2, 3, 1))
        c = x
        for (w, b) in params["cls_tower"]:
            c = conv3x3_ref(c, w, b, relu=True)
        cls = conv3x3_ref(c, *params["cls_logits"], relu=False)
        r = x
        for (w, b) in params["bbox_tower"]:
            r = conv3x3_ref(r, w, b, relu=True)
        reg = conv3x3_ref(r, *params["bbox_pred"], relu=False)
        logits.append(jnp.transpose(cls, (0, 3, 1, 2)))
        bbox_reg.append(jnp.transpose(reg, (0, 3, 1, 2)))
    return logits, bbox_reg


if __name__ == "__main__":
    # Small synthetic config:
    #   BACKBONE.OUT_CHANNELS = 32, RETINANET.NUM_CONVS = 2,
    #   NUM_CLASSES - 1 = 8, num_anchors = 3 aspect ratios * 3 scales = 9.
    in_channels = 32
    num_convs = 2
    num_classes = 8
    num_anchors = 9

    key = jax.random.PRNGKey(0)
    kp, kf0, kf1 = jax.random.split(key, 3)
    params = make_head_params(
        kp, in_channels=in_channels, num_convs=num_convs,
        num_anchors=num_anchors, num_classes=num_classes)
    fused = pack_fused_params(
        params, in_channels=in_channels, num_convs=num_convs,
        num_anchors=num_anchors, num_classes=num_classes)

    # Two FPN feature levels, NCHW (PyTorch convention).
    features = [
        jax.random.normal(kf0, (2, in_channels, 16, 16), jnp.float32),
        jax.random.normal(kf1, (2, in_channels, 8, 8), jnp.float32),
    ]

    box_cls, box_reg = retinanet_module_forward(features, fused)
    box_cls = [jax.block_until_ready(t) for t in box_cls]
    box_reg = [jax.block_until_ready(t) for t in box_reg]

    # Shape check (matches cls_logits / bbox_pred output channels).
    assert box_cls[0].shape == (2, num_anchors * num_classes, 16, 16)
    assert box_reg[0].shape == (2, num_anchors * 4, 16, 16)
    assert box_cls[1].shape == (2, num_anchors * num_classes, 8, 8)
    assert box_reg[1].shape == (2, num_anchors * 4, 8, 8)

    # Numerical check against a pure-JAX f32 reference on the raw (unfused)
    # params.  Tolerances account for bf16 MXU operands with f32 accumulation.
    ref_cls, ref_reg = retinanet_head_ref(features, params)
    for a, b in zip(box_cls + box_reg, ref_cls + ref_reg):
        assert jnp.allclose(a, b, rtol=1e-2, atol=1e-2), "mismatch vs reference"

    print("KERNEL_OK")
</pallas_src>

<mosaic_0001>
module attributes {stable_mosaic.version = 11 : i64} {
  func.func @_retina_head_level_kernel(%arg0: i32, %arg1: memref<1x32x256xf32, #tpu.memory_space<vmem>>, %arg2: memref<2x1152x64xbf16, #tpu.memory_space<vmem>>, %arg3: memref<2x1x64xf32, #tpu.memory_space<vmem>>, %arg4: memref<1152x128xbf16, #tpu.memory_space<vmem>>, %arg5: memref<1x128xf32, #tpu.memory_space<vmem>>, %arg6: memref<1x16x16x128xf32, #tpu.memory_space<vmem>>, %arg7: memref<18x32x64xbf16, #tpu.memory_space<vmem>>, %arg8: memref<16x16x1152xbf16, #tpu.memory_space<vmem>>) attributes {dimension_semantics = [#tpu.dimension_semantics<arbitrary>], iteration_bounds = array<i64: 2>, scalar_prefetch = 0 : i64, scratch_operands = 2 : i64, tpu.core_type = #tpu.core_type<tc>, window_params = [{transform_indices = @transform_0, window_bounds = array<i64: 1, 32, 256>}, {pipeline_mode = #tpu.pipeline_mode<synchronous>, transform_indices = @transform_1, window_bounds = array<i64: 2, 1152, 64>}, {pipeline_mode = #tpu.pipeline_mode<synchronous>, transform_indices = @transform_2, window_bounds = array<i64: 2, 1, 64>}, {pipeline_mode = #tpu.pipeline_mode<synchronous>, transform_indices = @transform_3, window_bounds = array<i64: 1152, 128>}, {pipeline_mode = #tpu.pipeline_mode<synchronous>, transform_indices = @transform_4, window_bounds = array<i64: 1, 128>}, {transform_indices = @transform_5, window_bounds = array<i64: 1, 16, 16, 128>}]} {
    %c0_i32 = arith.constant 0 : i32
    %0 = arith.cmpi eq, %arg0, %c0_i32 : i32
    %1 = arith.extui %0 : i1 to i32
    %c0_i32_0 = arith.constant 0 : i32
    %2 = arith.cmpi ne, %1, %c0_i32_0 : i32
    scf.if %2 {
      %cst_141 = arith.constant 0.000000e+00 : bf16
      %111 = vector.broadcast %cst_141 : bf16 to vector<18x32x64xbf16>
      %c0_142 = arith.constant 0 : index
      %c0_143 = arith.constant 0 : index
      %c0_144 = arith.constant 0 : index
      %112 = vector.load %arg7[%c0_142, %c0_143, %c0_144] : memref<18x32x64xbf16, #tpu.memory_space<vmem>>, vector<18x32x64xbf16>
      tpu.vector_store %arg7[%c0_142, %c0_143, %c0_144], %111 {strides = array<i32>} : memref<18x32x64xbf16, #tpu.memory_space<vmem>>, vector<18x32x64xbf16>,
      %cst_145 = arith.constant 0.000000e+00 : bf16
      %113 = vector.broadcast %cst_145 : bf16 to vector<16x16x1152xbf16>
      %c0_146 = arith.constant 0 : index
      %c0_147 = arith.constant 0 : index
      %c0_148 = arith.constant 0 : index
      %114 = vector.load %arg8[%c0_146, %c0_147, %c0_148] : memref<16x16x1152xbf16, #tpu.memory_space<vmem>>, vector<16x16x1152xbf16>
      tpu.vector_store %arg8[%c0_146, %c0_147, %c0_148], %113 {strides = array<i32>} : memref<16x16x1152xbf16, #tpu.memory_space<vmem>>, vector<16x16x1152xbf16>,
    } else {
    }
    %c0 = arith.constant 0 : index
    %c0_1 = arith.constant 0 : index
    %c0_2 = arith.constant 0 : index
    %3 = vector.load %arg1[%c0, %c0_1, %c0_2] : memref<1x32x256xf32, #tpu.memory_space<vmem>>, vector<1x32x256xf32>
    %4 = vector.shape_cast %3 : vector<1x32x256xf32> to vector<32x256xf32>
    %5 = tpu.transpose %4, [1, 0] : vector<32x256xf32> -> vector<256x32xf32>
    %6 = vector.shape_cast %5 : vector<256x32xf32> to vector<16x16x32xf32>
    %7 = arith.truncf %6 : vector<16x16x32xf32> to vector<16x16x32xbf16>
    %c1 = arith.constant 1 : index
    %c8 = arith.constant 8 : index
    %c0_3 = arith.constant 0 : index
    %8 = vector.load %arg7[%c1, %c8, %c0_3] : memref<18x32x64xbf16, #tpu.memory_space<vmem>>, vector<16x16x32xbf16>
    tpu.vector_store %arg7[%c1, %c8, %c0_3], %7 {strides = array<i32>} : memref<18x32x64xbf16, #tpu.memory_space<vmem>>, vector<16x16x32xbf16>,
    %c0_4 = arith.constant 0 : index
    %c7 = arith.constant 7 : index
    %c0_5 = arith.constant 0 : index
    %9 = vector.load %arg7[%c0_4, %c7, %c0_5] : memref<18x32x64xbf16, #tpu.memory_space<vmem>>, vector<16x18x64xbf16>
    %10 = vector.extract_strided_slice %9 {offsets = [0, 0, 0], sizes = [16, 16, 64], strides = [1, 1, 1]} : vector<16x18x64xbf16> to vector<16x16x64xbf16>
    %c0_6 = arith.constant 0 : index
    %c0_7 = arith.constant 0 : index
    %c0_8 = arith.constant 0 : index
    %11 = vector.load %arg8[%c0_6, %c0_7, %c0_8] : memref<16x16x1152xbf16, #tpu.memory_space<vmem>>, vector<16x16x64xbf16>
    tpu.vector_store %arg8[%c0_6, %c0_7, %c0_8], %10 {strides = array<i32>} : memref<16x16x1152xbf16, #tpu.memory_space<vmem>>, vector<16x16x64xbf16>,
    %12 = vector.extract_strided_slice %9 {offsets = [0, 1, 0], sizes = [16, 16, 64], strides = [1, 1, 1]} : vector<16x18x64xbf16> to vector<16x16x64xbf16>
    %c0_9 = arith.constant 0 : index
    %c0_10 = arith.constant 0 : index
    %c128 = arith.constant 128 : index
    %13 = vector.load %arg8[%c0_9, %c0_10, %c128] : memref<16x16x1152xbf16, #tpu.memory_space<vmem>>, vector<16x16x64xbf16>
    tpu.vector_store %arg8[%c0_9, %c0_10, %c128], %12 {strides = array<i32>} : memref<16x16x1152xbf16, #tpu.memory_space<vmem>>, vector<16x16x64xbf16>,
    %14 = vector.extract_strided_slice %9 {offsets = [0, 2, 0], sizes = [16, 16, 64], strides = [1, 1, 1]} : vector<16x18x64xbf16> to vector<16x16x64xbf16>
    %c0_11 = arith.constant 0 : index
    %c0_12 = arith.constant 0 : index
    %c256 = arith.constant 256 : index
    %15 = vector.load %arg8[%c0_11, %c0_12, %c256] : memref<16x16x1152xbf16, #tpu.memory_space<vmem>>, vector<16x16x64xbf16>
    tpu.vector_store %arg8[%c0_11, %c0_12, %c256], %14 {strides = array<i32>} : memref<16x16x1152xbf16, #tpu.memory_space<vmem>>, vector<16x16x64xbf16>,
    %c1_13 = arith.constant 1 : index
    %c7_14 = arith.constant 7 : index
    %c0_15 = arith.constant 0 : index
    %16 = vector.load %arg7[%c1_13, %c7_14, %c0_15] : memref<18x32x64xbf16, #tpu.memory_space<vmem>>, vector<16x18x64xbf16>
    %17 = vector.extract_strided_slice %16 {offsets = [0, 0, 0], sizes = [16, 16, 64], strides = [1, 1, 1]} : vector<16x18x64xbf16> to vector<16x16x64xbf16>
    %c0_16 = arith.constant 0 : index
    %c0_17 = arith.constant 0 : index
    %c384 = arith.constant 384 : index
    %18 = vector.load %arg8[%c0_16, %c0_17, %c384] : memref<16x16x1152xbf16, #tpu.memory_space<vmem>>, vector<16x16x64xbf16>
    tpu.vector_store %arg8[%c0_16, %c0_17, %c384], %17 {strides = array<i32>} : memref<16x16x1152xbf16, #tpu.memory_space<vmem>>, vector<16x16x64xbf16>,
    %19 = vector.extract_strided_slice %16 {offsets = [0, 1, 0], sizes = [16, 16, 64], strides = [1, 1, 1]} : vector<16x18x64xbf16> to vector<16x16x64xbf16>
    %c0_18 = arith.constant 0 : index
    %c0_19 = arith.constant 0 : index
    %c512 = arith.constant 512 : index
    %20 = vector.load %arg8[%c0_18, %c0_19, %c512] : memref<16x16x1152xbf16, #tpu.memory_space<vmem>>, vector<16x16x64xbf16>
    tpu.vector_store %arg8[%c0_18, %c0_19, %c512], %19 {strides = array<i32>} : memref<16x16x1152xbf16, #tpu.memory_space<vmem>>, vector<16x16x64xbf16>,
    %21 = vector.extract_strided_slice %16 {offsets = [0, 2, 0], sizes = [16, 16, 64], strides = [1, 1, 1]} : vector<16x18x64xbf16> to vector<16x16x64xbf16>
    %c0_20 = arith.constant 0 : index
    %c0_21 = arith.constant 0 : index
    %c640 = arith.constant 640 : index
    %22 = vector.load %arg8[%c0_20, %c0_21, %c640] : memref<16x16x1152xbf16, #tpu.memory_space<vmem>>, vector<16x16x64xbf16>
    tpu.vector_store %arg8[%c0_20, %c0_21, %c640], %21 {strides = array<i32>} : memref<16x16x1152xbf16, #tpu.memory_space<vmem>>, vector<16x16x64xbf16>,
    %c2 = arith.constant 2 : index
    %c7_22 = arith.constant 7 : index
    %c0_23 = arith.constant 0 : index
    %23 = vector.load %arg7[%c2, %c7_22, %c0_23] : memref<18x32x64xbf16, #tpu.memory_space<vmem>>, vector<16x18x64xbf16>
    %24 = vector.extract_strided_slice %23 {offsets = [0, 0, 0], sizes = [16, 16, 64], strides = [1, 1, 1]} : vector<16x18x64xbf16> to vector<16x16x64xbf16>
    %c0_24 = arith.constant 0 : index
    %c0_25 = arith.constant 0 : index
    %c768 = arith.constant 768 : index
    %25 = vector.load %arg8[%c0_24, %c0_25, %c768] : memref<16x16x1152xbf16, #tpu.memory_space<vmem>>, vector<16x16x64xbf16>
    tpu.vector_store %arg8[%c0_24, %c0_25, %c768], %24 {strides = array<i32>} : memref<16x16x1152xbf16, #tpu.memory_space<vmem>>, vector<16x16x64xbf16>,
    %26 = vector.extract_strided_slice %23 {offsets = [0, 1, 0], sizes = [16, 16, 64], strides = [1, 1, 1]} : vector<16x18x64xbf16> to vector<16x16x64xbf16>
    %c0_26 = arith.constant 0 : index
    %c0_27 = arith.constant 0 : index
    %c896 = arith.constant 896 : index
    %27 = vector.load %arg8[%c0_26, %c0_27, %c896] : memref<16x16x1152xbf16, #tpu.memory_space<vmem>>, vector<16x16x64xbf16>
    tpu.vector_store %arg8[%c0_26, %c0_27, %c896], %26 {strides = array<i32>} : memref<16x16x1152xbf16, #tpu.memory_space<vmem>>, vector<16x16x64xbf16>,
    %28 = vector.extract_strided_slice %23 {offsets = [0, 2, 0], sizes = [16, 16, 64], strides = [1, 1, 1]} : vector<16x18x64xbf16> to vector<16x16x64xbf16>
    %c0_28 = arith.constant 0 : index
    %c0_29 = arith.constant 0 : index
    %c1024 = arith.constant 1024 : index
    %29 = vector.load %arg8[%c0_28, %c0_29, %c1024] : memref<16x16x1152xbf16, #tpu.memory_space<vmem>>, vector<16x16x64xbf16>
    tpu.vector_store %arg8[%c0_28, %c0_29, %c1024], %28 {strides = array<i32>} : memref<16x16x1152xbf16, #tpu.memory_space<vmem>>, vector<16x16x64xbf16>,
    %c0_30 = arith.constant 0 : index
    %c0_31 = arith.constant 0 : index
    %c0_32 = arith.constant 0 : index
    %30 = vector.load %arg8[%c0_30, %c0_31, %c0_32] : memref<16x16x1152xbf16, #tpu.memory_space<vmem>>, vector<16x16x1152xbf16>
    %31 = vector.shape_cast %30 : vector<16x16x1152xbf16> to vector<256x1152xbf16>
    %c0_33 = arith.constant 0 : index
    %c0_34 = arith.constant 0 : index
    %c0_35 = arith.constant 0 : index
    %32 = vector.load %arg2[%c0_33, %c0_34, %c0_35] : memref<2x1152x64xbf16, #tpu.memory_space<vmem>>, vector<1x1152x64xbf16>
    %33 = vector.shape_cast %32 : vector<1x1152x64xbf16> to vector<1152x64xbf16>
    %cst = arith.constant dense<0.000000e+00> : vector<256x64xf32>
    %34 = tpu.matmul %31, %33, %cst {dimension_numbers = #tpu.dot_dimension_numbers<[1], [0], [0], [1], [0, 0, 1, 1], [], []>} : vector<256x1152xbf16>, vector<1152x64xbf16>, vector<256x64xf32> -> vector<256x64xf32>
    %c0_36 = arith.constant 0 : index
    %c0_37 = arith.constant 0 : index
    %c0_38 = arith.constant 0 : index
    %35 = vector.load %arg3[%c0_36, %c0_37, %c0_38] : memref<2x1x64xf32, #tpu.memory_space<vmem>>, vector<1x1x64xf32>
    %36 = vector.shape_cast %35 : vector<1x1x64xf32> to vector<1x64xf32>
    %37 = vector.broadcast %36 : vector<1x64xf32> to vector<256x64xf32>
    %38 = arith.addf %34, %37 : vector<256x64xf32>
    %cst_39 = arith.constant 0.000000e+00 : f32
    %39 = vector.broadcast %cst_39 : f32 to vector<256x64xf32>
    %40 = arith.maximumf %38, %39 : vector<256x64xf32>
    %41 = vector.shape_cast %40 : vector<256x64xf32> to vector<16x16x64xf32>
    %42 = arith.truncf %41 : vector<16x16x64xf32> to vector<16x16x64xbf16>
    %c1_40 = arith.constant 1 : index
    %c8_41 = arith.constant 8 : index
    %c0_42 = arith.constant 0 : index
    %43 = vector.load %arg7[%c1_40, %c8_41, %c0_42] : memref<18x32x64xbf16, #tpu.memory_space<vmem>>, vector<16x16x64xbf16>
    tpu.vector_store %arg7[%c1_40, %c8_41, %c0_42], %42 {strides = array<i32>} : memref<18x32x64xbf16, #tpu.memory_space<vmem>>, vector<16x16x64xbf16>,
    %c0_43 = arith.constant 0 : index
    %c7_44 = arith.constant 7 : index
    %c0_45 = arith.constant 0 : index
    %44 = vector.load %arg7[%c0_43, %c7_44, %c0_45] : memref<18x32x64xbf16, #tpu.memory_space<vmem>>, vector<16x18x64xbf16>
    %45 = vector.extract_strided_slice %44 {offsets = [0, 0, 0], sizes = [16, 16, 64], strides = [1, 1, 1]} : vector<16x18x64xbf16> to vector<16x16x64xbf16>
    %c0_46 = arith.constant 0 : index
    %c0_47 = arith.constant 0 : index
    %c0_48 = arith.constant 0 : index
    %46 = vector.load %arg8[%c0_46, %c0_47, %c0_48] : memref<16x16x1152xbf16, #tpu.memory_space<vmem>>, vector<16x16x64xbf16>
    tpu.vector_store %arg8[%c0_46, %c0_47, %c0_48], %45 {strides = array<i32>} : memref<16x16x1152xbf16, #tpu.memory_space<vmem>>, vector<16x16x64xbf16>,
    %47 = vector.extract_strided_slice %44 {offsets = [0, 1, 0], sizes = [16, 16, 64], strides = [1, 1, 1]} : vector<16x18x64xbf16> to vector<16x16x64xbf16>
    %c0_49 = arith.constant 0 : index
    %c0_50 = arith.constant 0 : index
    %c128_51 = arith.constant 128 : index
    %48 = vector.load %arg8[%c0_49, %c0_50, %c128_51] : memref<16x16x1152xbf16, #tpu.memory_space<vmem>>, vector<16x16x64xbf16>
    tpu.vector_store %arg8[%c0_49, %c0_50, %c128_51], %47 {strides = array<i32>} : memref<16x16x1152xbf16, #tpu.memory_space<vmem>>, vector<16x16x64xbf16>,
    %49 = vector.extract_strided_slice %44 {offsets = [0, 2, 0], sizes = [16, 16, 64], strides = [1, 1, 1]} : vector<16x18x64xbf16> to vector<16x16x64xbf16>
    %c0_52 = arith.constant 0 : index
    %c0_53 = arith.constant 0 : index
    %c256_54 = arith.constant 256 : index
    %50 = vector.load %arg8[%c0_52, %c0_53, %c256_54] : memref<16x16x1152xbf16, #tpu.memory_space<vmem>>, vector<16x16x64xbf16>
    tpu.vector_store %arg8[%c0_52, %c0_53, %c256_54], %49 {strides = array<i32>} : memref<16x16x1152xbf16, #tpu.memory_space<vmem>>, vector<16x16x64xbf16>,
    %c1_55 = arith.constant 1 : index
    %c7_56 = arith.constant 7 : index
    %c0_57 = arith.constant 0 : index
    %51 = vector.load %arg7[%c1_55, %c7_56, %c0_57] : memref<18x32x64xbf16, #tpu.memory_space<vmem>>, vector<16x18x64xbf16>
    %52 = vector.extract_strided_slice %51 {offsets = [0, 0, 0], sizes = [16, 16, 64], strides = [1, 1, 1]} : vector<16x18x64xbf16> to vector<16x16x64xbf16>
    %c0_58 = arith.constant 0 : index
    %c0_59 = arith.constant 0 : index
    %c384_60 = arith.constant 384 : index
    %53 = vector.load %arg8[%c0_58, %c0_59, %c384_60] : memref<16x16x1152xbf16, #tpu.memory_space<vmem>>, vector<16x16x64xbf16>
    tpu.vector_store %arg8[%c0_58, %c0_59, %c384_60], %52 {strides = array<i32>} : memref<16x16x1152xbf16, #tpu.memory_space<vmem>>, vector<16x16x64xbf16>,
    %54 = vector.extract_strided_slice %51 {offsets = [0, 1, 0], sizes = [16, 16, 64], strides = [1, 1, 1]} : vector<16x18x64xbf16> to vector<16x16x64xbf16>
    %c0_61 = arith.constant 0 : index
    %c0_62 = arith.constant 0 : index
    %c512_63 = arith.constant 512 : index
    %55 = vector.load %arg8[%c0_61, %c0_62, %c512_63] : memref<16x16x1152xbf16, #tpu.memory_space<vmem>>, vector<16x16x64xbf16>
    tpu.vector_store %arg8[%c0_61, %c0_62, %c512_63], %54 {strides = array<i32>} : memref<16x16x1152xbf16, #tpu.memory_space<vmem>>, vector<16x16x64xbf16>,
    %56 = vector.extract_strided_slice %51 {offsets = [0, 2, 0], sizes = [16, 16, 64], strides = [1, 1, 1]} : vector<16x18x64xbf16> to vector<16x16x64xbf16>
    %c0_64 = arith.constant 0 : index
    %c0_65 = arith.constant 0 : index
    %c640_66 = arith.constant 640 : index
    %57 = vector.load %arg8[%c0_64, %c0_65, %c640_66] : memref<16x16x1152xbf16, #tpu.memory_space<vmem>>, vector<16x16x64xbf16>
    tpu.vector_store %arg8[%c0_64, %c0_65, %c640_66], %56 {strides = array<i32>} : memref<16x16x1152xbf16, #tpu.memory_space<vmem>>, vector<16x16x64xbf16>,
    %c2_67 = arith.constant 2 : index
    %c7_68 = arith.constant 7 : index
    %c0_69 = arith.constant 0 : index
    %58 = vector.load %arg7[%c2_67, %c7_68, %c0_69] : memref<18x32x64xbf16, #tpu.memory_space<vmem>>, vector<16x18x64xbf16>
    %59 = vector.extract_strided_slice %58 {offsets = [0, 0, 0], sizes = [16, 16, 64], strides = [1, 1, 1]} : vector<16x18x64xbf16> to vector<16x16x64xbf16>
    %c0_70 = arith.constant 0 : index
    %c0_71 = arith.constant 0 : index
    %c768_72 = arith.constant 768 : index
    %60 = vector.load %arg8[%c0_70, %c0_71, %c768_72] : memref<16x16x1152xbf16, #tpu.memory_space<vmem>>, vector<16x16x64xbf16>
    tpu.vector_store %arg8[%c0_70, %c0_71, %c768_72], %59 {strides = array<i32>} : memref<16x16x1152xbf16, #tpu.memory_space<vmem>>, vector<16x16x64xbf16>,
    %61 = vector.extract_strided_slice %58 {offsets = [0, 1, 0], sizes = [16, 16, 64], strides = [1, 1, 1]} : vector<16x18x64xbf16> to vector<16x16x64xbf16>
    %c0_73 = arith.constant 0 : index
    %c0_74 = arith.constant 0 : index
    %c896_75 = arith.constant 896 : index
    %62 = vector.load %arg8[%c0_73, %c0_74, %c896_75] : memref<16x16x1152xbf16, #tpu.memory_space<vmem>>, vector<16x16x64xbf16>
    tpu.vector_store %arg8[%c0_73, %c0_74, %c896_75], %61 {strides = array<i32>} : memref<16x16x1152xbf16, #tpu.memory_space<vmem>>, vector<16x16x64xbf16>,
    %63 = vector.extract_strided_slice %58 {offsets = [0, 2, 0], sizes = [16, 16, 64], strides = [1, 1, 1]} : vector<16x18x64xbf16> to vector<16x16x64xbf16>
    %c0_76 = arith.constant 0 : index
    %c0_77 = arith.constant 0 : index
    %c1024_78 = arith.constant 1024 : index
    %64 = vector.load %arg8[%c0_76, %c0_77, %c1024_78] : memref<16x16x1152xbf16, #tpu.memory_space<vmem>>, vector<16x16x64xbf16>
    tpu.vector_store %arg8[%c0_76, %c0_77, %c1024_78], %63 {strides = array<i32>} : memref<16x16x1152xbf16, #tpu.memory_space<vmem>>, vector<16x16x64xbf16>,
    %c0_79 = arith.constant 0 : index
    %c0_80 = arith.constant 0 : index
    %c0_81 = arith.constant 0 : index
    %65 = vector.load %arg8[%c0_79, %c0_80, %c0_81] : memref<16x16x1152xbf16, #tpu.memory_space<vmem>>, vector<16x16x1152xbf16>
    %66 = vector.shape_cast %65 : vector<16x16x1152xbf16> to vector<256x1152xbf16>
    %c1_82 = arith.constant 1 : index
    %c0_83 = arith.constant 0 : index
    %c0_84 = arith.constant 0 : index
    %67 = vector.load %arg2[%c1_82, %c0_83, %c0_84] : memref<2x1152x64xbf16, #tpu.memory_space<vmem>>, vector<1x1152x64xbf16>
    %68 = vector.shape_cast %67 : vector<1x1152x64xbf16> to vector<1152x64xbf16>
    %cst_85 = arith.constant dense<0.000000e+00> : vector<256x64xf32>
    %69 = tpu.matmul %66, %68, %cst_85 {dimension_numbers = #tpu.dot_dimension_numbers<[1], [0], [0], [1], [0, 0, 1, 1], [], []>} : vector<256x1152xbf16>, vector<1152x64xbf16>, vector<256x64xf32> -> vector<256x64xf32>
    %c1_86 = arith.constant 1 : index
    %c0_87 = arith.constant 0 : index
    %c0_88 = arith.constant 0 : index
    %70 = vector.load %arg3[%c1_86, %c0_87, %c0_88] : memref<2x1x64xf32, #tpu.memory_space<vmem>>, vector<1x1x64xf32>
    %71 = vector.shape_cast %70 : vector<1x1x64xf32> to vector<1x64xf32>
    %72 = vector.broadcast %71 : vector<1x64xf32> to vector<256x64xf32>
    %73 = arith.addf %69, %72 : vector<256x64xf32>
    %cst_89 = arith.constant 0.000000e+00 : f32
    %74 = vector.broadcast %cst_89 : f32 to vector<256x64xf32>
    %75 = arith.maximumf %73, %74 : vector<256x64xf32>
    %76 = vector.shape_cast %75 : vector<256x64xf32> to vector<16x16x64xf32>
    %77 = arith.truncf %76 : vector<16x16x64xf32> to vector<16x16x64xbf16>
    %c1_90 = arith.constant 1 : index
    %c8_91 = arith.constant 8 : index
    %c0_92 = arith.constant 0 : index
    %78 = vector.load %arg7[%c1_90, %c8_91, %c0_92] : memref<18x32x64xbf16, #tpu.memory_space<vmem>>, vector<16x16x64xbf16>
    tpu.vector_store %arg7[%c1_90, %c8_91, %c0_92], %77 {strides = array<i32>} : memref<18x32x64xbf16, #tpu.memory_space<vmem>>, vector<16x16x64xbf16>,
    %c0_93 = arith.constant 0 : index
    %c7_94 = arith.constant 7 : index
    %c0_95 = arith.constant 0 : index
    %79 = vector.load %arg7[%c0_93, %c7_94, %c0_95] : memref<18x32x64xbf16, #tpu.memory_space<vmem>>, vector<16x18x64xbf16>
    %80 = vector.extract_strided_slice %79 {offsets = [0, 0, 0], sizes = [16, 16, 64], strides = [1, 1, 1]} : vector<16x18x64xbf16> to vector<16x16x64xbf16>
    %c0_96 = arith.constant 0 : index
    %c0_97 = arith.constant 0 : index
    %c0_98 = arith.constant 0 : index
    %81 = vector.load %arg8[%c0_96, %c0_97, %c0_98] : memref<16x16x1152xbf16, #tpu.memory_space<vmem>>, vector<16x16x64xbf16>
    tpu.vector_store %arg8[%c0_96, %c0_97, %c0_98], %80 {strides = array<i32>} : memref<16x16x1152xbf16, #tpu.memory_space<vmem>>, vector<16x16x64xbf16>,
    %82 = vector.extract_strided_slice %79 {offsets = [0, 1, 0], sizes = [16, 16, 64], strides = [1, 1, 1]} : vector<16x18x64xbf16> to vector<16x16x64xbf16>
    %c0_99 = arith.constant 0 : index
    %c0_100 = arith.constant 0 : index
    %c128_101 = arith.constant 128 : index
    %83 = vector.load %arg8[%c0_99, %c0_100, %c128_101] : memref<16x16x1152xbf16, #tpu.memory_space<vmem>>, vector<16x16x64xbf16>
    tpu.vector_store %arg8[%c0_99, %c0_100, %c128_101], %82 {strides = array<i32>} : memref<16x16x1152xbf16, #tpu.memory_space<vmem>>, vector<16x16x64xbf16>,
    %84 = vector.extract_strided_slice %79 {offsets = [0, 2, 0], sizes = [16, 16, 64], strides = [1, 1, 1]} : vector<16x18x64xbf16> to vector<16x16x64xbf16>
    %c0_102 = arith.constant 0 : index
    %c0_103 = arith.constant 0 : index
    %c256_104 = arith.constant 256 : index
    %85 = vector.load %arg8[%c0_102, %c0_103, %c256_104] : memref<16x16x1152xbf16, #tpu.memory_space<vmem>>, vector<16x16x64xbf16>
    tpu.vector_store %arg8[%c0_102, %c0_103, %c256_104], %84 {strides = array<i32>} : memref<16x16x1152xbf16, #tpu.memory_space<vmem>>, vector<16x16x64xbf16>,
    %c1_105 = arith.constant 1 : index
    %c7_106 = arith.constant 7 : index
    %c0_107 = arith.constant 0 : index
    %86 = vector.load %arg7[%c1_105, %c7_106, %c0_107] : memref<18x32x64xbf16, #tpu.memory_space<vmem>>, vector<16x18x64xbf16>
    %87 = vector.extract_strided_slice %86 {offsets = [0, 0, 0], sizes = [16, 16, 64], strides = [1, 1, 1]} : vector<16x18x64xbf16> to vector<16x16x64xbf16>
    %c0_108 = arith.constant 0 : index
    %c0_109 = arith.constant 0 : index
    %c384_110 = arith.constant 384 : index
    %88 = vector.load %arg8[%c0_108, %c0_109, %c384_110] : memref<16x16x1152xbf16, #tpu.memory_space<vmem>>, vector<16x16x64xbf16>
    tpu.vector_store %arg8[%c0_108, %c0_109, %c384_110], %87 {strides = array<i32>} : memref<16x16x1152xbf16, #tpu.memory_space<vmem>>, vector<16x16x64xbf16>,
    %89 = vector.extract_strided_slice %86 {offsets = [0, 1, 0], sizes = [16, 16, 64], strides = [1, 1, 1]} : vector<16x18x64xbf16> to vector<16x16x64xbf16>
    %c0_111 = arith.constant 0 : index
    %c0_112 = arith.constant 0 : index
    %c512_113 = arith.constant 512 : index
    %90 = vector.load %arg8[%c0_111, %c0_112, %c512_113] : memref<16x16x1152xbf16, #tpu.memory_space<vmem>>, vector<16x16x64xbf16>
    tpu.vector_store %arg8[%c0_111, %c0_112, %c512_113], %89 {strides = array<i32>} : memref<16x16x1152xbf16, #tpu.memory_space<vmem>>, vector<16x16x64xbf16>,
    %91 = vector.extract_strided_slice %86 {offsets = [0, 2, 0], sizes = [16, 16, 64], strides = [1, 1, 1]} : vector<16x18x64xbf16> to vector<16x16x64xbf16>
    %c0_114 = arith.constant 0 : index
    %c0_115 = arith.constant 0 : index
    %c640_116 = arith.constant 640 : index
    %92 = vector.load %arg8[%c0_114, %c0_115, %c640_116] : memref<16x16x1152xbf16, #tpu.memory_space<vmem>>, vector<16x16x64xbf16>
    tpu.vector_store %arg8[%c0_114, %c0_115, %c640_116], %91 {strides = array<i32>} : memref<16x16x1152xbf16, #tpu.memory_space<vmem>>, vector<16x16x64xbf16>,
    %c2_117 = arith.constant 2 : index
    %c7_118 = arith.constant 7 : index
    %c0_119 = arith.constant 0 : index
    %93 = vector.load %arg7[%c2_117, %c7_118, %c0_119] : memref<18x32x64xbf16, #tpu.memory_space<vmem>>, vector<16x18x64xbf16>
    %94 = vector.extract_strided_slice %93 {offsets = [0, 0, 0], sizes = [16, 16, 64], strides = [1, 1, 1]} : vector<16x18x64xbf16> to vector<16x16x64xbf16>
    %c0_120 = arith.constant 0 : index
    %c0_121 = arith.constant 0 : index
    %c768_122 = arith.constant 768 : index
    %95 = vector.load %arg8[%c0_120, %c0_121, %c768_122] : memref<16x16x1152xbf16, #tpu.memory_space<vmem>>, vector<16x16x64xbf16>
    tpu.vector_store %arg8[%c0_120, %c0_121, %c768_122], %94 {strides = array<i32>} : memref<16x16x1152xbf16, #tpu.memory_space<vmem>>, vector<16x16x64xbf16>,
    %96 = vector.extract_strided_slice %93 {offsets = [0, 1, 0], sizes = [16, 16, 64], strides = [1, 1, 1]} : vector<16x18x64xbf16> to vector<16x16x64xbf16>
    %c0_123 = arith.constant 0 : index
    %c0_124 = arith.constant 0 : index
    %c896_125 = arith.constant 896 : index
    %97 = vector.load %arg8[%c0_123, %c0_124, %c896_125] : memref<16x16x1152xbf16, #tpu.memory_space<vmem>>, vector<16x16x64xbf16>
    tpu.vector_store %arg8[%c0_123, %c0_124, %c896_125], %96 {strides = array<i32>} : memref<16x16x1152xbf16, #tpu.memory_space<vmem>>, vector<16x16x64xbf16>,
    %98 = vector.extract_strided_slice %93 {offsets = [0, 2, 0], sizes = [16, 16, 64], strides = [1, 1, 1]} : vector<16x18x64xbf16> to vector<16x16x64xbf16>
    %c0_126 = arith.constant 0 : index
    %c0_127 = arith.constant 0 : index
    %c1024_128 = arith.constant 1024 : index
    %99 = vector.load %arg8[%c0_126, %c0_127, %c1024_128] : memref<16x16x1152xbf16, #tpu.memory_space<vmem>>, vector<16x16x64xbf16>
    tpu.vector_store %arg8[%c0_126, %c0_127, %c1024_128], %98 {strides = array<i32>} : memref<16x16x1152xbf16, #tpu.memory_space<vmem>>, vector<16x16x64xbf16>,
    %c0_129 = arith.constant 0 : index
    %c0_130 = arith.constant 0 : index
    %c0_131 = arith.constant 0 : index
    %100 = vector.load %arg8[%c0_129, %c0_130, %c0_131] : memref<16x16x1152xbf16, #tpu.memory_space<vmem>>, vector<16x16x1152xbf16>
    %101 = vector.shape_cast %100 : vector<16x16x1152xbf16> to vector<256x1152xbf16>
    %c0_132 = arith.constant 0 : index
    %c0_133 = arith.constant 0 : index
    %102 = vector.load %arg4[%c0_132, %c0_133] : memref<1152x128xbf16, #tpu.memory_space<vmem>>, vector<1152x128xbf16>
    %cst_134 = arith.constant dense<0.000000e+00> : vector<256x128xf32>
    %103 = tpu.matmul %101, %102, %cst_134 {dimension_numbers = #tpu.dot_dimension_numbers<[1], [0], [0], [1], [0, 0, 1, 1], [], []>} : vector<256x1152xbf16>, vector<1152x128xbf16>, vector<256x128xf32> -> vector<256x128xf32>
    %c0_135 = arith.constant 0 : index
    %c0_136 = arith.constant 0 : index
    %104 = vector.load %arg5[%c0_135, %c0_136] : memref<1x128xf32, #tpu.memory_space<vmem>>, vector<1x128xf32>
    %105 = vector.broadcast %104 : vector<1x128xf32> to vector<256x128xf32>
    %106 = arith.addf %103, %105 : vector<256x128xf32>
    %107 = vector.shape_cast %106 : vector<256x128xf32> to vector<16x16x128xf32>
    %c0_137 = arith.constant 0 : index
    %c0_138 = arith.constant 0 : index
    %c0_139 = arith.constant 0 : index
    %c0_140 = arith.constant 0 : index
    %108 = vector.load %arg6[%c0_137, %c0_138, %c0_139, %c0_140] : memref<1x16x16x128xf32, #tpu.memory_space<vmem>>, vector<1x16x16x128xf32>
    %109 = vector.shape_cast %108 : vector<1x16x16x128xf32> to vector<16x16x128xf32>
    %110 = vector.shape_cast %107 : vector<16x16x128xf32> to vector<1x16x16x128xf32>
    tpu.vector_store %arg6[%c0_137, %c0_138, %c0_139, %c0_140], %110 {strides = array<i32>} : memref<1x16x16x128xf32, #tpu.memory_space<vmem>>, vector<1x16x16x128xf32>,
    return
  }
  func.func @transform_0(%arg0: i32) -> (i32, i32, i32) {
    %c0_i32 = arith.constant 0 : i32
    %c0_i32_0 = arith.constant 0 : i32
    %c0_i32_1 = arith.constant 0 : i32
    return %arg0, %c0_i32, %c0_i32_0 : i32, i32, i32
  }
  func.func @transform_1(%arg0: i32) -> (i32, i32, i32) {
    %c0_i32 = arith.constant 0 : i32
    %c0_i32_0 = arith.constant 0 : i32
    %c0_i32_1 = arith.constant 0 : i32
    %c0_i32_2 = arith.constant 0 : i32
    return %c0_i32, %c0_i32_0, %c0_i32_1 : i32, i32, i32
  }
  func.func @transform_2(%arg0: i32) -> (i32, i32, i32) {
    %c0_i32 = arith.constant 0 : i32
    %c0_i32_0 = arith.constant 0 : i32
    %c0_i32_1 = arith.constant 0 : i32
    %c0_i32_2 = arith.constant 0 : i32
    return %c0_i32, %c0_i32_0, %c0_i32_1 : i32, i32, i32
  }
  func.func @transform_3(%arg0: i32) -> (i32, i32) {
    %c0_i32 = arith.constant 0 : i32
    %c0_i32_0 = arith.constant 0 : i32
    %c0_i32_1 = arith.constant 0 : i32
    return %c0_i32, %c0_i32_0 : i32, i32
  }
  func.func @transform_4(%arg0: i32) -> (i32, i32) {
    %c0_i32 = arith.constant 0 : i32
    %c0_i32_0 = arith.constant 0 : i32
    %c0_i32_1 = arith.constant 0 : i32
    return %c0_i32, %c0_i32_0 : i32, i32
  }
  func.func @transform_5(%arg0: i32) -> (i32, i32, i32, i32) {
    %c0_i32 = arith.constant 0 : i32
    %c0_i32_0 = arith.constant 0 : i32
    %c0_i32_1 = arith.constant 0 : i32
    %c0_i32_2 = arith.constant 0 : i32
    return %arg0, %c0_i32, %c0_i32_0, %c0_i32_1 : i32, i32, i32, i32
  }
}

</mosaic_0001>

<llo_original>
// kernel: tpu_custom_call.1
$region0: #{tpu_custom_call.1}
  #allocation0 [shape = 'u32[]', space=smem, size = 0x4, offset = 0x4, fixed_abs, tag = 'smem constant byte address 0x4 - core index']
  #allocation1 [shape = 'u32[144,128]{1,0:T(1,128)}', space=vmem, size = 0x12000, scoped, tag = 'internal scratch']
  #allocation2 [shape = 'bf16[18,32,64]{2,1,0:T(16,128)(2,1)}', space=vmem, size = 0x24000, scoped, tag = 'scratch operand']
  #allocation3 [shape = 'bf16[16,16,1152]{2,1,0:T(16,128)(2,1)}', space=vmem, size = 0x90000, scoped, tag = 'scratch operand']
  %s0 = inlined_call_operand.hbm [shape: f32[2,32,256], index: 0, kind: input, shape index: {}]
  %s1 = inlined_call_operand.hbm [shape: bf16[2,1152,64], index: 1, kind: input, shape index: {}]
  %s2 = inlined_call_operand.hbm [shape: f32[2,1,64], index: 2, kind: input, shape index: {}]
  %s3 = inlined_call_operand.hbm [shape: bf16[1152,128], index: 3, kind: input, shape index: {}]
  %s4 = inlined_call_operand.hbm [shape: f32[1,128], index: 4, kind: input, shape index: {}]
  %s5 = inlined_call_operand.hbm [shape: f32[2,16,16,128], index: 5, kind: output, shape index: {}]
  %s6 = sld [smem:[#allocation0]]
  $region77: #{tpu_custom_call.1} parent=0
    _
  %s8 = ssub.s32 1, %s6
  %s9 = scalar_select 0, %s8, %s6
  $region1: #{tpu_custom_call.1} parent=0
    #allocation4 [shape = 'u8[65536]{0}', space=vmem, size = 0x10000, scoped, tag = 'input window, operand 0']
    #allocation5 [shape = 's32[2]{0}', space=sflag, size = 0x8, scoped, tag = 'scoped memory for tpu_custom_call.1']
    #allocation6 [shape = 's32[2]{0}', space=sflag, size = 0x8, scoped, tag = 'scoped memory for tpu_custom_call.1']
    #allocation7 [shape = 'u8[589824]{0}', space=vmem, size = 0x90000, scoped, tag = 'input window, operand 1, single buffered']
    #allocation8 [shape = 's32[1]{0}', space=sflag, size = 0x4, scoped, tag = 'scoped memory for tpu_custom_call.1']
    #allocation9 [shape = 'u8[1024]{0}', space=vmem, size = 0x400, scoped, tag = 'input window, operand 2, single buffered']
    #allocation10 [shape = 'u8[294912]{0}', space=vmem, size = 0x48000, scoped, tag = 'input window, operand 3, single buffered']
    #allocation11 [shape = 's32[1]{0}', space=sflag, size = 0x4, scoped, tag = 'scoped memory for tpu_custom_call.1']
    #allocation12 [shape = 'u8[512]{0}', space=vmem, size = 0x400, scoped, tag = 'input window, operand 4, single buffered']
    #allocation13 [shape = 'u8[262144]{0}', space=vmem, size = 0x40000, scoped, tag = 'output window, operand 0']
    %10 = vsyncpa [#allocation5], 0
    %s11 = scalar_lea.sflag [#allocation5], 1
    %12 = vsyncpa %s11, 0
    %13 = vsyncpa [#allocation8], 0
    %14 = vsyncpa [#allocation11], 0
    %15 = vsyncpa [#allocation6], 0
    %s16 = scalar_lea.sflag [#allocation6], 1
    %17 = vsyncpa %s16, 0
    loop: start=0, step=1, limit=4
    $region2: #{tpu_custom_call.1} parent=1 // loop_pre_header
      _
    $region3: #{tpu_custom_call.1} parent=1 // loop_header
      %s19 = sphi 0, %s23
      %p20 = scmp.ge.s32.totalorder %s19, 4
      %s29 = sphi 0, %s31
      %s32 = sphi 0, %s29
      %s33 = sphi 0, %s32
      %s49 = sphi 0, %s33
      %s53 = sphi 0, %s53
      %s55 = sphi 0, %s53
      %s56 = sphi 0, %s55
      %s70 = sphi 0, %s56
      %s74 = sphi 0, %s74
      %s76 = sphi 0, %s74
      %s77 = sphi 0, %s76
      %s91 = sphi 0, %s77
      %s95 = sphi 0, %s95
      %s97 = sphi 0, %s95
      %s98 = sphi 0, %s97
      %s112 = sphi 0, %s98
      %s116 = sphi 0, %s116
      %s118 = sphi 0, %s116
      %s119 = sphi 0, %s118
      %s133 = sphi 0, %s119
      %s139 = sphi 0, %s141
      %s142 = sphi 0, %s139
      %s143 = sphi 0, %s142
      %s159 = sphi 0, %s143
    $region4: #{tpu_custom_call.1} parent=1 // loop_header_branch
      %22 = sbr.rel (%p20) target = $region8
    $region5: #{tpu_custom_call.1} parent=1 // loop_body
      %s24 = ssub.s32 %s19, 1
      %s25 = ssub.s32 %s19, 2
      %s26 = sadd.s32 %s19, 1
      %s27 = ssub.s32 %s19, %s26
      %p28 = scmp.eq.s32.totalorder %s27, 0
      %s30 = sadd.s32 %s29, 1
      %s31 = scalar_select %p28, %s29, %s30
      %p34 = pneg %p28
      %p35 = scmp.eq.s32.totalorder %s19, 1
      %p36 = por %p34, %p35
      %p37 = scmp.ne.s32.totalorder %s29, %s32
      %p38 = scmp.eq.s32.totalorder %s19, 0
      %p39 = por %p37, %p38
      %p40 = scmp.ne.s32.totalorder %s29, %s32
      %p41 = scmp.eq.s32.totalorder %s24, 1
      %p42 = por %p40, %p41
      %p43 = scmp.ne.s32.totalorder %s32, %s33
      %p44 = scmp.eq.s32.totalorder %s24, 0
      %p45 = por %p43, %p44
      %p46 = scmp.ne.s32.totalorder %s32, %s33
      %p47 = scmp.eq.s32.totalorder %s25, 1
      %p48 = por %p46, %p47
      %p50 = scmp.ne.s32.totalorder %s33, %s49
      %p51 = scmp.eq.s32.totalorder %s25, 0
      %p52 = por %p50, %p51
      %s54 = sadd.s32 %s53, 1
      %p57 = scmp.eq.s32.totalorder %s19, 1
      %p58 = scmp.ne.s32.totalorder %s53, %s55
      %p59 = scmp.eq.s32.totalorder %s19, 0
      %p60 = por %p58, %p59
      %p61 = scmp.ne.s32.totalorder %s53, %s55
      %p62 = scmp.eq.s32.totalorder %s24, 1
      %p63 = por %p61, %p62
      %p64 = scmp.ne.s32.totalorder %s55, %s56
      %p65 = scmp.eq.s32.totalorder %s24, 0
      %p66 = por %p64, %p65
      %p67 = scmp.ne.s32.totalorder %s55, %s56
      %p68 = scmp.eq.s32.totalorder %s25, 1
      %p69 = por %p67, %p68
      %p71 = scmp.ne.s32.totalorder %s56, %s70
      %p72 = scmp.eq.s32.totalorder %s25, 0
      %p73 = por %p71, %p72
      %s75 = sadd.s32 %s74, 1
      %p78 = scmp.eq.s32.totalorder %s19, 1
      %p79 = scmp.ne.s32.totalorder %s74, %s76
      %p80 = scmp.eq.s32.totalorder %s19, 0
      %p81 = por %p79, %p80
      %p82 = scmp.ne.s32.totalorder %s74, %s76
      %p83 = scmp.eq.s32.totalorder %s24, 1
      %p84 = por %p82, %p83
      %p85 = scmp.ne.s32.totalorder %s76, %s77
      %p86 = scmp.eq.s32.totalorder %s24, 0
      %p87 = por %p85, %p86
      %p88 = scmp.ne.s32.totalorder %s76, %s77
      %p89 = scmp.eq.s32.totalorder %s25, 1
      %p90 = por %p88, %p89
      %p92 = scmp.ne.s32.totalorder %s77, %s91
      %p93 = scmp.eq.s32.totalorder %s25, 0
      %p94 = por %p92, %p93
      %s96 = sadd.s32 %s95, 1
      %p99 = scmp.eq.s32.totalorder %s19, 1
      %p100 = scmp.ne.s32.totalorder %s95, %s97
      %p101 = scmp.eq.s32.totalorder %s19, 0
      %p102 = por %p100, %p101
      %p103 = scmp.ne.s32.totalorder %s95, %s97
      %p104 = scmp.eq.s32.totalorder %s24, 1
      %p105 = por %p103, %p104
      %p106 = scmp.ne.s32.totalorder %s97, %s98
      %p107 = scmp.eq.s32.totalorder %s24, 0
      %p108 = por %p106, %p107
      %p109 = scmp.ne.s32.totalorder %s97, %s98
      %p110 = scmp.eq.s32.totalorder %s25, 1
      %p111 = por %p109, %p110
      %p113 = scmp.ne.s32.totalorder %s98, %s112
      %p114 = scmp.eq.s32.totalorder %s25, 0
      %p115 = por %p113, %p114
      %s117 = sadd.s32 %s116, 1
      %p120 = scmp.eq.s32.totalorder %s19, 1
      %p121 = scmp.ne.s32.totalorder %s116, %s118
      %p122 = scmp.eq.s32.totalorder %s19, 0
      %p123 = por %p121, %p122
      %p124 = scmp.ne.s32.totalorder %s116, %s118
      %p125 = scmp.eq.s32.totalorder %s24, 1
      %p126 = por %p124, %p125
      %p127 = scmp.ne.s32.totalorder %s118, %s119
      %p128 = scmp.eq.s32.totalorder %s24, 0
      %p129 = por %p127, %p128
      %p130 = scmp.ne.s32.totalorder %s118, %s119
      %p131 = scmp.eq.s32.totalorder %s25, 1
      %p132 = por %p130, %p131
      %p134 = scmp.ne.s32.totalorder %s119, %s133
      %p135 = scmp.eq.s32.totalorder %s25, 0
      %p136 = por %p134, %p135
      %s137 = ssub.s32 %s19, %s26
      %p138 = scmp.eq.s32.totalorder %s137, 0
      %s140 = sadd.s32 %s139, 1
      %s141 = scalar_select %p138, %s139, %s140
      %p144 = pneg %p138
      %p145 = scmp.eq.s32.totalorder %s19, 1
      %p146 = por %p144, %p145
      %p147 = scmp.ne.s32.totalorder %s139, %s142
      %p148 = scmp.eq.s32.totalorder %s19, 0
      %p149 = por %p147, %p148
      %p150 = scmp.ne.s32.totalorder %s139, %s142
      %p151 = scmp.eq.s32.totalorder %s24, 1
      %p152 = por %p150, %p151
      %p153 = scmp.ne.s32.totalorder %s142, %s143
      %p154 = scmp.eq.s32.totalorder %s24, 0
      %p155 = por %p153, %p154
      %p156 = scmp.ne.s32.totalorder %s142, %s143
      %p157 = scmp.eq.s32.totalorder %s25, 1
      %p158 = por %p156, %p157
      %p160 = scmp.ne.s32.totalorder %s143, %s159
      %p161 = scmp.eq.s32.totalorder %s25, 0
      %p162 = por %p160, %p161
      %p163 = scmp.le.s32.totalorder 1, %s19
      %p164 = scmp.lt.s32.totalorder %s19, 3
      %p165 = pnand %p163, %p164
      %p166 = pneg %p165
      // Predicated region
      $region9: #{tpu_custom_call.1} parent=5 // pred_check
        _
      $region10: #{tpu_custom_call.1} parent=5 // pred_check_branch
        %168 = sbr.rel (%p165) target = $region12
      $region11: #{tpu_custom_call.1} parent=5 // pred_region
        %s169 = ssub.s32 %s19, 1
        // Predicated region
        $region13: #{tpu_custom_call.1} parent=11 // pred_check
          %p170 = pneg %p66
        $region14: #{tpu_custom_call.1} parent=11 // pred_check_branch
          %172 = sbr.rel (%p170) target = $region16
        $region15: #{tpu_custom_call.1} parent=11 // pred_region
          %s174 = ssub.s32 18432, 18432
          %175 = vsyncadd [#allocation8], %s174
          %s176 = sshll.u32 [#allocation7], 4
          %s177 = int_to_ptr.vmem [resolvable:$true] %s176
          %182 = dma.hbm_to_vmem [thread:$0]  %s1, 18432, %s177, [#allocation8], 64, 64, 4
        $region16: #{tpu_custom_call.1} parent=11 // pred_fallthru
          _
        // Predicated region
        $region17: #{tpu_custom_call.1} parent=11 // pred_check
          %p183 = pneg %p87
        $region18: #{tpu_custom_call.1} parent=11 // pred_check_branch
          %185 = sbr.rel (%p183) target = $region20
        $region19: #{tpu_custom_call.1} parent=11 // pred_region
          %s187 = ssub.s32 32, 32
          %188 = vsyncadd [#allocation8], %s187
          %s189 = sshll.u32 [#allocation9], 4
          %s190 = int_to_ptr.vmem [resolvable:$true] %s189
          %195 = dma.hbm_to_vmem [thread:$0]  %s2, 32, %s190, [#allocation8], 16, 16, 1
        $region20: #{tpu_custom_call.1} parent=11 // pred_fallthru
          _
        // Predicated region
        $region21: #{tpu_custom_call.1} parent=11 // pred_check
          %p196 = pneg %p108
        $region22: #{tpu_custom_call.1} parent=11 // pred_check_branch
          %198 = sbr.rel (%p196) target = $region24
        $region23: #{tpu_custom_call.1} parent=11 // pred_region
          %s200 = ssub.s32 9216, 9216
          %201 = vsyncadd [#allocation11], %s200
          %s202 = sshll.u32 [#allocation10], 4
          %s203 = int_to_ptr.vmem [resolvable:$true] %s202
          %208 = dma.hbm_to_vmem [thread:$0]  %s3, 9216, %s203, [#allocation11], 64, 64, 4
        $region24: #{tpu_custom_call.1} parent=11 // pred_fallthru
          _
        // Predicated region
        $region25: #{tpu_custom_call.1} parent=11 // pred_check
          %p209 = pneg %p129
        $region26: #{tpu_custom_call.1} parent=11 // pred_check_branch
          %211 = sbr.rel (%p209) target = $region28
        $region27: #{tpu_custom_call.1} parent=11 // pred_region
          %s213 = ssub.s32 16, 16
          %214 = vsyncadd [#allocation11], %s213
          %s216 = sshll.u32 [#allocation12], 4
          %s217 = int_to_ptr.vmem [resolvable:$true] %s216
          %219 = dma.hbm_to_vmem [thread:$0]  %s4, 16, %s217, [#allocation11]
        $region28: #{tpu_custom_call.1} parent=11 // pred_fallthru
          _
      $region12: #{tpu_custom_call.1} parent=5 // pred_fallthru
        _
      %p220 = scmp.lt.s32.totalorder %s19, 2
      // Predicated region
      $region29: #{tpu_custom_call.1} parent=5 // pred_check
        %p221 = pneg %p220
      $region30: #{tpu_custom_call.1} parent=5 // pred_check_branch
        %223 = sbr.rel (%p221) target = $region32
      $region31: #{tpu_custom_call.1} parent=5 // pred_region
        // Predicated region
        $region33: #{tpu_custom_call.1} parent=31 // pred_check
          %p224 = pneg %p39
        $region34: #{tpu_custom_call.1} parent=31 // pred_check_branch
          %226 = sbr.rel (%p224) target = $region36
        $region35: #{tpu_custom_call.1} parent=31 // pred_region
          %s227 = sand.u32 %s29, 1
          %s228 = scalar_lea.sflag [#allocation5], %s227
          %s229 = sand.u32 %s29, 1
          %s230 = smul.addr %s229, 64
          %s231 = scalar_lea.vmem [#allocation4], %s230
          %s233 = ssub.s32 1024, 1024
          %234 = vsyncadd %s228, %s233
          %s235 = smul.addr %s19, 8
          %s236 = smul.addr %s235, 128
          %s237 = scalar_lea.hbm %s0, %s236
          %s238 = sshll.u32 %s231, 4
          %s239 = int_to_ptr.vmem [resolvable:$true] %s238
          %244 = dma.hbm_to_vmem [thread:$0]  %s237, 1024, %s239, %s228, 256, 256, 16
        $region36: #{tpu_custom_call.1} parent=31 // pred_fallthru
          _
      $region32: #{tpu_custom_call.1} parent=5 // pred_fallthru
        _
      %p245 = scmp.le.s32.totalorder 1, %s19
      %p246 = scmp.lt.s32.totalorder %s19, 3
      %p247 = pnand %p245, %p246
      %p248 = pneg %p247
      // Predicated region
      $region37: #{tpu_custom_call.1} parent=5 // pred_check
        _
      $region38: #{tpu_custom_call.1} parent=5 // pred_check_branch
        %250 = sbr.rel (%p247) target = $region40
      $region39: #{tpu_custom_call.1} parent=5 // pred_region
        %s251 = ssub.s32 %s19, 1
        %s252 = sand.u32 %s32, 1
        %s253 = scalar_lea.sflag [#allocation5], %s252
        %s254 = sand.u32 %s32, 1
        %s255 = smul.addr %s254, 64
        %s256 = scalar_lea.vmem [#allocation4], %s255
        // Predicated region
        $region41: #{tpu_custom_call.1} parent=39 // pred_check
          %p257 = pneg %p45
        $region42: #{tpu_custom_call.1} parent=39 // pred_check_branch
          %259 = sbr.rel (%p257) target = $region44
        $region43: #{tpu_custom_call.1} parent=39 // pred_region
          %260 = dma.done %s253, 1024
        $region44: #{tpu_custom_call.1} parent=39 // pred_fallthru
          _
        // Predicated region
        $region45: #{tpu_custom_call.1} parent=39 // pred_check
          %p261 = pneg %p66
        $region46: #{tpu_custom_call.1} parent=39 // pred_check_branch
          %263 = sbr.rel (%p261) target = $region48
        $region47: #{tpu_custom_call.1} parent=39 // pred_region
          %264 = dma.done [#allocation8], 18432
        $region48: #{tpu_custom_call.1} parent=39 // pred_fallthru
          _
        // Predicated region
        $region49: #{tpu_custom_call.1} parent=39 // pred_check
          %p265 = pneg %p87
        $region50: #{tpu_custom_call.1} parent=39 // pred_check_branch
          %267 = sbr.rel (%p265) target = $region52
        $region51: #{tpu_custom_call.1} parent=39 // pred_region
          %268 = dma.done [#allocation8], 32
        $region52: #{tpu_custom_call.1} parent=39 // pred_fallthru
          _
        // Predicated region
        $region53: #{tpu_custom_call.1} parent=39 // pred_check
          %p269 = pneg %p108
        $region54: #{tpu_custom_call.1} parent=39 // pred_check_branch
          %271 = sbr.rel (%p269) target = $region56
        $region55: #{tpu_custom_call.1} parent=39 // pred_region
          %272 = dma.done [#allocation11], 9216
        $region56: #{tpu_custom_call.1} parent=39 // pred_fallthru
          _
        // Predicated region
        $region57: #{tpu_custom_call.1} parent=39 // pred_check
          %p273 = pneg %p129
        $region58: #{tpu_custom_call.1} parent=39 // pred_check_branch
          %275 = sbr.rel (%p273) target = $region60
        $region59: #{tpu_custom_call.1} parent=39 // pred_region
          %276 = dma.done [#allocation11], 16
        $region60: #{tpu_custom_call.1} parent=39 // pred_fallthru
          _
        %s277 = sand.u32 %s32, 1
        %s278 = scalar_lea.sflag [#allocation5], %s277
        %s279 = sand.u32 %s32, 1
        %s280 = smul.addr %s279, 64
        %s281 = scalar_lea.vmem [#allocation4], %s280
        %p282 = pneg %p45
        %p283 = pneg %p42
        %p284 = pneg %p66
        %p285 = pneg %p63
        %p286 = pneg %p87
        %p287 = pneg %p84
        %p288 = pneg %p108
        %p289 = pneg %p105
        %p290 = pneg %p129
        %p291 = pneg %p126
        %p292 = pneg %p155
        %p293 = pneg %p152
        %s294 = sand.u32 %s142, 1
        %s295 = scalar_lea.sflag [#allocation6], %s294
        %s296 = sand.u32 %s142, 1
        %s297 = smul.addr %s296, 256
        %s298 = scalar_lea.vmem [#allocation13], %s297
        %p300 = scmp.eq.s32.totalorder %s24, 0
        // Predicated region
        $region61: #{tpu_custom_call.1} parent=39 // pred_check
          %p301 = pneg %p300
        $region62: #{tpu_custom_call.1} parent=39 // pred_check_branch
          %303 = sbr.rel (%p301) target = $region64
        $region63: #{tpu_custom_call.1} parent=39 // pred_region
          %vm304 = vcmask 523264
          %305 = vst.msk [vmem:[#allocation2] sm:$0xff] %vm304, 0
          %306 = vst.msk [vmem:[#allocation2 + $0x8] sm:$0xff] %vm304, 0
          %307 = vst.msk [vmem:[#allocation2 + $0x10] sm:$0xff] %vm304, 0
          %308 = vst.msk [vmem:[#allocation2 + $0x18] sm:$0xff] %vm304, 0
          %309 = vst.msk [vmem:[#allocation2 + $0x20] sm:$0xff] %vm304, 0
          %310 = vst.msk [vmem:[#allocation2 + $0x28] sm:$0xff] %vm304, 0
          %311 = vst.msk [vmem:[#allocation2 + $0x30] sm:$0xff] %vm304, 0
          %312 = vst.msk [vmem:[#allocation2 + $0x38] sm:$0xff] %vm304, 0
          %313 = vst.msk [vmem:[#allocation2 + $0x40] sm:$0xff] %vm304, 0
          %314 = vst.msk [vmem:[#allocation2 + $0x48] sm:$0xff] %vm304, 0
          %315 = vst.msk [vmem:[#allocation2 + $0x50] sm:$0xff] %vm304, 0
          %316 = vst.msk [vmem:[#allocation2 + $0x58] sm:$0xff] %vm304, 0
          %317 = vst.msk [vmem:[#allocation2 + $0x60] sm:$0xff] %vm304, 0
          %318 = vst.msk [vmem:[#allocation2 + $0x68] sm:$0xff] %vm304, 0
          %319 = vst.msk [vmem:[#allocation2 + $0x70] sm:$0xff] %vm304, 0
          %320 = vst.msk [vmem:[#allocation2 + $0x78] sm:$0xff] %vm304, 0
          %321 = vst.msk [vmem:[#allocation2 + $0x80] sm:$0xff] %vm304, 0
          %322 = vst.msk [vmem:[#allocation2 + $0x88] sm:$0xff] %vm304, 0
          %323 = vst.msk [vmem:[#allocation2 + $0x90] sm:$0xff] %vm304, 0
          %324 = vst.msk [vmem:[#allocation2 + $0x98] sm:$0xff] %vm304, 0
          %325 = vst.msk [vmem:[#allocation2 + $0xa0] sm:$0xff] %vm304, 0
          %326 = vst.msk [vmem:[#allocation2 + $0xa8] sm:$0xff] %vm304, 0
          %327 = vst.msk [vmem:[#allocation2 + $0xb0] sm:$0xff] %vm304, 0
          %328 = vst.msk [vmem:[#allocation2 + $0xb8] sm:$0xff] %vm304, 0
          %329 = vst.msk [vmem:[#allocation2 + $0xc0] sm:$0xff] %vm304, 0
          %330 = vst.msk [vmem:[#allocation2 + $0xc8] sm:$0xff] %vm304, 0
          %331 = vst.msk [vmem:[#allocation2 + $0xd0] sm:$0xff] %vm304, 0
          %332 = vst.msk [vmem:[#allocation2 + $0xd8] sm:$0xff] %vm304, 0
          %333 = vst.msk [vmem:[#allocation2 + $0xe0] sm:$0xff] %vm304, 0
          %334 = vst.msk [vmem:[#allocation2 + $0xe8] sm:$0xff] %vm304, 0
          %335 = vst.msk [vmem:[#allocation2 + $0xf0] sm:$0xff] %vm304, 0
          %336 = vst.msk [vmem:[#allocation2 + $0xf8] sm:$0xff] %vm304, 0
          %337 = vst.msk [vmem:[#allocation2 + $0x100] sm:$0xff] %vm304, 0
          %338 = vst.msk [vmem:[#allocation2 + $0x108] sm:$0xff] %vm304, 0
          %339 = vst.msk [vmem:[#allocation2 + $0x110] sm:$0xff] %vm304, 0
          %340 = vst.msk [vmem:[#allocation2 + $0x118] sm:$0xff] %vm304, 0
          %341 = vst [vmem:[#allocation3] sm:$0xff] 0
          %342 = vst [vmem:[#allocation3 + $0x8] sm:$0xff] 0
          %343 = vst [vmem:[#allocation3 + $0x10] sm:$0xff] 0
          %344 = vst [vmem:[#allocation3 + $0x18] sm:$0xff] 0
          %345 = vst [vmem:[#allocation3 + $0x20] sm:$0xff] 0
          %346 = vst [vmem:[#allocation3 + $0x28] sm:$0xff] 0
          %347 = vst [vmem:[#allocation3 + $0x30] sm:$0xff] 0
          %348 = vst [vmem:[#allocation3 + $0x38] sm:$0xff] 0
          %349 = vst [vmem:[#allocation3 + $0x40] sm:$0xff] 0
          %350 = vst [vmem:[#allocation3 + $0x48] sm:$0xff] 0
          %351 = vst [vmem:[#allocation3 + $0x50] sm:$0xff] 0
          %352 = vst [vmem:[#allocation3 + $0x58] sm:$0xff] 0
          %353 = vst [vmem:[#allocation3 + $0x60] sm:$0xff] 0
          %354 = vst [vmem:[#allocation3 + $0x68] sm:$0xff] 0
          %355 = vst [vmem:[#allocation3 + $0x70] sm:$0xff] 0
          %356 = vst [vmem:[#allocation3 + $0x78] sm:$0xff] 0
          %357 = vst [vmem:[#allocation3 + $0x80] sm:$0xff] 0
          %358 = vst [vmem:[#allocation3 + $0x88] sm:$0xff] 0
          %359 = vst [vmem:[#allocation3 + $0x90] sm:$0xff] 0
          %360 = vst [vmem:[#allocation3 + $0x98] sm:$0xff] 0
          %361 = vst [vmem:[#allocation3 + $0xa0] sm:$0xff] 0
          %362 = vst [vmem:[#allocation3 + $0xa8] sm:$0xff] 0
          %363 = vst [vmem:[#allocation3 + $0xb0] sm:$0xff] 0
          %364 = vst [vmem:[#allocation3 + $0xb8] sm:$0xff] 0
          %365 = vst [vmem:[#allocation3 + $0xc0] sm:$0xff] 0
          %366 = vst [vmem:[#allocation3 + $0xc8] sm:$0xff] 0
          %367 = vst [vmem:[#allocation3 + $0xd0] sm:$0xff] 0
          %368 = vst [vmem:[#allocation3 + $0xd8] sm:$0xff] 0
          %369 = vst [vmem:[#allocation3 + $0xe0] sm:$0xff] 0
          %370 = vst [vmem:[#allocation3 + $0xe8] sm:$0xff] 0
          %371 = vst [vmem:[#allocation3 + $0xf0] sm:$0xff] 0
          %372 = vst [vmem:[#allocation3 + $0xf8] sm:$0xff] 0
          %373 = vst [vmem:[#allocation3 + $0x100] sm:$0xff] 0
          %374 = vst [vmem:[#allocation3 + $0x108] sm:$0xff] 0
          %375 = vst [vmem:[#allocation3 + $0x110] sm:$0xff] 0
          %376 = vst [vmem:[#allocation3 + $0x118] sm:$0xff] 0
          %377 = vst [vmem:[#allocation3 + $0x120] sm:$0xff] 0
          %378 = vst [vmem:[#allocation3 + $0x128] sm:$0xff] 0
          %379 = vst [vmem:[#allocation3 + $0x130] sm:$0xff] 0
          %380 = vst [vmem:[#allocation3 + $0x138] sm:$0xff] 0
          %381 = vst [vmem:[#allocation3 + $0x140] sm:$0xff] 0
          %382 = vst [vmem:[#allocation3 + $0x148] sm:$0xff] 0
          %383 = vst [vmem:[#allocation3 + $0x150] sm:$0xff] 0
          %384 = vst [vmem:[#allocation3 + $0x158] sm:$0xff] 0
          %385 = vst [vmem:[#allocation3 + $0x160] sm:$0xff] 0
          %386 = vst [vmem:[#allocation3 + $0x168] sm:$0xff] 0
          %387 = vst [vmem:[#allocation3 + $0x170] sm:$0xff] 0
          %388 = vst [vmem:[#allocation3 + $0x178] sm:$0xff] 0
          %389 = vst [vmem:[#allocation3 + $0x180] sm:$0xff] 0
          %390 = vst [vmem:[#allocation3 + $0x188] sm:$0xff] 0
          %391 = vst [vmem:[#allocation3 + $0x190] sm:$0xff] 0
          %392 = vst [vmem:[#allocation3 + $0x198] sm:$0xff] 0
          %393 = vst [vmem:[#allocation3 + $0x1a0] sm:$0xff] 0
          %394 = vst [vmem:[#allocation3 + $0x1a8] sm:$0xff] 0
          %395 = vst [vmem:[#allocation3 + $0x1b0] sm:$0xff] 0
          %396 = vst [vmem:[#allocation3 + $0x1b8] sm:$0xff] 0
          %397 = vst [vmem:[#allocation3 + $0x1c0] sm:$0xff] 0
          %398 = vst [vmem:[#allocation3 + $0x1c8] sm:$0xff] 0
          %399 = vst [vmem:[#allocation3 + $0x1d0] sm:$0xff] 0
          %400 = vst [vmem:[#allocation3 + $0x1d8] sm:$0xff] 0
          %401 = vst [vmem:[#allocation3 + $0x1e0] sm:$0xff] 0
          %402 = vst [vmem:[#allocation3 + $0x1e8] sm:$0xff] 0
          %403 = vst [vmem:[#allocation3 + $0x1f0] sm:$0xff] 0
          %404 = vst [vmem:[#allocation3 + $0x1f8] sm:$0xff] 0
          %405 = vst [vmem:[#allocation3 + $0x200] sm:$0xff] 0
          %406 = vst [vmem:[#allocation3 + $0x208] sm:$0xff] 0
          %407 = vst [vmem:[#allocation3 + $0x210] sm:$0xff] 0
          %408 = vst [vmem:[#allocation3 + $0x218] sm:$0xff] 0
          %409 = vst [vmem:[#allocation3 + $0x220] sm:$0xff] 0
          %410 = vst [vmem:[#allocation3 + $0x228] sm:$0xff] 0
          %411 = vst [vmem:[#allocation3 + $0x230] sm:$0xff] 0
          %412 = vst [vmem:[#allocation3 + $0x238] sm:$0xff] 0
          %413 = vst [vmem:[#allocation3 + $0x240] sm:$0xff] 0
          %414 = vst [vmem:[#allocation3 + $0x248] sm:$0xff] 0
          %415 = vst [vmem:[#allocation3 + $0x250] sm:$0xff] 0
          %416 = vst [vmem:[#allocation3 + $0x258] sm:$0xff] 0
          %417 = vst [vmem:[#allocation3 + $0x260] sm:$0xff] 0
          %418 = vst [vmem:[#allocation3 + $0x268] sm:$0xff] 0
          %419 = vst [vmem:[#allocation3 + $0x270] sm:$0xff] 0
          %420 = vst [vmem:[#allocation3 + $0x278] sm:$0xff] 0
          %421 = vst [vmem:[#allocation3 + $0x280] sm:$0xff] 0
          %422 = vst [vmem:[#allocation3 + $0x288] sm:$0xff] 0
          %423 = vst [vmem:[#allocation3 + $0x290] sm:$0xff] 0
          %424 = vst [vmem:[#allocation3 + $0x298] sm:$0xff] 0
          %425 = vst [vmem:[#allocation3 + $0x2a0] sm:$0xff] 0
          %426 = vst [vmem:[#allocation3 + $0x2a8] sm:$0xff] 0
          %427 = vst [vmem:[#allocation3 + $0x2b0] sm:$0xff] 0
          %428 = vst [vmem:[#allocation3 + $0x2b8] sm:$0xff] 0
          %429 = vst [vmem:[#allocation3 + $0x2c0] sm:$0xff] 0
          %430 = vst [vmem:[#allocation3 + $0x2c8] sm:$0xff] 0
          %431 = vst [vmem:[#allocation3 + $0x2d0] sm:$0xff] 0
          %432 = vst [vmem:[#allocation3 + $0x2d8] sm:$0xff] 0
          %433 = vst [vmem:[#allocation3 + $0x2e0] sm:$0xff] 0
          %434 = vst [vmem:[#allocation3 + $0x2e8] sm:$0xff] 0
          %435 = vst [vmem:[#allocation3 + $0x2f0] sm:$0xff] 0
          %436 = vst [vmem:[#allocation3 + $0x2f8] sm:$0xff] 0
          %437 = vst [vmem:[#allocation3 + $0x300] sm:$0xff] 0
          %438 = vst [vmem:[#allocation3 + $0x308] sm:$0xff] 0
          %439 = vst [vmem:[#allocation3 + $0x310] sm:$0xff] 0
          %440 = vst [vmem:[#allocation3 + $0x318] sm:$0xff] 0
          %441 = vst [vmem:[#allocation3 + $0x320] sm:$0xff] 0
          %442 = vst [vmem:[#allocation3 + $0x328] sm:$0xff] 0
          %443 = vst [vmem:[#allocation3 + $0x330] sm:$0xff] 0
          %444 = vst [vmem:[#allocation3 + $0x338] sm:$0xff] 0
          %445 = vst [vmem:[#allocation3 + $0x340] sm:$0xff] 0
          %446 = vst [vmem:[#allocation3 + $0x348] sm:$0xff] 0
          %447 = vst [vmem:[#allocation3 + $0x350] sm:$0xff] 0
          %448 = vst [vmem:[#allocation3 + $0x358] sm:$0xff] 0
          %449 = vst [vmem:[#allocation3 + $0x360] sm:$0xff] 0
          %450 = vst [vmem:[#allocation3 + $0x368] sm:$0xff] 0
          %451 = vst [vmem:[#allocation3 + $0x370] sm:$0xff] 0
          %452 = vst [vmem:[#allocation3 + $0x378] sm:$0xff] 0
          %453 = vst [vmem:[#allocation3 + $0x380] sm:$0xff] 0
          %454 = vst [vmem:[#allocation3 + $0x388] sm:$0xff] 0
          %455 = vst [vmem:[#allocation3 + $0x390] sm:$0xff] 0
          %456 = vst [vmem:[#allocation3 + $0x398] sm:$0xff] 0
          %457 = vst [vmem:[#allocation3 + $0x3a0] sm:$0xff] 0
          %458 = vst [vmem:[#allocation3 + $0x3a8] sm:$0xff] 0
          %459 = vst [vmem:[#allocation3 + $0x3b0] sm:$0xff] 0
          %460 = vst [vmem:[#allocation3 + $0x3b8] sm:$0xff] 0
          %461 = vst [vmem:[#allocation3 + $0x3c0] sm:$0xff] 0
          %462 = vst [vmem:[#allocation3 + $0x3c8] sm:$0xff] 0
          %463 = vst [vmem:[#allocation3 + $0x3d0] sm:$0xff] 0
          %464 = vst [vmem:[#allocation3 + $0x3d8] sm:$0xff] 0
          %465 = vst [vmem:[#allocation3 + $0x3e0] sm:$0xff] 0
          %466 = vst [vmem:[#allocation3 + $0x3e8] sm:$0xff] 0
          %467 = vst [vmem:[#allocation3 + $0x3f0] sm:$0xff] 0
          %468 = vst [vmem:[#allocation3 + $0x3f8] sm:$0xff] 0
          %469 = vst [vmem:[#allocation3 + $0x400] sm:$0xff] 0
          %470 = vst [vmem:[#allocation3 + $0x408] sm:$0xff] 0
          %471 = vst [vmem:[#allocation3 + $0x410] sm:$0xff] 0
          %472 = vst [vmem:[#allocation3 + $0x418] sm:$0xff] 0
          %473 = vst [vmem:[#allocation3 + $0x420] sm:$0xff] 0
          %474 = vst [vmem:[#allocation3 + $0x428] sm:$0xff] 0
          %475 = vst [vmem:[#allocation3 + $0x430] sm:$0xff] 0
          %476 = vst [vmem:[#allocation3 + $0x438] sm:$0xff] 0
          %477 = vst [vmem:[#allocation3 + $0x440] sm:$0xff] 0
          %478 = vst [vmem:[#allocation3 + $0x448] sm:$0xff] 0
          %479 = vst [vmem:[#allocation3 + $0x450] sm:$0xff] 0
          %480 = vst [vmem:[#allocation3 + $0x458] sm:$0xff] 0
          %481 = vst [vmem:[#allocation3 + $0x460] sm:$0xff] 0
          %482 = vst [vmem:[#allocation3 + $0x468] sm:$0xff] 0
          %483 = vst [vmem:[#allocation3 + $0x470] sm:$0xff] 0
          %484 = vst [vmem:[#allocation3 + $0x478] sm:$0xff] 0
        $region64: #{tpu_custom_call.1} parent=39 // pred_fallthru
          _
        %v485 = vld [vmem:[%s256] sm:$0xff]
        %v486 = vld [vmem:[%s256 + $0x8] sm:$0xff]
        %v487 = vld [vmem:[%s256 + $0x10] sm:$0xff]
        %v488 = vld [vmem:[%s256 + $0x18] sm:$0xff]
        %v489 = vld [vmem:[%s256 + $0x20] sm:$0xff]
        %v490 = vld [vmem:[%s256 + $0x28] sm:$0xff]
        %v491 = vld [vmem:[%s256 + $0x30] sm:$0xff]
        %v492 = vld [vmem:[%s256 + $0x38] sm:$0xff]
        %493 = vxpose.xlu0.b32.start [1/16] %v485, 128
        %494 = vxpose.xlu0.b32.cont [2/16] %v487, 128
        %495 = vxpose.xlu0.b32.cont [3/16] %v489, 128
        %496 = vxpose.xlu0.b32.cont [4/16] %v491, 128
        %497 = vxpose.xlu0.b32.cont [5/16] 0.0, 128
        %498 = vxpose.xlu0.b32.cont [6/16] 0.0, 128
        %499 = vxpose.xlu0.b32.cont [7/16] 0.0, 128
        %500 = vxpose.xlu0.b32.cont [8/16] 0.0, 128
        %501 = vxpose.xlu0.b32.cont [9/16] 0.0, 128
        %502 = vxpose.xlu0.b32.cont [10/16] 0.0, 128
        %503 = vxpose.xlu0.b32.cont [11/16] 0.0, 128
        %504 = vxpose.xlu0.b32.cont [12/16] 0.0, 128
        %505 = vxpose.xlu0.b32.cont [13/16] 0.0, 128
        %506 = vxpose.xlu0.b32.cont [14/16] 0.0, 128
        %507 = vxpose.xlu0.b32.cont [15/16] 0.0, 128
        %508 = vxpose.xlu0.b32.end [16/16] 0.0, 128
        %v509 = vpop.trf.xlu0
        %v510 = vpop.trf.xlu0
        %v511 = vpop.trf.xlu0
        %v512 = vpop.trf.xlu0
        %v513 = vpop.trf.xlu0
        %v514 = vpop.trf.xlu0
        %v515 = vpop.trf.xlu0
        %v516 = vpop.trf.xlu0
        %v517 = vpop.trf.xlu0
        %v518 = vpop.trf.xlu0
        %v519 = vpop.trf.xlu0
        %v520 = vpop.trf.xlu0
        %v521 = vpop.trf.xlu0
        %v522 = vpop.trf.xlu0
        %v523 = vpop.trf.xlu0
        %v524 = vpop.trf.xlu0
        %525 = vxpose.xlu0.b32.start [1/16] %v486, 128
        %526 = vxpose.xlu0.b32.cont [2/16] %v488, 128
        %527 = vxpose.xlu0.b32.cont [3/16] %v490, 128
        %528 = vxpose.xlu0.b32.cont [4/16] %v492, 128
        %529 = vxpose.xlu0.b32.cont [5/16] 0.0, 128
        %530 = vxpose.xlu0.b32.cont [6/16] 0.0, 128
        %531 = vxpose.xlu0.b32.cont [7/16] 0.0, 128
        %532 = vxpose.xlu0.b32.cont [8/16] 0.0, 128
        %533 = vxpose.xlu0.b32.cont [9/16] 0.0, 128
        %534 = vxpose.xlu0.b32.cont [10/16] 0.0, 128
        %535 = vxpose.xlu0.b32.cont [11/16] 0.0, 128
        %536 = vxpose.xlu0.b32.cont [12/16] 0.0, 128
        %537 = vxpose.xlu0.b32.cont [13/16] 0.0, 128
        %538 = vxpose.xlu0.b32.cont [14/16] 0.0, 128
        %539 = vxpose.xlu0.b32.cont [15/16] 0.0, 128
        %540 = vxpose.xlu0.b32.end [16/16] 0.0, 128
        %v541 = vpop.trf.xlu0
        %v542 = vpop.trf.xlu0
        %v543 = vpop.trf.xlu0
        %v544 = vpop.trf.xlu0
        %v545 = vpop.trf.xlu0
        %v546 = vpop.trf.xlu0
        %v547 = vpop.trf.xlu0
        %v548 = vpop.trf.xlu0
        %v549 = vpop.trf.xlu0
        %v550 = vpop.trf.xlu0
        %v551 = vpop.trf.xlu0
        %v552 = vpop.trf.xlu0
        %v553 = vpop.trf.xlu0
        %v554 = vpop.trf.xlu0
        %v555 = vpop.trf.xlu0
        %v556 = vpop.trf.xlu0
        %v557 = vpack.c.bf16 %v510, %v509
        %v558 = vpack.c.bf16 %v512, %v511
        %v559 = vpack.c.bf16 %v514, %v513
        %v560 = vpack.c.bf16 %v516, %v515
        %v561 = vpack.c.bf16 %v518, %v517
        %v562 = vpack.c.bf16 %v520, %v519
        %v563 = vpack.c.bf16 %v522, %v521
        %v564 = vpack.c.bf16 %v524, %v523
        %v565 = vpack.c.bf16 %v542, %v541
        %v566 = vpack.c.bf16 %v544, %v543
        %v567 = vpack.c.bf16 %v546, %v545
        %v568 = vpack.c.bf16 %v548, %v547
        %v569 = vpack.c.bf16 %v550, %v549
        %v570 = vpack.c.bf16 %v552, %v551
        %v571 = vpack.c.bf16 %v554, %v553
        %v572 = vpack.c.bf16 %v556, %v555
        %v589 = vrot.slane %v557, 4
        %v590 = vrot.slane %v558, 4
        %v591 = vrot.slane %v559, 4
        %v592 = vrot.slane %v560, 4
        %v593 = vrot.slane %v561, 4
        %v594 = vrot.slane %v562, 4
        %v595 = vrot.slane %v563, 4
        %v596 = vrot.slane %v564, 4
        %v597 = vrot.slane %v565, 4
        %v598 = vrot.slane %v566, 4
        %v599 = vrot.slane %v567, 4
        %v600 = vrot.slane %v568, 4
        %v601 = vrot.slane %v569, 4
        %v602 = vrot.slane %v570, 4
        %v603 = vrot.slane %v571, 4
        %v604 = vrot.slane %v572, 4
        %s621 = scalar_lea.vmem [#allocation2], 16
        %vm622 = vcmask 261124
        %623 = vst.msk [vmem:[%s621] sm:$0xf0] %vm622, %v589
        %vm624 = vcmask 257024
        %625 = vst.msk [vmem:[%s621 + $0x8] sm:$0xf] %vm624, %v589
        %626 = vst.msk [vmem:[%s621 + $0x10] sm:$0xf0] %vm622, %v590
        %627 = vst.msk [vmem:[%s621 + $0x18] sm:$0xf] %vm624, %v590
        %628 = vst.msk [vmem:[%s621 + $0x20] sm:$0xf0] %vm622, %v591
        %629 = vst.msk [vmem:[%s621 + $0x28] sm:$0xf] %vm624, %v591
        %630 = vst.msk [vmem:[%s621 + $0x30] sm:$0xf0] %vm622, %v592
        %631 = vst.msk [vmem:[%s621 + $0x38] sm:$0xf] %vm624, %v592
        %632 = vst.msk [vmem:[%s621 + $0x40] sm:$0xf0] %vm622, %v593
        %633 = vst.msk [vmem:[%s621 + $0x48] sm:$0xf] %vm624, %v593
        %634 = vst.msk [vmem:[%s621 + $0x50] sm:$0xf0] %vm622, %v594
        %635 = vst.msk [vmem:[%s621 + $0x58] sm:$0xf] %vm624, %v594
        %636 = vst.msk [vmem:[%s621 + $0x60] sm:$0xf0] %vm622, %v595
        %637 = vst.msk [vmem:[%s621 + $0x68] sm:$0xf] %vm624, %v595
        %638 = vst.msk [vmem:[%s621 + $0x70] sm:$0xf0] %vm622, %v596
        %639 = vst.msk [vmem:[%s621 + $0x78] sm:$0xf] %vm624, %v596
        %640 = vst.msk [vmem:[%s621 + $0x80] sm:$0xf0] %vm622, %v597
        %641 = vst.msk [vmem:[%s621 + $0x88] sm:$0xf] %vm624, %v597
        %642 = vst.msk [vmem:[%s621 + $0x90] sm:$0xf0] %vm622, %v598
        %643 = vst.msk [vmem:[%s621 + $0x98] sm:$0xf] %vm624, %v598
        %644 = vst.msk [vmem:[%s621 + $0xa0] sm:$0xf0] %vm622, %v599
        %645 = vst.msk [vmem:[%s621 + $0xa8] sm:$0xf] %vm624, %v599
        %646 = vst.msk [vmem:[%s621 + $0xb0] sm:$0xf0] %vm622, %v600
        %647 = vst.msk [vmem:[%s621 + $0xb8] sm:$0xf] %vm624, %v600
        %648 = vst.msk [vmem:[%s621 + $0xc0] sm:$0xf0] %vm622, %v601
        %649 = vst.msk [vmem:[%s621 + $0xc8] sm:$0xf] %vm624, %v601
        %650 = vst.msk [vmem:[%s621 + $0xd0] sm:$0xf0] %vm622, %v602
        %651 = vst.msk [vmem:[%s621 + $0xd8] sm:$0xf] %vm624, %v602
        %652 = vst.msk [vmem:[%s621 + $0xe0] sm:$0xf0] %vm622, %v603
        %653 = vst.msk [vmem:[%s621 + $0xe8] sm:$0xf] %vm624, %v603
        %654 = vst.msk [vmem:[%s621 + $0xf0] sm:$0xf0] %vm622, %v604
        %655 = vst.msk [vmem:[%s621 + $0xf8] sm:$0xf] %vm624, %v604
        %v656 = vld [vmem:[#allocation2] sm:$0xf8]
        %v657 = vld [vmem:[#allocation2 + $0x8] sm:$0x1f]
        %v658 = vld [vmem:[#allocation2 + $0x10] sm:$0xf8]
        %v659 = vld [vmem:[#allocation2 + $0x18] sm:$0x1f]
        %v660 = vld [vmem:[#allocation2 + $0x20] sm:$0xf8]
        %v661 = vld [vmem:[#allocation2 + $0x28] sm:$0x1f]
        %v662 = vld [vmem:[#allocation2 + $0x30] sm:$0xf8]
        %v663 = vld [vmem:[#allocation2 + $0x38] sm:$0x1f]
        %v664 = vld [vmem:[#allocation2 + $0x40] sm:$0xf8]
        %v665 = vld [vmem:[#allocation2 + $0x48] sm:$0x1f]
        %v666 = vld [vmem:[#allocation2 + $0x50] sm:$0xf8]
        %v667 = vld [vmem:[#allocation2 + $0x58] sm:$0x1f]
        %v668 = vld [vmem:[#allocation2 + $0x60] sm:$0xf8]
        %v669 = vld [vmem:[#allocation2 + $0x68] sm:$0x1f]
        %v670 = vld [vmem:[#allocation2 + $0x70] sm:$0xf8]
        %v671 = vld [vmem:[#allocation2 + $0x78] sm:$0x1f]
        %v672 = vld [vmem:[#allocation2 + $0x80] sm:$0xf8]
        %v673 = vld [vmem:[#allocation2 + $0x88] sm:$0x1f]
        %v674 = vld [vmem:[#allocation2 + $0x90] sm:$0xf8]
        %v675 = vld [vmem:[#allocation2 + $0x98] sm:$0x1f]
        %v676 = vld [vmem:[#allocation2 + $0xa0] sm:$0xf8]
        %v677 = vld [vmem:[#allocation2 + $0xa8] sm:$0x1f]
        %v678 = vld [vmem:[#allocation2 + $0xb0] sm:$0xf8]
        %v679 = vld [vmem:[#allocation2 + $0xb8] sm:$0x1f]
        %v680 = vld [vmem:[#allocation2 + $0xc0] sm:$0xf8]
        %v681 = vld [vmem:[#allocation2 + $0xc8] sm:$0x1f]
        %v682 = vld [vmem:[#allocation2 + $0xd0] sm:$0xf8]
        %v683 = vld [vmem:[#allocation2 + $0xd8] sm:$0x1f]
        %v684 = vld [vmem:[#allocation2 + $0xe0] sm:$0xf8]
        %v685 = vld [vmem:[#allocation2 + $0xe8] sm:$0x1f]
        %v686 = vld [vmem:[#allocation2 + $0xf0] sm:$0xf8]
        %v687 = vld [vmem:[#allocation2 + $0xf8] sm:$0x1f]
        %vm688 = vsmask.f32 4352
        %v690 = vshrl.u32 %v656, 16
        %v692 = vrot.slane %v690, 3
        %v693 = vshll.u32 %v656, 16
        %v695 = vrot.slane %v693, 4
        %v696 = vor.u32 %v692, %v695
        %v698 = vshrl.u32 %v657, 16
        %v700 = vrot.slane %v698, 3
        %v701 = vshll.u32 %v657, 16
        %v703 = vrot.slane %v701, 4
        %v704 = vor.u32 %v700, %v703
        %v705 = vsel %vm688, %v696, %v704
        %v707 = vshrl.u32 %v658, 16
        %v709 = vrot.slane %v707, 3
        %v710 = vshll.u32 %v658, 16
        %v712 = vrot.slane %v710, 4
        %v713 = vor.u32 %v709, %v712
        %v715 = vshrl.u32 %v659, 16
        %v717 = vrot.slane %v715, 3
        %v718 = vshll.u32 %v659, 16
        %v720 = vrot.slane %v718, 4
        %v721 = vor.u32 %v717, %v720
        %v722 = vsel %vm688, %v713, %v721
        %v724 = vshrl.u32 %v660, 16
        %v726 = vrot.slane %v724, 3
        %v727 = vshll.u32 %v660, 16
        %v729 = vrot.slane %v727, 4
        %v730 = vor.u32 %v726, %v729
        %v732 = vshrl.u32 %v661, 16
        %v734 = vrot.slane %v732, 3
        %v735 = vshll.u32 %v661, 16
        %v737 = vrot.slane %v735, 4
        %v738 = vor.u32 %v734, %v737
        %v739 = vsel %vm688, %v730, %v738
        %v741 = vshrl.u32 %v662, 16
        %v743 = vrot.slane %v741, 3
        %v744 = vshll.u32 %v662, 16
        %v746 = vrot.slane %v744, 4
        %v747 = vor.u32 %v743, %v746
        %v749 = vshrl.u32 %v663, 16
        %v751 = vrot.slane %v749, 3
        %v752 = vshll.u32 %v663, 16
        %v754 = vrot.slane %v752, 4
        %v755 = vor.u32 %v751, %v754
        %v756 = vsel %vm688, %v747, %v755
        %v758 = vshrl.u32 %v664, 16
        %v760 = vrot.slane %v758, 3
        %v761 = vshll.u32 %v664, 16
        %v763 = vrot.slane %v761, 4
        %v764 = vor.u32 %v760, %v763
        %v766 = vshrl.u32 %v665, 16
        %v768 = vrot.slane %v766, 3
        %v769 = vshll.u32 %v665, 16
        %v771 = vrot.slane %v769, 4
        %v772 = vor.u32 %v768, %v771
        %v773 = vsel %vm688, %v764, %v772
        %v775 = vshrl.u32 %v666, 16
        %v777 = vrot.slane %v775, 3
        %v778 = vshll.u32 %v666, 16
        %v780 = vrot.slane %v778, 4
        %v781 = vor.u32 %v777, %v780
        %v783 = vshrl.u32 %v667, 16
        %v785 = vrot.slane %v783, 3
        %v786 = vshll.u32 %v667, 16
        %v788 = vrot.slane %v786, 4
        %v789 = vor.u32 %v785, %v788
        %v790 = vsel %vm688, %v781, %v789
        %v792 = vshrl.u32 %v668, 16
        %v794 = vrot.slane %v792, 3
        %v795 = vshll.u32 %v668, 16
        %v797 = vrot.slane %v795, 4
        %v798 = vor.u32 %v794, %v797
        %v800 = vshrl.u32 %v669, 16
        %v802 = vrot.slane %v800, 3
        %v803 = vshll.u32 %v669, 16
        %v805 = vrot.slane %v803, 4
        %v806 = vor.u32 %v802, %v805
        %v807 = vsel %vm688, %v798, %v806
        %v809 = vshrl.u32 %v670, 16
        %v811 = vrot.slane %v809, 3
        %v812 = vshll.u32 %v670, 16
        %v814 = vrot.slane %v812, 4
        %v815 = vor.u32 %v811, %v814
        %v817 = vshrl.u32 %v671, 16
        %v819 = vrot.slane %v817, 3
        %v820 = vshll.u32 %v671, 16
        %v822 = vrot.slane %v820, 4
        %v823 = vor.u32 %v819, %v822
        %v824 = vsel %vm688, %v815, %v823
        %v826 = vshrl.u32 %v672, 16
        %v828 = vrot.slane %v826, 3
        %v829 = vshll.u32 %v672, 16
        %v831 = vrot.slane %v829, 4
        %v832 = vor.u32 %v828, %v831
        %v834 = vshrl.u32 %v673, 16
        %v836 = vrot.slane %v834, 3
        %v837 = vshll.u32 %v673, 16
        %v839 = vrot.slane %v837, 4
        %v840 = vor.u32 %v836, %v839
        %v841 = vsel %vm688, %v832, %v840
        %v843 = vshrl.u32 %v674, 16
        %v845 = vrot.slane %v843, 3
        %v846 = vshll.u32 %v674, 16
        %v848 = vrot.slane %v846, 4
        %v849 = vor.u32 %v845, %v848
        %v851 = vshrl.u32 %v675, 16
        %v853 = vrot.slane %v851, 3
        %v854 = vshll.u32 %v675, 16
        %v856 = vrot.slane %v854, 4
        %v857 = vor.u32 %v853, %v856
        %v858 = vsel %vm688, %v849, %v857
        %v860 = vshrl.u32 %v676, 16
        %v862 = vrot.slane %v860, 3
        %v863 = vshll.u32 %v676, 16
        %v865 = vrot.slane %v863, 4
        %v866 = vor.u32 %v862, %v865
        %v868 = vshrl.u32 %v677, 16
        %v870 = vrot.slane %v868, 3
        %v871 = vshll.u32 %v677, 16
        %v873 = vrot.slane %v871, 4
        %v874 = vor.u32 %v870, %v873
        %v875 = vsel %vm688, %v866, %v874
        %v877 = vshrl.u32 %v678, 16
        %v879 = vrot.slane %v877, 3
        %v880 = vshll.u32 %v678, 16
        %v882 = vrot.slane %v880, 4
        %v883 = vor.u32 %v879, %v882
        %v885 = vshrl.u32 %v679, 16
        %v887 = vrot.slane %v885, 3
        %v888 = vshll.u32 %v679, 16
        %v890 = vrot.slane %v888, 4
        %v891 = vor.u32 %v887, %v890
        %v892 = vsel %vm688, %v883, %v891
        %v894 = vshrl.u32 %v680, 16
        %v896 = vrot.slane %v894, 3
        %v897 = vshll.u32 %v680, 16
        %v899 = vrot.slane %v897, 4
        %v900 = vor.u32 %v896, %v899
        %v902 = vshrl.u32 %v681, 16
        %v904 = vrot.slane %v902, 3
        %v905 = vshll.u32 %v681, 16
        %v907 = vrot.slane %v905, 4
        %v908 = vor.u32 %v904, %v907
        %v909 = vsel %vm688, %v900, %v908
        %v911 = vshrl.u32 %v682, 16
        %v913 = vrot.slane %v911, 3
        %v914 = vshll.u32 %v682, 16
        %v916 = vrot.slane %v914, 4
        %v917 = vor.u32 %v913, %v916
        %v919 = vshrl.u32 %v683, 16
        %v921 = vrot.slane %v919, 3
        %v922 = vshll.u32 %v683, 16
        %v924 = vrot.slane %v922, 4
        %v925 = vor.u32 %v921, %v924
        %v926 = vsel %vm688, %v917, %v925
        %v928 = vshrl.u32 %v684, 16
        %v930 = vrot.slane %v928, 3
        %v931 = vshll.u32 %v684, 16
        %v933 = vrot.slane %v931, 4
        %v934 = vor.u32 %v930, %v933
        %v936 = vshrl.u32 %v685, 16
        %v938 = vrot.slane %v936, 3
        %v939 = vshll.u32 %v685, 16
        %v941 = vrot.slane %v939, 4
        %v942 = vor.u32 %v938, %v941
        %v943 = vsel %vm688, %v934, %v942
        %v945 = vshrl.u32 %v686, 16
        %v947 = vrot.slane %v945, 3
        %v948 = vshll.u32 %v686, 16
        %v950 = vrot.slane %v948, 4
        %v951 = vor.u32 %v947, %v950
        %v953 = vshrl.u32 %v687, 16
        %v955 = vrot.slane %v953, 3
        %v956 = vshll.u32 %v687, 16
        %v958 = vrot.slane %v956, 4
        %v959 = vor.u32 %v955, %v958
        %v960 = vsel %vm688, %v951, %v959
        %vm977 = vcmask 523264
        %978 = vst.msk [vmem:[#allocation3] sm:$0xff] %vm977, %v705
        %979 = vst.msk [vmem:[#allocation3 + $0x48] sm:$0xff] %vm977, %v722
        %980 = vst.msk [vmem:[#allocation3 + $0x90] sm:$0xff] %vm977, %v739
        %981 = vst.msk [vmem:[#allocation3 + $0xd8] sm:$0xff] %vm977, %v756
        %982 = vst.msk [vmem:[#allocation3 + $0x120] sm:$0xff] %vm977, %v773
        %983 = vst.msk [vmem:[#allocation3 + $0x168] sm:$0xff] %vm977, %v790
        %984 = vst.msk [vmem:[#allocation3 + $0x1b0] sm:$0xff] %vm977, %v807
        %985 = vst.msk [vmem:[#allocation3 + $0x1f8] sm:$0xff] %vm977, %v824
        %986 = vst.msk [vmem:[#allocation3 + $0x240] sm:$0xff] %vm977, %v841
        %987 = vst.msk [vmem:[#allocation3 + $0x288] sm:$0xff] %vm977, %v858
        %988 = vst.msk [vmem:[#allocation3 + $0x2d0] sm:$0xff] %vm977, %v875
        %989 = vst.msk [vmem:[#allocation3 + $0x318] sm:$0xff] %vm977, %v892
        %990 = vst.msk [vmem:[#allocation3 + $0x360] sm:$0xff] %vm977, %v909
        %991 = vst.msk [vmem:[#allocation3 + $0x3a8] sm:$0xff] %vm977, %v926
        %992 = vst.msk [vmem:[#allocation3 + $0x3f0] sm:$0xff] %vm977, %v943
        %993 = vst.msk [vmem:[#allocation3 + $0x438] sm:$0xff] %vm977, %v960
        %vm1026 = vcmask 1043456
        %v1027 = vrot.slane %v656, 4
        %v1028 = vrot.slane %v657, 4
        %v1029 = vsel %vm1026, %v1027, %v1028
        %v1030 = vrot.slane %v658, 4
        %v1031 = vrot.slane %v659, 4
        %v1032 = vsel %vm1026, %v1030, %v1031
        %v1033 = vrot.slane %v660, 4
        %v1034 = vrot.slane %v661, 4
        %v1035 = vsel %vm1026, %v1033, %v1034
        %v1036 = vrot.slane %v662, 4
        %v1037 = vrot.slane %v663, 4
        %v1038 = vsel %vm1026, %v1036, %v1037
        %v1039 = vrot.slane %v664, 4
        %v1040 = vrot.slane %v665, 4
        %v1041 = vsel %vm1026, %v1039, %v1040
        %v1042 = vrot.slane %v666, 4
        %v1043 = vrot.slane %v667, 4
        %v1044 = vsel %vm1026, %v1042, %v1043
        %v1045 = vrot.slane %v668, 4
        %v1046 = vrot.slane %v669, 4
        %v1047 = vsel %vm1026, %v1045, %v1046
        %v1048 = vrot.slane %v670, 4
        %v1049 = vrot.slane %v671, 4
        %v1050 = vsel %vm1026, %v1048, %v1049
        %v1051 = vrot.slane %v672, 4
        %v1052 = vrot.slane %v673, 4
        %v1053 = vsel %vm1026, %v1051, %v1052
        %v1054 = vrot.slane %v674, 4
        %v1055 = vrot.slane %v675, 4
        %v1056 = vsel %vm1026, %v1054, %v1055
        %v1057 = vrot.slane %v676, 4
        %v1058 = vrot.slane %v677, 4
        %v1059 = vsel %vm1026, %v1057, %v1058
        %v1060 = vrot.slane %v678, 4
        %v1061 = vrot.slane %v679, 4
        %v1062 = vsel %vm1026, %v1060, %v1061
        %v1063 = vrot.slane %v680, 4
        %v1064 = vrot.slane %v681, 4
        %v1065 = vsel %vm1026, %v1063, %v1064
        %v1066 = vrot.slane %v682, 4
        %v1067 = vrot.slane %v683, 4
        %v1068 = vsel %vm1026, %v1066, %v1067
        %v1069 = vrot.slane %v684, 4
        %v1070 = vrot.slane %v685, 4
        %v1071 = vsel %vm1026, %v1069, %v1070
        %v1072 = vrot.slane %v686, 4
        %v1073 = vrot.slane %v687, 4
        %v1074 = vsel %vm1026, %v1072, %v1073
        %1091 = vst.msk [vmem:[#allocation3 + $0x8] sm:$0xff] %vm977, %v1029
        %1092 = vst.msk [vmem:[#allocation3 + $0x50] sm:$0xff] %vm977, %v1032
        %1093 = vst.msk [vmem:[#allocation3 + $0x98] sm:$0xff] %vm977, %v1035
        %1094 = vst.msk [vmem:[#allocation3 + $0xe0] sm:$0xff] %vm977, %v1038
        %1095 = vst.msk [vmem:[#allocation3 + $0x128] sm:$0xff] %vm977, %v1041
        %1096 = vst.msk [vmem:[#allocation3 + $0x170] sm:$0xff] %vm977, %v1044
        %1097 = vst.msk [vmem:[#allocation3 + $0x1b8] sm:$0xff] %vm977, %v1047
        %1098 = vst.msk [vmem:[#allocation3 + $0x200] sm:$0xff] %vm977, %v1050
        %1099 = vst.msk [vmem:[#allocation3 + $0x248] sm:$0xff] %vm977, %v1053
        %1100 = vst.msk [vmem:[#allocation3 + $0x290] sm:$0xff] %vm977, %v1056
        %1101 = vst.msk [vmem:[#allocation3 + $0x2d8] sm:$0xff] %vm977, %v1059
        %1102 = vst.msk [vmem:[#allocation3 + $0x320] sm:$0xff] %vm977, %v1062
        %1103 = vst.msk [vmem:[#allocation3 + $0x368] sm:$0xff] %vm977, %v1065
        %1104 = vst.msk [vmem:[#allocation3 + $0x3b0] sm:$0xff] %vm977, %v1068
        %1105 = vst.msk [vmem:[#allocation3 + $0x3f8] sm:$0xff] %vm977, %v1071
        %1106 = vst.msk [vmem:[#allocation3 + $0x440] sm:$0xff] %vm977, %v1074
        %vm1107 = vsmask.f32 3328
        %v1108 = vrot.slane %v690, 4
        %v1109 = vrot.slane %v693, 5
        %v1110 = vor.u32 %v1108, %v1109
        %v1111 = vrot.slane %v698, 4
        %v1112 = vrot.slane %v701, 5
        %v1113 = vor.u32 %v1111, %v1112
        %v1114 = vsel %vm1107, %v1110, %v1113
        %v1115 = vrot.slane %v707, 4
        %v1116 = vrot.slane %v710, 5
        %v1117 = vor.u32 %v1115, %v1116
        %v1118 = vrot.slane %v715, 4
        %v1119 = vrot.slane %v718, 5
        %v1120 = vor.u32 %v1118, %v1119
        %v1121 = vsel %vm1107, %v1117, %v1120
        %v1122 = vrot.slane %v724, 4
        %v1123 = vrot.slane %v727, 5
        %v1124 = vor.u32 %v1122, %v1123
        %v1125 = vrot.slane %v732, 4
        %v1126 = vrot.slane %v735, 5
        %v1127 = vor.u32 %v1125, %v1126
        %v1128 = vsel %vm1107, %v1124, %v1127
        %v1129 = vrot.slane %v741, 4
        %v1130 = vrot.slane %v744, 5
        %v1131 = vor.u32 %v1129, %v1130
        %v1132 = vrot.slane %v749, 4
        %v1133 = vrot.slane %v752, 5
        %v1134 = vor.u32 %v1132, %v1133
        %v1135 = vsel %vm1107, %v1131, %v1134
        %v1136 = vrot.slane %v758, 4
        %v1137 = vrot.slane %v761, 5
        %v1138 = vor.u32 %v1136, %v1137
        %v1139 = vrot.slane %v766, 4
        %v1140 = vrot.slane %v769, 5
        %v1141 = vor.u32 %v1139, %v1140
        %v1142 = vsel %vm1107, %v1138, %v1141
        %v1143 = vrot.slane %v775, 4
        %v1144 = vrot.slane %v778, 5
        %v1145 = vor.u32 %v1143, %v1144
        %v1146 = vrot.slane %v783, 4
        %v1147 = vrot.slane %v786, 5
        %v1148 = vor.u32 %v1146, %v1147
        %v1149 = vsel %vm1107, %v1145, %v1148
        %v1150 = vrot.slane %v792, 4
        %v1151 = vrot.slane %v795, 5
        %v1152 = vor.u32 %v1150, %v1151
        %v1153 = vrot.slane %v800, 4
        %v1154 = vrot.slane %v803, 5
        %v1155 = vor.u32 %v1153, %v1154
        %v1156 = vsel %vm1107, %v1152, %v1155
        %v1157 = vrot.slane %v809, 4
        %v1158 = vrot.slane %v812, 5
        %v1159 = vor.u32 %v1157, %v1158
        %v1160 = vrot.slane %v817, 4
        %v1161 = vrot.slane %v820, 5
        %v1162 = vor.u32 %v1160, %v1161
        %v1163 = vsel %vm1107, %v1159, %v1162
        %v1164 = vrot.slane %v826, 4
        %v1165 = vrot.slane %v829, 5
        %v1166 = vor.u32 %v1164, %v1165
        %v1167 = vrot.slane %v834, 4
        %v1168 = vrot.slane %v837, 5
        %v1169 = vor.u32 %v1167, %v1168
        %v1170 = vsel %vm1107, %v1166, %v1169
        %v1171 = vrot.slane %v843, 4
        %v1172 = vrot.slane %v846, 5
        %v1173 = vor.u32 %v1171, %v1172
        %v1174 = vrot.slane %v851, 4
        %v1175 = vrot.slane %v854, 5
        %v1176 = vor.u32 %v1174, %v1175
        %v1177 = vsel %vm1107, %v1173, %v1176
        %v1178 = vrot.slane %v860, 4
        %v1179 = vrot.slane %v863, 5
        %v1180 = vor.u32 %v1178, %v1179
        %v1181 = vrot.slane %v868, 4
        %v1182 = vrot.slane %v871, 5
        %v1183 = vor.u32 %v1181, %v1182
        %v1184 = vsel %vm1107, %v1180, %v1183
        %v1185 = vrot.slane %v877, 4
        %v1186 = vrot.slane %v880, 5
        %v1187 = vor.u32 %v1185, %v1186
        %v1188 = vrot.slane %v885, 4
        %v1189 = vrot.slane %v888, 5
        %v1190 = vor.u32 %v1188, %v1189
        %v1191 = vsel %vm1107, %v1187, %v1190
        %v1192 = vrot.slane %v894, 4
        %v1193 = vrot.slane %v897, 5
        %v1194 = vor.u32 %v1192, %v1193
        %v1195 = vrot.slane %v902, 4
        %v1196 = vrot.slane %v905, 5
        %v1197 = vor.u32 %v1195, %v1196
        %v1198 = vsel %vm1107, %v1194, %v1197
        %v1199 = vrot.slane %v911, 4
        %v1200 = vrot.slane %v914, 5
        %v1201 = vor.u32 %v1199, %v1200
        %v1202 = vrot.slane %v919, 4
        %v1203 = vrot.slane %v922, 5
        %v1204 = vor.u32 %v1202, %v1203
        %v1205 = vsel %vm1107, %v1201, %v1204
        %v1206 = vrot.slane %v928, 4
        %v1207 = vrot.slane %v931, 5
        %v1208 = vor.u32 %v1206, %v1207
        %v1209 = vrot.slane %v936, 4
        %v1210 = vrot.slane %v939, 5
        %v1211 = vor.u32 %v1209, %v1210
        %v1212 = vsel %vm1107, %v1208, %v1211
        %v1213 = vrot.slane %v945, 4
        %v1214 = vrot.slane %v948, 5
        %v1215 = vor.u32 %v1213, %v1214
        %v1216 = vrot.slane %v953, 4
        %v1217 = vrot.slane %v956, 5
        %v1218 = vor.u32 %v1216, %v1217
        %v1219 = vsel %vm1107, %v1215, %v1218
        %1236 = vst.msk [vmem:[#allocation3 + $0x10] sm:$0xff] %vm977, %v1114
        %1237 = vst.msk [vmem:[#allocation3 + $0x58] sm:$0xff] %vm977, %v1121
        %1238 = vst.msk [vmem:[#allocation3 + $0xa0] sm:$0xff] %vm977, %v1128
        %1239 = vst.msk [vmem:[#allocation3 + $0xe8] sm:$0xff] %vm977, %v1135
        %1240 = vst.msk [vmem:[#allocation3 + $0x130] sm:$0xff] %vm977, %v1142
        %1241 = vst.msk [vmem:[#allocation3 + $0x178] sm:$0xff] %vm977, %v1149
        %1242 = vst.msk [vmem:[#allocation3 + $0x1c0] sm:$0xff] %vm977, %v1156
        %1243 = vst.msk [vmem:[#allocation3 + $0x208] sm:$0xff] %vm977, %v1163
        %1244 = vst.msk [vmem:[#allocation3 + $0x250] sm:$0xff] %vm977, %v1170
        %1245 = vst.msk [vmem:[#allocation3 + $0x298] sm:$0xff] %vm977, %v1177
        %1246 = vst.msk [vmem:[#allocation3 + $0x2e0] sm:$0xff] %vm977, %v1184
        %1247 = vst.msk [vmem:[#allocation3 + $0x328] sm:$0xff] %vm977, %v1191
        %1248 = vst.msk [vmem:[#allocation3 + $0x370] sm:$0xff] %vm977, %v1198
        %1249 = vst.msk [vmem:[#allocation3 + $0x3b8] sm:$0xff] %vm977, %v1205
        %1250 = vst.msk [vmem:[#allocation3 + $0x400] sm:$0xff] %vm977, %v1212
        %1251 = vst.msk [vmem:[#allocation3 + $0x448] sm:$0xff] %vm977, %v1219
        %v1252 = vld [vmem:[%s621] sm:$0xf8]
        %v1253 = vld [vmem:[%s621 + $0x8] sm:$0x1f]
        %v1254 = vld [vmem:[%s621 + $0x10] sm:$0xf8]
        %v1255 = vld [vmem:[%s621 + $0x18] sm:$0x1f]
        %v1256 = vld [vmem:[%s621 + $0x20] sm:$0xf8]
        %v1257 = vld [vmem:[%s621 + $0x28] sm:$0x1f]
        %v1258 = vld [vmem:[%s621 + $0x30] sm:$0xf8]
        %v1259 = vld [vmem:[%s621 + $0x38] sm:$0x1f]
        %v1260 = vld [vmem:[%s621 + $0x40] sm:$0xf8]
        %v1261 = vld [vmem:[%s621 + $0x48] sm:$0x1f]
        %v1262 = vld [vmem:[%s621 + $0x50] sm:$0xf8]
        %v1263 = vld [vmem:[%s621 + $0x58] sm:$0x1f]
        %v1264 = vld [vmem:[%s621 + $0x60] sm:$0xf8]
        %v1265 = vld [vmem:[%s621 + $0x68] sm:$0x1f]
        %v1266 = vld [vmem:[%s621 + $0x70] sm:$0xf8]
        %v1267 = vld [vmem:[%s621 + $0x78] sm:$0x1f]
        %v1268 = vld [vmem:[%s621 + $0x80] sm:$0xf8]
        %v1269 = vld [vmem:[%s621 + $0x88] sm:$0x1f]
        %v1270 = vld [vmem:[%s621 + $0x90] sm:$0xf8]
        %v1271 = vld [vmem:[%s621 + $0x98] sm:$0x1f]
        %v1272 = vld [vmem:[%s621 + $0xa0] sm:$0xf8]
        %v1273 = vld [vmem:[%s621 + $0xa8] sm:$0x1f]
        %v1274 = vld [vmem:[%s621 + $0xb0] sm:$0xf8]
        %v1275 = vld [vmem:[%s621 + $0xb8] sm:$0x1f]
        %v1276 = vld [vmem:[%s621 + $0xc0] sm:$0xf8]
        %v1277 = vld [vmem:[%s621 + $0xc8] sm:$0x1f]
        %v1278 = vld [vmem:[%s621 + $0xd0] sm:$0xf8]
        %v1279 = vld [vmem:[%s621 + $0xd8] sm:$0x1f]
        %v1280 = vld [vmem:[%s621 + $0xe0] sm:$0xf8]
        %v1281 = vld [vmem:[%s621 + $0xe8] sm:$0x1f]
        %v1282 = vld [vmem:[%s621 + $0xf0] sm:$0xf8]
        %v1283 = vld [vmem:[%s621 + $0xf8] sm:$0x1f]
        %v1285 = vshrl.u32 %v1252, 16
        %v1287 = vrot.slane %v1285, 3
        %v1288 = vshll.u32 %v1252, 16
        %v1290 = vrot.slane %v1288, 4
        %v1291 = vor.u32 %v1287, %v1290
        %v1293 = vshrl.u32 %v1253, 16
        %v1295 = vrot.slane %v1293, 3
        %v1296 = vshll.u32 %v1253, 16
        %v1298 = vrot.slane %v1296, 4
        %v1299 = vor.u32 %v1295, %v1298
        %v1300 = vsel %vm688, %v1291, %v1299
        %v1302 = vshrl.u32 %v1254, 16
        %v1304 = vrot.slane %v1302, 3
        %v1305 = vshll.u32 %v1254, 16
        %v1307 = vrot.slane %v1305, 4
        %v1308 = vor.u32 %v1304, %v1307
        %v1310 = vshrl.u32 %v1255, 16
        %v1312 = vrot.slane %v1310, 3
        %v1313 = vshll.u32 %v1255, 16
        %v1315 = vrot.slane %v1313, 4
        %v1316 = vor.u32 %v1312, %v1315
        %v1317 = vsel %vm688, %v1308, %v1316
        %v1319 = vshrl.u32 %v1256, 16
        %v1321 = vrot.slane %v1319, 3
        %v1322 = vshll.u32 %v1256, 16
        %v1324 = vrot.slane %v1322, 4
        %v1325 = vor.u32 %v1321, %v1324
        %v1327 = vshrl.u32 %v1257, 16
        %v1329 = vrot.slane %v1327, 3
        %v1330 = vshll.u32 %v1257, 16
        %v1332 = vrot.slane %v1330, 4
        %v1333 = vor.u32 %v1329, %v1332
        %v1334 = vsel %vm688, %v1325, %v1333
        %v1336 = vshrl.u32 %v1258, 16
        %v1338 = vrot.slane %v1336, 3
        %v1339 = vshll.u32 %v1258, 16
        %v1341 = vrot.slane %v1339, 4
        %v1342 = vor.u32 %v1338, %v1341
        %v1344 = vshrl.u32 %v1259, 16
        %v1346 = vrot.slane %v1344, 3
        %v1347 = vshll.u32 %v1259, 16
        %v1349 = vrot.slane %v1347, 4
        %v1350 = vor.u32 %v1346, %v1349
        %v1351 = vsel %vm688, %v1342, %v1350
        %v1353 = vshrl.u32 %v1260, 16
        %v1355 = vrot.slane %v1353, 3
        %v1356 = vshll.u32 %v1260, 16
        %v1358 = vrot.slane %v1356, 4
        %v1359 = vor.u32 %v1355, %v1358
        %v1361 = vshrl.u32 %v1261, 16
        %v1363 = vrot.slane %v1361, 3
        %v1364 = vshll.u32 %v1261, 16
        %v1366 = vrot.slane %v1364, 4
        %v1367 = vor.u32 %v1363, %v1366
        %v1368 = vsel %vm688, %v1359, %v1367
        %v1370 = vshrl.u32 %v1262, 16
        %v1372 = vrot.slane %v1370, 3
        %v1373 = vshll.u32 %v1262, 16
        %v1375 = vrot.slane %v1373, 4
        %v1376 = vor.u32 %v1372, %v1375
        %v1378 = vshrl.u32 %v1263, 16
        %v1380 = vrot.slane %v1378, 3
        %v1381 = vshll.u32 %v1263, 16
        %v1383 = vrot.slane %v1381, 4
        %v1384 = vor.u32 %v1380, %v1383
        %v1385 = vsel %vm688, %v1376, %v1384
        %v1387 = vshrl.u32 %v1264, 16
        %v1389 = vrot.slane %v1387, 3
        %v1390 = vshll.u32 %v1264, 16
        %v1392 = vrot.slane %v1390, 4
        %v1393 = vor.u32 %v1389, %v1392
        %v1395 = vshrl.u32 %v1265, 16
        %v1397 = vrot.slane %v1395, 3
        %v1398 = vshll.u32 %v1265, 16
        %v1400 = vrot.slane %v1398, 4
        %v1401 = vor.u32 %v1397, %v1400
        %v1402 = vsel %vm688, %v1393, %v1401
        %v1404 = vshrl.u32 %v1266, 16
        %v1406 = vrot.slane %v1404, 3
        %v1407 = vshll.u32 %v1266, 16
        %v1409 = vrot.slane %v1407, 4
        %v1410 = vor.u32 %v1406, %v1409
        %v1412 = vshrl.u32 %v1267, 16
        %v1414 = vrot.slane %v1412, 3
        %v1415 = vshll.u32 %v1267, 16
        %v1417 = vrot.slane %v1415, 4
        %v1418 = vor.u32 %v1414, %v1417
        %v1419 = vsel %vm688, %v1410, %v1418
        %v1421 = vshrl.u32 %v1268, 16
        %v1423 = vrot.slane %v1421, 3
        %v1424 = vshll.u32 %v1268, 16
        %v1426 = vrot.slane %v1424, 4
        %v1427 = vor.u32 %v1423, %v1426
        %v1429 = vshrl.u32 %v1269, 16
        %v1431 = vrot.slane %v1429, 3
        %v1432 = vshll.u32 %v1269, 16
        %v1434 = vrot.slane %v1432, 4
        %v1435 = vor.u32 %v1431, %v1434
        %v1436 = vsel %vm688, %v1427, %v1435
        %v1438 = vshrl.u32 %v1270, 16
        %v1440 = vrot.slane %v1438, 3
        %v1441 = vshll.u32 %v1270, 16
        %v1443 = vrot.slane %v1441, 4
        %v1444 = vor.u32 %v1440, %v1443
        %v1446 = vshrl.u32 %v1271, 16
        %v1448 = vrot.slane %v1446, 3
        %v1449 = vshll.u32 %v1271, 16
        %v1451 = vrot.slane %v1449, 4
        %v1452 = vor.u32 %v1448, %v1451
        %v1453 = vsel %vm688, %v1444, %v1452
        %v1455 = vshrl.u32 %v1272, 16
        %v1457 = vrot.slane %v1455, 3
        %v1458 = vshll.u32 %v1272, 16
        %v1460 = vrot.slane %v1458, 4
        %v1461 = vor.u32 %v1457, %v1460
        %v1463 = vshrl.u32 %v1273, 16
        %v1465 = vrot.slane %v1463, 3
        %v1466 = vshll.u32 %v1273, 16
        %v1468 = vrot.slane %v1466, 4
        %v1469 = vor.u32 %v1465, %v1468
        %v1470 = vsel %vm688, %v1461, %v1469
        %v1472 = vshrl.u32 %v1274, 16
        %v1474 = vrot.slane %v1472, 3
        %v1475 = vshll.u32 %v1274, 16
        %v1477 = vrot.slane %v1475, 4
        %v1478 = vor.u32 %v1474, %v1477
        %v1480 = vshrl.u32 %v1275, 16
        %v1482 = vrot.slane %v1480, 3
        %v1483 = vshll.u32 %v1275, 16
        %v1485 = vrot.slane %v1483, 4
        %v1486 = vor.u32 %v1482, %v1485
        %v1487 = vsel %vm688, %v1478, %v1486
        %v1489 = vshrl.u32 %v1276, 16
        %v1491 = vrot.slane %v1489, 3
        %v1492 = vshll.u32 %v1276, 16
        %v1494 = vrot.slane %v1492, 4
        %v1495 = vor.u32 %v1491, %v1494
        %v1497 = vshrl.u32 %v1277, 16
        %v1499 = vrot.slane %v1497, 3
        %v1500 = vshll.u32 %v1277, 16
        %v1502 = vrot.slane %v1500, 4
        %v1503 = vor.u32 %v1499, %v1502
        %v1504 = vsel %vm688, %v1495, %v1503
        %v1506 = vshrl.u32 %v1278, 16
        %v1508 = vrot.slane %v1506, 3
        %v1509 = vshll.u32 %v1278, 16
        %v1511 = vrot.slane %v1509, 4
        %v1512 = vor.u32 %v1508, %v1511
        %v1514 = vshrl.u32 %v1279, 16
        %v1516 = vrot.slane %v1514, 3
        %v1517 = vshll.u32 %v1279, 16
        %v1519 = vrot.slane %v1517, 4
        %v1520 = vor.u32 %v1516, %v1519
        %v1521 = vsel %vm688, %v1512, %v1520
        %v1523 = vshrl.u32 %v1280, 16
        %v1525 = vrot.slane %v1523, 3
        %v1526 = vshll.u32 %v1280, 16
        %v1528 = vrot.slane %v1526, 4
        %v1529 = vor.u32 %v1525, %v1528
        %v1531 = vshrl.u32 %v1281, 16
        %v1533 = vrot.slane %v1531, 3
        %v1534 = vshll.u32 %v1281, 16
        %v1536 = vrot.slane %v1534, 4
        %v1537 = vor.u32 %v1533, %v1536
        %v1538 = vsel %vm688, %v1529, %v1537
        %v1540 = vshrl.u32 %v1282, 16
        %v1542 = vrot.slane %v1540, 3
        %v1543 = vshll.u32 %v1282, 16
        %v1545 = vrot.slane %v1543, 4
        %v1546 = vor.u32 %v1542, %v1545
        %v1548 = vshrl.u32 %v1283, 16
        %v1550 = vrot.slane %v1548, 3
        %v1551 = vshll.u32 %v1283, 16
        %v1553 = vrot.slane %v1551, 4
        %v1554 = vor.u32 %v1550, %v1553
        %v1555 = vsel %vm688, %v1546, %v1554
        %1572 = vst.msk [vmem:[#allocation3 + $0x18] sm:$0xff] %vm977, %v1300
        %1573 = vst.msk [vmem:[#allocation3 + $0x60] sm:$0xff] %vm977, %v1317
        %1574 = vst.msk [vmem:[#allocation3 + $0xa8] sm:$0xff] %vm977, %v1334
        %1575 = vst.msk [vmem:[#allocation3 + $0xf0] sm:$0xff] %vm977, %v1351
        %1576 = vst.msk [vmem:[#allocation3 + $0x138] sm:$0xff] %vm977, %v1368
        %1577 = vst.msk [vmem:[#allocation3 + $0x180] sm:$0xff] %vm977, %v1385
        %1578 = vst.msk [vmem:[#allocation3 + $0x1c8] sm:$0xff] %vm977, %v1402
        %1579 = vst.msk [vmem:[#allocation3 + $0x210] sm:$0xff] %vm977, %v1419
        %1580 = vst.msk [vmem:[#allocation3 + $0x258] sm:$0xff] %vm977, %v1436
        %1581 = vst.msk [vmem:[#allocation3 + $0x2a0] sm:$0xff] %vm977, %v1453
        %1582 = vst.msk [vmem:[#allocation3 + $0x2e8] sm:$0xff] %vm977, %v1470
        %1583 = vst.msk [vmem:[#allocation3 + $0x330] sm:$0xff] %vm977, %v1487
        %1584 = vst.msk [vmem:[#allocation3 + $0x378] sm:$0xff] %vm977, %v1504
        %1585 = vst.msk [vmem:[#allocation3 + $0x3c0] sm:$0xff] %vm977, %v1521
        %1586 = vst.msk [vmem:[#allocation3 + $0x408] sm:$0xff] %vm977, %v1538
        %1587 = vst.msk [vmem:[#allocation3 + $0x450] sm:$0xff] %vm977, %v1555
        %v1620 = vrot.slane %v1252, 4
        %v1621 = vrot.slane %v1253, 4
        %v1622 = vsel %vm1026, %v1620, %v1621
        %v1623 = vrot.slane %v1254, 4
        %v1624 = vrot.slane %v1255, 4
        %v1625 = vsel %vm1026, %v1623, %v1624
        %v1626 = vrot.slane %v1256, 4
        %v1627 = vrot.slane %v1257, 4
        %v1628 = vsel %vm1026, %v1626, %v1627
        %v1629 = vrot.slane %v1258, 4
        %v1630 = vrot.slane %v1259, 4
        %v1631 = vsel %vm1026, %v1629, %v1630
        %v1632 = vrot.slane %v1260, 4
        %v1633 = vrot.slane %v1261, 4
        %v1634 = vsel %vm1026, %v1632, %v1633
        %v1635 = vrot.slane %v1262, 4
        %v1636 = vrot.slane %v1263, 4
        %v1637 = vsel %vm1026, %v1635, %v1636
        %v1638 = vrot.slane %v1264, 4
        %v1639 = vrot.slane %v1265, 4
        %v1640 = vsel %vm1026, %v1638, %v1639
        %v1641 = vrot.slane %v1266, 4
        %v1642 = vrot.slane %v1267, 4
        %v1643 = vsel %vm1026, %v1641, %v1642
        %v1644 = vrot.slane %v1268, 4
        %v1645 = vrot.slane %v1269, 4
        %v1646 = vsel %vm1026, %v1644, %v1645
        %v1647 = vrot.slane %v1270, 4
        %v1648 = vrot.slane %v1271, 4
        %v1649 = vsel %vm1026, %v1647, %v1648
        %v1650 = vrot.slane %v1272, 4
        %v1651 = vrot.slane %v1273, 4
        %v1652 = vsel %vm1026, %v1650, %v1651
        %v1653 = vrot.slane %v1274, 4
        %v1654 = vrot.slane %v1275, 4
        %v1655 = vsel %vm1026, %v1653, %v1654
        %v1656 = vrot.slane %v1276, 4
        %v1657 = vrot.slane %v1277, 4
        %v1658 = vsel %vm1026, %v1656, %v1657
        %v1659 = vrot.slane %v1278, 4
        %v1660 = vrot.slane %v1279, 4
        %v1661 = vsel %vm1026, %v1659, %v1660
        %v1662 = vrot.slane %v1280, 4
        %v1663 = vrot.slane %v1281, 4
        %v1664 = vsel %vm1026, %v1662, %v1663
        %v1665 = vrot.slane %v1282, 4
        %v1666 = vrot.slane %v1283, 4
        %v1667 = vsel %vm1026, %v1665, %v1666
        %1684 = vst.msk [vmem:[#allocation3 + $0x20] sm:$0xff] %vm977, %v1622
        %1685 = vst.msk [vmem:[#allocation3 + $0x68] sm:$0xff] %vm977, %v1625
        %1686 = vst.msk [vmem:[#allocation3 + $0xb0] sm:$0xff] %vm977, %v1628
        %1687 = vst.msk [vmem:[#allocation3 + $0xf8] sm:$0xff] %vm977, %v1631
        %1688 = vst.msk [vmem:[#allocation3 + $0x140] sm:$0xff] %vm977, %v1634
        %1689 = vst.msk [vmem:[#allocation3 + $0x188] sm:$0xff] %vm977, %v1637
        %1690 = vst.msk [vmem:[#allocation3 + $0x1d0] sm:$0xff] %vm977, %v1640
        %1691 = vst.msk [vmem:[#allocation3 + $0x218] sm:$0xff] %vm977, %v1643
        %1692 = vst.msk [vmem:[#allocation3 + $0x260] sm:$0xff] %vm977, %v1646
        %1693 = vst.msk [vmem:[#allocation3 + $0x2a8] sm:$0xff] %vm977, %v1649
        %1694 = vst.msk [vmem:[#allocation3 + $0x2f0] sm:$0xff] %vm977, %v1652
        %1695 = vst.msk [vmem:[#allocation3 + $0x338] sm:$0xff] %vm977, %v1655
        %1696 = vst.msk [vmem:[#allocation3 + $0x380] sm:$0xff] %vm977, %v1658
        %1697 = vst.msk [vmem:[#allocation3 + $0x3c8] sm:$0xff] %vm977, %v1661
        %1698 = vst.msk [vmem:[#allocation3 + $0x410] sm:$0xff] %vm977, %v1664
        %1699 = vst.msk [vmem:[#allocation3 + $0x458] sm:$0xff] %vm977, %v1667
        %v1700 = vrot.slane %v1285, 4
        %v1701 = vrot.slane %v1288, 5
        %v1702 = vor.u32 %v1700, %v1701
        %v1703 = vrot.slane %v1293, 4
        %v1704 = vrot.slane %v1296, 5
        %v1705 = vor.u32 %v1703, %v1704
        %v1706 = vsel %vm1107, %v1702, %v1705
        %v1707 = vrot.slane %v1302, 4
        %v1708 = vrot.slane %v1305, 5
        %v1709 = vor.u32 %v1707, %v1708
        %v1710 = vrot.slane %v1310, 4
        %v1711 = vrot.slane %v1313, 5
        %v1712 = vor.u32 %v1710, %v1711
        %v1713 = vsel %vm1107, %v1709, %v1712
        %v1714 = vrot.slane %v1319, 4
        %v1715 = vrot.slane %v1322, 5
        %v1716 = vor.u32 %v1714, %v1715
        %v1717 = vrot.slane %v1327, 4
        %v1718 = vrot.slane %v1330, 5
        %v1719 = vor.u32 %v1717, %v1718
        %v1720 = vsel %vm1107, %v1716, %v1719
        %v1721 = vrot.slane %v1336, 4
        %v1722 = vrot.slane %v1339, 5
        %v1723 = vor.u32 %v1721, %v1722
        %v1724 = vrot.slane %v1344, 4
        %v1725 = vrot.slane %v1347, 5
        %v1726 = vor.u32 %v1724, %v1725
        %v1727 = vsel %vm1107, %v1723, %v1726
        %v1728 = vrot.slane %v1353, 4
        %v1729 = vrot.slane %v1356, 5
        %v1730 = vor.u32 %v1728, %v1729
        %v1731 = vrot.slane %v1361, 4
        %v1732 = vrot.slane %v1364, 5
        %v1733 = vor.u32 %v1731, %v1732
        %v1734 = vsel %vm1107, %v1730, %v1733
        %v1735 = vrot.slane %v1370, 4
        %v1736 = vrot.slane %v1373, 5
        %v1737 = vor.u32 %v1735, %v1736
        %v1738 = vrot.slane %v1378, 4
        %v1739 = vrot.slane %v1381, 5
        %v1740 = vor.u32 %v1738, %v1739
        %v1741 = vsel %vm1107, %v1737, %v1740
        %v1742 = vrot.slane %v1387, 4
        %v1743 = vrot.slane %v1390, 5
        %v1744 = vor.u32 %v1742, %v1743
        %v1745 = vrot.slane %v1395, 4
        %v1746 = vrot.slane %v1398, 5
        %v1747 = vor.u32 %v1745, %v1746
        %v1748 = vsel %vm1107, %v1744, %v1747
        %v1749 = vrot.slane %v1404, 4
        %v1750 = vrot.slane %v1407, 5
        %v1751 = vor.u32 %v1749, %v1750
        %v1752 = vrot.slane %v1412, 4
        %v1753 = vrot.slane %v1415, 5
        %v1754 = vor.u32 %v1752, %v1753
        %v1755 = vsel %vm1107, %v1751, %v1754
        %v1756 = vrot.slane %v1421, 4
        %v1757 = vrot.slane %v1424, 5
        %v1758 = vor.u32 %v1756, %v1757
        %v1759 = vrot.slane %v1429, 4
        %v1760 = vrot.slane %v1432, 5
        %v1761 = vor.u32 %v1759, %v1760
        %v1762 = vsel %vm1107, %v1758, %v1761
        %v1763 = vrot.slane %v1438, 4
        %v1764 = vrot.slane %v1441, 5
        %v1765 = vor.u32 %v1763, %v1764
        %v1766 = vrot.slane %v1446, 4
        %v1767 = vrot.slane %v1449, 5
        %v1768 = vor.u32 %v1766, %v1767
        %v1769 = vsel %vm1107, %v1765, %v1768
        %v1770 = vrot.slane %v1455, 4
        %v1771 = vrot.slane %v1458, 5
        %v1772 = vor.u32 %v1770, %v1771
        %v1773 = vrot.slane %v1463, 4
        %v1774 = vrot.slane %v1466, 5
        %v1775 = vor.u32 %v1773, %v1774
        %v1776 = vsel %vm1107, %v1772, %v1775
        %v1777 = vrot.slane %v1472, 4
        %v1778 = vrot.slane %v1475, 5
        %v1779 = vor.u32 %v1777, %v1778
        %v1780 = vrot.slane %v1480, 4
        %v1781 = vrot.slane %v1483, 5
        %v1782 = vor.u32 %v1780, %v1781
        %v1783 = vsel %vm1107, %v1779, %v1782
        %v1784 = vrot.slane %v1489, 4
        %v1785 = vrot.slane %v1492, 5
        %v1786 = vor.u32 %v1784, %v1785
        %v1787 = vrot.slane %v1497, 4
        %v1788 = vrot.slane %v1500, 5
        %v1789 = vor.u32 %v1787, %v1788
        %v1790 = vsel %vm1107, %v1786, %v1789
        %v1791 = vrot.slane %v1506, 4
        %v1792 = vrot.slane %v1509, 5
        %v1793 = vor.u32 %v1791, %v1792
        %v1794 = vrot.slane %v1514, 4
        %v1795 = vrot.slane %v1517, 5
        %v1796 = vor.u32 %v1794, %v1795
        %v1797 = vsel %vm1107, %v1793, %v1796
        %v1798 = vrot.slane %v1523, 4
        %v1799 = vrot.slane %v1526, 5
        %v1800 = vor.u32 %v1798, %v1799
        %v1801 = vrot.slane %v1531, 4
        %v1802 = vrot.slane %v1534, 5
        %v1803 = vor.u32 %v1801, %v1802
        %v1804 = vsel %vm1107, %v1800, %v1803
        %v1805 = vrot.slane %v1540, 4
        %v1806 = vrot.slane %v1543, 5
        %v1807 = vor.u32 %v1805, %v1806
        %v1808 = vrot.slane %v1548, 4
        %v1809 = vrot.slane %v1551, 5
        %v1810 = vor.u32 %v1808, %v1809
        %v1811 = vsel %vm1107, %v1807, %v1810
        %1828 = vst.msk [vmem:[#allocation3 + $0x28] sm:$0xff] %vm977, %v1706
        %1829 = vst.msk [vmem:[#allocation3 + $0x70] sm:$0xff] %vm977, %v1713
        %1830 = vst.msk [vmem:[#allocation3 + $0xb8] sm:$0xff] %vm977, %v1720
        %1831 = vst.msk [vmem:[#allocation3 + $0x100] sm:$0xff] %vm977, %v1727
        %1832 = vst.msk [vmem:[#allocation3 + $0x148] sm:$0xff] %vm977, %v1734
        %1833 = vst.msk [vmem:[#allocation3 + $0x190] sm:$0xff] %vm977, %v1741
        %1834 = vst.msk [vmem:[#allocation3 + $0x1d8] sm:$0xff] %vm977, %v1748
        %1835 = vst.msk [vmem:[#allocation3 + $0x220] sm:$0xff] %vm977, %v1755
        %1836 = vst.msk [vmem:[#allocation3 + $0x268] sm:$0xff] %vm977, %v1762
        %1837 = vst.msk [vmem:[#allocation3 + $0x2b0] sm:$0xff] %vm977, %v1769
        %1838 = vst.msk [vmem:[#allocation3 + $0x2f8] sm:$0xff] %vm977, %v1776
        %1839 = vst.msk [vmem:[#allocation3 + $0x340] sm:$0xff] %vm977, %v1783
        %1840 = vst.msk [vmem:[#allocation3 + $0x388] sm:$0xff] %vm977, %v1790
        %1841 = vst.msk [vmem:[#allocation3 + $0x3d0] sm:$0xff] %vm977, %v1797
        %1842 = vst.msk [vmem:[#allocation3 + $0x418] sm:$0xff] %vm977, %v1804
        %1843 = vst.msk [vmem:[#allocation3 + $0x460] sm:$0xff] %vm977, %v1811
        %s1844 = scalar_lea.vmem [#allocation2], 32
        %v1845 = vld [vmem:[%s1844] sm:$0xf8]
        %v1846 = vld [vmem:[%s1844 + $0x8] sm:$0x1f]
        %v1847 = vld [vmem:[%s1844 + $0x10] sm:$0xf8]
        %v1848 = vld [vmem:[%s1844 + $0x18] sm:$0x1f]
        %v1849 = vld [vmem:[%s1844 + $0x20] sm:$0xf8]
        %v1850 = vld [vmem:[%s1844 + $0x28] sm:$0x1f]
        %v1851 = vld [vmem:[%s1844 + $0x30] sm:$0xf8]
        %v1852 = vld [vmem:[%s1844 + $0x38] sm:$0x1f]
        %v1853 = vld [vmem:[%s1844 + $0x40] sm:$0xf8]
        %v1854 = vld [vmem:[%s1844 + $0x48] sm:$0x1f]
        %v1855 = vld [vmem:[%s1844 + $0x50] sm:$0xf8]
        %v1856 = vld [vmem:[%s1844 + $0x58] sm:$0x1f]
        %v1857 = vld [vmem:[%s1844 + $0x60] sm:$0xf8]
        %v1858 = vld [vmem:[%s1844 + $0x68] sm:$0x1f]
        %v1859 = vld [vmem:[%s1844 + $0x70] sm:$0xf8]
        %v1860 = vld [vmem:[%s1844 + $0x78] sm:$0x1f]
        %v1861 = vld [vmem:[%s1844 + $0x80] sm:$0xf8]
        %v1862 = vld [vmem:[%s1844 + $0x88] sm:$0x1f]
        %v1863 = vld [vmem:[%s1844 + $0x90] sm:$0xf8]
        %v1864 = vld [vmem:[%s1844 + $0x98] sm:$0x1f]
        %v1865 = vld [vmem:[%s1844 + $0xa0] sm:$0xf8]
        %v1866 = vld [vmem:[%s1844 + $0xa8] sm:$0x1f]
        %v1867 = vld [vmem:[%s1844 + $0xb0] sm:$0xf8]
        %v1868 = vld [vmem:[%s1844 + $0xb8] sm:$0x1f]
        %v1869 = vld [vmem:[%s1844 + $0xc0] sm:$0xf8]
        %v1870 = vld [vmem:[%s1844 + $0xc8] sm:$0x1f]
        %v1871 = vld [vmem:[%s1844 + $0xd0] sm:$0xf8]
        %v1872 = vld [vmem:[%s1844 + $0xd8] sm:$0x1f]
        %v1873 = vld [vmem:[%s1844 + $0xe0] sm:$0xf8]
        %v1874 = vld [vmem:[%s1844 + $0xe8] sm:$0x1f]
        %v1875 = vld [vmem:[%s1844 + $0xf0] sm:$0xf8]
        %v1876 = vld [vmem:[%s1844 + $0xf8] sm:$0x1f]
        %v1878 = vshrl.u32 %v1845, 16
        %v1880 = vrot.slane %v1878, 3
        %v1881 = vshll.u32 %v1845, 16
        %v1883 = vrot.slane %v1881, 4
        %v1884 = vor.u32 %v1880, %v1883
        %v1886 = vshrl.u32 %v1846, 16
        %v1888 = vrot.slane %v1886, 3
        %v1889 = vshll.u32 %v1846, 16
        %v1891 = vrot.slane %v1889, 4
        %v1892 = vor.u32 %v1888, %v1891
        %v1893 = vsel %vm688, %v1884, %v1892
        %v1895 = vshrl.u32 %v1847, 16
        %v1897 = vrot.slane %v1895, 3
        %v1898 = vshll.u32 %v1847, 16
        %v1900 = vrot.slane %v1898, 4
        %v1901 = vor.u32 %v1897, %v1900
        %v1903 = vshrl.u32 %v1848, 16
        %v1905 = vrot.slane %v1903, 3
        %v1906 = vshll.u32 %v1848, 16
        %v1908 = vrot.slane %v1906, 4
        %v1909 = vor.u32 %v1905, %v1908
        %v1910 = vsel %vm688, %v1901, %v1909
        %v1912 = vshrl.u32 %v1849, 16
        %v1914 = vrot.slane %v1912, 3
        %v1915 = vshll.u32 %v1849, 16
        %v1917 = vrot.slane %v1915, 4
        %v1918 = vor.u32 %v1914, %v1917
        %v1920 = vshrl.u32 %v1850, 16
        %v1922 = vrot.slane %v1920, 3
        %v1923 = vshll.u32 %v1850, 16
        %v1925 = vrot.slane %v1923, 4
        %v1926 = vor.u32 %v1922, %v1925
        %v1927 = vsel %vm688, %v1918, %v1926
        %v1929 = vshrl.u32 %v1851, 16
        %v1931 = vrot.slane %v1929, 3
        %v1932 = vshll.u32 %v1851, 16
        %v1934 = vrot.slane %v1932, 4
        %v1935 = vor.u32 %v1931, %v1934
        %v1937 = vshrl.u32 %v1852, 16
        %v1939 = vrot.slane %v1937, 3
        %v1940 = vshll.u32 %v1852, 16
        %v1942 = vrot.slane %v1940, 4
        %v1943 = vor.u32 %v1939, %v1942
        %v1944 = vsel %vm688, %v1935, %v1943
        %v1946 = vshrl.u32 %v1853, 16
        %v1948 = vrot.slane %v1946, 3
        %v1949 = vshll.u32 %v1853, 16
        %v1951 = vrot.slane %v1949, 4
        %v1952 = vor.u32 %v1948, %v1951
        %v1954 = vshrl.u32 %v1854, 16
        %v1956 = vrot.slane %v1954, 3
        %v1957 = vshll.u32 %v1854, 16
        %v1959 = vrot.slane %v1957, 4
        %v1960 = vor.u32 %v1956, %v1959
        %v1961 = vsel %vm688, %v1952, %v1960
        %v1963 = vshrl.u32 %v1855, 16
        %v1965 = vrot.slane %v1963, 3
        %v1966 = vshll.u32 %v1855, 16
        %v1968 = vrot.slane %v1966, 4
        %v1969 = vor.u32 %v1965, %v1968
        %v1971 = vshrl.u32 %v1856, 16
        %v1973 = vrot.slane %v1971, 3
        %v1974 = vshll.u32 %v1856, 16
        %v1976 = vrot.slane %v1974, 4
        %v1977 = vor.u32 %v1973, %v1976
        %v1978 = vsel %vm688, %v1969, %v1977
        %v1980 = vshrl.u32 %v1857, 16
        %v1982 = vrot.slane %v1980, 3
        %v1983 = vshll.u32 %v1857, 16
        %v1985 = vrot.slane %v1983, 4
        %v1986 = vor.u32 %v1982, %v1985
        %v1988 = vshrl.u32 %v1858, 16
        %v1990 = vrot.slane %v1988, 3
        %v1991 = vshll.u32 %v1858, 16
        %v1993 = vrot.slane %v1991, 4
        %v1994 = vor.u32 %v1990, %v1993
        %v1995 = vsel %vm688, %v1986, %v1994
        %v1997 = vshrl.u32 %v1859, 16
        %v1999 = vrot.slane %v1997, 3
        %v2000 = vshll.u32 %v1859, 16
        %v2002 = vrot.slane %v2000, 4
        %v2003 = vor.u32 %v1999, %v2002
        %v2005 = vshrl.u32 %v1860, 16
        %v2007 = vrot.slane %v2005, 3
        %v2008 = vshll.u32 %v1860, 16
        %v2010 = vrot.slane %v2008, 4
        %v2011 = vor.u32 %v2007, %v2010
        %v2012 = vsel %vm688, %v2003, %v2011
        %v2014 = vshrl.u32 %v1861, 16
        %v2016 = vrot.slane %v2014, 3
        %v2017 = vshll.u32 %v1861, 16
        %v2019 = vrot.slane %v2017, 4
        %v2020 = vor.u32 %v2016, %v2019
        %v2022 = vshrl.u32 %v1862, 16
        %v2024 = vrot.slane %v2022, 3
        %v2025 = vshll.u32 %v1862, 16
        %v2027 = vrot.slane %v2025, 4
        %v2028 = vor.u32 %v2024, %v2027
        %v2029 = vsel %vm688, %v2020, %v2028
        %v2031 = vshrl.u32 %v1863, 16
        %v2033 = vrot.slane %v2031, 3
        %v2034 = vshll.u32 %v1863, 16
        %v2036 = vrot.slane %v2034, 4
        %v2037 = vor.u32 %v2033, %v2036
        %v2039 = vshrl.u32 %v1864, 16
        %v2041 = vrot.slane %v2039, 3
        %v2042 = vshll.u32 %v1864, 16
        %v2044 = vrot.slane %v2042, 4
        %v2045 = vor.u32 %v2041, %v2044
        %v2046 = vsel %vm688, %v2037, %v2045
        %v2048 = vshrl.u32 %v1865, 16
        %v2050 = vrot.slane %v2048, 3
        %v2051 = vshll.u32 %v1865, 16
        %v2053 = vrot.slane %v2051, 4
        %v2054 = vor.u32 %v2050, %v2053
        %v2056 = vshrl.u32 %v1866, 16
        %v2058 = vrot.slane %v2056, 3
        %v2059 = vshll.u32 %v1866, 16
        %v2061 = vrot.slane %v2059, 4
        %v2062 = vor.u32 %v2058, %v2061
        %v2063 = vsel %vm688, %v2054, %v2062
        %v2065 = vshrl.u32 %v1867, 16
        %v2067 = vrot.slane %v2065, 3
        %v2068 = vshll.u32 %v1867, 16
        %v2070 = vrot.slane %v2068, 4
        %v2071 = vor.u32 %v2067, %v2070
        %v2073 = vshrl.u32 %v1868, 16
        %v2075 = vrot.slane %v2073, 3
        %v2076 = vshll.u32 %v1868, 16
        %v2078 = vrot.slane %v2076, 4
        %v2079 = vor.u32 %v2075, %v2078
        %v2080 = vsel %vm688, %v2071, %v2079
        %v2082 = vshrl.u32 %v1869, 16
        %v2084 = vrot.slane %v2082, 3
        %v2085 = vshll.u32 %v1869, 16
        %v2087 = vrot.slane %v2085, 4
        %v2088 = vor.u32 %v2084, %v2087
        %v2090 = vshrl.u32 %v1870, 16
        %v2092 = vrot.slane %v2090, 3
        %v2093 = vshll.u32 %v1870, 16
        %v2095 = vrot.slane %v2093, 4
        %v2096 = vor.u32 %v2092, %v2095
        %v2097 = vsel %vm688, %v2088, %v2096
        %v2099 = vshrl.u32 %v1871, 16
        %v2101 = vrot.slane %v2099, 3
        %v2102 = vshll.u32 %v1871, 16
        %v2104 = vrot.slane %v2102, 4
        %v2105 = vor.u32 %v2101, %v2104
        %v2107 = vshrl.u32 %v1872, 16
        %v2109 = vrot.slane %v2107, 3
        %v2110 = vshll.u32 %v1872, 16
        %v2112 = vrot.slane %v2110, 4
        %v2113 = vor.u32 %v2109, %v2112
        %v2114 = vsel %vm688, %v2105, %v2113
        %v2116 = vshrl.u32 %v1873, 16
        %v2118 = vrot.slane %v2116, 3
        %v2119 = vshll.u32 %v1873, 16
        %v2121 = vrot.slane %v2119, 4
        %v2122 = vor.u32 %v2118, %v2121
        %v2124 = vshrl.u32 %v1874, 16
        %v2126 = vrot.slane %v2124, 3
        %v2127 = vshll.u32 %v1874, 16
        %v2129 = vrot.slane %v2127, 4
        %v2130 = vor.u32 %v2126, %v2129
        %v2131 = vsel %vm688, %v2122, %v2130
        %v2133 = vshrl.u32 %v1875, 16
        %v2135 = vrot.slane %v2133, 3
        %v2136 = vshll.u32 %v1875, 16
        %v2138 = vrot.slane %v2136, 4
        %v2139 = vor.u32 %v2135, %v2138
        %v2141 = vshrl.u32 %v1876, 16
        %v2143 = vrot.slane %v2141, 3
        %v2144 = vshll.u32 %v1876, 16
        %v2146 = vrot.slane %v2144, 4
        %v2147 = vor.u32 %v2143, %v2146
        %v2148 = vsel %vm688, %v2139, %v2147
        %2165 = vst.msk [vmem:[#allocation3 + $0x30] sm:$0xff] %vm977, %v1893
        %2166 = vst.msk [vmem:[#allocation3 + $0x78] sm:$0xff] %vm977, %v1910
        %2167 = vst.msk [vmem:[#allocation3 + $0xc0] sm:$0xff] %vm977, %v1927
        %2168 = vst.msk [vmem:[#allocation3 + $0x108] sm:$0xff] %vm977, %v1944
        %2169 = vst.msk [vmem:[#allocation3 + $0x150] sm:$0xff] %vm977, %v1961
        %2170 = vst.msk [vmem:[#allocation3 + $0x198] sm:$0xff] %vm977, %v1978
        %2171 = vst.msk [vmem:[#allocation3 + $0x1e0] sm:$0xff] %vm977, %v1995
        %2172 = vst.msk [vmem:[#allocation3 + $0x228] sm:$0xff] %vm977, %v2012
        %2173 = vst.msk [vmem:[#allocation3 + $0x270] sm:$0xff] %vm977, %v2029
        %2174 = vst.msk [vmem:[#allocation3 + $0x2b8] sm:$0xff] %vm977, %v2046
        %2175 = vst.msk [vmem:[#allocation3 + $0x300] sm:$0xff] %vm977, %v2063
        %2176 = vst.msk [vmem:[#allocation3 + $0x348] sm:$0xff] %vm977, %v2080
        %2177 = vst.msk [vmem:[#allocation3 + $0x390] sm:$0xff] %vm977, %v2097
        %2178 = vst.msk [vmem:[#allocation3 + $0x3d8] sm:$0xff] %vm977, %v2114
        %2179 = vst.msk [vmem:[#allocation3 + $0x420] sm:$0xff] %vm977, %v2131
        %2180 = vst.msk [vmem:[#allocation3 + $0x468] sm:$0xff] %vm977, %v2148
        %v2213 = vrot.slane %v1845, 4
        %v2214 = vrot.slane %v1846, 4
        %v2215 = vsel %vm1026, %v2213, %v2214
        %v2216 = vrot.slane %v1847, 4
        %v2217 = vrot.slane %v1848, 4
        %v2218 = vsel %vm1026, %v2216, %v2217
        %v2219 = vrot.slane %v1849, 4
        %v2220 = vrot.slane %v1850, 4
        %v2221 = vsel %vm1026, %v2219, %v2220
        %v2222 = vrot.slane %v1851, 4
        %v2223 = vrot.slane %v1852, 4
        %v2224 = vsel %vm1026, %v2222, %v2223
        %v2225 = vrot.slane %v1853, 4
        %v2226 = vrot.slane %v1854, 4
        %v2227 = vsel %vm1026, %v2225, %v2226
        %v2228 = vrot.slane %v1855, 4
        %v2229 = vrot.slane %v1856, 4
        %v2230 = vsel %vm1026, %v2228, %v2229
        %v2231 = vrot.slane %v1857, 4
        %v2232 = vrot.slane %v1858, 4
        %v2233 = vsel %vm1026, %v2231, %v2232
        %v2234 = vrot.slane %v1859, 4
        %v2235 = vrot.slane %v1860, 4
        %v2236 = vsel %vm1026, %v2234, %v2235
        %v2237 = vrot.slane %v1861, 4
        %v2238 = vrot.slane %v1862, 4
        %v2239 = vsel %vm1026, %v2237, %v2238
        %v2240 = vrot.slane %v1863, 4
        %v2241 = vrot.slane %v1864, 4
        %v2242 = vsel %vm1026, %v2240, %v2241
        %v2243 = vrot.slane %v1865, 4
        %v2244 = vrot.slane %v1866, 4
        %v2245 = vsel %vm1026, %v2243, %v2244
        %v2246 = vrot.slane %v1867, 4
        %v2247 = vrot.slane %v1868, 4
        %v2248 = vsel %vm1026, %v2246, %v2247
        %v2249 = vrot.slane %v1869, 4
        %v2250 = vrot.slane %v1870, 4
        %v2251 = vsel %vm1026, %v2249, %v2250
        %v2252 = vrot.slane %v1871, 4
        %v2253 = vrot.slane %v1872, 4
        %v2254 = vsel %vm1026, %v2252, %v2253
        %v2255 = vrot.slane %v1873, 4
        %v2256 = vrot.slane %v1874, 4
        %v2257 = vsel %vm1026, %v2255, %v2256
        %v2258 = vrot.slane %v1875, 4
        %v2259 = vrot.slane %v1876, 4
        %v2260 = vsel %vm1026, %v2258, %v2259
        %2277 = vst.msk [vmem:[#allocation3 + $0x38] sm:$0xff] %vm977, %v2215
        %2278 = vst.msk [vmem:[#allocation3 + $0x80] sm:$0xff] %vm977, %v2218
        %2279 = vst.msk [vmem:[#allocation3 + $0xc8] sm:$0xff] %vm977, %v2221
        %2280 = vst.msk [vmem:[#allocation3 + $0x110] sm:$0xff] %vm977, %v2224
        %2281 = vst.msk [vmem:[#allocation3 + $0x158] sm:$0xff] %vm977, %v2227
        %2282 = vst.msk [vmem:[#allocation3 + $0x1a0] sm:$0xff] %vm977, %v2230
        %2283 = vst.msk [vmem:[#allocation3 + $0x1e8] sm:$0xff] %vm977, %v2233
        %2284 = vst.msk [vmem:[#allocation3 + $0x230] sm:$0xff] %vm977, %v2236
        %2285 = vst.msk [vmem:[#allocation3 + $0x278] sm:$0xff] %vm977, %v2239
        %2286 = vst.msk [vmem:[#allocation3 + $0x2c0] sm:$0xff] %vm977, %v2242
        %2287 = vst.msk [vmem:[#allocation3 + $0x308] sm:$0xff] %vm977, %v2245
        %2288 = vst.msk [vmem:[#allocation3 + $0x350] sm:$0xff] %vm977, %v2248
        %2289 = vst.msk [vmem:[#allocation3 + $0x398] sm:$0xff] %vm977, %v2251
        %2290 = vst.msk [vmem:[#allocation3 + $0x3e0] sm:$0xff] %vm977, %v2254
        %2291 = vst.msk [vmem:[#allocation3 + $0x428] sm:$0xff] %vm977, %v2257
        %2292 = vst.msk [vmem:[#allocation3 + $0x470] sm:$0xff] %vm977, %v2260
        %v2293 = vrot.slane %v1878, 4
        %v2294 = vrot.slane %v1881, 5
        %v2295 = vor.u32 %v2293, %v2294
        %v2296 = vrot.slane %v1886, 4
        %v2297 = vrot.slane %v1889, 5
        %v2298 = vor.u32 %v2296, %v2297
        %v2299 = vsel %vm1107, %v2295, %v2298
        %v2300 = vrot.slane %v1895, 4
        %v2301 = vrot.slane %v1898, 5
        %v2302 = vor.u32 %v2300, %v2301
        %v2303 = vrot.slane %v1903, 4
        %v2304 = vrot.slane %v1906, 5
        %v2305 = vor.u32 %v2303, %v2304
        %v2306 = vsel %vm1107, %v2302, %v2305
        %v2307 = vrot.slane %v1912, 4
        %v2308 = vrot.slane %v1915, 5
        %v2309 = vor.u32 %v2307, %v2308
        %v2310 = vrot.slane %v1920, 4
        %v2311 = vrot.slane %v1923, 5
        %v2312 = vor.u32 %v2310, %v2311
        %v2313 = vsel %vm1107, %v2309, %v2312
        %v2314 = vrot.slane %v1929, 4
        %v2315 = vrot.slane %v1932, 5
        %v2316 = vor.u32 %v2314, %v2315
        %v2317 = vrot.slane %v1937, 4
        %v2318 = vrot.slane %v1940, 5
        %v2319 = vor.u32 %v2317, %v2318
        %v2320 = vsel %vm1107, %v2316, %v2319
        %v2321 = vrot.slane %v1946, 4
        %v2322 = vrot.slane %v1949, 5
        %v2323 = vor.u32 %v2321, %v2322
        %v2324 = vrot.slane %v1954, 4
        %v2325 = vrot.slane %v1957, 5
        %v2326 = vor.u32 %v2324, %v2325
        %v2327 = vsel %vm1107, %v2323, %v2326
        %v2328 = vrot.slane %v1963, 4
        %v2329 = vrot.slane %v1966, 5
        %v2330 = vor.u32 %v2328, %v2329
        %v2331 = vrot.slane %v1971, 4
        %v2332 = vrot.slane %v1974, 5
        %v2333 = vor.u32 %v2331, %v2332
        %v2334 = vsel %vm1107, %v2330, %v2333
        %v2335 = vrot.slane %v1980, 4
        %v2336 = vrot.slane %v1983, 5
        %v2337 = vor.u32 %v2335, %v2336
        %v2338 = vrot.slane %v1988, 4
        %v2339 = vrot.slane %v1991, 5
        %v2340 = vor.u32 %v2338, %v2339
        %v2341 = vsel %vm1107, %v2337, %v2340
        %v2342 = vrot.slane %v1997, 4
        %v2343 = vrot.slane %v2000, 5
        %v2344 = vor.u32 %v2342, %v2343
        %v2345 = vrot.slane %v2005, 4
        %v2346 = vrot.slane %v2008, 5
        %v2347 = vor.u32 %v2345, %v2346
        %v2348 = vsel %vm1107, %v2344, %v2347
        %v2349 = vrot.slane %v2014, 4
        %v2350 = vrot.slane %v2017, 5
        %v2351 = vor.u32 %v2349, %v2350
        %v2352 = vrot.slane %v2022, 4
        %v2353 = vrot.slane %v2025, 5
        %v2354 = vor.u32 %v2352, %v2353
        %v2355 = vsel %vm1107, %v2351, %v2354
        %v2356 = vrot.slane %v2031, 4
        %v2357 = vrot.slane %v2034, 5
        %v2358 = vor.u32 %v2356, %v2357
        %v2359 = vrot.slane %v2039, 4
        %v2360 = vrot.slane %v2042, 5
        %v2361 = vor.u32 %v2359, %v2360
        %v2362 = vsel %vm1107, %v2358, %v2361
        %v2363 = vrot.slane %v2048, 4
        %v2364 = vrot.slane %v2051, 5
        %v2365 = vor.u32 %v2363, %v2364
        %v2366 = vrot.slane %v2056, 4
        %v2367 = vrot.slane %v2059, 5
        %v2368 = vor.u32 %v2366, %v2367
        %v2369 = vsel %vm1107, %v2365, %v2368
        %v2370 = vrot.slane %v2065, 4
        %v2371 = vrot.slane %v2068, 5
        %v2372 = vor.u32 %v2370, %v2371
        %v2373 = vrot.slane %v2073, 4
        %v2374 = vrot.slane %v2076, 5
        %v2375 = vor.u32 %v2373, %v2374
        %v2376 = vsel %vm1107, %v2372, %v2375
        %v2377 = vrot.slane %v2082, 4
        %v2378 = vrot.slane %v2085, 5
        %v2379 = vor.u32 %v2377, %v2378
        %v2380 = vrot.slane %v2090, 4
        %v2381 = vrot.slane %v2093, 5
        %v2382 = vor.u32 %v2380, %v2381
        %v2383 = vsel %vm1107, %v2379, %v2382
        %v2384 = vrot.slane %v2099, 4
        %v2385 = vrot.slane %v2102, 5
        %v2386 = vor.u32 %v2384, %v2385
        %v2387 = vrot.slane %v2107, 4
        %v2388 = vrot.slane %v2110, 5
        %v2389 = vor.u32 %v2387, %v2388
        %v2390 = vsel %vm1107, %v2386, %v2389
        %v2391 = vrot.slane %v2116, 4
        %v2392 = vrot.slane %v2119, 5
        %v2393 = vor.u32 %v2391, %v2392
        %v2394 = vrot.slane %v2124, 4
        %v2395 = vrot.slane %v2127, 5
        %v2396 = vor.u32 %v2394, %v2395
        %v2397 = vsel %vm1107, %v2393, %v2396
        %v2398 = vrot.slane %v2133, 4
        %v2399 = vrot.slane %v2136, 5
        %v2400 = vor.u32 %v2398, %v2399
        %v2401 = vrot.slane %v2141, 4
        %v2402 = vrot.slane %v2144, 5
        %v2403 = vor.u32 %v2401, %v2402
        %v2404 = vsel %vm1107, %v2400, %v2403
        %2421 = vst.msk [vmem:[#allocation3 + $0x40] sm:$0xff] %vm977, %v2299
        %2422 = vst.msk [vmem:[#allocation3 + $0x88] sm:$0xff] %vm977, %v2306
        %2423 = vst.msk [vmem:[#allocation3 + $0xd0] sm:$0xff] %vm977, %v2313
        %2424 = vst.msk [vmem:[#allocation3 + $0x118] sm:$0xff] %vm977, %v2320
        %2425 = vst.msk [vmem:[#allocation3 + $0x160] sm:$0xff] %vm977, %v2327
        %2426 = vst.msk [vmem:[#allocation3 + $0x1a8] sm:$0xff] %vm977, %v2334
        %2427 = vst.msk [vmem:[#allocation3 + $0x1f0] sm:$0xff] %vm977, %v2341
        %2428 = vst.msk [vmem:[#allocation3 + $0x238] sm:$0xff] %vm977, %v2348
        %2429 = vst.msk [vmem:[#allocation3 + $0x280] sm:$0xff] %vm977, %v2355
        %2430 = vst.msk [vmem:[#allocation3 + $0x2c8] sm:$0xff] %vm977, %v2362
        %2431 = vst.msk [vmem:[#allocation3 + $0x310] sm:$0xff] %vm977, %v2369
        %2432 = vst.msk [vmem:[#allocation3 + $0x358] sm:$0xff] %vm977, %v2376
        %2433 = vst.msk [vmem:[#allocation3 + $0x3a0] sm:$0xff] %vm977, %v2383
        %2434 = vst.msk [vmem:[#allocation3 + $0x3e8] sm:$0xff] %vm977, %v2390
        %2435 = vst.msk [vmem:[#allocation3 + $0x430] sm:$0xff] %vm977, %v2397
        %2436 = vst.msk [vmem:[#allocation3 + $0x478] sm:$0xff] %vm977, %v2404
        %v2437 = vld [vmem:[#allocation3] sm:$0xff]
        %v2438 = vld [vmem:[#allocation3 + $0x8] sm:$0xff]
        %v2439 = vld [vmem:[#allocation3 + $0x10] sm:$0xff]
        %v2440 = vld [vmem:[#allocation3 + $0x18] sm:$0xff]
        %v2441 = vld [vmem:[#allocation3 + $0x20] sm:$0xff]
        %v2442 = vld [vmem:[#allocation3 + $0x28] sm:$0xff]
        %v2443 = vld [vmem:[#allocation3 + $0x30] sm:$0xff]
        %v2444 = vld [vmem:[#allocation3 + $0x38] sm:$0xff]
        %v2445 = vld [vmem:[#allocation3 + $0x40] sm:$0xff]
        %v2446 = vld [vmem:[#allocation3 + $0x48] sm:$0xff]
        %v2447 = vld [vmem:[#allocation3 + $0x50] sm:$0xff]
        %v2448 = vld [vmem:[#allocation3 + $0x58] sm:$0xff]
        %v2449 = vld [vmem:[#allocation3 + $0x60] sm:$0xff]
        %v2450 = vld [vmem:[#allocation3 + $0x68] sm:$0xff]
        %v2451 = vld [vmem:[#allocation3 + $0x70] sm:$0xff]
        %v2452 = vld [vmem:[#allocation3 + $0x78] sm:$0xff]
        %v2453 = vld [vmem:[#allocation3 + $0x80] sm:$0xff]
        %v2454 = vld [vmem:[#allocation3 + $0x88] sm:$0xff]
        %v2455 = vld [vmem:[#allocation3 + $0x90] sm:$0xff]
        %v2456 = vld [vmem:[#allocation3 + $0x98] sm:$0xff]
        %v2457 = vld [vmem:[#allocation3 + $0xa0] sm:$0xff]
        %v2458 = vld [vmem:[#allocation3 + $0xa8] sm:$0xff]
        %v2459 = vld [vmem:[#allocation3 + $0xb0] sm:$0xff]
        %v2460 = vld [vmem:[#allocation3 + $0xb8] sm:$0xff]
        %v2461 = vld [vmem:[#allocation3 + $0xc0] sm:$0xff]
        %v2462 = vld [vmem:[#allocation3 + $0xc8] sm:$0xff]
        %v2463 = vld [vmem:[#allocation3 + $0xd0] sm:$0xff]
        %v2464 = vld [vmem:[#allocation3 + $0xd8] sm:$0xff]
        %v2465 = vld [vmem:[#allocation3 + $0xe0] sm:$0xff]
        %v2466 = vld [vmem:[#allocation3 + $0xe8] sm:$0xff]
        %v2467 = vld [vmem:[#allocation3 + $0xf0] sm:$0xff]
        %v2468 = vld [vmem:[#allocation3 + $0xf8] sm:$0xff]
        %v2469 = vld [vmem:[#allocation3 + $0x100] sm:$0xff]
        %v2470 = vld [vmem:[#allocation3 + $0x108] sm:$0xff]
        %v2471 = vld [vmem:[#allocation3 + $0x110] sm:$0xff]
        %v2472 = vld [vmem:[#allocation3 + $0x118] sm:$0xff]
        %v2473 = vld [vmem:[#allocation3 + $0x120] sm:$0xff]
        %v2474 = vld [vmem:[#allocation3 + $0x128] sm:$0xff]
        %v2475 = vld [vmem:[#allocation3 + $0x130] sm:$0xff]
        %v2476 = vld [vmem:[#allocation3 + $0x138] sm:$0xff]
        %v2477 = vld [vmem:[#allocation3 + $0x140] sm:$0xff]
        %v2478 = vld [vmem:[#allocation3 + $0x148] sm:$0xff]
        %v2479 = vld [vmem:[#allocation3 + $0x150] sm:$0xff]
        %v2480 = vld [vmem:[#allocation3 + $0x158] sm:$0xff]
        %v2481 = vld [vmem:[#allocation3 + $0x160] sm:$0xff]
        %v2482 = vld [vmem:[#allocation3 + $0x168] sm:$0xff]
        %v2483 = vld [vmem:[#allocation3 + $0x170] sm:$0xff]
        %v2484 = vld [vmem:[#allocation3 + $0x178] sm:$0xff]
        %v2485 = vld [vmem:[#allocation3 + $0x180] sm:$0xff]
        %v2486 = vld [vmem:[#allocation3 + $0x188] sm:$0xff]
        %v2487 = vld [vmem:[#allocation3 + $0x190] sm:$0xff]
        %v2488 = vld [vmem:[#allocation3 + $0x198] sm:$0xff]
        %v2489 = vld [vmem:[#allocation3 + $0x1a0] sm:$0xff]
        %v2490 = vld [vmem:[#allocation3 + $0x1a8] sm:$0xff]
        %v2491 = vld [vmem:[#allocation3 + $0x1b0] sm:$0xff]
        %v2492 = vld [vmem:[#allocation3 + $0x1b8] sm:$0xff]
        %v2493 = vld [vmem:[#allocation3 + $0x1c0] sm:$0xff]
        %v2494 = vld [vmem:[#allocation3 + $0x1c8] sm:$0xff]
        %v2495 = vld [vmem:[#allocation3 + $0x1d0] sm:$0xff]
        %v2496 = vld [vmem:[#allocation3 + $0x1d8] sm:$0xff]
        %v2497 = vld [vmem:[#allocation3 + $0x1e0] sm:$0xff]
        %v2498 = vld [vmem:[#allocation3 + $0x1e8] sm:$0xff]
        %v2499 = vld [vmem:[#allocation3 + $0x1f0] sm:$0xff]
        %v2500 = vld [vmem:[#allocation3 + $0x1f8] sm:$0xff]
        %v2501 = vld [vmem:[#allocation3 + $0x200] sm:$0xff]
        %v2502 = vld [vmem:[#allocation3 + $0x208] sm:$0xff]
        %v2503 = vld [vmem:[#allocation3 + $0x210] sm:$0xff]
        %v2504 = vld [vmem:[#allocation3 + $0x218] sm:$0xff]
        %v2505 = vld [vmem:[#allocation3 + $0x220] sm:$0xff]
        %v2506 = vld [vmem:[#allocation3 + $0x228] sm:$0xff]
        %v2507 = vld [vmem:[#allocation3 + $0x230] sm:$0xff]
        %v2508 = vld [vmem:[#allocation3 + $0x238] sm:$0xff]
        %v2509 = vld [vmem:[#allocation3 + $0x240] sm:$0xff]
        %v2510 = vld [vmem:[#allocation3 + $0x248] sm:$0xff]
        %v2511 = vld [vmem:[#allocation3 + $0x250] sm:$0xff]
        %v2512 = vld [vmem:[#allocation3 + $0x258] sm:$0xff]
        %v2513 = vld [vmem:[#allocation3 + $0x260] sm:$0xff]
        %v2514 = vld [vmem:[#allocation3 + $0x268] sm:$0xff]
        %v2515 = vld [vmem:[#allocation3 + $0x270] sm:$0xff]
        %v2516 = vld [vmem:[#allocation3 + $0x278] sm:$0xff]
        %v2517 = vld [vmem:[#allocation3 + $0x280] sm:$0xff]
        %v2518 = vld [vmem:[#allocation3 + $0x288] sm:$0xff]
        %v2519 = vld [vmem:[#allocation3 + $0x290] sm:$0xff]
        %v2520 = vld [vmem:[#allocation3 + $0x298] sm:$0xff]
        %v2521 = vld [vmem:[#allocation3 + $0x2a0] sm:$0xff]
        %v2522 = vld [vmem:[#allocation3 + $0x2a8] sm:$0xff]
        %v2523 = vld [vmem:[#allocation3 + $0x2b0] sm:$0xff]
        %v2524 = vld [vmem:[#allocation3 + $0x2b8] sm:$0xff]
        %v2525 = vld [vmem:[#allocation3 + $0x2c0] sm:$0xff]
        %v2526 = vld [vmem:[#allocation3 + $0x2c8] sm:$0xff]
        %v2527 = vld [vmem:[#allocation3 + $0x2d0] sm:$0xff]
        %v2528 = vld [vmem:[#allocation3 + $0x2d8] sm:$0xff]
        %v2529 = vld [vmem:[#allocation3 + $0x2e0] sm:$0xff]
        %v2530 = vld [vmem:[#allocation3 + $0x2e8] sm:$0xff]
        %v2531 = vld [vmem:[#allocation3 + $0x2f0] sm:$0xff]
        %v2532 = vld [vmem:[#allocation3 + $0x2f8] sm:$0xff]
        %v2533 = vld [vmem:[#allocation3 + $0x300] sm:$0xff]
        %v2534 = vld [vmem:[#allocation3 + $0x308] sm:$0xff]
        %v2535 = vld [vmem:[#allocation3 + $0x310] sm:$0xff]
        %v2536 = vld [vmem:[#allocation3 + $0x318] sm:$0xff]
        %v2537 = vld [vmem:[#allocation3 + $0x320] sm:$0xff]
        %v2538 = vld [vmem:[#allocation3 + $0x328] sm:$0xff]
        %v2539 = vld [vmem:[#allocation3 + $0x330] sm:$0xff]
        %v2540 = vld [vmem:[#allocation3 + $0x338] sm:$0xff]
        %v2541 = vld [vmem:[#allocation3 + $0x340] sm:$0xff]
        %v2542 = vld [vmem:[#allocation3 + $0x348] sm:$0xff]
        %v2543 = vld [vmem:[#allocation3 + $0x350] sm:$0xff]
        %v2544 = vld [vmem:[#allocation3 + $0x358] sm:$0xff]
        %v2545 = vld [vmem:[#allocation3 + $0x360] sm:$0xff]
        %v2546 = vld [vmem:[#allocation3 + $0x368] sm:$0xff]
        %v2547 = vld [vmem:[#allocation3 + $0x370] sm:$0xff]
        %v2548 = vld [vmem:[#allocation3 + $0x378] sm:$0xff]
        %v2549 = vld [vmem:[#allocation3 + $0x380] sm:$0xff]
        %v2550 = vld [vmem:[#allocation3 + $0x388] sm:$0xff]
        %v2551 = vld [vmem:[#allocation3 + $0x390] sm:$0xff]
        %v2552 = vld [vmem:[#allocation3 + $0x398] sm:$0xff]
        %v2553 = vld [vmem:[#allocation3 + $0x3a0] sm:$0xff]
        %v2554 = vld [vmem:[#allocation3 + $0x3a8] sm:$0xff]
        %v2555 = vld [vmem:[#allocation3 + $0x3b0] sm:$0xff]
        %v2556 = vld [vmem:[#allocation3 + $0x3b8] sm:$0xff]
        %v2557 = vld [vmem:[#allocation3 + $0x3c0] sm:$0xff]
        %v2558 = vld [vmem:[#allocation3 + $0x3c8] sm:$0xff]
        %v2559 = vld [vmem:[#allocation3 + $0x3d0] sm:$0xff]
        %v2560 = vld [vmem:[#allocation3 + $0x3d8] sm:$0xff]
        %v2561 = vld [vmem:[#allocation3 + $0x3e0] sm:$0xff]
        %v2562 = vld [vmem:[#allocation3 + $0x3e8] sm:$0xff]
        %v2563 = vld [vmem:[#allocation3 + $0x3f0] sm:$0xff]
        %v2564 = vld [vmem:[#allocation3 + $0x3f8] sm:$0xff]
        %v2565 = vld [vmem:[#allocation3 + $0x400] sm:$0xff]
        %v2566 = vld [vmem:[#allocation3 + $0x408] sm:$0xff]
        %v2567 = vld [vmem:[#allocation3 + $0x410] sm:$0xff]
        %v2568 = vld [vmem:[#allocation3 + $0x418] sm:$0xff]
        %v2569 = vld [vmem:[#allocation3 + $0x420] sm:$0xff]
        %v2570 = vld [vmem:[#allocation3 + $0x428] sm:$0xff]
        %v2571 = vld [vmem:[#allocation3 + $0x430] sm:$0xff]
        %v2572 = vld [vmem:[#allocation3 + $0x438] sm:$0xff]
        %v2573 = vld [vmem:[#allocation3 + $0x440] sm:$0xff]
        %v2574 = vld [vmem:[#allocation3 + $0x448] sm:$0xff]
        %v2575 = vld [vmem:[#allocation3 + $0x450] sm:$0xff]
        %v2576 = vld [vmem:[#allocation3 + $0x458] sm:$0xff]
        %v2577 = vld [vmem:[#allocation3 + $0x460] sm:$0xff]
        %v2578 = vld [vmem:[#allocation3 + $0x468] sm:$0xff]
        %v2579 = vld [vmem:[#allocation3 + $0x470] sm:$0xff]
        %v2580 = vld [vmem:[#allocation3 + $0x478] sm:$0xff]
        %v2581 = vld [vmem:[#allocation7] sm:$0xf]
        %v2582 = vld [vmem:[#allocation7 + $0x4] sm:$0xf]
        %v2583 = vld [vmem:[#allocation7 + $0x8] sm:$0xf]
        %v2584 = vld [vmem:[#allocation7 + $0xc] sm:$0xf]
        %v2585 = vld [vmem:[#allocation7 + $0x10] sm:$0xf]
        %v2586 = vld [vmem:[#allocation7 + $0x14] sm:$0xf]
        %v2587 = vld [vmem:[#allocation7 + $0x18] sm:$0xf]
        %v2588 = vld [vmem:[#allocation7 + $0x1c] sm:$0xf]
        %v2589 = vld [vmem:[#allocation7 + $0x20] sm:$0xf]
        %v2590 = vld [vmem:[#allocation7 + $0x24] sm:$0xf]
        %v2591 = vld [vmem:[#allocation7 + $0x28] sm:$0xf]
        %v2592 = vld [vmem:[#allocation7 + $0x2c] sm:$0xf]
        %v2593 = vld [vmem:[#allocation7 + $0x30] sm:$0xf]
        %v2594 = vld [vmem:[#allocation7 + $0x34] sm:$0xf]
        %v2595 = vld [vmem:[#allocation7 + $0x38] sm:$0xf]
        %v2596 = vld [vmem:[#allocation7 + $0x3c] sm:$0xf]
        %v2597 = vld [vmem:[#allocation7 + $0x40] sm:$0xf]
        %v2598 = vld [vmem:[#allocation7 + $0x44] sm:$0xf]
        %v2599 = vld [vmem:[#allocation7 + $0x48] sm:$0xf]
        %v2600 = vld [vmem:[#allocation7 + $0x4c] sm:$0xf]
        %v2601 = vld [vmem:[#allocation7 + $0x50] sm:$0xf]
        %v2602 = vld [vmem:[#allocation7 + $0x54] sm:$0xf]
        %v2603 = vld [vmem:[#allocation7 + $0x58] sm:$0xf]
        %v2604 = vld [vmem:[#allocation7 + $0x5c] sm:$0xf]
        %v2605 = vld [vmem:[#allocation7 + $0x60] sm:$0xf]
        %v2606 = vld [vmem:[#allocation7 + $0x64] sm:$0xf]
        %v2607 = vld [vmem:[#allocation7 + $0x68] sm:$0xf]
        %v2608 = vld [vmem:[#allocation7 + $0x6c] sm:$0xf]
        %v2609 = vld [vmem:[#allocation7 + $0x70] sm:$0xf]
        %v2610 = vld [vmem:[#allocation7 + $0x74] sm:$0xf]
        %v2611 = vld [vmem:[#allocation7 + $0x78] sm:$0xf]
        %v2612 = vld [vmem:[#allocation7 + $0x7c] sm:$0xf]
        %v2613 = vld [vmem:[#allocation7 + $0x80] sm:$0xf]
        %v2614 = vld [vmem:[#allocation7 + $0x84] sm:$0xf]
        %v2615 = vld [vmem:[#allocation7 + $0x88] sm:$0xf]
        %v2616 = vld [vmem:[#allocation7 + $0x8c] sm:$0xf]
        %v2617 = vld [vmem:[#allocation7 + $0x90] sm:$0xf]
        %v2618 = vld [vmem:[#allocation7 + $0x94] sm:$0xf]
        %v2619 = vld [vmem:[#allocation7 + $0x98] sm:$0xf]
        %v2620 = vld [vmem:[#allocation7 + $0x9c] sm:$0xf]
        %v2621 = vld [vmem:[#allocation7 + $0xa0] sm:$0xf]
        %v2622 = vld [vmem:[#allocation7 + $0xa4] sm:$0xf]
        %v2623 = vld [vmem:[#allocation7 + $0xa8] sm:$0xf]
        %v2624 = vld [vmem:[#allocation7 + $0xac] sm:$0xf]
        %v2625 = vld [vmem:[#allocation7 + $0xb0] sm:$0xf]
        %v2626 = vld [vmem:[#allocation7 + $0xb4] sm:$0xf]
        %v2627 = vld [vmem:[#allocation7 + $0xb8] sm:$0xf]
        %v2628 = vld [vmem:[#allocation7 + $0xbc] sm:$0xf]
        %v2629 = vld [vmem:[#allocation7 + $0xc0] sm:$0xf]
        %v2630 = vld [vmem:[#allocation7 + $0xc4] sm:$0xf]
        %v2631 = vld [vmem:[#allocation7 + $0xc8] sm:$0xf]
        %v2632 = vld [vmem:[#allocation7 + $0xcc] sm:$0xf]
        %v2633 = vld [vmem:[#allocation7 + $0xd0] sm:$0xf]
        %v2634 = vld [vmem:[#allocation7 + $0xd4] sm:$0xf]
        %v2635 = vld [vmem:[#allocation7 + $0xd8] sm:$0xf]
        %v2636 = vld [vmem:[#allocation7 + $0xdc] sm:$0xf]
        %v2637 = vld [vmem:[#allocation7 + $0xe0] sm:$0xf]
        %v2638 = vld [vmem:[#allocation7 + $0xe4] sm:$0xf]
        %v2639 = vld [vmem:[#allocation7 + $0xe8] sm:$0xf]
        %v2640 = vld [vmem:[#allocation7 + $0xec] sm:$0xf]
        %v2641 = vld [vmem:[#allocation7 + $0xf0] sm:$0xf]
        %v2642 = vld [vmem:[#allocation7 + $0xf4] sm:$0xf]
        %v2643 = vld [vmem:[#allocation7 + $0xf8] sm:$0xf]
        %v2644 = vld [vmem:[#allocation7 + $0xfc] sm:$0xf]
        %v2645 = vld [vmem:[#allocation7 + $0x100] sm:$0xf]
        %v2646 = vld [vmem:[#allocation7 + $0x104] sm:$0xf]
        %v2647 = vld [vmem:[#allocation7 + $0x108] sm:$0xf]
        %v2648 = vld [vmem:[#allocation7 + $0x10c] sm:$0xf]
        %v2649 = vld [vmem:[#allocation7 + $0x110] sm:$0xf]
        %v2650 = vld [vmem:[#allocation7 + $0x114] sm:$0xf]
        %v2651 = vld [vmem:[#allocation7 + $0x118] sm:$0xf]
        %v2652 = vld [vmem:[#allocation7 + $0x11c] sm:$0xf]
        %v2653 = vld [vmem:[#allocation7 + $0x120] sm:$0xf]
        %v2654 = vld [vmem:[#allocation7 + $0x124] sm:$0xf]
        %v2655 = vld [vmem:[#allocation7 + $0x128] sm:$0xf]
        %v2656 = vld [vmem:[#allocation7 + $0x12c] sm:$0xf]
        %v2657 = vld [vmem:[#allocation7 + $0x130] sm:$0xf]
        %v2658 = vld [vmem:[#allocation7 + $0x134] sm:$0xf]
        %v2659 = vld [vmem:[#allocation7 + $0x138] sm:$0xf]
        %v2660 = vld [vmem:[#allocation7 + $0x13c] sm:$0xf]
        %v2661 = vld [vmem:[#allocation7 + $0x140] sm:$0xf]
        %v2662 = vld [vmem:[#allocation7 + $0x144] sm:$0xf]
        %v2663 = vld [vmem:[#allocation7 + $0x148] sm:$0xf]
        %v2664 = vld [vmem:[#allocation7 + $0x14c] sm:$0xf]
        %v2665 = vld [vmem:[#allocation7 + $0x150] sm:$0xf]
        %v2666 = vld [vmem:[#allocation7 + $0x154] sm:$0xf]
        %v2667 = vld [vmem:[#allocation7 + $0x158] sm:$0xf]
        %v2668 = vld [vmem:[#allocation7 + $0x15c] sm:$0xf]
        %v2669 = vld [vmem:[#allocation7 + $0x160] sm:$0xf]
        %v2670 = vld [vmem:[#allocation7 + $0x164] sm:$0xf]
        %v2671 = vld [vmem:[#allocation7 + $0x168] sm:$0xf]
        %v2672 = vld [vmem:[#allocation7 + $0x16c] sm:$0xf]
        %v2673 = vld [vmem:[#allocation7 + $0x170] sm:$0xf]
        %v2674 = vld [vmem:[#allocation7 + $0x174] sm:$0xf]
        %v2675 = vld [vmem:[#allocation7 + $0x178] sm:$0xf]
        %v2676 = vld [vmem:[#allocation7 + $0x17c] sm:$0xf]
        %v2677 = vld [vmem:[#allocation7 + $0x180] sm:$0xf]
        %v2678 = vld [vmem:[#allocation7 + $0x184] sm:$0xf]
        %v2679 = vld [vmem:[#allocation7 + $0x188] sm:$0xf]
        %v2680 = vld [vmem:[#allocation7 + $0x18c] sm:$0xf]
        %v2681 = vld [vmem:[#allocation7 + $0x190] sm:$0xf]
        %v2682 = vld [vmem:[#allocation7 + $0x194] sm:$0xf]
        %v2683 = vld [vmem:[#allocation7 + $0x198] sm:$0xf]
        %v2684 = vld [vmem:[#allocation7 + $0x19c] sm:$0xf]
        %v2685 = vld [vmem:[#allocation7 + $0x1a0] sm:$0xf]
        %v2686 = vld [vmem:[#allocation7 + $0x1a4] sm:$0xf]
        %v2687 = vld [vmem:[#allocation7 + $0x1a8] sm:$0xf]
        %v2688 = vld [vmem:[#allocation7 + $0x1ac] sm:$0xf]
        %v2689 = vld [vmem:[#allocation7 + $0x1b0] sm:$0xf]
        %v2690 = vld [vmem:[#allocation7 + $0x1b4] sm:$0xf]
        %v2691 = vld [vmem:[#allocation7 + $0x1b8] sm:$0xf]
        %v2692 = vld [vmem:[#allocation7 + $0x1bc] sm:$0xf]
        %v2693 = vld [vmem:[#allocation7 + $0x1c0] sm:$0xf]
        %v2694 = vld [vmem:[#allocation7 + $0x1c4] sm:$0xf]
        %v2695 = vld [vmem:[#allocation7 + $0x1c8] sm:$0xf]
        %v2696 = vld [vmem:[#allocation7 + $0x1cc] sm:$0xf]
        %v2697 = vld [vmem:[#allocation7 + $0x1d0] sm:$0xf]
        %v2698 = vld [vmem:[#allocation7 + $0x1d4] sm:$0xf]
        %v2699 = vld [vmem:[#allocation7 + $0x1d8] sm:$0xf]
        %v2700 = vld [vmem:[#allocation7 + $0x1dc] sm:$0xf]
        %v2701 = vld [vmem:[#allocation7 + $0x1e0] sm:$0xf]
        %v2702 = vld [vmem:[#allocation7 + $0x1e4] sm:$0xf]
        %v2703 = vld [vmem:[#allocation7 + $0x1e8] sm:$0xf]
        %v2704 = vld [vmem:[#allocation7 + $0x1ec] sm:$0xf]
        %v2705 = vld [vmem:[#allocation7 + $0x1f0] sm:$0xf]
        %v2706 = vld [vmem:[#allocation7 + $0x1f4] sm:$0xf]
        %v2707 = vld [vmem:[#allocation7 + $0x1f8] sm:$0xf]
        %v2708 = vld [vmem:[#allocation7 + $0x1fc] sm:$0xf]
        %v2709 = vld [vmem:[#allocation7 + $0x200] sm:$0xf]
        %v2710 = vld [vmem:[#allocation7 + $0x204] sm:$0xf]
        %v2711 = vld [vmem:[#allocation7 + $0x208] sm:$0xf]
        %v2712 = vld [vmem:[#allocation7 + $0x20c] sm:$0xf]
        %v2713 = vld [vmem:[#allocation7 + $0x210] sm:$0xf]
        %v2714 = vld [vmem:[#allocation7 + $0x214] sm:$0xf]
        %v2715 = vld [vmem:[#allocation7 + $0x218] sm:$0xf]
        %v2716 = vld [vmem:[#allocation7 + $0x21c] sm:$0xf]
        %v2717 = vld [vmem:[#allocation7 + $0x220] sm:$0xf]
        %v2718 = vld [vmem:[#allocation7 + $0x224] sm:$0xf]
        %v2719 = vld [vmem:[#allocation7 + $0x228] sm:$0xf]
        %v2720 = vld [vmem:[#allocation7 + $0x22c] sm:$0xf]
        %v2721 = vld [vmem:[#allocation7 + $0x230] sm:$0xf]
        %v2722 = vld [vmem:[#allocation7 + $0x234] sm:$0xf]
        %v2723 = vld [vmem:[#allocation7 + $0x238] sm:$0xf]
        %v2724 = vld [vmem:[#allocation7 + $0x23c] sm:$0xf]
        %v2725 = vld [vmem:[#allocation9] sm:$0x1]
        %v2727 = vlaneseq
        %v2728 = vshrl.u32 %v2727, 7
        %v2729 = vsub.s32 0, %v2728
        %v2730 = vrot.slane %v2725, %v2729
        %v2876 = vunpack.c.l.b16 %v2581
        %v2877 = vunpack.c.l.b16 %v2582
        %v2878 = vunpack.c.l.b16 %v2583
        %v2879 = vunpack.c.l.b16 %v2584
        %v2880 = vunpack.c.l.b16 %v2585
        %v2881 = vunpack.c.l.b16 %v2586
        %v2882 = vunpack.c.l.b16 %v2587
        %v2883 = vunpack.c.l.b16 %v2588
        %v2884 = vunpack.c.l.b16 %v2589
        %v2885 = vunpack.c.l.b16 %v2590
        %v2886 = vunpack.c.l.b16 %v2591
        %v2887 = vunpack.c.l.b16 %v2592
        %v2888 = vunpack.c.l.b16 %v2593
        %v2889 = vunpack.c.l.b16 %v2594
        %v2890 = vunpack.c.l.b16 %v2595
        %v2891 = vunpack.c.l.b16 %v2596
        %v2892 = vunpack.c.l.b16 %v2597
        %v2893 = vunpack.c.l.b16 %v2598
        %v2894 = vunpack.c.l.b16 %v2599
        %v2895 = vunpack.c.l.b16 %v2600
        %v2896 = vunpack.c.l.b16 %v2601
        %v2897 = vunpack.c.l.b16 %v2602
        %v2898 = vunpack.c.l.b16 %v2603
        %v2899 = vunpack.c.l.b16 %v2604
        %v2900 = vunpack.c.l.b16 %v2605
        %v2901 = vunpack.c.l.b16 %v2606
        %v2902 = vunpack.c.l.b16 %v2607
        %v2903 = vunpack.c.l.b16 %v2608
        %v2904 = vunpack.c.l.b16 %v2609
        %v2905 = vunpack.c.l.b16 %v2610
        %v2906 = vunpack.c.l.b16 %v2611
        %v2907 = vunpack.c.l.b16 %v2612
        %v2908 = vunpack.c.l.b16 %v2613
        %v2909 = vunpack.c.l.b16 %v2614
        %v2910 = vunpack.c.l.b16 %v2615
        %v2911 = vunpack.c.l.b16 %v2616
        %v2912 = vunpack.c.l.b16 %v2617
        %v2913 = vunpack.c.l.b16 %v2618
        %v2914 = vunpack.c.l.b16 %v2619
        %v2915 = vunpack.c.l.b16 %v2620
        %v2916 = vunpack.c.l.b16 %v2621
        %v2917 = vunpack.c.l.b16 %v2622
        %v2918 = vunpack.c.l.b16 %v2623
        %v2919 = vunpack.c.l.b16 %v2624
        %v2920 = vunpack.c.l.b16 %v2625
        %v2921 = vunpack.c.l.b16 %v2626
        %v2922 = vunpack.c.l.b16 %v2627
        %v2923 = vunpack.c.l.b16 %v2628
        %v2924 = vunpack.c.l.b16 %v2629
        %v2925 = vunpack.c.l.b16 %v2630
        %v2926 = vunpack.c.l.b16 %v2631
        %v2927 = vunpack.c.l.b16 %v2632
        %v2928 = vunpack.c.l.b16 %v2633
        %v2929 = vunpack.c.l.b16 %v2634
        %v2930 = vunpack.c.l.b16 %v2635
        %v2931 = vunpack.c.l.b16 %v2636
        %v2932 = vunpack.c.l.b16 %v2637
        %v2933 = vunpack.c.l.b16 %v2638
        %v2934 = vunpack.c.l.b16 %v2639
        %v2935 = vunpack.c.l.b16 %v2640
        %v2936 = vunpack.c.l.b16 %v2641
        %v2937 = vunpack.c.l.b16 %v2642
        %v2938 = vunpack.c.l.b16 %v2643
        %v2939 = vunpack.c.l.b16 %v2644
        %v2940 = vunpack.c.l.b16 %v2645
        %v2941 = vunpack.c.l.b16 %v2646
        %v2942 = vunpack.c.l.b16 %v2647
        %v2943 = vunpack.c.l.b16 %v2648
        %v2944 = vunpack.c.l.b16 %v2649
        %v2945 = vunpack.c.l.b16 %v2650
        %v2946 = vunpack.c.l.b16 %v2651
        %v2947 = vunpack.c.l.b16 %v2652
        %v2948 = vunpack.c.l.b16 %v2653
        %v2949 = vunpack.c.l.b16 %v2654
        %v2950 = vunpack.c.l.b16 %v2655
        %v2951 = vunpack.c.l.b16 %v2656
        %v2952 = vunpack.c.l.b16 %v2657
        %v2953 = vunpack.c.l.b16 %v2658
        %v2954 = vunpack.c.l.b16 %v2659
        %v2955 = vunpack.c.l.b16 %v2660
        %v2956 = vunpack.c.l.b16 %v2661
        %v2957 = vunpack.c.l.b16 %v2662
        %v2958 = vunpack.c.l.b16 %v2663
        %v2959 = vunpack.c.l.b16 %v2664
        %v2960 = vunpack.c.l.b16 %v2665
        %v2961 = vunpack.c.l.b16 %v2666
        %v2962 = vunpack.c.l.b16 %v2667
        %v2963 = vunpack.c.l.b16 %v2668
        %v2964 = vunpack.c.l.b16 %v2669
        %v2965 = vunpack.c.l.b16 %v2670
        %v2966 = vunpack.c.l.b16 %v2671
        %v2967 = vunpack.c.l.b16 %v2672
        %v2968 = vunpack.c.l.b16 %v2673
        %v2969 = vunpack.c.l.b16 %v2674
        %v2970 = vunpack.c.l.b16 %v2675
        %v2971 = vunpack.c.l.b16 %v2676
        %v2972 = vunpack.c.l.b16 %v2677
        %v2973 = vunpack.c.l.b16 %v2678
        %v2974 = vunpack.c.l.b16 %v2679
        %v2975 = vunpack.c.l.b16 %v2680
        %v2976 = vunpack.c.l.b16 %v2681
        %v2977 = vunpack.c.l.b16 %v2682
        %v2978 = vunpack.c.l.b16 %v2683
        %v2979 = vunpack.c.l.b16 %v2684
        %v2980 = vunpack.c.l.b16 %v2685
        %v2981 = vunpack.c.l.b16 %v2686
        %v2982 = vunpack.c.l.b16 %v2687
        %v2983 = vunpack.c.l.b16 %v2688
        %v2984 = vunpack.c.l.b16 %v2689
        %v2985 = vunpack.c.l.b16 %v2690
        %v2986 = vunpack.c.l.b16 %v2691
        %v2987 = vunpack.c.l.b16 %v2692
        %v2988 = vunpack.c.l.b16 %v2693
        %v2989 = vunpack.c.l.b16 %v2694
        %v2990 = vunpack.c.l.b16 %v2695
        %v2991 = vunpack.c.l.b16 %v2696
        %v2992 = vunpack.c.l.b16 %v2697
        %v2993 = vunpack.c.l.b16 %v2698
        %v2994 = vunpack.c.l.b16 %v2699
        %v2995 = vunpack.c.l.b16 %v2700
        %v2996 = vunpack.c.l.b16 %v2701
        %v2997 = vunpack.c.l.b16 %v2702
        %v2998 = vunpack.c.l.b16 %v2703
        %v2999 = vunpack.c.l.b16 %v2704
        %v3000 = vunpack.c.l.b16 %v2705
        %v3001 = vunpack.c.l.b16 %v2706
        %v3002 = vunpack.c.l.b16 %v2707
        %v3003 = vunpack.c.l.b16 %v2708
        %v3004 = vunpack.c.l.b16 %v2709
        %v3005 = vunpack.c.l.b16 %v2710
        %v3006 = vunpack.c.l.b16 %v2711
        %v3007 = vunpack.c.l.b16 %v2712
        %v3008 = vunpack.c.l.b16 %v2713
        %v3009 = vunpack.c.l.b16 %v2714
        %v3010 = vunpack.c.l.b16 %v2715
        %v3011 = vunpack.c.l.b16 %v2716
        %v3012 = vunpack.c.l.b16 %v2717
        %v3013 = vunpack.c.l.b16 %v2718
        %v3014 = vunpack.c.l.b16 %v2719
        %v3015 = vunpack.c.l.b16 %v2720
        %v3016 = vunpack.c.l.b16 %v2721
        %v3017 = vunpack.c.l.b16 %v2722
        %v3018 = vunpack.c.l.b16 %v2723
        %v3019 = vunpack.c.l.b16 %v2724
        %v3020 = vpack.c.b16 %v2877, %v2876
        %v3021 = vpack.c.b16 %v2879, %v2878
        %v3022 = vpack.c.b16 %v2881, %v2880
        %v3023 = vpack.c.b16 %v2883, %v2882
        %v3024 = vpack.c.b16 %v2885, %v2884
        %v3025 = vpack.c.b16 %v2887, %v2886
        %v3026 = vpack.c.b16 %v2889, %v2888
        %v3027 = vpack.c.b16 %v2891, %v2890
        %v3028 = vpack.c.b16 %v2893, %v2892
        %v3029 = vpack.c.b16 %v2895, %v2894
        %v3030 = vpack.c.b16 %v2897, %v2896
        %v3031 = vpack.c.b16 %v2899, %v2898
        %v3032 = vpack.c.b16 %v2901, %v2900
        %v3033 = vpack.c.b16 %v2903, %v2902
        %v3034 = vpack.c.b16 %v2905, %v2904
        %v3035 = vpack.c.b16 %v2907, %v2906
        %v3036 = vpack.c.b16 %v2909, %v2908
        %v3037 = vpack.c.b16 %v2911, %v2910
        %v3038 = vpack.c.b16 %v2913, %v2912
        %v3039 = vpack.c.b16 %v2915, %v2914
        %v3040 = vpack.c.b16 %v2917, %v2916
        %v3041 = vpack.c.b16 %v2919, %v2918
        %v3042 = vpack.c.b16 %v2921, %v2920
        %v3043 = vpack.c.b16 %v2923, %v2922
        %v3044 = vpack.c.b16 %v2925, %v2924
        %v3045 = vpack.c.b16 %v2927, %v2926
        %v3046 = vpack.c.b16 %v2929, %v2928
        %v3047 = vpack.c.b16 %v2931, %v2930
        %v3048 = vpack.c.b16 %v2933, %v2932
        %v3049 = vpack.c.b16 %v2935, %v2934
        %v3050 = vpack.c.b16 %v2937, %v2936
        %v3051 = vpack.c.b16 %v2939, %v2938
        %v3052 = vpack.c.b16 %v2941, %v2940
        %v3053 = vpack.c.b16 %v2943, %v2942
        %v3054 = vpack.c.b16 %v2945, %v2944
        %v3055 = vpack.c.b16 %v2947, %v2946
        %v3056 = vpack.c.b16 %v2949, %v2948
        %v3057 = vpack.c.b16 %v2951, %v2950
        %v3058 = vpack.c.b16 %v2953, %v2952
        %v3059 = vpack.c.b16 %v2955, %v2954
        %v3060 = vpack.c.b16 %v2957, %v2956
        %v3061 = vpack.c.b16 %v2959, %v2958
        %v3062 = vpack.c.b16 %v2961, %v2960
        %v3063 = vpack.c.b16 %v2963, %v2962
        %v3064 = vpack.c.b16 %v2965, %v2964
        %v3065 = vpack.c.b16 %v2967, %v2966
        %v3066 = vpack.c.b16 %v2969, %v2968
        %v3067 = vpack.c.b16 %v2971, %v2970
        %v3068 = vpack.c.b16 %v2973, %v2972
        %v3069 = vpack.c.b16 %v2975, %v2974
        %v3070 = vpack.c.b16 %v2977, %v2976
        %v3071 = vpack.c.b16 %v2979, %v2978
        %v3072 = vpack.c.b16 %v2981, %v2980
        %v3073 = vpack.c.b16 %v2983, %v2982
        %v3074 = vpack.c.b16 %v2985, %v2984
        %v3075 = vpack.c.b16 %v2987, %v2986
        %v3076 = vpack.c.b16 %v2989, %v2988
        %v3077 = vpack.c.b16 %v2991, %v2990
        %v3078 = vpack.c.b16 %v2993, %v2992
        %v3079 = vpack.c.b16 %v2995, %v2994
        %v3080 = vpack.c.b16 %v2997, %v2996
        %v3081 = vpack.c.b16 %v2999, %v2998
        %v3082 = vpack.c.b16 %v3001, %v3000
        %v3083 = vpack.c.b16 %v3003, %v3002
        %v3084 = vpack.c.b16 %v3005, %v3004
        %v3085 = vpack.c.b16 %v3007, %v3006
        %v3086 = vpack.c.b16 %v3009, %v3008
        %v3087 = vpack.c.b16 %v3011, %v3010
        %v3088 = vpack.c.b16 %v3013, %v3012
        %v3089 = vpack.c.b16 %v3015, %v3014
        %v3090 = vpack.c.b16 %v3017, %v3016
        %v3091 = vpack.c.b16 %v3019, %v3018
        %3164 = vmatprep.subr.bf16.mxu0 0
        %3165 = vmatpush1.bf16.msra.mxu0 %v3020
        %3166 = vmatprep.subr.bf16.mxu0 0
        %3167 = vmatpush1.bf16.msra.mxu0 %v3021
        %3168 = vmatprep.subr.bf16.mxu0 0
        %3169 = vmatpush1.bf16.msra.mxu0 %v3022
        %3170 = vmatprep.subr.bf16.mxu0 0
        %3171 = vmatpush1.bf16.msra.mxu0 %v3023
        %3172 = vmatprep.subr.bf16.mxu0 0
        %3173 = vmatpush1.bf16.msra.mxu0 %v3024
        %3174 = vmatprep.subr.bf16.mxu0 0
        %3175 = vmatpush1.bf16.msra.mxu0 %v3025
        %3176 = vmatprep.subr.bf16.mxu0 0
        %3177 = vmatpush1.bf16.msra.mxu0 %v3026
        %3178 = vmatprep.subr.bf16.mxu0 0
        %3179 = vmatpush1.bf16.msra.mxu0 %v3027
        %3180 = vmatprep.subr.bf16.mxu0 0
        %3181 = vmatpush1.bf16.msra.mxu0 %v3028
        %3182 = vmatprep.subr.bf16.mxu0 0
        %3183 = vmatpush1.bf16.msra.mxu0 %v3029
        %3184 = vmatprep.subr.bf16.mxu0 0
        %3185 = vmatpush1.bf16.msra.mxu0 %v3030
        %3186 = vmatprep.subr.bf16.mxu0 0
        %3187 = vmatpush1.bf16.msra.mxu0 %v3031
        %3188 = vmatprep.subr.bf16.mxu0 0
        %3189 = vmatpush1.bf16.msra.mxu0 %v3032
        %3190 = vmatprep.subr.bf16.mxu0 0
        %3191 = vmatpush1.bf16.msra.mxu0 %v3033
        %3192 = vmatprep.subr.bf16.mxu0 0
        %3193 = vmatpush1.bf16.msra.mxu0 %v3034
        %3194 = vmatprep.subr.bf16.mxu0 0
        %3195 = vmatpush1.bf16.msra.mxu0 %v3035
        %3196 = vmatprep.mubr.bf16.mxu0 %v2438
        %3197 = vmatmul.mubr.bf16.gmra.mrb[0].mxu0 %v2437
        %v3198 = vpop.f32.mrb[0].mxu0
        %v3199 = vadd.f32 %v2730, %v3198
        %v3200 = vpop.f32.mrb[0].mxu0
        %v3201 = vpop.f32.mrb[0].mxu0
        %v3202 = vadd.f32 %v2730, %v3201
        %v3203 = vpop.f32.mrb[0].mxu0
        %3204 = vmatprep.mubr.bf16.mxu0 %v2447
        %3205 = vmatmul.mubr.bf16.gmra.mrb[0].mxu0 %v2446
        %v3206 = vpop.f32.mrb[0].mxu0
        %v3207 = vadd.f32 %v2730, %v3206
        %v3208 = vpop.f32.mrb[0].mxu0
        %v3209 = vpop.f32.mrb[0].mxu0
        %v3210 = vadd.f32 %v2730, %v3209
        %v3211 = vpop.f32.mrb[0].mxu0
        %3212 = vmatprep.mubr.bf16.mxu0 %v2456
        %3213 = vmatmul.mubr.bf16.gmra.mrb[0].mxu0 %v2455
        %v3214 = vpop.f32.mrb[0].mxu0
        %v3215 = vadd.f32 %v2730, %v3214
        %v3216 = vpop.f32.mrb[0].mxu0
        %v3217 = vpop.f32.mrb[0].mxu0
        %v3218 = vadd.f32 %v2730, %v3217
        %v3219 = vpop.f32.mrb[0].mxu0
        %3220 = vmatprep.mubr.bf16.mxu0 %v2465
        %3221 = vmatmul.mubr.bf16.gmra.mrb[0].mxu0 %v2464
        %v3222 = vpop.f32.mrb[0].mxu0
        %v3223 = vadd.f32 %v2730, %v3222
        %v3224 = vpop.f32.mrb[0].mxu0
        %v3225 = vpop.f32.mrb[0].mxu0
        %v3226 = vadd.f32 %v2730, %v3225
        %v3227 = vpop.f32.mrb[0].mxu0
        %3228 = vmatprep.mubr.bf16.mxu0 %v2474
        %3229 = vmatmul.mubr.bf16.gmra.mrb[0].mxu0 %v2473
        %v3230 = vpop.f32.mrb[0].mxu0
        %v3231 = vadd.f32 %v2730, %v3230
        %v3232 = vpop.f32.mrb[0].mxu0
        %v3233 = vpop.f32.mrb[0].mxu0
        %v3234 = vadd.f32 %v2730, %v3233
        %v3235 = vpop.f32.mrb[0].mxu0
        %3236 = vmatprep.mubr.bf16.mxu0 %v2483
        %3237 = vmatmul.mubr.bf16.gmra.mrb[0].mxu0 %v2482
        %v3238 = vpop.f32.mrb[0].mxu0
        %v3239 = vadd.f32 %v2730, %v3238
        %v3240 = vpop.f32.mrb[0].mxu0
        %v3241 = vpop.f32.mrb[0].mxu0
        %v3242 = vadd.f32 %v2730, %v3241
        %v3243 = vpop.f32.mrb[0].mxu0
        %3244 = vmatprep.mubr.bf16.mxu0 %v2492
        %3245 = vmatmul.mubr.bf16.gmra.mrb[0].mxu0 %v2491
        %v3246 = vpop.f32.mrb[0].mxu0
        %v3247 = vadd.f32 %v2730, %v3246
        %v3248 = vpop.f32.mrb[0].mxu0
        %v3249 = vpop.f32.mrb[0].mxu0
        %v3250 = vadd.f32 %v2730, %v3249
        %v3251 = vpop.f32.mrb[0].mxu0
        %3252 = vmatprep.mubr.bf16.mxu0 %v2501
        %3253 = vmatmul.mubr.bf16.gmra.mrb[0].mxu0 %v2500
        %v3254 = vpop.f32.mrb[0].mxu0
        %v3255 = vadd.f32 %v2730, %v3254
        %v3256 = vpop.f32.mrb[0].mxu0
        %v3257 = vpop.f32.mrb[0].mxu0
        %v3258 = vadd.f32 %v2730, %v3257
        %v3259 = vpop.f32.mrb[0].mxu0
        %3260 = vmatprep.mubr.bf16.mxu0 %v2510
        %3261 = vmatmul.mubr.bf16.gmra.mrb[0].mxu0 %v2509
        %v3262 = vpop.f32.mrb[0].mxu0
        %v3263 = vadd.f32 %v2730, %v3262
        %v3264 = vpop.f32.mrb[0].mxu0
        %v3265 = vpop.f32.mrb[0].mxu0
        %v3266 = vadd.f32 %v2730, %v3265
        %v3267 = vpop.f32.mrb[0].mxu0
        %3268 = vmatprep.mubr.bf16.mxu0 %v2519
        %3269 = vmatmul.mubr.bf16.gmra.mrb[0].mxu0 %v2518
        %v3270 = vpop.f32.mrb[0].mxu0
        %v3271 = vadd.f32 %v2730, %v3270
        %v3272 = vpop.f32.mrb[0].mxu0
        %v3273 = vpop.f32.mrb[0].mxu0
        %v3274 = vadd.f32 %v2730, %v3273
        %v3275 = vpop.f32.mrb[0].mxu0
        %3276 = vmatprep.mubr.bf16.mxu0 %v2528
        %3277 = vmatmul.mubr.bf16.gmra.mrb[0].mxu0 %v2527
        %v3278 = vpop.f32.mrb[0].mxu0
        %v3279 = vadd.f32 %v2730, %v3278
        %v3280 = vpop.f32.mrb[0].mxu0
        %v3281 = vpop.f32.mrb[0].mxu0
        %v3282 = vadd.f32 %v2730, %v3281
        %v3283 = vpop.f32.mrb[0].mxu0
        %3284 = vmatprep.mubr.bf16.mxu0 %v2537
        %3285 = vmatmul.mubr.bf16.gmra.mrb[0].mxu0 %v2536
        %v3286 = vpop.f32.mrb[0].mxu0
        %v3287 = vadd.f32 %v2730, %v3286
        %v3288 = vpop.f32.mrb[0].mxu0
        %v3289 = vpop.f32.mrb[0].mxu0
        %v3290 = vadd.f32 %v2730, %v3289
        %v3291 = vpop.f32.mrb[0].mxu0
        %3292 = vmatprep.mubr.bf16.mxu0 %v2546
        %3293 = vmatmul.mubr.bf16.gmra.mrb[0].mxu0 %v2545
        %v3294 = vpop.f32.mrb[0].mxu0
        %v3295 = vadd.f32 %v2730, %v3294
        %v3296 = vpop.f32.mrb[0].mxu0
        %v3297 = vpop.f32.mrb[0].mxu0
        %v3298 = vadd.f32 %v2730, %v3297
        %v3299 = vpop.f32.mrb[0].mxu0
        %3300 = vmatprep.mubr.bf16.mxu0 %v2555
        %3301 = vmatmul.mubr.bf16.gmra.mrb[0].mxu0 %v2554
        %v3302 = vpop.f32.mrb[0].mxu0
        %v3303 = vadd.f32 %v2730, %v3302
        %v3304 = vpop.f32.mrb[0].mxu0
        %v3305 = vpop.f32.mrb[0].mxu0
        %v3306 = vadd.f32 %v2730, %v3305
        %v3307 = vpop.f32.mrb[0].mxu0
        %3308 = vmatprep.mubr.bf16.mxu0 %v2564
        %3309 = vmatmul.mubr.bf16.gmra.mrb[0].mxu0 %v2563
        %v3310 = vpop.f32.mrb[0].mxu0
        %v3311 = vadd.f32 %v2730, %v3310
        %v3312 = vpop.f32.mrb[0].mxu0
        %v3313 = vpop.f32.mrb[0].mxu0
        %v3314 = vadd.f32 %v2730, %v3313
        %v3315 = vpop.f32.mrb[0].mxu0
        %3316 = vmatprep.mubr.bf16.mxu0 %v2573
        %3317 = vmatmul.mubr.bf16.gmra.mrb[0].mxu0 %v2572
        %v3318 = vpop.f32.mrb[0].mxu0
        %v3319 = vadd.f32 %v2730, %v3318
        %v3320 = vpop.f32.mrb[0].mxu0
        %v3321 = vpop.f32.mrb[0].mxu0
        %v3322 = vadd.f32 %v2730, %v3321
        %v3323 = vpop.f32.mrb[0].mxu0
        %3324 = vdwg.mxu0
        %3325 = vmatprep.subr.bf16.mxu0 0
        %3326 = vmatpush1.bf16.msra.mxu0 %v3036
        %3327 = vmatprep.subr.bf16.mxu0 0
        %3328 = vmatpush1.bf16.msra.mxu0 %v3037
        %3329 = vmatprep.subr.bf16.mxu0 0
        %3330 = vmatpush1.bf16.msra.mxu0 %v3038
        %3331 = vmatprep.subr.bf16.mxu0 0
        %3332 = vmatpush1.bf16.msra.mxu0 %v3039
        %3333 = vmatprep.subr.bf16.mxu0 0
        %3334 = vmatpush1.bf16.msra.mxu0 %v3040
        %3335 = vmatprep.subr.bf16.mxu0 0
        %3336 = vmatpush1.bf16.msra.mxu0 %v3041
        %3337 = vmatprep.subr.bf16.mxu0 0
        %3338 = vmatpush1.bf16.msra.mxu0 %v3042
        %3339 = vmatprep.subr.bf16.mxu0 0
        %3340 = vmatpush1.bf16.msra.mxu0 %v3043
        %3341 = vmatprep.subr.bf16.mxu0 0
        %3342 = vmatpush1.bf16.msra.mxu0 %v3044
        %3343 = vmatprep.subr.bf16.mxu0 0
        %3344 = vmatpush1.bf16.msra.mxu0 %v3045
        %3345 = vmatprep.subr.bf16.mxu0 0
        %3346 = vmatpush1.bf16.msra.mxu0 %v3046
        %3347 = vmatprep.subr.bf16.mxu0 0
        %3348 = vmatpush1.bf16.msra.mxu0 %v3047
        %3349 = vmatprep.subr.bf16.mxu0 0
        %3350 = vmatpush1.bf16.msra.mxu0 %v3048
        %3351 = vmatprep.subr.bf16.mxu0 0
        %3352 = vmatpush1.bf16.msra.mxu0 %v3049
        %3353 = vmatprep.subr.bf16.mxu0 0
        %3354 = vmatpush1.bf16.msra.mxu0 %v3050
        %3355 = vmatprep.subr.bf16.mxu0 0
        %3356 = vmatpush1.bf16.msra.mxu0 %v3051
        %3357 = vmatprep.mubr.bf16.mxu0 %v2440
        %3358 = vmatmul.mubr.bf16.gmra.mrb[0].mxu0 %v2439
        %v3359 = vpop.f32.mrb[0].mxu0
        %v3360 = vadd.f32 %v3199, %v3359
        %v3361 = vpop.f32.mrb[0].mxu0
        %v3362 = vpop.f32.mrb[0].mxu0
        %v3363 = vadd.f32 %v3202, %v3362
        %v3364 = vpop.f32.mrb[0].mxu0
        %3365 = vmatprep.mubr.bf16.mxu0 %v2449
        %3366 = vmatmul.mubr.bf16.gmra.mrb[0].mxu0 %v2448
        %v3367 = vpop.f32.mrb[0].mxu0
        %v3368 = vadd.f32 %v3207, %v3367
        %v3369 = vpop.f32.mrb[0].mxu0
        %v3370 = vpop.f32.mrb[0].mxu0
        %v3371 = vadd.f32 %v3210, %v3370
        %v3372 = vpop.f32.mrb[0].mxu0
        %3373 = vmatprep.mubr.bf16.mxu0 %v2458
        %3374 = vmatmul.mubr.bf16.gmra.mrb[0].mxu0 %v2457
        %v3375 = vpop.f32.mrb[0].mxu0
        %v3376 = vadd.f32 %v3215, %v3375
        %v3377 = vpop.f32.mrb[0].mxu0
        %v3378 = vpop.f32.mrb[0].mxu0
        %v3379 = vadd.f32 %v3218, %v3378
        %v3380 = vpop.f32.mrb[0].mxu0
        %3381 = vmatprep.mubr.bf16.mxu0 %v2467
        %3382 = vmatmul.mubr.bf16.gmra.mrb[0].mxu0 %v2466
        %v3383 = vpop.f32.mrb[0].mxu0
        %v3384 = vadd.f32 %v3223, %v3383
        %v3385 = vpop.f32.mrb[0].mxu0
        %v3386 = vpop.f32.mrb[0].mxu0
        %v3387 = vadd.f32 %v3226, %v3386
        %v3388 = vpop.f32.mrb[0].mxu0
        %3389 = vmatprep.mubr.bf16.mxu0 %v2476
        %3390 = vmatmul.mubr.bf16.gmra.mrb[0].mxu0 %v2475
        %v3391 = vpop.f32.mrb[0].mxu0
        %v3392 = vadd.f32 %v3231, %v3391
        %v3393 = vpop.f32.mrb[0].mxu0
        %v3394 = vpop.f32.mrb[0].mxu0
        %v3395 = vadd.f32 %v3234, %v3394
        %v3396 = vpop.f32.mrb[0].mxu0
        %3397 = vmatprep.mubr.bf16.mxu0 %v2485
        %3398 = vmatmul.mubr.bf16.gmra.mrb[0].mxu0 %v2484
        %v3399 = vpop.f32.mrb[0].mxu0
        %v3400 = vadd.f32 %v3239, %v3399
        %v3401 = vpop.f32.mrb[0].mxu0
        %v3402 = vpop.f32.mrb[0].mxu0
        %v3403 = vadd.f32 %v3242, %v3402
        %v3404 = vpop.f32.mrb[0].mxu0
        %3405 = vmatprep.mubr.bf16.mxu0 %v2494
        %3406 = vmatmul.mubr.bf16.gmra.mrb[0].mxu0 %v2493
        %v3407 = vpop.f32.mrb[0].mxu0
        %v3408 = vadd.f32 %v3247, %v3407
        %v3409 = vpop.f32.mrb[0].mxu0
        %v3410 = vpop.f32.mrb[0].mxu0
        %v3411 = vadd.f32 %v3250, %v3410
        %v3412 = vpop.f32.mrb[0].mxu0
        %3413 = vmatprep.mubr.bf16.mxu0 %v2503
        %3414 = vmatmul.mubr.bf16.gmra.mrb[0].mxu0 %v2502
        %v3415 = vpop.f32.mrb[0].mxu0
        %v3416 = vadd.f32 %v3255, %v3415
        %v3417 = vpop.f32.mrb[0].mxu0
        %v3418 = vpop.f32.mrb[0].mxu0
        %v3419 = vadd.f32 %v3258, %v3418
        %v3420 = vpop.f32.mrb[0].mxu0
        %3421 = vmatprep.mubr.bf16.mxu0 %v2512
        %3422 = vmatmul.mubr.bf16.gmra.mrb[0].mxu0 %v2511
        %v3423 = vpop.f32.mrb[0].mxu0
        %v3424 = vadd.f32 %v3263, %v3423
        %v3425 = vpop.f32.mrb[0].mxu0
        %v3426 = vpop.f32.mrb[0].mxu0
        %v3427 = vadd.f32 %v3266, %v3426
        %v3428 = vpop.f32.mrb[0].mxu0
        %3429 = vmatprep.mubr.bf16.mxu0 %v2521
        %3430 = vmatmul.mubr.bf16.gmra.mrb[0].mxu0 %v2520
        %v3431 = vpop.f32.mrb[0].mxu0
        %v3432 = vadd.f32 %v3271, %v3431
        %v3433 = vpop.f32.mrb[0].mxu0
        %v3434 = vpop.f32.mrb[0].mxu0
        %v3435 = vadd.f32 %v3274, %v3434
        %v3436 = vpop.f32.mrb[0].mxu0
        %3437 = vmatprep.mubr.bf16.mxu0 %v2530
        %3438 = vmatmul.mubr.bf16.gmra.mrb[0].mxu0 %v2529
        %v3439 = vpop.f32.mrb[0].mxu0
        %v3440 = vadd.f32 %v3279, %v3439
        %v3441 = vpop.f32.mrb[0].mxu0
        %v3442 = vpop.f32.mrb[0].mxu0
        %v3443 = vadd.f32 %v3282, %v3442
        %v3444 = vpop.f32.mrb[0].mxu0
        %3445 = vmatprep.mubr.bf16.mxu0 %v2539
        %3446 = vmatmul.mubr.bf16.gmra.mrb[0].mxu0 %v2538
        %v3447 = vpop.f32.mrb[0].mxu0
        %v3448 = vadd.f32 %v3287, %v3447
        %v3449 = vpop.f32.mrb[0].mxu0
        %v3450 = vpop.f32.mrb[0].mxu0
        %v3451 = vadd.f32 %v3290, %v3450
        %v3452 = vpop.f32.mrb[0].mxu0
        %3453 = vmatprep.mubr.bf16.mxu0 %v2548
        %3454 = vmatmul.mubr.bf16.gmra.mrb[0].mxu0 %v2547
        %v3455 = vpop.f32.mrb[0].mxu0
        %v3456 = vadd.f32 %v3295, %v3455
        %v3457 = vpop.f32.mrb[0].mxu0
        %v3458 = vpop.f32.mrb[0].mxu0
        %v3459 = vadd.f32 %v3298, %v3458
        %v3460 = vpop.f32.mrb[0].mxu0
        %3461 = vmatprep.mubr.bf16.mxu0 %v2557
        %3462 = vmatmul.mubr.bf16.gmra.mrb[0].mxu0 %v2556
        %v3463 = vpop.f32.mrb[0].mxu0
        %v3464 = vadd.f32 %v3303, %v3463
        %v3465 = vpop.f32.mrb[0].mxu0
        %v3466 = vpop.f32.mrb[0].mxu0
        %v3467 = vadd.f32 %v3306, %v3466
        %v3468 = vpop.f32.mrb[0].mxu0
        %3469 = vmatprep.mubr.bf16.mxu0 %v2566
        %3470 = vmatmul.mubr.bf16.gmra.mrb[0].mxu0 %v2565
        %v3471 = vpop.f32.mrb[0].mxu0
        %v3472 = vadd.f32 %v3311, %v3471
        %v3473 = vpop.f32.mrb[0].mxu0
        %v3474 = vpop.f32.mrb[0].mxu0
        %v3475 = vadd.f32 %v3314, %v3474
        %v3476 = vpop.f32.mrb[0].mxu0
        %3477 = vmatprep.mubr.bf16.mxu0 %v2575
        %3478 = vmatmul.mubr.bf16.gmra.mrb[0].mxu0 %v2574
        %v3479 = vpop.f32.mrb[0].mxu0
        %v3480 = vadd.f32 %v3319, %v3479
        %v3481 = vpop.f32.mrb[0].mxu0
        %v3482 = vpop.f32.mrb[0].mxu0
        %v3483 = vadd.f32 %v3322, %v3482
        %v3484 = vpop.f32.mrb[0].mxu0
        %3485 = vdwg.mxu0
        %3486 = vmatprep.subr.bf16.mxu0 0
        %3487 = vmatpush1.bf16.msra.mxu0 %v3052
        %3488 = vmatprep.subr.bf16.mxu0 0
        %3489 = vmatpush1.bf16.msra.mxu0 %v3053
        %3490 = vmatprep.subr.bf16.mxu0 0
        %3491 = vmatpush1.bf16.msra.mxu0 %v3054
        %3492 = vmatprep.subr.bf16.mxu0 0
        %3493 = vmatpush1.bf16.msra.mxu0 %v3055
        %3494 = vmatprep.subr.bf16.mxu0 0
        %3495 = vmatpush1.bf16.msra.mxu0 %v3056
        %3496 = vmatprep.subr.bf16.mxu0 0
        %3497 = vmatpush1.bf16.msra.mxu0 %v3057
        %3498 = vmatprep.subr.bf16.mxu0 0
        %3499 = vmatpush1.bf16.msra.mxu0 %v3058
        %3500 = vmatprep.subr.bf16.mxu0 0
        %3501 = vmatpush1.bf16.msra.mxu0 %v3059
        %3502 = vmatprep.subr.bf16.mxu0 0
        %3503 = vmatpush1.bf16.msra.mxu0 %v3060
        %3504 = vmatprep.subr.bf16.mxu0 0
        %3505 = vmatpush1.bf16.msra.mxu0 %v3061
        %3506 = vmatprep.subr.bf16.mxu0 0
        %3507 = vmatpush1.bf16.msra.mxu0 %v3062
        %3508 = vmatprep.subr.bf16.mxu0 0
        %3509 = vmatpush1.bf16.msra.mxu0 %v3063
        %3510 = vmatprep.subr.bf16.mxu0 0
        %3511 = vmatpush1.bf16.msra.mxu0 %v3064
        %3512 = vmatprep.subr.bf16.mxu0 0
        %3513 = vmatpush1.bf16.msra.mxu0 %v3065
        %3514 = vmatprep.subr.bf16.mxu0 0
        %3515 = vmatpush1.bf16.msra.mxu0 %v3066
        %3516 = vmatprep.subr.bf16.mxu0 0
        %3517 = vmatpush1.bf16.msra.mxu0 %v3067
        %3518 = vmatprep.mubr.bf16.mxu0 %v2442
        %3519 = vmatmul.mubr.bf16.gmra.mrb[0].mxu0 %v2441
        %v3520 = vpop.f32.mrb[0].mxu0
        %v3521 = vadd.f32 %v3360, %v3520
        %v3522 = vpop.f32.mrb[0].mxu0
        %v3523 = vpop.f32.mrb[0].mxu0
        %v3524 = vadd.f32 %v3363, %v3523
        %v3525 = vpop.f32.mrb[0].mxu0
        %3526 = vmatprep.mubr.bf16.mxu0 %v2451
        %3527 = vmatmul.mubr.bf16.gmra.mrb[0].mxu0 %v2450
        %v3528 = vpop.f32.mrb[0].mxu0
        %v3529 = vadd.f32 %v3368, %v3528
        %v3530 = vpop.f32.mrb[0].mxu0
        %v3531 = vpop.f32.mrb[0].mxu0
        %v3532 = vadd.f32 %v3371, %v3531
        %v3533 = vpop.f32.mrb[0].mxu0
        %3534 = vmatprep.mubr.bf16.mxu0 %v2460
        %3535 = vmatmul.mubr.bf16.gmra.mrb[0].mxu0 %v2459
        %v3536 = vpop.f32.mrb[0].mxu0
        %v3537 = vadd.f32 %v3376, %v3536
        %v3538 = vpop.f32.mrb[0].mxu0
        %v3539 = vpop.f32.mrb[0].mxu0
        %v3540 = vadd.f32 %v3379, %v3539
        %v3541 = vpop.f32.mrb[0].mxu0
        %3542 = vmatprep.mubr.bf16.mxu0 %v2469
        %3543 = vmatmul.mubr.bf16.gmra.mrb[0].mxu0 %v2468
        %v3544 = vpop.f32.mrb[0].mxu0
        %v3545 = vadd.f32 %v3384, %v3544
        %v3546 = vpop.f32.mrb[0].mxu0
        %v3547 = vpop.f32.mrb[0].mxu0
        %v3548 = vadd.f32 %v3387, %v3547
        %v3549 = vpop.f32.mrb[0].mxu0
        %3550 = vmatprep.mubr.bf16.mxu0 %v2478
        %3551 = vmatmul.mubr.bf16.gmra.mrb[0].mxu0 %v2477
        %v3552 = vpop.f32.mrb[0].mxu0
        %v3553 = vadd.f32 %v3392, %v3552
        %v3554 = vpop.f32.mrb[0].mxu0
        %v3555 = vpop.f32.mrb[0].mxu0
        %v3556 = vadd.f32 %v3395, %v3555
        %v3557 = vpop.f32.mrb[0].mxu0
        %3558 = vmatprep.mubr.bf16.mxu0 %v2487
        %3559 = vmatmul.mubr.bf16.gmra.mrb[0].mxu0 %v2486
        %v3560 = vpop.f32.mrb[0].mxu0
        %v3561 = vadd.f32 %v3400, %v3560
        %v3562 = vpop.f32.mrb[0].mxu0
        %v3563 = vpop.f32.mrb[0].mxu0
        %v3564 = vadd.f32 %v3403, %v3563
        %v3565 = vpop.f32.mrb[0].mxu0
        %3566 = vmatprep.mubr.bf16.mxu0 %v2496
        %3567 = vmatmul.mubr.bf16.gmra.mrb[0].mxu0 %v2495
        %v3568 = vpop.f32.mrb[0].mxu0
        %v3569 = vadd.f32 %v3408, %v3568
        %v3570 = vpop.f32.mrb[0].mxu0
        %v3571 = vpop.f32.mrb[0].mxu0
        %v3572 = vadd.f32 %v3411, %v3571
        %v3573 = vpop.f32.mrb[0].mxu0
        %3574 = vmatprep.mubr.bf16.mxu0 %v2505
        %3575 = vmatmul.mubr.bf16.gmra.mrb[0].mxu0 %v2504
        %v3576 = vpop.f32.mrb[0].mxu0
        %v3577 = vadd.f32 %v3416, %v3576
        %v3578 = vpop.f32.mrb[0].mxu0
        %v3579 = vpop.f32.mrb[0].mxu0
        %v3580 = vadd.f32 %v3419, %v3579
        %v3581 = vpop.f32.mrb[0].mxu0
        %3582 = vmatprep.mubr.bf16.mxu0 %v2514
        %3583 = vmatmul.mubr.bf16.gmra.mrb[0].mxu0 %v2513
        %v3584 = vpop.f32.mrb[0].mxu0
        %v3585 = vadd.f32 %v3424, %v3584
        %v3586 = vpop.f32.mrb[0].mxu0
        %v3587 = vpop.f32.mrb[0].mxu0
        %v3588 = vadd.f32 %v3427, %v3587
        %v3589 = vpop.f32.mrb[0].mxu0
        %3590 = vmatprep.mubr.bf16.mxu0 %v2523
        %3591 = vmatmul.mubr.bf16.gmra.mrb[0].mxu0 %v2522
        %v3592 = vpop.f32.mrb[0].mxu0
        %v3593 = vadd.f32 %v3432, %v3592
        %v3594 = vpop.f32.mrb[0].mxu0
        %v3595 = vpop.f32.mrb[0].mxu0
        %v3596 = vadd.f32 %v3435, %v3595
        %v3597 = vpop.f32.mrb[0].mxu0
        %3598 = vmatprep.mubr.bf16.mxu0 %v2532
        %3599 = vmatmul.mubr.bf16.gmra.mrb[0].mxu0 %v2531
        %v3600 = vpop.f32.mrb[0].mxu0
        %v3601 = vadd.f32 %v3440, %v3600
        %v3602 = vpop.f32.mrb[0].mxu0
        %v3603 = vpop.f32.mrb[0].mxu0
        %v3604 = vadd.f32 %v3443, %v3603
        %v3605 = vpop.f32.mrb[0].mxu0
        %3606 = vmatprep.mubr.bf16.mxu0 %v2541
        %3607 = vmatmul.mubr.bf16.gmra.mrb[0].mxu0 %v2540
        %v3608 = vpop.f32.mrb[0].mxu0
        %v3609 = vadd.f32 %v3448, %v3608
        %v3610 = vpop.f32.mrb[0].mxu0
        %v3611 = vpop.f32.mrb[0].mxu0
        %v3612 = vadd.f32 %v3451, %v3611
        %v3613 = vpop.f32.mrb[0].mxu0
        %3614 = vmatprep.mubr.bf16.mxu0 %v2550
        %3615 = vmatmul.mubr.bf16.gmra.mrb[0].mxu0 %v2549
        %v3616 = vpop.f32.mrb[0].mxu0
        %v3617 = vadd.f32 %v3456, %v3616
        %v3618 = vpop.f32.mrb[0].mxu0
        %v3619 = vpop.f32.mrb[0].mxu0
        %v3620 = vadd.f32 %v3459, %v3619
        %v3621 = vpop.f32.mrb[0].mxu0
        %3622 = vmatprep.mubr.bf16.mxu0 %v2559
        %3623 = vmatmul.mubr.bf16.gmra.mrb[0].mxu0 %v2558
        %v3624 = vpop.f32.mrb[0].mxu0
        %v3625 = vadd.f32 %v3464, %v3624
        %v3626 = vpop.f32.mrb[0].mxu0
        %v3627 = vpop.f32.mrb[0].mxu0
        %v3628 = vadd.f32 %v3467, %v3627
        %v3629 = vpop.f32.mrb[0].mxu0
        %3630 = vmatprep.mubr.bf16.mxu0 %v2568
        %3631 = vmatmul.mubr.bf16.gmra.mrb[0].mxu0 %v2567
        %v3632 = vpop.f32.mrb[0].mxu0
        %v3633 = vadd.f32 %v3472, %v3632
        %v3634 = vpop.f32.mrb[0].mxu0
        %v3635 = vpop.f32.mrb[0].mxu0
        %v3636 = vadd.f32 %v3475, %v3635
        %v3637 = vpop.f32.mrb[0].mxu0
        %3638 = vmatprep.mubr.bf16.mxu0 %v2577
        %3639 = vmatmul.mubr.bf16.gmra.mrb[0].mxu0 %v2576
        %v3640 = vpop.f32.mrb[0].mxu0
        %v3641 = vadd.f32 %v3480, %v3640
        %v3642 = vpop.f32.mrb[0].mxu0
        %v3643 = vpop.f32.mrb[0].mxu0
        %v3644 = vadd.f32 %v3483, %v3643
        %v3645 = vpop.f32.mrb[0].mxu0
        %3646 = vdwg.mxu0
        %3647 = vmatprep.subr.bf16.mxu0 0
        %3648 = vmatpush1.bf16.msra.mxu0 %v3068
        %3649 = vmatprep.subr.bf16.mxu0 0
        %3650 = vmatpush1.bf16.msra.mxu0 %v3069
        %3651 = vmatprep.subr.bf16.mxu0 0
        %3652 = vmatpush1.bf16.msra.mxu0 %v3070
        %3653 = vmatprep.subr.bf16.mxu0 0
        %3654 = vmatpush1.bf16.msra.mxu0 %v3071
        %3655 = vmatprep.subr.bf16.mxu0 0
        %3656 = vmatpush1.bf16.msra.mxu0 %v3072
        %3657 = vmatprep.subr.bf16.mxu0 0
        %3658 = vmatpush1.bf16.msra.mxu0 %v3073
        %3659 = vmatprep.subr.bf16.mxu0 0
        %3660 = vmatpush1.bf16.msra.mxu0 %v3074
        %3661 = vmatprep.subr.bf16.mxu0 0
        %3662 = vmatpush1.bf16.msra.mxu0 %v3075
        %3663 = vmatprep.subr.bf16.mxu0 0
        %3664 = vmatpush1.bf16.msra.mxu0 %v3076
        %3665 = vmatprep.subr.bf16.mxu0 0
        %3666 = vmatpush1.bf16.msra.mxu0 %v3077
        %3667 = vmatprep.subr.bf16.mxu0 0
        %3668 = vmatpush1.bf16.msra.mxu0 %v3078
        %3669 = vmatprep.subr.bf16.mxu0 0
        %3670 = vmatpush1.bf16.msra.mxu0 %v3079
        %3671 = vmatprep.subr.bf16.mxu0 0
        %3672 = vmatpush1.bf16.msra.mxu0 %v3080
        %3673 = vmatprep.subr.bf16.mxu0 0
        %3674 = vmatpush1.bf16.msra.mxu0 %v3081
        %3675 = vmatprep.subr.bf16.mxu0 0
        %3676 = vmatpush1.bf16.msra.mxu0 %v3082
        %3677 = vmatprep.subr.bf16.mxu0 0
        %3678 = vmatpush1.bf16.msra.mxu0 %v3083
        %3679 = vmatprep.mubr.bf16.mxu0 %v2444
        %3680 = vmatmul.mubr.bf16.gmra.mrb[0].mxu0 %v2443
        %v3681 = vpop.f32.mrb[0].mxu0
        %v3682 = vadd.f32 %v3521, %v3681
        %v3683 = vpop.f32.mrb[0].mxu0
        %v3684 = vpop.f32.mrb[0].mxu0
        %v3685 = vadd.f32 %v3524, %v3684
        %v3686 = vpop.f32.mrb[0].mxu0
        %3687 = vmatprep.mubr.bf16.mxu0 %v2453
        %3688 = vmatmul.mubr.bf16.gmra.mrb[0].mxu0 %v2452
        %v3689 = vpop.f32.mrb[0].mxu0
        %v3690 = vadd.f32 %v3529, %v3689
        %v3691 = vpop.f32.mrb[0].mxu0
        %v3692 = vpop.f32.mrb[0].mxu0
        %v3693 = vadd.f32 %v3532, %v3692
        %v3694 = vpop.f32.mrb[0].mxu0
        %3695 = vmatprep.mubr.bf16.mxu0 %v2462
        %3696 = vmatmul.mubr.bf16.gmra.mrb[0].mxu0 %v2461
        %v3697 = vpop.f32.mrb[0].mxu0
        %v3698 = vadd.f32 %v3537, %v3697
        %v3699 = vpop.f32.mrb[0].mxu0
        %v3700 = vpop.f32.mrb[0].mxu0
        %v3701 = vadd.f32 %v3540, %v3700
        %v3702 = vpop.f32.mrb[0].mxu0
        %3703 = vmatprep.mubr.bf16.mxu0 %v2471
        %3704 = vmatmul.mubr.bf16.gmra.mrb[0].mxu0 %v2470
        %v3705 = vpop.f32.mrb[0].mxu0
        %v3706 = vadd.f32 %v3545, %v3705
        %v3707 = vpop.f32.mrb[0].mxu0
        %v3708 = vpop.f32.mrb[0].mxu0
        %v3709 = vadd.f32 %v3548, %v3708
        %v3710 = vpop.f32.mrb[0].mxu0
        %3711 = vmatprep.mubr.bf16.mxu0 %v2480
        %3712 = vmatmul.mubr.bf16.gmra.mrb[0].mxu0 %v2479
        %v3713 = vpop.f32.mrb[0].mxu0
        %v3714 = vadd.f32 %v3553, %v3713
        %v3715 = vpop.f32.mrb[0].mxu0
        %v3716 = vpop.f32.mrb[0].mxu0
        %v3717 = vadd.f32 %v3556, %v3716
        %v3718 = vpop.f32.mrb[0].mxu0
        %3719 = vmatprep.mubr.bf16.mxu0 %v2489
        %3720 = vmatmul.mubr.bf16.gmra.mrb[0].mxu0 %v2488
        %v3721 = vpop.f32.mrb[0].mxu0
        %v3722 = vadd.f32 %v3561, %v3721
        %v3723 = vpop.f32.mrb[0].mxu0
        %v3724 = vpop.f32.mrb[0].mxu0
        %v3725 = vadd.f32 %v3564, %v3724
        %v3726 = vpop.f32.mrb[0].mxu0
        %3727 = vmatprep.mubr.bf16.mxu0 %v2498
        %3728 = vmatmul.mubr.bf16.gmra.mrb[0].mxu0 %v2497
        %v3729 = vpop.f32.mrb[0].mxu0
        %v3730 = vadd.f32 %v3569, %v3729
        %v3731 = vpop.f32.mrb[0].mxu0
        %v3732 = vpop.f32.mrb[0].mxu0
        %v3733 = vadd.f32 %v3572, %v3732
        %v3734 = vpop.f32.mrb[0].mxu0
        %3735 = vmatprep.mubr.bf16.mxu0 %v2507
        %3736 = vmatmul.mubr.bf16.gmra.mrb[0].mxu0 %v2506
        %v3737 = vpop.f32.mrb[0].mxu0
        %v3738 = vadd.f32 %v3577, %v3737
        %v3739 = vpop.f32.mrb[0].mxu0
        %v3740 = vpop.f32.mrb[0].mxu0
        %v3741 = vadd.f32 %v3580, %v3740
        %v3742 = vpop.f32.mrb[0].mxu0
        %3743 = vmatprep.mubr.bf16.mxu0 %v2516
        %3744 = vmatmul.mubr.bf16.gmra.mrb[0].mxu0 %v2515
        %v3745 = vpop.f32.mrb[0].mxu0
        %v3746 = vadd.f32 %v3585, %v3745
        %v3747 = vpop.f32.mrb[0].mxu0
        %v3748 = vpop.f32.mrb[0].mxu0
        %v3749 = vadd.f32 %v3588, %v3748
        %v3750 = vpop.f32.mrb[0].mxu0
        %3751 = vmatprep.mubr.bf16.mxu0 %v2525
        %3752 = vmatmul.mubr.bf16.gmra.mrb[0].mxu0 %v2524
        %v3753 = vpop.f32.mrb[0].mxu0
        %v3754 = vadd.f32 %v3593, %v3753
        %v3755 = vpop.f32.mrb[0].mxu0
        %v3756 = vpop.f32.mrb[0].mxu0
        %v3757 = vadd.f32 %v3596, %v3756
        %v3758 = vpop.f32.mrb[0].mxu0
        %3759 = vmatprep.mubr.bf16.mxu0 %v2534
        %3760 = vmatmul.mubr.bf16.gmra.mrb[0].mxu0 %v2533
        %v3761 = vpop.f32.mrb[0].mxu0
        %v3762 = vadd.f32 %v3601, %v3761
        %v3763 = vpop.f32.mrb[0].mxu0
        %v3764 = vpop.f32.mrb[0].mxu0
        %v3765 = vadd.f32 %v3604, %v3764
        %v3766 = vpop.f32.mrb[0].mxu0
        %3767 = vmatprep.mubr.bf16.mxu0 %v2543
        %3768 = vmatmul.mubr.bf16.gmra.mrb[0].mxu0 %v2542
        %v3769 = vpop.f32.mrb[0].mxu0
        %v3770 = vadd.f32 %v3609, %v3769
        %v3771 = vpop.f32.mrb[0].mxu0
        %v3772 = vpop.f32.mrb[0].mxu0
        %v3773 = vadd.f32 %v3612, %v3772
        %v3774 = vpop.f32.mrb[0].mxu0
        %3775 = vmatprep.mubr.bf16.mxu0 %v2552
        %3776 = vmatmul.mubr.bf16.gmra.mrb[0].mxu0 %v2551
        %v3777 = vpop.f32.mrb[0].mxu0
        %v3778 = vadd.f32 %v3617, %v3777
        %v3779 = vpop.f32.mrb[0].mxu0
        %v3780 = vpop.f32.mrb[0].mxu0
        %v3781 = vadd.f32 %v3620, %v3780
        %v3782 = vpop.f32.mrb[0].mxu0
        %3783 = vmatprep.mubr.bf16.mxu0 %v2561
        %3784 = vmatmul.mubr.bf16.gmra.mrb[0].mxu0 %v2560
        %v3785 = vpop.f32.mrb[0].mxu0
        %v3786 = vadd.f32 %v3625, %v3785
        %v3787 = vpop.f32.mrb[0].mxu0
        %v3788 = vpop.f32.mrb[0].mxu0
        %v3789 = vadd.f32 %v3628, %v3788
        %v3790 = vpop.f32.mrb[0].mxu0
        %3791 = vmatprep.mubr.bf16.mxu0 %v2570
        %3792 = vmatmul.mubr.bf16.gmra.mrb[0].mxu0 %v2569
        %v3793 = vpop.f32.mrb[0].mxu0
        %v3794 = vadd.f32 %v3633, %v3793
        %v3795 = vpop.f32.mrb[0].mxu0
        %v3796 = vpop.f32.mrb[0].mxu0
        %v3797 = vadd.f32 %v3636, %v3796
        %v3798 = vpop.f32.mrb[0].mxu0
        %3799 = vmatprep.mubr.bf16.mxu0 %v2579
        %3800 = vmatmul.mubr.bf16.gmra.mrb[0].mxu0 %v2578
        %v3801 = vpop.f32.mrb[0].mxu0
        %v3802 = vadd.f32 %v3641, %v3801
        %v3803 = vpop.f32.mrb[0].mxu0
        %v3804 = vpop.f32.mrb[0].mxu0
        %v3805 = vadd.f32 %v3644, %v3804
        %v3806 = vpop.f32.mrb[0].mxu0
        %3807 = vdwg.mxu0
        %3808 = vmatprep.subr.bf16.mxu0 0
        %3809 = vmatpush1.bf16.msra.mxu0 %v3084
        %3810 = vmatprep.subr.bf16.mxu0 0
        %3811 = vmatpush1.bf16.msra.mxu0 %v3085
        %3812 = vmatprep.subr.bf16.mxu0 0
        %3813 = vmatpush1.bf16.msra.mxu0 %v3086
        %3814 = vmatprep.subr.bf16.mxu0 0
        %3815 = vmatpush1.bf16.msra.mxu0 %v3087
        %3816 = vmatprep.subr.bf16.mxu0 0
        %3817 = vmatpush1.bf16.msra.mxu0 %v3088
        %3818 = vmatprep.subr.bf16.mxu0 0
        %3819 = vmatpush1.bf16.msra.mxu0 %v3089
        %3820 = vmatprep.subr.bf16.mxu0 0
        %3821 = vmatpush1.bf16.msra.mxu0 %v3090
        %3822 = vmatprep.subr.bf16.mxu0 0
        %3823 = vmatpush1.bf16.msra.mxu0 %v3091
        %3824 = vmatprep.subr.bf16.mxu0 0
        %3825 = vmatpush1.bf16.msra.mxu0 0
        %3826 = vmatprep.subr.bf16.mxu0 0
        %3827 = vmatpush1.bf16.msra.mxu0 0
        %3828 = vmatprep.subr.bf16.mxu0 0
        %3829 = vmatpush1.bf16.msra.mxu0 0
        %3830 = vmatprep.subr.bf16.mxu0 0
        %3831 = vmatpush1.bf16.msra.mxu0 0
        %3832 = vmatprep.subr.bf16.mxu0 0
        %3833 = vmatpush1.bf16.msra.mxu0 0
        %3834 = vmatprep.subr.bf16.mxu0 0
        %3835 = vmatpush1.bf16.msra.mxu0 0
        %3836 = vmatprep.subr.bf16.mxu0 0
        %3837 = vmatpush1.bf16.msra.mxu0 0
        %3838 = vmatprep.subr.bf16.mxu0 0
        %3839 = vmatpush1.bf16.msra.mxu0 0
        %3840 = vmatprep.mubr.bf16.mxu0 0
        %3841 = vmatmul.mubr.bf16.gmra.mrb[0].mxu0 %v2445
        %v3842 = vpop.f32.mrb[0].mxu0
        %v3843 = vadd.f32 %v3682, %v3842
        %v3844 = vpop.f32.mrb[0].mxu0
        %v3845 = vpop.f32.mrb[0].mxu0
        %v3846 = vadd.f32 %v3685, %v3845
        %v3847 = vpop.f32.mrb[0].mxu0
        %3848 = vmatprep.mubr.bf16.mxu0 0
        %3849 = vmatmul.mubr.bf16.gmra.mrb[0].mxu0 %v2454
        %v3850 = vpop.f32.mrb[0].mxu0
        %v3851 = vadd.f32 %v3690, %v3850
        %v3852 = vpop.f32.mrb[0].mxu0
        %v3853 = vpop.f32.mrb[0].mxu0
        %v3854 = vadd.f32 %v3693, %v3853
        %v3855 = vpop.f32.mrb[0].mxu0
        %3856 = vmatprep.mubr.bf16.mxu0 0
        %3857 = vmatmul.mubr.bf16.gmra.mrb[0].mxu0 %v2463
        %v3858 = vpop.f32.mrb[0].mxu0
        %v3859 = vadd.f32 %v3698, %v3858
        %v3860 = vpop.f32.mrb[0].mxu0
        %v3861 = vpop.f32.mrb[0].mxu0
        %v3862 = vadd.f32 %v3701, %v3861
        %v3863 = vpop.f32.mrb[0].mxu0
        %3864 = vmatprep.mubr.bf16.mxu0 0
        %3865 = vmatmul.mubr.bf16.gmra.mrb[0].mxu0 %v2472
        %v3866 = vpop.f32.mrb[0].mxu0
        %v3867 = vadd.f32 %v3706, %v3866
        %v3868 = vpop.f32.mrb[0].mxu0
        %v3869 = vpop.f32.mrb[0].mxu0
        %v3870 = vadd.f32 %v3709, %v3869
        %v3871 = vpop.f32.mrb[0].mxu0
        %3872 = vmatprep.mubr.bf16.mxu0 0
        %3873 = vmatmul.mubr.bf16.gmra.mrb[0].mxu0 %v2481
        %v3874 = vpop.f32.mrb[0].mxu0
        %v3875 = vadd.f32 %v3714, %v3874
        %v3876 = vpop.f32.mrb[0].mxu0
        %v3877 = vpop.f32.mrb[0].mxu0
        %v3878 = vadd.f32 %v3717, %v3877
        %v3879 = vpop.f32.mrb[0].mxu0
        %3880 = vmatprep.mubr.bf16.mxu0 0
        %3881 = vmatmul.mubr.bf16.gmra.mrb[0].mxu0 %v2490
        %v3882 = vpop.f32.mrb[0].mxu0
        %v3883 = vadd.f32 %v3722, %v3882
        %v3884 = vpop.f32.mrb[0].mxu0
        %v3885 = vpop.f32.mrb[0].mxu0
        %v3886 = vadd.f32 %v3725, %v3885
        %v3887 = vpop.f32.mrb[0].mxu0
        %3888 = vmatprep.mubr.bf16.mxu0 0
        %3889 = vmatmul.mubr.bf16.gmra.mrb[0].mxu0 %v2499
        %v3890 = vpop.f32.mrb[0].mxu0
        %v3891 = vadd.f32 %v3730, %v3890
        %v3892 = vpop.f32.mrb[0].mxu0
        %v3893 = vpop.f32.mrb[0].mxu0
        %v3894 = vadd.f32 %v3733, %v3893
        %v3895 = vpop.f32.mrb[0].mxu0
        %3896 = vmatprep.mubr.bf16.mxu0 0
        %3897 = vmatmul.mubr.bf16.gmra.mrb[0].mxu0 %v2508
        %v3898 = vpop.f32.mrb[0].mxu0
        %v3899 = vadd.f32 %v3738, %v3898
        %v3900 = vpop.f32.mrb[0].mxu0
        %v3901 = vpop.f32.mrb[0].mxu0
        %v3902 = vadd.f32 %v3741, %v3901
        %v3903 = vpop.f32.mrb[0].mxu0
        %3904 = vmatprep.mubr.bf16.mxu0 0
        %3905 = vmatmul.mubr.bf16.gmra.mrb[0].mxu0 %v2517
        %v3906 = vpop.f32.mrb[0].mxu0
        %v3907 = vadd.f32 %v3746, %v3906
        %v3908 = vpop.f32.mrb[0].mxu0
        %v3909 = vpop.f32.mrb[0].mxu0
        %v3910 = vadd.f32 %v3749, %v3909
        %v3911 = vpop.f32.mrb[0].mxu0
        %3912 = vmatprep.mubr.bf16.mxu0 0
        %3913 = vmatmul.mubr.bf16.gmra.mrb[0].mxu0 %v2526
        %v3914 = vpop.f32.mrb[0].mxu0
        %v3915 = vadd.f32 %v3754, %v3914
        %v3916 = vpop.f32.mrb[0].mxu0
        %v3917 = vpop.f32.mrb[0].mxu0
        %v3918 = vadd.f32 %v3757, %v3917
        %v3919 = vpop.f32.mrb[0].mxu0
        %3920 = vmatprep.mubr.bf16.mxu0 0
        %3921 = vmatmul.mubr.bf16.gmra.mrb[0].mxu0 %v2535
        %v3922 = vpop.f32.mrb[0].mxu0
        %v3923 = vadd.f32 %v3762, %v3922
        %v3924 = vpop.f32.mrb[0].mxu0
        %v3925 = vpop.f32.mrb[0].mxu0
        %v3926 = vadd.f32 %v3765, %v3925
        %v3927 = vpop.f32.mrb[0].mxu0
        %3928 = vmatprep.mubr.bf16.mxu0 0
        %3929 = vmatmul.mubr.bf16.gmra.mrb[0].mxu0 %v2544
        %v3930 = vpop.f32.mrb[0].mxu0
        %v3931 = vadd.f32 %v3770, %v3930
        %v3932 = vpop.f32.mrb[0].mxu0
        %v3933 = vpop.f32.mrb[0].mxu0
        %v3934 = vadd.f32 %v3773, %v3933
        %v3935 = vpop.f32.mrb[0].mxu0
        %3936 = vmatprep.mubr.bf16.mxu0 0
        %3937 = vmatmul.mubr.bf16.gmra.mrb[0].mxu0 %v2553
        %v3938 = vpop.f32.mrb[0].mxu0
        %v3939 = vadd.f32 %v3778, %v3938
        %v3940 = vpop.f32.mrb[0].mxu0
        %v3941 = vpop.f32.mrb[0].mxu0
        %v3942 = vadd.f32 %v3781, %v3941
        %v3943 = vpop.f32.mrb[0].mxu0
        %3944 = vmatprep.mubr.bf16.mxu0 0
        %3945 = vmatmul.mubr.bf16.gmra.mrb[0].mxu0 %v2562
        %v3946 = vpop.f32.mrb[0].mxu0
        %v3947 = vadd.f32 %v3786, %v3946
        %v3948 = vpop.f32.mrb[0].mxu0
        %v3949 = vpop.f32.mrb[0].mxu0
        %v3950 = vadd.f32 %v3789, %v3949
        %v3951 = vpop.f32.mrb[0].mxu0
        %3952 = vmatprep.mubr.bf16.mxu0 0
        %3953 = vmatmul.mubr.bf16.gmra.mrb[0].mxu0 %v2571
        %v3954 = vpop.f32.mrb[0].mxu0
        %v3955 = vadd.f32 %v3794, %v3954
        %v3956 = vpop.f32.mrb[0].mxu0
        %v3957 = vpop.f32.mrb[0].mxu0
        %v3958 = vadd.f32 %v3797, %v3957
        %v3959 = vpop.f32.mrb[0].mxu0
        %3960 = vmatprep.mubr.bf16.mxu0 0
        %3961 = vmatmul.mubr.bf16.gmra.mrb[0].mxu0 %v2580
        %v3962 = vpop.f32.mrb[0].mxu0
        %v3963 = vadd.f32 %v3802, %v3962
        %v3964 = vpop.f32.mrb[0].mxu0
        %v3965 = vpop.f32.mrb[0].mxu0
        %v3966 = vadd.f32 %v3805, %v3965
        %v3967 = vpop.f32.mrb[0].mxu0
        %3968 = vdwg.mxu0
        %v3969 = vmax.f32 %v3843, 0.0
        %v3970 = vmax.f32 %v3846, 0.0
        %v3971 = vmax.f32 %v3851, 0.0
        %v3972 = vmax.f32 %v3854, 0.0
        %v3973 = vmax.f32 %v3859, 0.0
        %v3974 = vmax.f32 %v3862, 0.0
        %v3975 = vmax.f32 %v3867, 0.0
        %v3976 = vmax.f32 %v3870, 0.0
        %v3977 = vmax.f32 %v3875, 0.0
        %v3978 = vmax.f32 %v3878, 0.0
        %v3979 = vmax.f32 %v3883, 0.0
        %v3980 = vmax.f32 %v3886, 0.0
        %v3981 = vmax.f32 %v3891, 0.0
        %v3982 = vmax.f32 %v3894, 0.0
        %v3983 = vmax.f32 %v3899, 0.0
        %v3984 = vmax.f32 %v3902, 0.0
        %v3985 = vmax.f32 %v3907, 0.0
        %v3986 = vmax.f32 %v3910, 0.0
        %v3987 = vmax.f32 %v3915, 0.0
        %v3988 = vmax.f32 %v3918, 0.0
        %v3989 = vmax.f32 %v3923, 0.0
        %v3990 = vmax.f32 %v3926, 0.0
        %v3991 = vmax.f32 %v3931, 0.0
        %v3992 = vmax.f32 %v3934, 0.0
        %v3993 = vmax.f32 %v3939, 0.0
        %v3994 = vmax.f32 %v3942, 0.0
        %v3995 = vmax.f32 %v3947, 0.0
        %v3996 = vmax.f32 %v3950, 0.0
        %v3997 = vmax.f32 %v3955, 0.0
        %v3998 = vmax.f32 %v3958, 0.0
        %v3999 = vmax.f32 %v3963, 0.0
        %v4000 = vmax.f32 %v3966, 0.0
        %v4001 = vpack.c.bf16 %v3970, %v3969
        %v4002 = vpack.c.bf16 %v3972, %v3971
        %v4003 = vpack.c.bf16 %v3974, %v3973
        %v4004 = vpack.c.bf16 %v3976, %v3975
        %v4005 = vpack.c.bf16 %v3978, %v3977
        %v4006 = vpack.c.bf16 %v3980, %v3979
        %v4007 = vpack.c.bf16 %v3982, %v3981
        %v4008 = vpack.c.bf16 %v3984, %v3983
        %v4009 = vpack.c.bf16 %v3986, %v3985
        %v4010 = vpack.c.bf16 %v3988, %v3987
        %v4011 = vpack.c.bf16 %v3990, %v3989
        %v4012 = vpack.c.bf16 %v3992, %v3991
        %v4013 = vpack.c.bf16 %v3994, %v3993
        %v4014 = vpack.c.bf16 %v3996, %v3995
        %v4015 = vpack.c.bf16 %v3998, %v3997
        %v4016 = vpack.c.bf16 %v4000, %v3999
        %v4033 = vrot.slane %v4001, 4
        %v4034 = vrot.slane %v4002, 4
        %v4035 = vrot.slane %v4003, 4
        %v4036 = vrot.slane %v4004, 4
        %v4037 = vrot.slane %v4005, 4
        %v4038 = vrot.slane %v4006, 4
        %v4039 = vrot.slane %v4007, 4
        %v4040 = vrot.slane %v4008, 4
        %v4041 = vrot.slane %v4009, 4
        %v4042 = vrot.slane %v4010, 4
        %v4043 = vrot.slane %v4011, 4
        %v4044 = vrot.slane %v4012, 4
        %v4045 = vrot.slane %v4013, 4
        %v4046 = vrot.slane %v4014, 4
        %v4047 = vrot.slane %v4015, 4
        %v4048 = vrot.slane %v4016, 4
        %vm4065 = vcmask 523268
        %4066 = vst.msk [vmem:[%s621] sm:$0xf0] %vm4065, %v4033
        %vm4067 = vcmask 519168
        %4068 = vst.msk [vmem:[%s621 + $0x8] sm:$0xf] %vm4067, %v4033
        %4069 = vst.msk [vmem:[%s621 + $0x10] sm:$0xf0] %vm4065, %v4034
        %4070 = vst.msk [vmem:[%s621 + $0x18] sm:$0xf] %vm4067, %v4034
        %4071 = vst.msk [vmem:[%s621 + $0x20] sm:$0xf0] %vm4065, %v4035
        %4072 = vst.msk [vmem:[%s621 + $0x28] sm:$0xf] %vm4067, %v4035
        %4073 = vst.msk [vmem:[%s621 + $0x30] sm:$0xf0] %vm4065, %v4036
        %4074 = vst.msk [vmem:[%s621 + $0x38] sm:$0xf] %vm4067, %v4036
        %4075 = vst.msk [vmem:[%s621 + $0x40] sm:$0xf0] %vm4065, %v4037
        %4076 = vst.msk [vmem:[%s621 + $0x48] sm:$0xf] %vm4067, %v4037
        %4077 = vst.msk [vmem:[%s621 + $0x50] sm:$0xf0] %vm4065, %v4038
        %4078 = vst.msk [vmem:[%s621 + $0x58] sm:$0xf] %vm4067, %v4038
        %4079 = vst.msk [vmem:[%s621 + $0x60] sm:$0xf0] %vm4065, %v4039
        %4080 = vst.msk [vmem:[%s621 + $0x68] sm:$0xf] %vm4067, %v4039
        %4081 = vst.msk [vmem:[%s621 + $0x70] sm:$0xf0] %vm4065, %v4040
        %4082 = vst.msk [vmem:[%s621 + $0x78] sm:$0xf] %vm4067, %v4040
        %4083 = vst.msk [vmem:[%s621 + $0x80] sm:$0xf0] %vm4065, %v4041
        %4084 = vst.msk [vmem:[%s621 + $0x88] sm:$0xf] %vm4067, %v4041
        %4085 = vst.msk [vmem:[%s621 + $0x90] sm:$0xf0] %vm4065, %v4042
        %4086 = vst.msk [vmem:[%s621 + $0x98] sm:$0xf] %vm4067, %v4042
        %4087 = vst.msk [vmem:[%s621 + $0xa0] sm:$0xf0] %vm4065, %v4043
        %4088 = vst.msk [vmem:[%s621 + $0xa8] sm:$0xf] %vm4067, %v4043
        %4089 = vst.msk [vmem:[%s621 + $0xb0] sm:$0xf0] %vm4065, %v4044
        %4090 = vst.msk [vmem:[%s621 + $0xb8] sm:$0xf] %vm4067, %v4044
        %4091 = vst.msk [vmem:[%s621 + $0xc0] sm:$0xf0] %vm4065, %v4045
        %4092 = vst.msk [vmem:[%s621 + $0xc8] sm:$0xf] %vm4067, %v4045
        %4093 = vst.msk [vmem:[%s621 + $0xd0] sm:$0xf0] %vm4065, %v4046
        %4094 = vst.msk [vmem:[%s621 + $0xd8] sm:$0xf] %vm4067, %v4046
        %4095 = vst.msk [vmem:[%s621 + $0xe0] sm:$0xf0] %vm4065, %v4047
        %4096 = vst.msk [vmem:[%s621 + $0xe8] sm:$0xf] %vm4067, %v4047
        %4097 = vst.msk [vmem:[%s621 + $0xf0] sm:$0xf0] %vm4065, %v4048
        %4098 = vst.msk [vmem:[%s621 + $0xf8] sm:$0xf] %vm4067, %v4048
        %v4099 = vld [vmem:[#allocation2] sm:$0xf8]
        %v4100 = vld [vmem:[#allocation2 + $0x8] sm:$0x1f]
        %v4101 = vld [vmem:[#allocation2 + $0x10] sm:$0xf8]
        %v4102 = vld [vmem:[#allocation2 + $0x18] sm:$0x1f]
        %v4103 = vld [vmem:[#allocation2 + $0x20] sm:$0xf8]
        %v4104 = vld [vmem:[#allocation2 + $0x28] sm:$0x1f]
        %v4105 = vld [vmem:[#allocation2 + $0x30] sm:$0xf8]
        %v4106 = vld [vmem:[#allocation2 + $0x38] sm:$0x1f]
        %v4107 = vld [vmem:[#allocation2 + $0x40] sm:$0xf8]
        %v4108 = vld [vmem:[#allocation2 + $0x48] sm:$0x1f]
        %v4109 = vld [vmem:[#allocation2 + $0x50] sm:$0xf8]
        %v4110 = vld [vmem:[#allocation2 + $0x58] sm:$0x1f]
        %v4111 = vld [vmem:[#allocation2 + $0x60] sm:$0xf8]
        %v4112 = vld [vmem:[#allocation2 + $0x68] sm:$0x1f]
        %v4113 = vld [vmem:[#allocation2 + $0x70] sm:$0xf8]
        %v4114 = vld [vmem:[#allocation2 + $0x78] sm:$0x1f]
        %v4115 = vld [vmem:[#allocation2 + $0x80] sm:$0xf8]
        %v4116 = vld [vmem:[#allocation2 + $0x88] sm:$0x1f]
        %v4117 = vld [vmem:[#allocation2 + $0x90] sm:$0xf8]
        %v4118 = vld [vmem:[#allocation2 + $0x98] sm:$0x1f]
        %v4119 = vld [vmem:[#allocation2 + $0xa0] sm:$0xf8]
        %v4120 = vld [vmem:[#allocation2 + $0xa8] sm:$0x1f]
        %v4121 = vld [vmem:[#allocation2 + $0xb0] sm:$0xf8]
        %v4122 = vld [vmem:[#allocation2 + $0xb8] sm:$0x1f]
        %v4123 = vld [vmem:[#allocation2 + $0xc0] sm:$0xf8]
        %v4124 = vld [vmem:[#allocation2 + $0xc8] sm:$0x1f]
        %v4125 = vld [vmem:[#allocation2 + $0xd0] sm:$0xf8]
        %v4126 = vld [vmem:[#allocation2 + $0xd8] sm:$0x1f]
        %v4127 = vld [vmem:[#allocation2 + $0xe0] sm:$0xf8]
        %v4128 = vld [vmem:[#allocation2 + $0xe8] sm:$0x1f]
        %v4129 = vld [vmem:[#allocation2 + $0xf0] sm:$0xf8]
        %v4130 = vld [vmem:[#allocation2 + $0xf8] sm:$0x1f]
        %v4132 = vshrl.u32 %v4099, 16
        %v4134 = vrot.slane %v4132, 3
        %v4135 = vshll.u32 %v4099, 16
        %v4137 = vrot.slane %v4135, 4
        %v4138 = vor.u32 %v4134, %v4137
        %v4140 = vshrl.u32 %v4100, 16
        %v4142 = vrot.slane %v4140, 3
        %v4143 = vshll.u32 %v4100, 16
        %v4145 = vrot.slane %v4143, 4
        %v4146 = vor.u32 %v4142, %v4145
        %v4147 = vsel %vm688, %v4138, %v4146
        %v4149 = vshrl.u32 %v4101, 16
        %v4151 = vrot.slane %v4149, 3
        %v4152 = vshll.u32 %v4101, 16
        %v4154 = vrot.slane %v4152, 4
        %v4155 = vor.u32 %v4151, %v4154
        %v4157 = vshrl.u32 %v4102, 16
        %v4159 = vrot.slane %v4157, 3
        %v4160 = vshll.u32 %v4102, 16
        %v4162 = vrot.slane %v4160, 4
        %v4163 = vor.u32 %v4159, %v4162
        %v4164 = vsel %vm688, %v4155, %v4163
        %v4166 = vshrl.u32 %v4103, 16
        %v4168 = vrot.slane %v4166, 3
        %v4169 = vshll.u32 %v4103, 16
        %v4171 = vrot.slane %v4169, 4
        %v4172 = vor.u32 %v4168, %v4171
        %v4174 = vshrl.u32 %v4104, 16
        %v4176 = vrot.slane %v4174, 3
        %v4177 = vshll.u32 %v4104, 16
        %v4179 = vrot.slane %v4177, 4
        %v4180 = vor.u32 %v4176, %v4179
        %v4181 = vsel %vm688, %v4172, %v4180
        %v4183 = vshrl.u32 %v4105, 16
        %v4185 = vrot.slane %v4183, 3
        %v4186 = vshll.u32 %v4105, 16
        %v4188 = vrot.slane %v4186, 4
        %v4189 = vor.u32 %v4185, %v4188
        %v4191 = vshrl.u32 %v4106, 16
        %v4193 = vrot.slane %v4191, 3
        %v4194 = vshll.u32 %v4106, 16
        %v4196 = vrot.slane %v4194, 4
        %v4197 = vor.u32 %v4193, %v4196
        %v4198 = vsel %vm688, %v4189, %v4197
        %v4200 = vshrl.u32 %v4107, 16
        %v4202 = vrot.slane %v4200, 3
        %v4203 = vshll.u32 %v4107, 16
        %v4205 = vrot.slane %v4203, 4
        %v4206 = vor.u32 %v4202, %v4205
        %v4208 = vshrl.u32 %v4108, 16
        %v4210 = vrot.slane %v4208, 3
        %v4211 = vshll.u32 %v4108, 16
        %v4213 = vrot.slane %v4211, 4
        %v4214 = vor.u32 %v4210, %v4213
        %v4215 = vsel %vm688, %v4206, %v4214
        %v4217 = vshrl.u32 %v4109, 16
        %v4219 = vrot.slane %v4217, 3
        %v4220 = vshll.u32 %v4109, 16
        %v4222 = vrot.slane %v4220, 4
        %v4223 = vor.u32 %v4219, %v4222
        %v4225 = vshrl.u32 %v4110, 16
        %v4227 = vrot.slane %v4225, 3
        %v4228 = vshll.u32 %v4110, 16
        %v4230 = vrot.slane %v4228, 4
        %v4231 = vor.u32 %v4227, %v4230
        %v4232 = vsel %vm688, %v4223, %v4231
        %v4234 = vshrl.u32 %v4111, 16
        %v4236 = vrot.slane %v4234, 3
        %v4237 = vshll.u32 %v4111, 16
        %v4239 = vrot.slane %v4237, 4
        %v4240 = vor.u32 %v4236, %v4239
        %v4242 = vshrl.u32 %v4112, 16
        %v4244 = vrot.slane %v4242, 3
        %v4245 = vshll.u32 %v4112, 16
        %v4247 = vrot.slane %v4245, 4
        %v4248 = vor.u32 %v4244, %v4247
        %v4249 = vsel %vm688, %v4240, %v4248
        %v4251 = vshrl.u32 %v4113, 16
        %v4253 = vrot.slane %v4251, 3
        %v4254 = vshll.u32 %v4113, 16
        %v4256 = vrot.slane %v4254, 4
        %v4257 = vor.u32 %v4253, %v4256
        %v4259 = vshrl.u32 %v4114, 16
        %v4261 = vrot.slane %v4259, 3
        %v4262 = vshll.u32 %v4114, 16
        %v4264 = vrot.slane %v4262, 4
        %v4265 = vor.u32 %v4261, %v4264
        %v4266 = vsel %vm688, %v4257, %v4265
        %v4268 = vshrl.u32 %v4115, 16
        %v4270 = vrot.slane %v4268, 3
        %v4271 = vshll.u32 %v4115, 16
        %v4273 = vrot.slane %v4271, 4
        %v4274 = vor.u32 %v4270, %v4273
        %v4276 = vshrl.u32 %v4116, 16
        %v4278 = vrot.slane %v4276, 3
        %v4279 = vshll.u32 %v4116, 16
        %v4281 = vrot.slane %v4279, 4
        %v4282 = vor.u32 %v4278, %v4281
        %v4283 = vsel %vm688, %v4274, %v4282
        %v4285 = vshrl.u32 %v4117, 16
        %v4287 = vrot.slane %v4285, 3
        %v4288 = vshll.u32 %v4117, 16
        %v4290 = vrot.slane %v4288, 4
        %v4291 = vor.u32 %v4287, %v4290
        %v4293 = vshrl.u32 %v4118, 16
        %v4295 = vrot.slane %v4293, 3
        %v4296 = vshll.u32 %v4118, 16
        %v4298 = vrot.slane %v4296, 4
        %v4299 = vor.u32 %v4295, %v4298
        %v4300 = vsel %vm688, %v4291, %v4299
        %v4302 = vshrl.u32 %v4119, 16
        %v4304 = vrot.slane %v4302, 3
        %v4305 = vshll.u32 %v4119, 16
        %v4307 = vrot.slane %v4305, 4
        %v4308 = vor.u32 %v4304, %v4307
        %v4310 = vshrl.u32 %v4120, 16
        %v4312 = vrot.slane %v4310, 3
        %v4313 = vshll.u32 %v4120, 16
        %v4315 = vrot.slane %v4313, 4
        %v4316 = vor.u32 %v4312, %v4315
        %v4317 = vsel %vm688, %v4308, %v4316
        %v4319 = vshrl.u32 %v4121, 16
        %v4321 = vrot.slane %v4319, 3
        %v4322 = vshll.u32 %v4121, 16
        %v4324 = vrot.slane %v4322, 4
        %v4325 = vor.u32 %v4321, %v4324
        %v4327 = vshrl.u32 %v4122, 16
        %v4329 = vrot.slane %v4327, 3
        %v4330 = vshll.u32 %v4122, 16
        %v4332 = vrot.slane %v4330, 4
        %v4333 = vor.u32 %v4329, %v4332
        %v4334 = vsel %vm688, %v4325, %v4333
        %v4336 = vshrl.u32 %v4123, 16
        %v4338 = vrot.slane %v4336, 3
        %v4339 = vshll.u32 %v4123, 16
        %v4341 = vrot.slane %v4339, 4
        %v4342 = vor.u32 %v4338, %v4341
        %v4344 = vshrl.u32 %v4124, 16
        %v4346 = vrot.slane %v4344, 3
        %v4347 = vshll.u32 %v4124, 16
        %v4349 = vrot.slane %v4347, 4
        %v4350 = vor.u32 %v4346, %v4349
        %v4351 = vsel %vm688, %v4342, %v4350
        %v4353 = vshrl.u32 %v4125, 16
        %v4355 = vrot.slane %v4353, 3
        %v4356 = vshll.u32 %v4125, 16
        %v4358 = vrot.slane %v4356, 4
        %v4359 = vor.u32 %v4355, %v4358
        %v4361 = vshrl.u32 %v4126, 16
        %v4363 = vrot.slane %v4361, 3
        %v4364 = vshll.u32 %v4126, 16
        %v4366 = vrot.slane %v4364, 4
        %v4367 = vor.u32 %v4363, %v4366
        %v4368 = vsel %vm688, %v4359, %v4367
        %v4370 = vshrl.u32 %v4127, 16
        %v4372 = vrot.slane %v4370, 3
        %v4373 = vshll.u32 %v4127, 16
        %v4375 = vrot.slane %v4373, 4
        %v4376 = vor.u32 %v4372, %v4375
        %v4378 = vshrl.u32 %v4128, 16
        %v4380 = vrot.slane %v4378, 3
        %v4381 = vshll.u32 %v4128, 16
        %v4383 = vrot.slane %v4381, 4
        %v4384 = vor.u32 %v4380, %v4383
        %v4385 = vsel %vm688, %v4376, %v4384
        %v4387 = vshrl.u32 %v4129, 16
        %v4389 = vrot.slane %v4387, 3
        %v4390 = vshll.u32 %v4129, 16
        %v4392 = vrot.slane %v4390, 4
        %v4393 = vor.u32 %v4389, %v4392
        %v4395 = vshrl.u32 %v4130, 16
        %v4397 = vrot.slane %v4395, 3
        %v4398 = vshll.u32 %v4130, 16
        %v4400 = vrot.slane %v4398, 4
        %v4401 = vor.u32 %v4397, %v4400
        %v4402 = vsel %vm688, %v4393, %v4401
        %4419 = vst.msk [vmem:[#allocation3] sm:$0xff] %vm977, %v4147
        %4420 = vst.msk [vmem:[#allocation3 + $0x48] sm:$0xff] %vm977, %v4164
        %4421 = vst.msk [vmem:[#allocation3 + $0x90] sm:$0xff] %vm977, %v4181
        %4422 = vst.msk [vmem:[#allocation3 + $0xd8] sm:$0xff] %vm977, %v4198
        %4423 = vst.msk [vmem:[#allocation3 + $0x120] sm:$0xff] %vm977, %v4215
        %4424 = vst.msk [vmem:[#allocation3 + $0x168] sm:$0xff] %vm977, %v4232
        %4425 = vst.msk [vmem:[#allocation3 + $0x1b0] sm:$0xff] %vm977, %v4249
        %4426 = vst.msk [vmem:[#allocation3 + $0x1f8] sm:$0xff] %vm977, %v4266
        %4427 = vst.msk [vmem:[#allocation3 + $0x240] sm:$0xff] %vm977, %v4283
        %4428 = vst.msk [vmem:[#allocation3 + $0x288] sm:$0xff] %vm977, %v4300
        %4429 = vst.msk [vmem:[#allocation3 + $0x2d0] sm:$0xff] %vm977, %v4317
        %4430 = vst.msk [vmem:[#allocation3 + $0x318] sm:$0xff] %vm977, %v4334
        %4431 = vst.msk [vmem:[#allocation3 + $0x360] sm:$0xff] %vm977, %v4351
        %4432 = vst.msk [vmem:[#allocation3 + $0x3a8] sm:$0xff] %vm977, %v4368
        %4433 = vst.msk [vmem:[#allocation3 + $0x3f0] sm:$0xff] %vm977, %v4385
        %4434 = vst.msk [vmem:[#allocation3 + $0x438] sm:$0xff] %vm977, %v4402
        %v4467 = vrot.slane %v4099, 4
        %v4468 = vrot.slane %v4100, 4
        %v4469 = vsel %vm1026, %v4467, %v4468
        %v4470 = vrot.slane %v4101, 4
        %v4471 = vrot.slane %v4102, 4
        %v4472 = vsel %vm1026, %v4470, %v4471
        %v4473 = vrot.slane %v4103, 4
        %v4474 = vrot.slane %v4104, 4
        %v4475 = vsel %vm1026, %v4473, %v4474
        %v4476 = vrot.slane %v4105, 4
        %v4477 = vrot.slane %v4106, 4
        %v4478 = vsel %vm1026, %v4476, %v4477
        %v4479 = vrot.slane %v4107, 4
        %v4480 = vrot.slane %v4108, 4
        %v4481 = vsel %vm1026, %v4479, %v4480
        %v4482 = vrot.slane %v4109, 4
        %v4483 = vrot.slane %v4110, 4
        %v4484 = vsel %vm1026, %v4482, %v4483
        %v4485 = vrot.slane %v4111, 4
        %v4486 = vrot.slane %v4112, 4
        %v4487 = vsel %vm1026, %v4485, %v4486
        %v4488 = vrot.slane %v4113, 4
        %v4489 = vrot.slane %v4114, 4
        %v4490 = vsel %vm1026, %v4488, %v4489
        %v4491 = vrot.slane %v4115, 4
        %v4492 = vrot.slane %v4116, 4
        %v4493 = vsel %vm1026, %v4491, %v4492
        %v4494 = vrot.slane %v4117, 4
        %v4495 = vrot.slane %v4118, 4
        %v4496 = vsel %vm1026, %v4494, %v4495
        %v4497 = vrot.slane %v4119, 4
        %v4498 = vrot.slane %v4120, 4
        %v4499 = vsel %vm1026, %v4497, %v4498
        %v4500 = vrot.slane %v4121, 4
        %v4501 = vrot.slane %v4122, 4
        %v4502 = vsel %vm1026, %v4500, %v4501
        %v4503 = vrot.slane %v4123, 4
        %v4504 = vrot.slane %v4124, 4
        %v4505 = vsel %vm1026, %v4503, %v4504
        %v4506 = vrot.slane %v4125, 4
        %v4507 = vrot.slane %v4126, 4
        %v4508 = vsel %vm1026, %v4506, %v4507
        %v4509 = vrot.slane %v4127, 4
        %v4510 = vrot.slane %v4128, 4
        %v4511 = vsel %vm1026, %v4509, %v4510
        %v4512 = vrot.slane %v4129, 4
        %v4513 = vrot.slane %v4130, 4
        %v4514 = vsel %vm1026, %v4512, %v4513
        %4531 = vst.msk [vmem:[#allocation3 + $0x8] sm:$0xff] %vm977, %v4469
        %4532 = vst.msk [vmem:[#allocation3 + $0x50] sm:$0xff] %vm977, %v4472
        %4533 = vst.msk [vmem:[#allocation3 + $0x98] sm:$0xff] %vm977, %v4475
        %4534 = vst.msk [vmem:[#allocation3 + $0xe0] sm:$0xff] %vm977, %v4478
        %4535 = vst.msk [vmem:[#allocation3 + $0x128] sm:$0xff] %vm977, %v4481
        %4536 = vst.msk [vmem:[#allocation3 + $0x170] sm:$0xff] %vm977, %v4484
        %4537 = vst.msk [vmem:[#allocation3 + $0x1b8] sm:$0xff] %vm977, %v4487
        %4538 = vst.msk [vmem:[#allocation3 + $0x200] sm:$0xff] %vm977, %v4490
        %4539 = vst.msk [vmem:[#allocation3 + $0x248] sm:$0xff] %vm977, %v4493
        %4540 = vst.msk [vmem:[#allocation3 + $0x290] sm:$0xff] %vm977, %v4496
        %4541 = vst.msk [vmem:[#allocation3 + $0x2d8] sm:$0xff] %vm977, %v4499
        %4542 = vst.msk [vmem:[#allocation3 + $0x320] sm:$0xff] %vm977, %v4502
        %4543 = vst.msk [vmem:[#allocation3 + $0x368] sm:$0xff] %vm977, %v4505
        %4544 = vst.msk [vmem:[#allocation3 + $0x3b0] sm:$0xff] %vm977, %v4508
        %4545 = vst.msk [vmem:[#allocation3 + $0x3f8] sm:$0xff] %vm977, %v4511
        %4546 = vst.msk [vmem:[#allocation3 + $0x440] sm:$0xff] %vm977, %v4514
        %v4547 = vrot.slane %v4132, 4
        %v4548 = vrot.slane %v4135, 5
        %v4549 = vor.u32 %v4547, %v4548
        %v4550 = vrot.slane %v4140, 4
        %v4551 = vrot.slane %v4143, 5
        %v4552 = vor.u32 %v4550, %v4551
        %v4553 = vsel %vm1107, %v4549, %v4552
        %v4554 = vrot.slane %v4149, 4
        %v4555 = vrot.slane %v4152, 5
        %v4556 = vor.u32 %v4554, %v4555
        %v4557 = vrot.slane %v4157, 4
        %v4558 = vrot.slane %v4160, 5
        %v4559 = vor.u32 %v4557, %v4558
        %v4560 = vsel %vm1107, %v4556, %v4559
        %v4561 = vrot.slane %v4166, 4
        %v4562 = vrot.slane %v4169, 5
        %v4563 = vor.u32 %v4561, %v4562
        %v4564 = vrot.slane %v4174, 4
        %v4565 = vrot.slane %v4177, 5
        %v4566 = vor.u32 %v4564, %v4565
        %v4567 = vsel %vm1107, %v4563, %v4566
        %v4568 = vrot.slane %v4183, 4
        %v4569 = vrot.slane %v4186, 5
        %v4570 = vor.u32 %v4568, %v4569
        %v4571 = vrot.slane %v4191, 4
        %v4572 = vrot.slane %v4194, 5
        %v4573 = vor.u32 %v4571, %v4572
        %v4574 = vsel %vm1107, %v4570, %v4573
        %v4575 = vrot.slane %v4200, 4
        %v4576 = vrot.slane %v4203, 5
        %v4577 = vor.u32 %v4575, %v4576
        %v4578 = vrot.slane %v4208, 4
        %v4579 = vrot.slane %v4211, 5
        %v4580 = vor.u32 %v4578, %v4579
        %v4581 = vsel %vm1107, %v4577, %v4580
        %v4582 = vrot.slane %v4217, 4
        %v4583 = vrot.slane %v4220, 5
        %v4584 = vor.u32 %v4582, %v4583
        %v4585 = vrot.slane %v4225, 4
        %v4586 = vrot.slane %v4228, 5
        %v4587 = vor.u32 %v4585, %v4586
        %v4588 = vsel %vm1107, %v4584, %v4587
        %v4589 = vrot.slane %v4234, 4
        %v4590 = vrot.slane %v4237, 5
        %v4591 = vor.u32 %v4589, %v4590
        %v4592 = vrot.slane %v4242, 4
        %v4593 = vrot.slane %v4245, 5
        %v4594 = vor.u32 %v4592, %v4593
        %v4595 = vsel %vm1107, %v4591, %v4594
        %v4596 = vrot.slane %v4251, 4
        %v4597 = vrot.slane %v4254, 5
        %v4598 = vor.u32 %v4596, %v4597
        %v4599 = vrot.slane %v4259, 4
        %v4600 = vrot.slane %v4262, 5
        %v4601 = vor.u32 %v4599, %v4600
        %v4602 = vsel %vm1107, %v4598, %v4601
        %v4603 = vrot.slane %v4268, 4
        %v4604 = vrot.slane %v4271, 5
        %v4605 = vor.u32 %v4603, %v4604
        %v4606 = vrot.slane %v4276, 4
        %v4607 = vrot.slane %v4279, 5
        %v4608 = vor.u32 %v4606, %v4607
        %v4609 = vsel %vm1107, %v4605, %v4608
        %v4610 = vrot.slane %v4285, 4
        %v4611 = vrot.slane %v4288, 5
        %v4612 = vor.u32 %v4610, %v4611
        %v4613 = vrot.slane %v4293, 4
        %v4614 = vrot.slane %v4296, 5
        %v4615 = vor.u32 %v4613, %v4614
        %v4616 = vsel %vm1107, %v4612, %v4615
        %v4617 = vrot.slane %v4302, 4
        %v4618 = vrot.slane %v4305, 5
        %v4619 = vor.u32 %v4617, %v4618
        %v4620 = vrot.slane %v4310, 4
        %v4621 = vrot.slane %v4313, 5
        %v4622 = vor.u32 %v4620, %v4621
        %v4623 = vsel %vm1107, %v4619, %v4622
        %v4624 = vrot.slane %v4319, 4
        %v4625 = vrot.slane %v4322, 5
        %v4626 = vor.u32 %v4624, %v4625
        %v4627 = vrot.slane %v4327, 4
        %v4628 = vrot.slane %v4330, 5
        %v4629 = vor.u32 %v4627, %v4628
        %v4630 = vsel %vm1107, %v4626, %v4629
        %v4631 = vrot.slane %v4336, 4
        %v4632 = vrot.slane %v4339, 5
        %v4633 = vor.u32 %v4631, %v4632
        %v4634 = vrot.slane %v4344, 4
        %v4635 = vrot.slane %v4347, 5
        %v4636 = vor.u32 %v4634, %v4635
        %v4637 = vsel %vm1107, %v4633, %v4636
        %v4638 = vrot.slane %v4353, 4
        %v4639 = vrot.slane %v4356, 5
        %v4640 = vor.u32 %v4638, %v4639
        %v4641 = vrot.slane %v4361, 4
        %v4642 = vrot.slane %v4364, 5
        %v4643 = vor.u32 %v4641, %v4642
        %v4644 = vsel %vm1107, %v4640, %v4643
        %v4645 = vrot.slane %v4370, 4
        %v4646 = vrot.slane %v4373, 5
        %v4647 = vor.u32 %v4645, %v4646
        %v4648 = vrot.slane %v4378, 4
        %v4649 = vrot.slane %v4381, 5
        %v4650 = vor.u32 %v4648, %v4649
        %v4651 = vsel %vm1107, %v4647, %v4650
        %v4652 = vrot.slane %v4387, 4
        %v4653 = vrot.slane %v4390, 5
        %v4654 = vor.u32 %v4652, %v4653
        %v4655 = vrot.slane %v4395, 4
        %v4656 = vrot.slane %v4398, 5
        %v4657 = vor.u32 %v4655, %v4656
        %v4658 = vsel %vm1107, %v4654, %v4657
        %4675 = vst.msk [vmem:[#allocation3 + $0x10] sm:$0xff] %vm977, %v4553
        %4676 = vst.msk [vmem:[#allocation3 + $0x58] sm:$0xff] %vm977, %v4560
        %4677 = vst.msk [vmem:[#allocation3 + $0xa0] sm:$0xff] %vm977, %v4567
        %4678 = vst.msk [vmem:[#allocation3 + $0xe8] sm:$0xff] %vm977, %v4574
        %4679 = vst.msk [vmem:[#allocation3 + $0x130] sm:$0xff] %vm977, %v4581
        %4680 = vst.msk [vmem:[#allocation3 + $0x178] sm:$0xff] %vm977, %v4588
        %4681 = vst.msk [vmem:[#allocation3 + $0x1c0] sm:$0xff] %vm977, %v4595
        %4682 = vst.msk [vmem:[#allocation3 + $0x208] sm:$0xff] %vm977, %v4602
        %4683 = vst.msk [vmem:[#allocation3 + $0x250] sm:$0xff] %vm977, %v4609
        %4684 = vst.msk [vmem:[#allocation3 + $0x298] sm:$0xff] %vm977, %v4616
        %4685 = vst.msk [vmem:[#allocation3 + $0x2e0] sm:$0xff] %vm977, %v4623
        %4686 = vst.msk [vmem:[#allocation3 + $0x328] sm:$0xff] %vm977, %v4630
        %4687 = vst.msk [vmem:[#allocation3 + $0x370] sm:$0xff] %vm977, %v4637
        %4688 = vst.msk [vmem:[#allocation3 + $0x3b8] sm:$0xff] %vm977, %v4644
        %4689 = vst.msk [vmem:[#allocation3 + $0x400] sm:$0xff] %vm977, %v4651
        %4690 = vst.msk [vmem:[#allocation3 + $0x448] sm:$0xff] %vm977, %v4658
        %v4691 = vld [vmem:[%s621] sm:$0xf8]
        %v4692 = vld [vmem:[%s621 + $0x8] sm:$0x1f]
        %v4693 = vld [vmem:[%s621 + $0x10] sm:$0xf8]
        %v4694 = vld [vmem:[%s621 + $0x18] sm:$0x1f]
        %v4695 = vld [vmem:[%s621 + $0x20] sm:$0xf8]
        %v4696 = vld [vmem:[%s621 + $0x28] sm:$0x1f]
        %v4697 = vld [vmem:[%s621 + $0x30] sm:$0xf8]
        %v4698 = vld [vmem:[%s621 + $0x38] sm:$0x1f]
        %v4699 = vld [vmem:[%s621 + $0x40] sm:$0xf8]
        %v4700 = vld [vmem:[%s621 + $0x48] sm:$0x1f]
        %v4701 = vld [vmem:[%s621 + $0x50] sm:$0xf8]
        %v4702 = vld [vmem:[%s621 + $0x58] sm:$0x1f]
        %v4703 = vld [vmem:[%s621 + $0x60] sm:$0xf8]
        %v4704 = vld [vmem:[%s621 + $0x68] sm:$0x1f]
        %v4705 = vld [vmem:[%s621 + $0x70] sm:$0xf8]
        %v4706 = vld [vmem:[%s621 + $0x78] sm:$0x1f]
        %v4707 = vld [vmem:[%s621 + $0x80] sm:$0xf8]
        %v4708 = vld [vmem:[%s621 + $0x88] sm:$0x1f]
        %v4709 = vld [vmem:[%s621 + $0x90] sm:$0xf8]
        %v4710 = vld [vmem:[%s621 + $0x98] sm:$0x1f]
        %v4711 = vld [vmem:[%s621 + $0xa0] sm:$0xf8]
        %v4712 = vld [vmem:[%s621 + $0xa8] sm:$0x1f]
        %v4713 = vld [vmem:[%s621 + $0xb0] sm:$0xf8]
        %v4714 = vld [vmem:[%s621 + $0xb8] sm:$0x1f]
        %v4715 = vld [vmem:[%s621 + $0xc0] sm:$0xf8]
        %v4716 = vld [vmem:[%s621 + $0xc8] sm:$0x1f]
        %v4717 = vld [vmem:[%s621 + $0xd0] sm:$0xf8]
        %v4718 = vld [vmem:[%s621 + $0xd8] sm:$0x1f]
        %v4719 = vld [vmem:[%s621 + $0xe0] sm:$0xf8]
        %v4720 = vld [vmem:[%s621 + $0xe8] sm:$0x1f]
        %v4721 = vld [vmem:[%s621 + $0xf0] sm:$0xf8]
        %v4722 = vld [vmem:[%s621 + $0xf8] sm:$0x1f]
        %v4724 = vshrl.u32 %v4691, 16
        %v4726 = vrot.slane %v4724, 3
        %v4727 = vshll.u32 %v4691, 16
        %v4729 = vrot.slane %v4727, 4
        %v4730 = vor.u32 %v4726, %v4729
        %v4732 = vshrl.u32 %v4692, 16
        %v4734 = vrot.slane %v4732, 3
        %v4735 = vshll.u32 %v4692, 16
        %v4737 = vrot.slane %v4735, 4
        %v4738 = vor.u32 %v4734, %v4737
        %v4739 = vsel %vm688, %v4730, %v4738
        %v4741 = vshrl.u32 %v4693, 16
        %v4743 = vrot.slane %v4741, 3
        %v4744 = vshll.u32 %v4693, 16
        %v4746 = vrot.slane %v4744, 4
        %v4747 = vor.u32 %v4743, %v4746
        %v4749 = vshrl.u32 %v4694, 16
        %v4751 = vrot.slane %v4749, 3
        %v4752 = vshll.u32 %v4694, 16
        %v4754 = vrot.slane %v4752, 4
        %v4755 = vor.u32 %v4751, %v4754
        %v4756 = vsel %vm688, %v4747, %v4755
        %v4758 = vshrl.u32 %v4695, 16
        %v4760 = vrot.slane %v4758, 3
        %v4761 = vshll.u32 %v4695, 16
        %v4763 = vrot.slane %v4761, 4
        %v4764 = vor.u32 %v4760, %v4763
        %v4766 = vshrl.u32 %v4696, 16
        %v4768 = vrot.slane %v4766, 3
        %v4769 = vshll.u32 %v4696, 16
        %v4771 = vrot.slane %v4769, 4
        %v4772 = vor.u32 %v4768, %v4771
        %v4773 = vsel %vm688, %v4764, %v4772
        %v4775 = vshrl.u32 %v4697, 16
        %v4777 = vrot.slane %v4775, 3
        %v4778 = vshll.u32 %v4697, 16
        %v4780 = vrot.slane %v4778, 4
        %v4781 = vor.u32 %v4777, %v4780
        %v4783 = vshrl.u32 %v4698, 16
        %v4785 = vrot.slane %v4783, 3
        %v4786 = vshll.u32 %v4698, 16
        %v4788 = vrot.slane %v4786, 4
        %v4789 = vor.u32 %v4785, %v4788
        %v4790 = vsel %vm688, %v4781, %v4789
        %v4792 = vshrl.u32 %v4699, 16
        %v4794 = vrot.slane %v4792, 3
        %v4795 = vshll.u32 %v4699, 16
        %v4797 = vrot.slane %v4795, 4
        %v4798 = vor.u32 %v4794, %v4797
        %v4800 = vshrl.u32 %v4700, 16
        %v4802 = vrot.slane %v4800, 3
        %v4803 = vshll.u32 %v4700, 16
        %v4805 = vrot.slane %v4803, 4
        %v4806 = vor.u32 %v4802, %v4805
        %v4807 = vsel %vm688, %v4798, %v4806
        %v4809 = vshrl.u32 %v4701, 16
        %v4811 = vrot.slane %v4809, 3
        %v4812 = vshll.u32 %v4701, 16
        %v4814 = vrot.slane %v4812, 4
        %v4815 = vor.u32 %v4811, %v4814
        %v4817 = vshrl.u32 %v4702, 16
        %v4819 = vrot.slane %v4817, 3
        %v4820 = vshll.u32 %v4702, 16
        %v4822 = vrot.slane %v4820, 4
        %v4823 = vor.u32 %v4819, %v4822
        %v4824 = vsel %vm688, %v4815, %v4823
        %v4826 = vshrl.u32 %v4703, 16
        %v4828 = vrot.slane %v4826, 3
        %v4829 = vshll.u32 %v4703, 16
        %v4831 = vrot.slane %v4829, 4
        %v4832 = vor.u32 %v4828, %v4831
        %v4834 = vshrl.u32 %v4704, 16
        %v4836 = vrot.slane %v4834, 3
        %v4837 = vshll.u32 %v4704, 16
        %v4839 = vrot.slane %v4837, 4
        %v4840 = vor.u32 %v4836, %v4839
        %v4841 = vsel %vm688, %v4832, %v4840
        %v4843 = vshrl.u32 %v4705, 16
        %v4845 = vrot.slane %v4843, 3
        %v4846 = vshll.u32 %v4705, 16
        %v4848 = vrot.slane %v4846, 4
        %v4849 = vor.u32 %v4845, %v4848
        %v4851 = vshrl.u32 %v4706, 16
        %v4853 = vrot.slane %v4851, 3
        %v4854 = vshll.u32 %v4706, 16
        %v4856 = vrot.slane %v4854, 4
        %v4857 = vor.u32 %v4853, %v4856
        %v4858 = vsel %vm688, %v4849, %v4857
        %v4860 = vshrl.u32 %v4707, 16
        %v4862 = vrot.slane %v4860, 3
        %v4863 = vshll.u32 %v4707, 16
        %v4865 = vrot.slane %v4863, 4
        %v4866 = vor.u32 %v4862, %v4865
        %v4868 = vshrl.u32 %v4708, 16
        %v4870 = vrot.slane %v4868, 3
        %v4871 = vshll.u32 %v4708, 16
        %v4873 = vrot.slane %v4871, 4
        %v4874 = vor.u32 %v4870, %v4873
        %v4875 = vsel %vm688, %v4866, %v4874
        %v4877 = vshrl.u32 %v4709, 16
        %v4879 = vrot.slane %v4877, 3
        %v4880 = vshll.u32 %v4709, 16
        %v4882 = vrot.slane %v4880, 4
        %v4883 = vor.u32 %v4879, %v4882
        %v4885 = vshrl.u32 %v4710, 16
        %v4887 = vrot.slane %v4885, 3
        %v4888 = vshll.u32 %v4710, 16
        %v4890 = vrot.slane %v4888, 4
        %v4891 = vor.u32 %v4887, %v4890
        %v4892 = vsel %vm688, %v4883, %v4891
        %v4894 = vshrl.u32 %v4711, 16
        %v4896 = vrot.slane %v4894, 3
        %v4897 = vshll.u32 %v4711, 16
        %v4899 = vrot.slane %v4897, 4
        %v4900 = vor.u32 %v4896, %v4899
        %v4902 = vshrl.u32 %v4712, 16
        %v4904 = vrot.slane %v4902, 3
        %v4905 = vshll.u32 %v4712, 16
        %v4907 = vrot.slane %v4905, 4
        %v4908 = vor.u32 %v4904, %v4907
        %v4909 = vsel %vm688, %v4900, %v4908
        %v4911 = vshrl.u32 %v4713, 16
        %v4913 = vrot.slane %v4911, 3
        %v4914 = vshll.u32 %v4713, 16
        %v4916 = vrot.slane %v4914, 4
        %v4917 = vor.u32 %v4913, %v4916
        %v4919 = vshrl.u32 %v4714, 16
        %v4921 = vrot.slane %v4919, 3
        %v4922 = vshll.u32 %v4714, 16
        %v4924 = vrot.slane %v4922, 4
        %v4925 = vor.u32 %v4921, %v4924
        %v4926 = vsel %vm688, %v4917, %v4925
        %v4928 = vshrl.u32 %v4715, 16
        %v4930 = vrot.slane %v4928, 3
        %v4931 = vshll.u32 %v4715, 16
        %v4933 = vrot.slane %v4931, 4
        %v4934 = vor.u32 %v4930, %v4933
        %v4936 = vshrl.u32 %v4716, 16
        %v4938 = vrot.slane %v4936, 3
        %v4939 = vshll.u32 %v4716, 16
        %v4941 = vrot.slane %v4939, 4
        %v4942 = vor.u32 %v4938, %v4941
        %v4943 = vsel %vm688, %v4934, %v4942
        %v4945 = vshrl.u32 %v4717, 16
        %v4947 = vrot.slane %v4945, 3
        %v4948 = vshll.u32 %v4717, 16
        %v4950 = vrot.slane %v4948, 4
        %v4951 = vor.u32 %v4947, %v4950
        %v4953 = vshrl.u32 %v4718, 16
        %v4955 = vrot.slane %v4953, 3
        %v4956 = vshll.u32 %v4718, 16
        %v4958 = vrot.slane %v4956, 4
        %v4959 = vor.u32 %v4955, %v4958
        %v4960 = vsel %vm688, %v4951, %v4959
        %v4962 = vshrl.u32 %v4719, 16
        %v4964 = vrot.slane %v4962, 3
        %v4965 = vshll.u32 %v4719, 16
        %v4967 = vrot.slane %v4965, 4
        %v4968 = vor.u32 %v4964, %v4967
        %v4970 = vshrl.u32 %v4720, 16
        %v4972 = vrot.slane %v4970, 3
        %v4973 = vshll.u32 %v4720, 16
        %v4975 = vrot.slane %v4973, 4
        %v4976 = vor.u32 %v4972, %v4975
        %v4977 = vsel %vm688, %v4968, %v4976
        %v4979 = vshrl.u32 %v4721, 16
        %v4981 = vrot.slane %v4979, 3
        %v4982 = vshll.u32 %v4721, 16
        %v4984 = vrot.slane %v4982, 4
        %v4985 = vor.u32 %v4981, %v4984
        %v4987 = vshrl.u32 %v4722, 16
        %v4989 = vrot.slane %v4987, 3
        %v4990 = vshll.u32 %v4722, 16
        %v4992 = vrot.slane %v4990, 4
        %v4993 = vor.u32 %v4989, %v4992
        %v4994 = vsel %vm688, %v4985, %v4993
        %5011 = vst.msk [vmem:[#allocation3 + $0x18] sm:$0xff] %vm977, %v4739
        %5012 = vst.msk [vmem:[#allocation3 + $0x60] sm:$0xff] %vm977, %v4756
        %5013 = vst.msk [vmem:[#allocation3 + $0xa8] sm:$0xff] %vm977, %v4773
        %5014 = vst.msk [vmem:[#allocation3 + $0xf0] sm:$0xff] %vm977, %v4790
        %5015 = vst.msk [vmem:[#allocation3 + $0x138] sm:$0xff] %vm977, %v4807
        %5016 = vst.msk [vmem:[#allocation3 + $0x180] sm:$0xff] %vm977, %v4824
        %5017 = vst.msk [vmem:[#allocation3 + $0x1c8] sm:$0xff] %vm977, %v4841
        %5018 = vst.msk [vmem:[#allocation3 + $0x210] sm:$0xff] %vm977, %v4858
        %5019 = vst.msk [vmem:[#allocation3 + $0x258] sm:$0xff] %vm977, %v4875
        %5020 = vst.msk [vmem:[#allocation3 + $0x2a0] sm:$0xff] %vm977, %v4892
        %5021 = vst.msk [vmem:[#allocation3 + $0x2e8] sm:$0xff] %vm977, %v4909
        %5022 = vst.msk [vmem:[#allocation3 + $0x330] sm:$0xff] %vm977, %v4926
        %5023 = vst.msk [vmem:[#allocation3 + $0x378] sm:$0xff] %vm977, %v4943
        %5024 = vst.msk [vmem:[#allocation3 + $0x3c0] sm:$0xff] %vm977, %v4960
        %5025 = vst.msk [vmem:[#allocation3 + $0x408] sm:$0xff] %vm977, %v4977
        %5026 = vst.msk [vmem:[#allocation3 + $0x450] sm:$0xff] %vm977, %v4994
        %v5059 = vrot.slane %v4691, 4
        %v5060 = vrot.slane %v4692, 4
        %v5061 = vsel %vm1026, %v5059, %v5060
        %v5062 = vrot.slane %v4693, 4
        %v5063 = vrot.slane %v4694, 4
        %v5064 = vsel %vm1026, %v5062, %v5063
        %v5065 = vrot.slane %v4695, 4
        %v5066 = vrot.slane %v4696, 4
        %v5067 = vsel %vm1026, %v5065, %v5066
        %v5068 = vrot.slane %v4697, 4
        %v5069 = vrot.slane %v4698, 4
        %v5070 = vsel %vm1026, %v5068, %v5069
        %v5071 = vrot.slane %v4699, 4
        %v5072 = vrot.slane %v4700, 4
        %v5073 = vsel %vm1026, %v5071, %v5072
        %v5074 = vrot.slane %v4701, 4
        %v5075 = vrot.slane %v4702, 4
        %v5076 = vsel %vm1026, %v5074, %v5075
        %v5077 = vrot.slane %v4703, 4
        %v5078 = vrot.slane %v4704, 4
        %v5079 = vsel %vm1026, %v5077, %v5078
        %v5080 = vrot.slane %v4705, 4
        %v5081 = vrot.slane %v4706, 4
        %v5082 = vsel %vm1026, %v5080, %v5081
        %v5083 = vrot.slane %v4707, 4
        %v5084 = vrot.slane %v4708, 4
        %v5085 = vsel %vm1026, %v5083, %v5084
        %v5086 = vrot.slane %v4709, 4
        %v5087 = vrot.slane %v4710, 4
        %v5088 = vsel %vm1026, %v5086, %v5087
        %v5089 = vrot.slane %v4711, 4
        %v5090 = vrot.slane %v4712, 4
        %v5091 = vsel %vm1026, %v5089, %v5090
        %v5092 = vrot.slane %v4713, 4
        %v5093 = vrot.slane %v4714, 4
        %v5094 = vsel %vm1026, %v5092, %v5093
        %v5095 = vrot.slane %v4715, 4
        %v5096 = vrot.slane %v4716, 4
        %v5097 = vsel %vm1026, %v5095, %v5096
        %v5098 = vrot.slane %v4717, 4
        %v5099 = vrot.slane %v4718, 4
        %v5100 = vsel %vm1026, %v5098, %v5099
        %v5101 = vrot.slane %v4719, 4
        %v5102 = vrot.slane %v4720, 4
        %v5103 = vsel %vm1026, %v5101, %v5102
        %v5104 = vrot.slane %v4721, 4
        %v5105 = vrot.slane %v4722, 4
        %v5106 = vsel %vm1026, %v5104, %v5105
        %5123 = vst.msk [vmem:[#allocation3 + $0x20] sm:$0xff] %vm977, %v5061
        %5124 = vst.msk [vmem:[#allocation3 + $0x68] sm:$0xff] %vm977, %v5064
        %5125 = vst.msk [vmem:[#allocation3 + $0xb0] sm:$0xff] %vm977, %v5067
        %5126 = vst.msk [vmem:[#allocation3 + $0xf8] sm:$0xff] %vm977, %v5070
        %5127 = vst.msk [vmem:[#allocation3 + $0x140] sm:$0xff] %vm977, %v5073
        %5128 = vst.msk [vmem:[#allocation3 + $0x188] sm:$0xff] %vm977, %v5076
        %5129 = vst.msk [vmem:[#allocation3 + $0x1d0] sm:$0xff] %vm977, %v5079
        %5130 = vst.msk [vmem:[#allocation3 + $0x218] sm:$0xff] %vm977, %v5082
        %5131 = vst.msk [vmem:[#allocation3 + $0x260] sm:$0xff] %vm977, %v5085
        %5132 = vst.msk [vmem:[#allocation3 + $0x2a8] sm:$0xff] %vm977, %v5088
        %5133 = vst.msk [vmem:[#allocation3 + $0x2f0] sm:$0xff] %vm977, %v5091
        %5134 = vst.msk [vmem:[#allocation3 + $0x338] sm:$0xff] %vm977, %v5094
        %5135 = vst.msk [vmem:[#allocation3 + $0x380] sm:$0xff] %vm977, %v5097
        %5136 = vst.msk [vmem:[#allocation3 + $0x3c8] sm:$0xff] %vm977, %v5100
        %5137 = vst.msk [vmem:[#allocation3 + $0x410] sm:$0xff] %vm977, %v5103
        %5138 = vst.msk [vmem:[#allocation3 + $0x458] sm:$0xff] %vm977, %v5106
        %v5139 = vrot.slane %v4724, 4
        %v5140 = vrot.slane %v4727, 5
        %v5141 = vor.u32 %v5139, %v5140
        %v5142 = vrot.slane %v4732, 4
        %v5143 = vrot.slane %v4735, 5
        %v5144 = vor.u32 %v5142, %v5143
        %v5145 = vsel %vm1107, %v5141, %v5144
        %v5146 = vrot.slane %v4741, 4
        %v5147 = vrot.slane %v4744, 5
        %v5148 = vor.u32 %v5146, %v5147
        %v5149 = vrot.slane %v4749, 4
        %v5150 = vrot.slane %v4752, 5
        %v5151 = vor.u32 %v5149, %v5150
        %v5152 = vsel %vm1107, %v5148, %v5151
        %v5153 = vrot.slane %v4758, 4
        %v5154 = vrot.slane %v4761, 5
        %v5155 = vor.u32 %v5153, %v5154
        %v5156 = vrot.slane %v4766, 4
        %v5157 = vrot.slane %v4769, 5
        %v5158 = vor.u32 %v5156, %v5157
        %v5159 = vsel %vm1107, %v5155, %v5158
        %v5160 = vrot.slane %v4775, 4
        %v5161 = vrot.slane %v4778, 5
        %v5162 = vor.u32 %v5160, %v5161
        %v5163 = vrot.slane %v4783, 4
        %v5164 = vrot.slane %v4786, 5
        %v5165 = vor.u32 %v5163, %v5164
        %v5166 = vsel %vm1107, %v5162, %v5165
        %v5167 = vrot.slane %v4792, 4
        %v5168 = vrot.slane %v4795, 5
        %v5169 = vor.u32 %v5167, %v5168
        %v5170 = vrot.slane %v4800, 4
        %v5171 = vrot.slane %v4803, 5
        %v5172 = vor.u32 %v5170, %v5171
        %v5173 = vsel %vm1107, %v5169, %v5172
        %v5174 = vrot.slane %v4809, 4
        %v5175 = vrot.slane %v4812, 5
        %v5176 = vor.u32 %v5174, %v5175
        %v5177 = vrot.slane %v4817, 4
        %v5178 = vrot.slane %v4820, 5
        %v5179 = vor.u32 %v5177, %v5178
        %v5180 = vsel %vm1107, %v5176, %v5179
        %v5181 = vrot.slane %v4826, 4
        %v5182 = vrot.slane %v4829, 5
        %v5183 = vor.u32 %v5181, %v5182
        %v5184 = vrot.slane %v4834, 4
        %v5185 = vrot.slane %v4837, 5
        %v5186 = vor.u32 %v5184, %v5185
        %v5187 = vsel %vm1107, %v5183, %v5186
        %v5188 = vrot.slane %v4843, 4
        %v5189 = vrot.slane %v4846, 5
        %v5190 = vor.u32 %v5188, %v5189
        %v5191 = vrot.slane %v4851, 4
        %v5192 = vrot.slane %v4854, 5
        %v5193 = vor.u32 %v5191, %v5192
        %v5194 = vsel %vm1107, %v5190, %v5193
        %v5195 = vrot.slane %v4860, 4
        %v5196 = vrot.slane %v4863, 5
        %v5197 = vor.u32 %v5195, %v5196
        %v5198 = vrot.slane %v4868, 4
        %v5199 = vrot.slane %v4871, 5
        %v5200 = vor.u32 %v5198, %v5199
        %v5201 = vsel %vm1107, %v5197, %v5200
        %v5202 = vrot.slane %v4877, 4
        %v5203 = vrot.slane %v4880, 5
        %v5204 = vor.u32 %v5202, %v5203
        %v5205 = vrot.slane %v4885, 4
        %v5206 = vrot.slane %v4888, 5
        %v5207 = vor.u32 %v5205, %v5206
        %v5208 = vsel %vm1107, %v5204, %v5207
        %v5209 = vrot.slane %v4894, 4
        %v5210 = vrot.slane %v4897, 5
        %v5211 = vor.u32 %v5209, %v5210
        %v5212 = vrot.slane %v4902, 4
        %v5213 = vrot.slane %v4905, 5
        %v5214 = vor.u32 %v5212, %v5213
        %v5215 = vsel %vm1107, %v5211, %v5214
        %v5216 = vrot.slane %v4911, 4
        %v5217 = vrot.slane %v4914, 5
        %v5218 = vor.u32 %v5216, %v5217
        %v5219 = vrot.slane %v4919, 4
        %v5220 = vrot.slane %v4922, 5
        %v5221 = vor.u32 %v5219, %v5220
        %v5222 = vsel %vm1107, %v5218, %v5221
        %v5223 = vrot.slane %v4928, 4
        %v5224 = vrot.slane %v4931, 5
        %v5225 = vor.u32 %v5223, %v5224
        %v5226 = vrot.slane %v4936, 4
        %v5227 = vrot.slane %v4939, 5
        %v5228 = vor.u32 %v5226, %v5227
        %v5229 = vsel %vm1107, %v5225, %v5228
        %v5230 = vrot.slane %v4945, 4
        %v5231 = vrot.slane %v4948, 5
        %v5232 = vor.u32 %v5230, %v5231
        %v5233 = vrot.slane %v4953, 4
        %v5234 = vrot.slane %v4956, 5
        %v5235 = vor.u32 %v5233, %v5234
        %v5236 = vsel %vm1107, %v5232, %v5235
        %v5237 = vrot.slane %v4962, 4
        %v5238 = vrot.slane %v4965, 5
        %v5239 = vor.u32 %v5237, %v5238
        %v5240 = vrot.slane %v4970, 4
        %v5241 = vrot.slane %v4973, 5
        %v5242 = vor.u32 %v5240, %v5241
        %v5243 = vsel %vm1107, %v5239, %v5242
        %v5244 = vrot.slane %v4979, 4
        %v5245 = vrot.slane %v4982, 5
        %v5246 = vor.u32 %v5244, %v5245
        %v5247 = vrot.slane %v4987, 4
        %v5248 = vrot.slane %v4990, 5
        %v5249 = vor.u32 %v5247, %v5248
        %v5250 = vsel %vm1107, %v5246, %v5249
        %5267 = vst.msk [vmem:[#allocation3 + $0x28] sm:$0xff] %vm977, %v5145
        %5268 = vst.msk [vmem:[#allocation3 + $0x70] sm:$0xff] %vm977, %v5152
        %5269 = vst.msk [vmem:[#allocation3 + $0xb8] sm:$0xff] %vm977, %v5159
        %5270 = vst.msk [vmem:[#allocation3 + $0x100] sm:$0xff] %vm977, %v5166
        %5271 = vst.msk [vmem:[#allocation3 + $0x148] sm:$0xff] %vm977, %v5173
        %5272 = vst.msk [vmem:[#allocation3 + $0x190] sm:$0xff] %vm977, %v5180
        %5273 = vst.msk [vmem:[#allocation3 + $0x1d8] sm:$0xff] %vm977, %v5187
        %5274 = vst.msk [vmem:[#allocation3 + $0x220] sm:$0xff] %vm977, %v5194
        %5275 = vst.msk [vmem:[#allocation3 + $0x268] sm:$0xff] %vm977, %v5201
        %5276 = vst.msk [vmem:[#allocation3 + $0x2b0] sm:$0xff] %vm977, %v5208
        %5277 = vst.msk [vmem:[#allocation3 + $0x2f8] sm:$0xff] %vm977, %v5215
        %5278 = vst.msk [vmem:[#allocation3 + $0x340] sm:$0xff] %vm977, %v5222
        %5279 = vst.msk [vmem:[#allocation3 + $0x388] sm:$0xff] %vm977, %v5229
        %5280 = vst.msk [vmem:[#allocation3 + $0x3d0] sm:$0xff] %vm977, %v5236
        %5281 = vst.msk [vmem:[#allocation3 + $0x418] sm:$0xff] %vm977, %v5243
        %5282 = vst.msk [vmem:[#allocation3 + $0x460] sm:$0xff] %vm977, %v5250
        %v5283 = vld [vmem:[%s1844] sm:$0xf8]
        %v5284 = vld [vmem:[%s1844 + $0x8] sm:$0x1f]
        %v5285 = vld [vmem:[%s1844 + $0x10] sm:$0xf8]
        %v5286 = vld [vmem:[%s1844 + $0x18] sm:$0x1f]
        %v5287 = vld [vmem:[%s1844 + $0x20] sm:$0xf8]
        %v5288 = vld [vmem:[%s1844 + $0x28] sm:$0x1f]
        %v5289 = vld [vmem:[%s1844 + $0x30] sm:$0xf8]
        %v5290 = vld [vmem:[%s1844 + $0x38] sm:$0x1f]
        %v5291 = vld [vmem:[%s1844 + $0x40] sm:$0xf8]
        %v5292 = vld [vmem:[%s1844 + $0x48] sm:$0x1f]
        %v5293 = vld [vmem:[%s1844 + $0x50] sm:$0xf8]
        %v5294 = vld [vmem:[%s1844 + $0x58] sm:$0x1f]
        %v5295 = vld [vmem:[%s1844 + $0x60] sm:$0xf8]
        %v5296 = vld [vmem:[%s1844 + $0x68] sm:$0x1f]
        %v5297 = vld [vmem:[%s1844 + $0x70] sm:$0xf8]
        %v5298 = vld [vmem:[%s1844 + $0x78] sm:$0x1f]
        %v5299 = vld [vmem:[%s1844 + $0x80] sm:$0xf8]
        %v5300 = vld [vmem:[%s1844 + $0x88] sm:$0x1f]
        %v5301 = vld [vmem:[%s1844 + $0x90] sm:$0xf8]
        %v5302 = vld [vmem:[%s1844 + $0x98] sm:$0x1f]
        %v5303 = vld [vmem:[%s1844 + $0xa0] sm:$0xf8]
        %v5304 = vld [vmem:[%s1844 + $0xa8] sm:$0x1f]
        %v5305 = vld [vmem:[%s1844 + $0xb0] sm:$0xf8]
        %v5306 = vld [vmem:[%s1844 + $0xb8] sm:$0x1f]
        %v5307 = vld [vmem:[%s1844 + $0xc0] sm:$0xf8]
        %v5308 = vld [vmem:[%s1844 + $0xc8] sm:$0x1f]
        %v5309 = vld [vmem:[%s1844 + $0xd0] sm:$0xf8]
        %v5310 = vld [vmem:[%s1844 + $0xd8] sm:$0x1f]
        %v5311 = vld [vmem:[%s1844 + $0xe0] sm:$0xf8]
        %v5312 = vld [vmem:[%s1844 + $0xe8] sm:$0x1f]
        %v5313 = vld [vmem:[%s1844 + $0xf0] sm:$0xf8]
        %v5314 = vld [vmem:[%s1844 + $0xf8] sm:$0x1f]
        %v5316 = vshrl.u32 %v5283, 16
        %v5318 = vrot.slane %v5316, 3
        %v5319 = vshll.u32 %v5283, 16
        %v5321 = vrot.slane %v5319, 4
        %v5322 = vor.u32 %v5318, %v5321
        %v5324 = vshrl.u32 %v5284, 16
        %v5326 = vrot.slane %v5324, 3
        %v5327 = vshll.u32 %v5284, 16
        %v5329 = vrot.slane %v5327, 4
        %v5330 = vor.u32 %v5326, %v5329
        %v5331 = vsel %vm688, %v5322, %v5330
        %v5333 = vshrl.u32 %v5285, 16
        %v5335 = vrot.slane %v5333, 3
        %v5336 = vshll.u32 %v5285, 16
        %v5338 = vrot.slane %v5336, 4
        %v5339 = vor.u32 %v5335, %v5338
        %v5341 = vshrl.u32 %v5286, 16
        %v5343 = vrot.slane %v5341, 3
        %v5344 = vshll.u32 %v5286, 16
        %v5346 = vrot.slane %v5344, 4
        %v5347 = vor.u32 %v5343, %v5346
        %v5348 = vsel %vm688, %v5339, %v5347
        %v5350 = vshrl.u32 %v5287, 16
        %v5352 = vrot.slane %v5350, 3
        %v5353 = vshll.u32 %v5287, 16
        %v5355 = vrot.slane %v5353, 4
        %v5356 = vor.u32 %v5352, %v5355
        %v5358 = vshrl.u32 %v5288, 16
        %v5360 = vrot.slane %v5358, 3
        %v5361 = vshll.u32 %v5288, 16
        %v5363 = vrot.slane %v5361, 4
        %v5364 = vor.u32 %v5360, %v5363
        %v5365 = vsel %vm688, %v5356, %v5364
        %v5367 = vshrl.u32 %v5289, 16
        %v5369 = vrot.slane %v5367, 3
        %v5370 = vshll.u32 %v5289, 16
        %v5372 = vrot.slane %v5370, 4
        %v5373 = vor.u32 %v5369, %v5372
        %v5375 = vshrl.u32 %v5290, 16
        %v5377 = vrot.slane %v5375, 3
        %v5378 = vshll.u32 %v5290, 16
        %v5380 = vrot.slane %v5378, 4
        %v5381 = vor.u32 %v5377, %v5380
        %v5382 = vsel %vm688, %v5373, %v5381
        %v5384 = vshrl.u32 %v5291, 16
        %v5386 = vrot.slane %v5384, 3
        %v5387 = vshll.u32 %v5291, 16
        %v5389 = vrot.slane %v5387, 4
        %v5390 = vor.u32 %v5386, %v5389
        %v5392 = vshrl.u32 %v5292, 16
        %v5394 = vrot.slane %v5392, 3
        %v5395 = vshll.u32 %v5292, 16
        %v5397 = vrot.slane %v5395, 4
        %v5398 = vor.u32 %v5394, %v5397
        %v5399 = vsel %vm688, %v5390, %v5398
        %v5401 = vshrl.u32 %v5293, 16
        %v5403 = vrot.slane %v5401, 3
        %v5404 = vshll.u32 %v5293, 16
        %v5406 = vrot.slane %v5404, 4
        %v5407 = vor.u32 %v5403, %v5406
        %v5409 = vshrl.u32 %v5294, 16
        %v5411 = vrot.slane %v5409, 3
        %v5412 = vshll.u32 %v5294, 16
        %v5414 = vrot.slane %v5412, 4
        %v5415 = vor.u32 %v5411, %v5414
        %v5416 = vsel %vm688, %v5407, %v5415
        %v5418 = vshrl.u32 %v5295, 16
        %v5420 = vrot.slane %v5418, 3
        %v5421 = vshll.u32 %v5295, 16
        %v5423 = vrot.slane %v5421, 4
        %v5424 = vor.u32 %v5420, %v5423
        %v5426 = vshrl.u32 %v5296, 16
        %v5428 = vrot.slane %v5426, 3
        %v5429 = vshll.u32 %v5296, 16
        %v5431 = vrot.slane %v5429, 4
        %v5432 = vor.u32 %v5428, %v5431
        %v5433 = vsel %vm688, %v5424, %v5432
        %v5435 = vshrl.u32 %v5297, 16
        %v5437 = vrot.slane %v5435, 3
        %v5438 = vshll.u32 %v5297, 16
        %v5440 = vrot.slane %v5438, 4
        %v5441 = vor.u32 %v5437, %v5440
        %v5443 = vshrl.u32 %v5298, 16
        %v5445 = vrot.slane %v5443, 3
        %v5446 = vshll.u32 %v5298, 16
        %v5448 = vrot.slane %v5446, 4
        %v5449 = vor.u32 %v5445, %v5448
        %v5450 = vsel %vm688, %v5441, %v5449
        %v5452 = vshrl.u32 %v5299, 16
        %v5454 = vrot.slane %v5452, 3
        %v5455 = vshll.u32 %v5299, 16
        %v5457 = vrot.slane %v5455, 4
        %v5458 = vor.u32 %v5454, %v5457
        %v5460 = vshrl.u32 %v5300, 16
        %v5462 = vrot.slane %v5460, 3
        %v5463 = vshll.u32 %v5300, 16
        %v5465 = vrot.slane %v5463, 4
        %v5466 = vor.u32 %v5462, %v5465
        %v5467 = vsel %vm688, %v5458, %v5466
        %v5469 = vshrl.u32 %v5301, 16
        %v5471 = vrot.slane %v5469, 3
        %v5472 = vshll.u32 %v5301, 16
        %v5474 = vrot.slane %v5472, 4
        %v5475 = vor.u32 %v5471, %v5474
        %v5477 = vshrl.u32 %v5302, 16
        %v5479 = vrot.slane %v5477, 3
        %v5480 = vshll.u32 %v5302, 16
        %v5482 = vrot.slane %v5480, 4
        %v5483 = vor.u32 %v5479, %v5482
        %v5484 = vsel %vm688, %v5475, %v5483
        %v5486 = vshrl.u32 %v5303, 16
        %v5488 = vrot.slane %v5486, 3
        %v5489 = vshll.u32 %v5303, 16
        %v5491 = vrot.slane %v5489, 4
        %v5492 = vor.u32 %v5488, %v5491
        %v5494 = vshrl.u32 %v5304, 16
        %v5496 = vrot.slane %v5494, 3
        %v5497 = vshll.u32 %v5304, 16
        %v5499 = vrot.slane %v5497, 4
        %v5500 = vor.u32 %v5496, %v5499
        %v5501 = vsel %vm688, %v5492, %v5500
        %v5503 = vshrl.u32 %v5305, 16
        %v5505 = vrot.slane %v5503, 3
        %v5506 = vshll.u32 %v5305, 16
        %v5508 = vrot.slane %v5506, 4
        %v5509 = vor.u32 %v5505, %v5508
        %v5511 = vshrl.u32 %v5306, 16
        %v5513 = vrot.slane %v5511, 3
        %v5514 = vshll.u32 %v5306, 16
        %v5516 = vrot.slane %v5514, 4
        %v5517 = vor.u32 %v5513, %v5516
        %v5518 = vsel %vm688, %v5509, %v5517
        %v5520 = vshrl.u32 %v5307, 16
        %v5522 = vrot.slane %v5520, 3
        %v5523 = vshll.u32 %v5307, 16
        %v5525 = vrot.slane %v5523, 4
        %v5526 = vor.u32 %v5522, %v5525
        %v5528 = vshrl.u32 %v5308, 16
        %v5530 = vrot.slane %v5528, 3
        %v5531 = vshll.u32 %v5308, 16
        %v5533 = vrot.slane %v5531, 4
        %v5534 = vor.u32 %v5530, %v5533
        %v5535 = vsel %vm688, %v5526, %v5534
        %v5537 = vshrl.u32 %v5309, 16
        %v5539 = vrot.slane %v5537, 3
        %v5540 = vshll.u32 %v5309, 16
        %v5542 = vrot.slane %v5540, 4
        %v5543 = vor.u32 %v5539, %v5542
        %v5545 = vshrl.u32 %v5310, 16
        %v5547 = vrot.slane %v5545, 3
        %v5548 = vshll.u32 %v5310, 16
        %v5550 = vrot.slane %v5548, 4
        %v5551 = vor.u32 %v5547, %v5550
        %v5552 = vsel %vm688, %v5543, %v5551
        %v5554 = vshrl.u32 %v5311, 16
        %v5556 = vrot.slane %v5554, 3
        %v5557 = vshll.u32 %v5311, 16
        %v5559 = vrot.slane %v5557, 4
        %v5560 = vor.u32 %v5556, %v5559
        %v5562 = vshrl.u32 %v5312, 16
        %v5564 = vrot.slane %v5562, 3
        %v5565 = vshll.u32 %v5312, 16
        %v5567 = vrot.slane %v5565, 4
        %v5568 = vor.u32 %v5564, %v5567
        %v5569 = vsel %vm688, %v5560, %v5568
        %v5571 = vshrl.u32 %v5313, 16
        %v5573 = vrot.slane %v5571, 3
        %v5574 = vshll.u32 %v5313, 16
        %v5576 = vrot.slane %v5574, 4
        %v5577 = vor.u32 %v5573, %v5576
        %v5579 = vshrl.u32 %v5314, 16
        %v5581 = vrot.slane %v5579, 3
        %v5582 = vshll.u32 %v5314, 16
        %v5584 = vrot.slane %v5582, 4
        %v5585 = vor.u32 %v5581, %v5584
        %v5586 = vsel %vm688, %v5577, %v5585
        %5603 = vst.msk [vmem:[#allocation3 + $0x30] sm:$0xff] %vm977, %v5331
        %5604 = vst.msk [vmem:[#allocation3 + $0x78] sm:$0xff] %vm977, %v5348
        %5605 = vst.msk [vmem:[#allocation3 + $0xc0] sm:$0xff] %vm977, %v5365
        %5606 = vst.msk [vmem:[#allocation3 + $0x108] sm:$0xff] %vm977, %v5382
        %5607 = vst.msk [vmem:[#allocation3 + $0x150] sm:$0xff] %vm977, %v5399
        %5608 = vst.msk [vmem:[#allocation3 + $0x198] sm:$0xff] %vm977, %v5416
        %5609 = vst.msk [vmem:[#allocation3 + $0x1e0] sm:$0xff] %vm977, %v5433
        %5610 = vst.msk [vmem:[#allocation3 + $0x228] sm:$0xff] %vm977, %v5450
        %5611 = vst.msk [vmem:[#allocation3 + $0x270] sm:$0xff] %vm977, %v5467
        %5612 = vst.msk [vmem:[#allocation3 + $0x2b8] sm:$0xff] %vm977, %v5484
        %5613 = vst.msk [vmem:[#allocation3 + $0x300] sm:$0xff] %vm977, %v5501
        %5614 = vst.msk [vmem:[#allocation3 + $0x348] sm:$0xff] %vm977, %v5518
        %5615 = vst.msk [vmem:[#allocation3 + $0x390] sm:$0xff] %vm977, %v5535
        %5616 = vst.msk [vmem:[#allocation3 + $0x3d8] sm:$0xff] %vm977, %v5552
        %5617 = vst.msk [vmem:[#allocation3 + $0x420] sm:$0xff] %vm977, %v5569
        %5618 = vst.msk [vmem:[#allocation3 + $0x468] sm:$0xff] %vm977, %v5586
        %v5651 = vrot.slane %v5283, 4
        %v5652 = vrot.slane %v5284, 4
        %v5653 = vsel %vm1026, %v5651, %v5652
        %v5654 = vrot.slane %v5285, 4
        %v5655 = vrot.slane %v5286, 4
        %v5656 = vsel %vm1026, %v5654, %v5655
        %v5657 = vrot.slane %v5287, 4
        %v5658 = vrot.slane %v5288, 4
        %v5659 = vsel %vm1026, %v5657, %v5658
        %v5660 = vrot.slane %v5289, 4
        %v5661 = vrot.slane %v5290, 4
        %v5662 = vsel %vm1026, %v5660, %v5661
        %v5663 = vrot.slane %v5291, 4
        %v5664 = vrot.slane %v5292, 4
        %v5665 = vsel %vm1026, %v5663, %v5664
        %v5666 = vrot.slane %v5293, 4
        %v5667 = vrot.slane %v5294, 4
        %v5668 = vsel %vm1026, %v5666, %v5667
        %v5669 = vrot.slane %v5295, 4
        %v5670 = vrot.slane %v5296, 4
        %v5671 = vsel %vm1026, %v5669, %v5670
        %v5672 = vrot.slane %v5297, 4
        %v5673 = vrot.slane %v5298, 4
        %v5674 = vsel %vm1026, %v5672, %v5673
        %v5675 = vrot.slane %v5299, 4
        %v5676 = vrot.slane %v5300, 4
        %v5677 = vsel %vm1026, %v5675, %v5676
        %v5678 = vrot.slane %v5301, 4
        %v5679 = vrot.slane %v5302, 4
        %v5680 = vsel %vm1026, %v5678, %v5679
        %v5681 = vrot.slane %v5303, 4
        %v5682 = vrot.slane %v5304, 4
        %v5683 = vsel %vm1026, %v5681, %v5682
        %v5684 = vrot.slane %v5305, 4
        %v5685 = vrot.slane %v5306, 4
        %v5686 = vsel %vm1026, %v5684, %v5685
        %v5687 = vrot.slane %v5307, 4
        %v5688 = vrot.slane %v5308, 4
        %v5689 = vsel %vm1026, %v5687, %v5688
        %v5690 = vrot.slane %v5309, 4
        %v5691 = vrot.slane %v5310, 4
        %v5692 = vsel %vm1026, %v5690, %v5691
        %v5693 = vrot.slane %v5311, 4
        %v5694 = vrot.slane %v5312, 4
        %v5695 = vsel %vm1026, %v5693, %v5694
        %v5696 = vrot.slane %v5313, 4
        %v5697 = vrot.slane %v5314, 4
        %v5698 = vsel %vm1026, %v5696, %v5697
        %5715 = vst.msk [vmem:[#allocation3 + $0x38] sm:$0xff] %vm977, %v5653
        %5716 = vst.msk [vmem:[#allocation3 + $0x80] sm:$0xff] %vm977, %v5656
        %5717 = vst.msk [vmem:[#allocation3 + $0xc8] sm:$0xff] %vm977, %v5659
        %5718 = vst.msk [vmem:[#allocation3 + $0x110] sm:$0xff] %vm977, %v5662
        %5719 = vst.msk [vmem:[#allocation3 + $0x158] sm:$0xff] %vm977, %v5665
        %5720 = vst.msk [vmem:[#allocation3 + $0x1a0] sm:$0xff] %vm977, %v5668
        %5721 = vst.msk [vmem:[#allocation3 + $0x1e8] sm:$0xff] %vm977, %v5671
        %5722 = vst.msk [vmem:[#allocation3 + $0x230] sm:$0xff] %vm977, %v5674
        %5723 = vst.msk [vmem:[#allocation3 + $0x278] sm:$0xff] %vm977, %v5677
        %5724 = vst.msk [vmem:[#allocation3 + $0x2c0] sm:$0xff] %vm977, %v5680
        %5725 = vst.msk [vmem:[#allocation3 + $0x308] sm:$0xff] %vm977, %v5683
        %5726 = vst.msk [vmem:[#allocation3 + $0x350] sm:$0xff] %vm977, %v5686
        %5727 = vst.msk [vmem:[#allocation3 + $0x398] sm:$0xff] %vm977, %v5689
        %5728 = vst.msk [vmem:[#allocation3 + $0x3e0] sm:$0xff] %vm977, %v5692
        %5729 = vst.msk [vmem:[#allocation3 + $0x428] sm:$0xff] %vm977, %v5695
        %5730 = vst.msk [vmem:[#allocation3 + $0x470] sm:$0xff] %vm977, %v5698
        %v5731 = vrot.slane %v5316, 4
        %v5732 = vrot.slane %v5319, 5
        %v5733 = vor.u32 %v5731, %v5732
        %v5734 = vrot.slane %v5324, 4
        %v5735 = vrot.slane %v5327, 5
        %v5736 = vor.u32 %v5734, %v5735
        %v5737 = vsel %vm1107, %v5733, %v5736
        %v5738 = vrot.slane %v5333, 4
        %v5739 = vrot.slane %v5336, 5
        %v5740 = vor.u32 %v5738, %v5739
        %v5741 = vrot.slane %v5341, 4
        %v5742 = vrot.slane %v5344, 5
        %v5743 = vor.u32 %v5741, %v5742
        %v5744 = vsel %vm1107, %v5740, %v5743
        %v5745 = vrot.slane %v5350, 4
        %v5746 = vrot.slane %v5353, 5
        %v5747 = vor.u32 %v5745, %v5746
        %v5748 = vrot.slane %v5358, 4
        %v5749 = vrot.slane %v5361, 5
        %v5750 = vor.u32 %v5748, %v5749
        %v5751 = vsel %vm1107, %v5747, %v5750
        %v5752 = vrot.slane %v5367, 4
        %v5753 = vrot.slane %v5370, 5
        %v5754 = vor.u32 %v5752, %v5753
        %v5755 = vrot.slane %v5375, 4
        %v5756 = vrot.slane %v5378, 5
        %v5757 = vor.u32 %v5755, %v5756
        %v5758 = vsel %vm1107, %v5754, %v5757
        %v5759 = vrot.slane %v5384, 4
        %v5760 = vrot.slane %v5387, 5
        %v5761 = vor.u32 %v5759, %v5760
        %v5762 = vrot.slane %v5392, 4
        %v5763 = vrot.slane %v5395, 5
        %v5764 = vor.u32 %v5762, %v5763
        %v5765 = vsel %vm1107, %v5761, %v5764
        %v5766 = vrot.slane %v5401, 4
        %v5767 = vrot.slane %v5404, 5
        %v5768 = vor.u32 %v5766, %v5767
        %v5769 = vrot.slane %v5409, 4
        %v5770 = vrot.slane %v5412, 5
        %v5771 = vor.u32 %v5769, %v5770
        %v5772 = vsel %vm1107, %v5768, %v5771
        %v5773 = vrot.slane %v5418, 4
        %v5774 = vrot.slane %v5421, 5
        %v5775 = vor.u32 %v5773, %v5774
        %v5776 = vrot.slane %v5426, 4
        %v5777 = vrot.slane %v5429, 5
        %v5778 = vor.u32 %v5776, %v5777
        %v5779 = vsel %vm1107, %v5775, %v5778
        %v5780 = vrot.slane %v5435, 4
        %v5781 = vrot.slane %v5438, 5
        %v5782 = vor.u32 %v5780, %v5781
        %v5783 = vrot.slane %v5443, 4
        %v5784 = vrot.slane %v5446, 5
        %v5785 = vor.u32 %v5783, %v5784
        %v5786 = vsel %vm1107, %v5782, %v5785
        %v5787 = vrot.slane %v5452, 4
        %v5788 = vrot.slane %v5455, 5
        %v5789 = vor.u32 %v5787, %v5788
        %v5790 = vrot.slane %v5460, 4
        %v5791 = vrot.slane %v5463, 5
        %v5792 = vor.u32 %v5790, %v5791
        %v5793 = vsel %vm1107, %v5789, %v5792
        %v5794 = vrot.slane %v5469, 4
        %v5795 = vrot.slane %v5472, 5
        %v5796 = vor.u32 %v5794, %v5795
        %v5797 = vrot.slane %v5477, 4
        %v5798 = vrot.slane %v5480, 5
        %v5799 = vor.u32 %v5797, %v5798
        %v5800 = vsel %vm1107, %v5796, %v5799
        %v5801 = vrot.slane %v5486, 4
        %v5802 = vrot.slane %v5489, 5
        %v5803 = vor.u32 %v5801, %v5802
        %v5804 = vrot.slane %v5494, 4
        %v5805 = vrot.slane %v5497, 5
        %v5806 = vor.u32 %v5804, %v5805
        %v5807 = vsel %vm1107, %v5803, %v5806
        %v5808 = vrot.slane %v5503, 4
        %v5809 = vrot.slane %v5506, 5
        %v5810 = vor.u32 %v5808, %v5809
        %v5811 = vrot.slane %v5511, 4
        %v5812 = vrot.slane %v5514, 5
        %v5813 = vor.u32 %v5811, %v5812
        %v5814 = vsel %vm1107, %v5810, %v5813
        %v5815 = vrot.slane %v5520, 4
        %v5816 = vrot.slane %v5523, 5
        %v5817 = vor.u32 %v5815, %v5816
        %v5818 = vrot.slane %v5528, 4
        %v5819 = vrot.slane %v5531, 5
        %v5820 = vor.u32 %v5818, %v5819
        %v5821 = vsel %vm1107, %v5817, %v5820
        %v5822 = vrot.slane %v5537, 4
        %v5823 = vrot.slane %v5540, 5
        %v5824 = vor.u32 %v5822, %v5823
        %v5825 = vrot.slane %v5545, 4
        %v5826 = vrot.slane %v5548, 5
        %v5827 = vor.u32 %v5825, %v5826
        %v5828 = vsel %vm1107, %v5824, %v5827
        %v5829 = vrot.slane %v5554, 4
        %v5830 = vrot.slane %v5557, 5
        %v5831 = vor.u32 %v5829, %v5830
        %v5832 = vrot.slane %v5562, 4
        %v5833 = vrot.slane %v5565, 5
        %v5834 = vor.u32 %v5832, %v5833
        %v5835 = vsel %vm1107, %v5831, %v5834
        %v5836 = vrot.slane %v5571, 4
        %v5837 = vrot.slane %v5574, 5
        %v5838 = vor.u32 %v5836, %v5837
        %v5839 = vrot.slane %v5579, 4
        %v5840 = vrot.slane %v5582, 5
        %v5841 = vor.u32 %v5839, %v5840
        %v5842 = vsel %vm1107, %v5838, %v5841
        %5859 = vst.msk [vmem:[#allocation3 + $0x40] sm:$0xff] %vm977, %v5737
        %5860 = vst.msk [vmem:[#allocation3 + $0x88] sm:$0xff] %vm977, %v5744
        %5861 = vst.msk [vmem:[#allocation3 + $0xd0] sm:$0xff] %vm977, %v5751
        %5862 = vst.msk [vmem:[#allocation3 + $0x118] sm:$0xff] %vm977, %v5758
        %5863 = vst.msk [vmem:[#allocation3 + $0x160] sm:$0xff] %vm977, %v5765
        %5864 = vst.msk [vmem:[#allocation3 + $0x1a8] sm:$0xff] %vm977, %v5772
        %5865 = vst.msk [vmem:[#allocation3 + $0x1f0] sm:$0xff] %vm977, %v5779
        %5866 = vst.msk [vmem:[#allocation3 + $0x238] sm:$0xff] %vm977, %v5786
        %5867 = vst.msk [vmem:[#allocation3 + $0x280] sm:$0xff] %vm977, %v5793
        %5868 = vst.msk [vmem:[#allocation3 + $0x2c8] sm:$0xff] %vm977, %v5800
        %5869 = vst.msk [vmem:[#allocation3 + $0x310] sm:$0xff] %vm977, %v5807
        %5870 = vst.msk [vmem:[#allocation3 + $0x358] sm:$0xff] %vm977, %v5814
        %5871 = vst.msk [vmem:[#allocation3 + $0x3a0] sm:$0xff] %vm977, %v5821
        %5872 = vst.msk [vmem:[#allocation3 + $0x3e8] sm:$0xff] %vm977, %v5828
        %5873 = vst.msk [vmem:[#allocation3 + $0x430] sm:$0xff] %vm977, %v5835
        %5874 = vst.msk [vmem:[#allocation3 + $0x478] sm:$0xff] %vm977, %v5842
        %v5875 = vld [vmem:[#allocation3] sm:$0xff]
        %v5876 = vld [vmem:[#allocation3 + $0x8] sm:$0xff]
        %v5877 = vld [vmem:[#allocation3 + $0x10] sm:$0xff]
        %v5878 = vld [vmem:[#allocation3 + $0x18] sm:$0xff]
        %v5879 = vld [vmem:[#allocation3 + $0x20] sm:$0xff]
        %v5880 = vld [vmem:[#allocation3 + $0x28] sm:$0xff]
        %v5881 = vld [vmem:[#allocation3 + $0x30] sm:$0xff]
        %v5882 = vld [vmem:[#allocation3 + $0x38] sm:$0xff]
        %v5883 = vld [vmem:[#allocation3 + $0x40] sm:$0xff]
        %v5884 = vld [vmem:[#allocation3 + $0x48] sm:$0xff]
        %v5885 = vld [vmem:[#allocation3 + $0x50] sm:$0xff]
        %v5886 = vld [vmem:[#allocation3 + $0x58] sm:$0xff]
        %v5887 = vld [vmem:[#allocation3 + $0x60] sm:$0xff]
        %v5888 = vld [vmem:[#allocation3 + $0x68] sm:$0xff]
        %v5889 = vld [vmem:[#allocation3 + $0x70] sm:$0xff]
        %v5890 = vld [vmem:[#allocation3 + $0x78] sm:$0xff]
        %v5891 = vld [vmem:[#allocation3 + $0x80] sm:$0xff]
        %v5892 = vld [vmem:[#allocation3 + $0x88] sm:$0xff]
        %v5893 = vld [vmem:[#allocation3 + $0x90] sm:$0xff]
        %v5894 = vld [vmem:[#allocation3 + $0x98] sm:$0xff]
        %v5895 = vld [vmem:[#allocation3 + $0xa0] sm:$0xff]
        %v5896 = vld [vmem:[#allocation3 + $0xa8] sm:$0xff]
        %v5897 = vld [vmem:[#allocation3 + $0xb0] sm:$0xff]
        %v5898 = vld [vmem:[#allocation3 + $0xb8] sm:$0xff]
        %v5899 = vld [vmem:[#allocation3 + $0xc0] sm:$0xff]
        %v5900 = vld [vmem:[#allocation3 + $0xc8] sm:$0xff]
        %v5901 = vld [vmem:[#allocation3 + $0xd0] sm:$0xff]
        %v5902 = vld [vmem:[#allocation3 + $0xd8] sm:$0xff]
        %v5903 = vld [vmem:[#allocation3 + $0xe0] sm:$0xff]
        %v5904 = vld [vmem:[#allocation3 + $0xe8] sm:$0xff]
        %v5905 = vld [vmem:[#allocation3 + $0xf0] sm:$0xff]
        %v5906 = vld [vmem:[#allocation3 + $0xf8] sm:$0xff]
        %v5907 = vld [vmem:[#allocation3 + $0x100] sm:$0xff]
        %v5908 = vld [vmem:[#allocation3 + $0x108] sm:$0xff]
        %v5909 = vld [vmem:[#allocation3 + $0x110] sm:$0xff]
        %v5910 = vld [vmem:[#allocation3 + $0x118] sm:$0xff]
        %v5911 = vld [vmem:[#allocation3 + $0x120] sm:$0xff]
        %v5912 = vld [vmem:[#allocation3 + $0x128] sm:$0xff]
        %v5913 = vld [vmem:[#allocation3 + $0x130] sm:$0xff]
        %v5914 = vld [vmem:[#allocation3 + $0x138] sm:$0xff]
        %v5915 = vld [vmem:[#allocation3 + $0x140] sm:$0xff]
        %v5916 = vld [vmem:[#allocation3 + $0x148] sm:$0xff]
        %v5917 = vld [vmem:[#allocation3 + $0x150] sm:$0xff]
        %v5918 = vld [vmem:[#allocation3 + $0x158] sm:$0xff]
        %v5919 = vld [vmem:[#allocation3 + $0x160] sm:$0xff]
        %v5920 = vld [vmem:[#allocation3 + $0x168] sm:$0xff]
        %v5921 = vld [vmem:[#allocation3 + $0x170] sm:$0xff]
        %v5922 = vld [vmem:[#allocation3 + $0x178] sm:$0xff]
        %v5923 = vld [vmem:[#allocation3 + $0x180] sm:$0xff]
        %v5924 = vld [vmem:[#allocation3 + $0x188] sm:$0xff]
        %v5925 = vld [vmem:[#allocation3 + $0x190] sm:$0xff]
        %v5926 = vld [vmem:[#allocation3 + $0x198] sm:$0xff]
        %v5927 = vld [vmem:[#allocation3 + $0x1a0] sm:$0xff]
        %v5928 = vld [vmem:[#allocation3 + $0x1a8] sm:$0xff]
        %v5929 = vld [vmem:[#allocation3 + $0x1b0] sm:$0xff]
        %v5930 = vld [vmem:[#allocation3 + $0x1b8] sm:$0xff]
        %v5931 = vld [vmem:[#allocation3 + $0x1c0] sm:$0xff]
        %v5932 = vld [vmem:[#allocation3 + $0x1c8] sm:$0xff]
        %v5933 = vld [vmem:[#allocation3 + $0x1d0] sm:$0xff]
        %v5934 = vld [vmem:[#allocation3 + $0x1d8] sm:$0xff]
        %v5935 = vld [vmem:[#allocation3 + $0x1e0] sm:$0xff]
        %v5936 = vld [vmem:[#allocation3 + $0x1e8] sm:$0xff]
        %v5937 = vld [vmem:[#allocation3 + $0x1f0] sm:$0xff]
        %v5938 = vld [vmem:[#allocation3 + $0x1f8] sm:$0xff]
        %v5939 = vld [vmem:[#allocation3 + $0x200] sm:$0xff]
        %v5940 = vld [vmem:[#allocation3 + $0x208] sm:$0xff]
        %v5941 = vld [vmem:[#allocation3 + $0x210] sm:$0xff]
        %v5942 = vld [vmem:[#allocation3 + $0x218] sm:$0xff]
        %v5943 = vld [vmem:[#allocation3 + $0x220] sm:$0xff]
        %v5944 = vld [vmem:[#allocation3 + $0x228] sm:$0xff]
        %v5945 = vld [vmem:[#allocation3 + $0x230] sm:$0xff]
        %v5946 = vld [vmem:[#allocation3 + $0x238] sm:$0xff]
        %v5947 = vld [vmem:[#allocation3 + $0x240] sm:$0xff]
        %v5948 = vld [vmem:[#allocation3 + $0x248] sm:$0xff]
        %v5949 = vld [vmem:[#allocation3 + $0x250] sm:$0xff]
        %v5950 = vld [vmem:[#allocation3 + $0x258] sm:$0xff]
        %v5951 = vld [vmem:[#allocation3 + $0x260] sm:$0xff]
        %v5952 = vld [vmem:[#allocation3 + $0x268] sm:$0xff]
        %v5953 = vld [vmem:[#allocation3 + $0x270] sm:$0xff]
        %v5954 = vld [vmem:[#allocation3 + $0x278] sm:$0xff]
        %v5955 = vld [vmem:[#allocation3 + $0x280] sm:$0xff]
        %v5956 = vld [vmem:[#allocation3 + $0x288] sm:$0xff]
        %v5957 = vld [vmem:[#allocation3 + $0x290] sm:$0xff]
        %v5958 = vld [vmem:[#allocation3 + $0x298] sm:$0xff]
        %v5959 = vld [vmem:[#allocation3 + $0x2a0] sm:$0xff]
        %v5960 = vld [vmem:[#allocation3 + $0x2a8] sm:$0xff]
        %v5961 = vld [vmem:[#allocation3 + $0x2b0] sm:$0xff]
        %v5962 = vld [vmem:[#allocation3 + $0x2b8] sm:$0xff]
        %v5963 = vld [vmem:[#allocation3 + $0x2c0] sm:$0xff]
        %v5964 = vld [vmem:[#allocation3 + $0x2c8] sm:$0xff]
        %v5965 = vld [vmem:[#allocation3 + $0x2d0] sm:$0xff]
        %v5966 = vld [vmem:[#allocation3 + $0x2d8] sm:$0xff]
        %v5967 = vld [vmem:[#allocation3 + $0x2e0] sm:$0xff]
        %v5968 = vld [vmem:[#allocation3 + $0x2e8] sm:$0xff]
        %v5969 = vld [vmem:[#allocation3 + $0x2f0] sm:$0xff]
        %v5970 = vld [vmem:[#allocation3 + $0x2f8] sm:$0xff]
        %v5971 = vld [vmem:[#allocation3 + $0x300] sm:$0xff]
        %v5972 = vld [vmem:[#allocation3 + $0x308] sm:$0xff]
        %v5973 = vld [vmem:[#allocation3 + $0x310] sm:$0xff]
        %v5974 = vld [vmem:[#allocation3 + $0x318] sm:$0xff]
        %v5975 = vld [vmem:[#allocation3 + $0x320] sm:$0xff]
        %v5976 = vld [vmem:[#allocation3 + $0x328] sm:$0xff]
        %v5977 = vld [vmem:[#allocation3 + $0x330] sm:$0xff]
        %v5978 = vld [vmem:[#allocation3 + $0x338] sm:$0xff]
        %v5979 = vld [vmem:[#allocation3 + $0x340] sm:$0xff]
        %v5980 = vld [vmem:[#allocation3 + $0x348] sm:$0xff]
        %v5981 = vld [vmem:[#allocation3 + $0x350] sm:$0xff]
        %v5982 = vld [vmem:[#allocation3 + $0x358] sm:$0xff]
        %v5983 = vld [vmem:[#allocation3 + $0x360] sm:$0xff]
        %v5984 = vld [vmem:[#allocation3 + $0x368] sm:$0xff]
        %v5985 = vld [vmem:[#allocation3 + $0x370] sm:$0xff]
        %v5986 = vld [vmem:[#allocation3 + $0x378] sm:$0xff]
        %v5987 = vld [vmem:[#allocation3 + $0x380] sm:$0xff]
        %v5988 = vld [vmem:[#allocation3 + $0x388] sm:$0xff]
        %v5989 = vld [vmem:[#allocation3 + $0x390] sm:$0xff]
        %v5990 = vld [vmem:[#allocation3 + $0x398] sm:$0xff]
        %v5991 = vld [vmem:[#allocation3 + $0x3a0] sm:$0xff]
        %v5992 = vld [vmem:[#allocation3 + $0x3a8] sm:$0xff]
        %v5993 = vld [vmem:[#allocation3 + $0x3b0] sm:$0xff]
        %v5994 = vld [vmem:[#allocation3 + $0x3b8] sm:$0xff]
        %v5995 = vld [vmem:[#allocation3 + $0x3c0] sm:$0xff]
        %v5996 = vld [vmem:[#allocation3 + $0x3c8] sm:$0xff]
        %v5997 = vld [vmem:[#allocation3 + $0x3d0] sm:$0xff]
        %v5998 = vld [vmem:[#allocation3 + $0x3d8] sm:$0xff]
        %v5999 = vld [vmem:[#allocation3 + $0x3e0] sm:$0xff]
        %v6000 = vld [vmem:[#allocation3 + $0x3e8] sm:$0xff]
        %v6001 = vld [vmem:[#allocation3 + $0x3f0] sm:$0xff]
        %v6002 = vld [vmem:[#allocation3 + $0x3f8] sm:$0xff]
        %v6003 = vld [vmem:[#allocation3 + $0x400] sm:$0xff]
        %v6004 = vld [vmem:[#allocation3 + $0x408] sm:$0xff]
        %v6005 = vld [vmem:[#allocation3 + $0x410] sm:$0xff]
        %v6006 = vld [vmem:[#allocation3 + $0x418] sm:$0xff]
        %v6007 = vld [vmem:[#allocation3 + $0x420] sm:$0xff]
        %v6008 = vld [vmem:[#allocation3 + $0x428] sm:$0xff]
        %v6009 = vld [vmem:[#allocation3 + $0x430] sm:$0xff]
        %v6010 = vld [vmem:[#allocation3 + $0x438] sm:$0xff]
        %v6011 = vld [vmem:[#allocation3 + $0x440] sm:$0xff]
        %v6012 = vld [vmem:[#allocation3 + $0x448] sm:$0xff]
        %v6013 = vld [vmem:[#allocation3 + $0x450] sm:$0xff]
        %v6014 = vld [vmem:[#allocation3 + $0x458] sm:$0xff]
        %v6015 = vld [vmem:[#allocation3 + $0x460] sm:$0xff]
        %v6016 = vld [vmem:[#allocation3 + $0x468] sm:$0xff]
        %v6017 = vld [vmem:[#allocation3 + $0x470] sm:$0xff]
        %v6018 = vld [vmem:[#allocation3 + $0x478] sm:$0xff]
        %s6019 = scalar_lea.vmem [#allocation7], 576
        %v6020 = vld [vmem:[%s6019] sm:$0xf]
        %v6021 = vld [vmem:[%s6019 + $0x4] sm:$0xf]
        %v6022 = vld [vmem:[%s6019 + $0x8] sm:$0xf]
        %v6023 = vld [vmem:[%s6019 + $0xc] sm:$0xf]
        %v6024 = vld [vmem:[%s6019 + $0x10] sm:$0xf]
        %v6025 = vld [vmem:[%s6019 + $0x14] sm:$0xf]
        %v6026 = vld [vmem:[%s6019 + $0x18] sm:$0xf]
        %v6027 = vld [vmem:[%s6019 + $0x1c] sm:$0xf]
        %v6028 = vld [vmem:[%s6019 + $0x20] sm:$0xf]
        %v6029 = vld [vmem:[%s6019 + $0x24] sm:$0xf]
        %v6030 = vld [vmem:[%s6019 + $0x28] sm:$0xf]
        %v6031 = vld [vmem:[%s6019 + $0x2c] sm:$0xf]
        %v6032 = vld [vmem:[%s6019 + $0x30] sm:$0xf]
        %v6033 = vld [vmem:[%s6019 + $0x34] sm:$0xf]
        %v6034 = vld [vmem:[%s6019 + $0x38] sm:$0xf]
        %v6035 = vld [vmem:[%s6019 + $0x3c] sm:$0xf]
        %v6036 = vld [vmem:[%s6019 + $0x40] sm:$0xf]
        %v6037 = vld [vmem:[%s6019 + $0x44] sm:$0xf]
        %v6038 = vld [vmem:[%s6019 + $0x48] sm:$0xf]
        %v6039 = vld [vmem:[%s6019 + $0x4c] sm:$0xf]
        %v6040 = vld [vmem:[%s6019 + $0x50] sm:$0xf]
        %v6041 = vld [vmem:[%s6019 + $0x54] sm:$0xf]
        %v6042 = vld [vmem:[%s6019 + $0x58] sm:$0xf]
        %v6043 = vld [vmem:[%s6019 + $0x5c] sm:$0xf]
        %v6044 = vld [vmem:[%s6019 + $0x60] sm:$0xf]
        %v6045 = vld [vmem:[%s6019 + $0x64] sm:$0xf]
        %v6046 = vld [vmem:[%s6019 + $0x68] sm:$0xf]
        %v6047 = vld [vmem:[%s6019 + $0x6c] sm:$0xf]
        %v6048 = vld [vmem:[%s6019 + $0x70] sm:$0xf]
        %v6049 = vld [vmem:[%s6019 + $0x74] sm:$0xf]
        %v6050 = vld [vmem:[%s6019 + $0x78] sm:$0xf]
        %v6051 = vld [vmem:[%s6019 + $0x7c] sm:$0xf]
        %v6052 = vld [vmem:[%s6019 + $0x80] sm:$0xf]
        %v6053 = vld [vmem:[%s6019 + $0x84] sm:$0xf]
        %v6054 = vld [vmem:[%s6019 + $0x88] sm:$0xf]
        %v6055 = vld [vmem:[%s6019 + $0x8c] sm:$0xf]
        %v6056 = vld [vmem:[%s6019 + $0x90] sm:$0xf]
        %v6057 = vld [vmem:[%s6019 + $0x94] sm:$0xf]
        %v6058 = vld [vmem:[%s6019 + $0x98] sm:$0xf]
        %v6059 = vld [vmem:[%s6019 + $0x9c] sm:$0xf]
        %v6060 = vld [vmem:[%s6019 + $0xa0] sm:$0xf]
        %v6061 = vld [vmem:[%s6019 + $0xa4] sm:$0xf]
        %v6062 = vld [vmem:[%s6019 + $0xa8] sm:$0xf]
        %v6063 = vld [vmem:[%s6019 + $0xac] sm:$0xf]
        %v6064 = vld [vmem:[%s6019 + $0xb0] sm:$0xf]
        %v6065 = vld [vmem:[%s6019 + $0xb4] sm:$0xf]
        %v6066 = vld [vmem:[%s6019 + $0xb8] sm:$0xf]
        %v6067 = vld [vmem:[%s6019 + $0xbc] sm:$0xf]
        %v6068 = vld [vmem:[%s6019 + $0xc0] sm:$0xf]
        %v6069 = vld [vmem:[%s6019 + $0xc4] sm:$0xf]
        %v6070 = vld [vmem:[%s6019 + $0xc8] sm:$0xf]
        %v6071 = vld [vmem:[%s6019 + $0xcc] sm:$0xf]
        %v6072 = vld [vmem:[%s6019 + $0xd0] sm:$0xf]
        %v6073 = vld [vmem:[%s6019 + $0xd4] sm:$0xf]
        %v6074 = vld [vmem:[%s6019 + $0xd8] sm:$0xf]
        %v6075 = vld [vmem:[%s6019 + $0xdc] sm:$0xf]
        %v6076 = vld [vmem:[%s6019 + $0xe0] sm:$0xf]
        %v6077 = vld [vmem:[%s6019 + $0xe4] sm:$0xf]
        %v6078 = vld [vmem:[%s6019 + $0xe8] sm:$0xf]
        %v6079 = vld [vmem:[%s6019 + $0xec] sm:$0xf]
        %v6080 = vld [vmem:[%s6019 + $0xf0] sm:$0xf]
        %v6081 = vld [vmem:[%s6019 + $0xf4] sm:$0xf]
        %v6082 = vld [vmem:[%s6019 + $0xf8] sm:$0xf]
        %v6083 = vld [vmem:[%s6019 + $0xfc] sm:$0xf]
        %v6084 = vld [vmem:[%s6019 + $0x100] sm:$0xf]
        %v6085 = vld [vmem:[%s6019 + $0x104] sm:$0xf]
        %v6086 = vld [vmem:[%s6019 + $0x108] sm:$0xf]
        %v6087 = vld [vmem:[%s6019 + $0x10c] sm:$0xf]
        %v6088 = vld [vmem:[%s6019 + $0x110] sm:$0xf]
        %v6089 = vld [vmem:[%s6019 + $0x114] sm:$0xf]
        %v6090 = vld [vmem:[%s6019 + $0x118] sm:$0xf]
        %v6091 = vld [vmem:[%s6019 + $0x11c] sm:$0xf]
        %v6092 = vld [vmem:[%s6019 + $0x120] sm:$0xf]
        %v6093 = vld [vmem:[%s6019 + $0x124] sm:$0xf]
        %v6094 = vld [vmem:[%s6019 + $0x128] sm:$0xf]
        %v6095 = vld [vmem:[%s6019 + $0x12c] sm:$0xf]
        %v6096 = vld [vmem:[%s6019 + $0x130] sm:$0xf]
        %v6097 = vld [vmem:[%s6019 + $0x134] sm:$0xf]
        %v6098 = vld [vmem:[%s6019 + $0x138] sm:$0xf]
        %v6099 = vld [vmem:[%s6019 + $0x13c] sm:$0xf]
        %v6100 = vld [vmem:[%s6019 + $0x140] sm:$0xf]
        %v6101 = vld [vmem:[%s6019 + $0x144] sm:$0xf]
        %v6102 = vld [vmem:[%s6019 + $0x148] sm:$0xf]
        %v6103 = vld [vmem:[%s6019 + $0x14c] sm:$0xf]
        %v6104 = vld [vmem:[%s6019 + $0x150] sm:$0xf]
        %v6105 = vld [vmem:[%s6019 + $0x154] sm:$0xf]
        %v6106 = vld [vmem:[%s6019 + $0x158] sm:$0xf]
        %v6107 = vld [vmem:[%s6019 + $0x15c] sm:$0xf]
        %v6108 = vld [vmem:[%s6019 + $0x160] sm:$0xf]
        %v6109 = vld [vmem:[%s6019 + $0x164] sm:$0xf]
        %v6110 = vld [vmem:[%s6019 + $0x168] sm:$0xf]
        %v6111 = vld [vmem:[%s6019 + $0x16c] sm:$0xf]
        %v6112 = vld [vmem:[%s6019 + $0x170] sm:$0xf]
        %v6113 = vld [vmem:[%s6019 + $0x174] sm:$0xf]
        %v6114 = vld [vmem:[%s6019 + $0x178] sm:$0xf]
        %v6115 = vld [vmem:[%s6019 + $0x17c] sm:$0xf]
        %v6116 = vld [vmem:[%s6019 + $0x180] sm:$0xf]
        %v6117 = vld [vmem:[%s6019 + $0x184] sm:$0xf]
        %v6118 = vld [vmem:[%s6019 + $0x188] sm:$0xf]
        %v6119 = vld [vmem:[%s6019 + $0x18c] sm:$0xf]
        %v6120 = vld [vmem:[%s6019 + $0x190] sm:$0xf]
        %v6121 = vld [vmem:[%s6019 + $0x194] sm:$0xf]
        %v6122 = vld [vmem:[%s6019 + $0x198] sm:$0xf]
        %v6123 = vld [vmem:[%s6019 + $0x19c] sm:$0xf]
        %v6124 = vld [vmem:[%s6019 + $0x1a0] sm:$0xf]
        %v6125 = vld [vmem:[%s6019 + $0x1a4] sm:$0xf]
        %v6126 = vld [vmem:[%s6019 + $0x1a8] sm:$0xf]
        %v6127 = vld [vmem:[%s6019 + $0x1ac] sm:$0xf]
        %v6128 = vld [vmem:[%s6019 + $0x1b0] sm:$0xf]
        %v6129 = vld [vmem:[%s6019 + $0x1b4] sm:$0xf]
        %v6130 = vld [vmem:[%s6019 + $0x1b8] sm:$0xf]
        %v6131 = vld [vmem:[%s6019 + $0x1bc] sm:$0xf]
        %v6132 = vld [vmem:[%s6019 + $0x1c0] sm:$0xf]
        %v6133 = vld [vmem:[%s6019 + $0x1c4] sm:$0xf]
        %v6134 = vld [vmem:[%s6019 + $0x1c8] sm:$0xf]
        %v6135 = vld [vmem:[%s6019 + $0x1cc] sm:$0xf]
        %v6136 = vld [vmem:[%s6019 + $0x1d0] sm:$0xf]
        %v6137 = vld [vmem:[%s6019 + $0x1d4] sm:$0xf]
        %v6138 = vld [vmem:[%s6019 + $0x1d8] sm:$0xf]
        %v6139 = vld [vmem:[%s6019 + $0x1dc] sm:$0xf]
        %v6140 = vld [vmem:[%s6019 + $0x1e0] sm:$0xf]
        %v6141 = vld [vmem:[%s6019 + $0x1e4] sm:$0xf]
        %v6142 = vld [vmem:[%s6019 + $0x1e8] sm:$0xf]
        %v6143 = vld [vmem:[%s6019 + $0x1ec] sm:$0xf]
        %v6144 = vld [vmem:[%s6019 + $0x1f0] sm:$0xf]
        %v6145 = vld [vmem:[%s6019 + $0x1f4] sm:$0xf]
        %v6146 = vld [vmem:[%s6019 + $0x1f8] sm:$0xf]
        %v6147 = vld [vmem:[%s6019 + $0x1fc] sm:$0xf]
        %v6148 = vld [vmem:[%s6019 + $0x200] sm:$0xf]
        %v6149 = vld [vmem:[%s6019 + $0x204] sm:$0xf]
        %v6150 = vld [vmem:[%s6019 + $0x208] sm:$0xf]
        %v6151 = vld [vmem:[%s6019 + $0x20c] sm:$0xf]
        %v6152 = vld [vmem:[%s6019 + $0x210] sm:$0xf]
        %v6153 = vld [vmem:[%s6019 + $0x214] sm:$0xf]
        %v6154 = vld [vmem:[%s6019 + $0x218] sm:$0xf]
        %v6155 = vld [vmem:[%s6019 + $0x21c] sm:$0xf]
        %v6156 = vld [vmem:[%s6019 + $0x220] sm:$0xf]
        %v6157 = vld [vmem:[%s6019 + $0x224] sm:$0xf]
        %v6158 = vld [vmem:[%s6019 + $0x228] sm:$0xf]
        %v6159 = vld [vmem:[%s6019 + $0x22c] sm:$0xf]
        %v6160 = vld [vmem:[%s6019 + $0x230] sm:$0xf]
        %v6161 = vld [vmem:[%s6019 + $0x234] sm:$0xf]
        %v6162 = vld [vmem:[%s6019 + $0x238] sm:$0xf]
        %v6163 = vld [vmem:[%s6019 + $0x23c] sm:$0xf]
        %s6164 = scalar_lea.vmem [#allocation9], 1
        %v6165 = vld [vmem:[%s6164] sm:$0x1]
        %v6167 = vlaneseq
        %v6168 = vshrl.u32 %v6167, 7
        %v6169 = vsub.s32 0, %v6168
        %v6170 = vrot.slane %v6165, %v6169
        %v6316 = vunpack.c.l.b16 %v6020
        %v6317 = vunpack.c.l.b16 %v6021
        %v6318 = vunpack.c.l.b16 %v6022
        %v6319 = vunpack.c.l.b16 %v6023
        %v6320 = vunpack.c.l.b16 %v6024
        %v6321 = vunpack.c.l.b16 %v6025
        %v6322 = vunpack.c.l.b16 %v6026
        %v6323 = vunpack.c.l.b16 %v6027
        %v6324 = vunpack.c.l.b16 %v6028
        %v6325 = vunpack.c.l.b16 %v6029
        %v6326 = vunpack.c.l.b16 %v6030
        %v6327 = vunpack.c.l.b16 %v6031
        %v6328 = vunpack.c.l.b16 %v6032
        %v6329 = vunpack.c.l.b16 %v6033
        %v6330 = vunpack.c.l.b16 %v6034
        %v6331 = vunpack.c.l.b16 %v6035
        %v6332 = vunpack.c.l.b16 %v6036
        %v6333 = vunpack.c.l.b16 %v6037
        %v6334 = vunpack.c.l.b16 %v6038
        %v6335 = vunpack.c.l.b16 %v6039
        %v6336 = vunpack.c.l.b16 %v6040
        %v6337 = vunpack.c.l.b16 %v6041
        %v6338 = vunpack.c.l.b16 %v6042
        %v6339 = vunpack.c.l.b16 %v6043
        %v6340 = vunpack.c.l.b16 %v6044
        %v6341 = vunpack.c.l.b16 %v6045
        %v6342 = vunpack.c.l.b16 %v6046
        %v6343 = vunpack.c.l.b16 %v6047
        %v6344 = vunpack.c.l.b16 %v6048
        %v6345 = vunpack.c.l.b16 %v6049
        %v6346 = vunpack.c.l.b16 %v6050
        %v6347 = vunpack.c.l.b16 %v6051
        %v6348 = vunpack.c.l.b16 %v6052
        %v6349 = vunpack.c.l.b16 %v6053
        %v6350 = vunpack.c.l.b16 %v6054
        %v6351 = vunpack.c.l.b16 %v6055
        %v6352 = vunpack.c.l.b16 %v6056
        %v6353 = vunpack.c.l.b16 %v6057
        %v6354 = vunpack.c.l.b16 %v6058
        %v6355 = vunpack.c.l.b16 %v6059
        %v6356 = vunpack.c.l.b16 %v6060
        %v6357 = vunpack.c.l.b16 %v6061
        %v6358 = vunpack.c.l.b16 %v6062
        %v6359 = vunpack.c.l.b16 %v6063
        %v6360 = vunpack.c.l.b16 %v6064
        %v6361 = vunpack.c.l.b16 %v6065
        %v6362 = vunpack.c.l.b16 %v6066
        %v6363 = vunpack.c.l.b16 %v6067
        %v6364 = vunpack.c.l.b16 %v6068
        %v6365 = vunpack.c.l.b16 %v6069
        %v6366 = vunpack.c.l.b16 %v6070
        %v6367 = vunpack.c.l.b16 %v6071
        %v6368 = vunpack.c.l.b16 %v6072
        %v6369 = vunpack.c.l.b16 %v6073
        %v6370 = vunpack.c.l.b16 %v6074
        %v6371 = vunpack.c.l.b16 %v6075
        %v6372 = vunpack.c.l.b16 %v6076
        %v6373 = vunpack.c.l.b16 %v6077
        %v6374 = vunpack.c.l.b16 %v6078
        %v6375 = vunpack.c.l.b16 %v6079
        %v6376 = vunpack.c.l.b16 %v6080
        %v6377 = vunpack.c.l.b16 %v6081
        %v6378 = vunpack.c.l.b16 %v6082
        %v6379 = vunpack.c.l.b16 %v6083
        %v6380 = vunpack.c.l.b16 %v6084
        %v6381 = vunpack.c.l.b16 %v6085
        %v6382 = vunpack.c.l.b16 %v6086
        %v6383 = vunpack.c.l.b16 %v6087
        %v6384 = vunpack.c.l.b16 %v6088
        %v6385 = vunpack.c.l.b16 %v6089
        %v6386 = vunpack.c.l.b16 %v6090
        %v6387 = vunpack.c.l.b16 %v6091
        %v6388 = vunpack.c.l.b16 %v6092
        %v6389 = vunpack.c.l.b16 %v6093
        %v6390 = vunpack.c.l.b16 %v6094
        %v6391 = vunpack.c.l.b16 %v6095
        %v6392 = vunpack.c.l.b16 %v6096
        %v6393 = vunpack.c.l.b16 %v6097
        %v6394 = vunpack.c.l.b16 %v6098
        %v6395 = vunpack.c.l.b16 %v6099
        %v6396 = vunpack.c.l.b16 %v6100
        %v6397 = vunpack.c.l.b16 %v6101
        %v6398 = vunpack.c.l.b16 %v6102
        %v6399 = vunpack.c.l.b16 %v6103
        %v6400 = vunpack.c.l.b16 %v6104
        %v6401 = vunpack.c.l.b16 %v6105
        %v6402 = vunpack.c.l.b16 %v6106
        %v6403 = vunpack.c.l.b16 %v6107
        %v6404 = vunpack.c.l.b16 %v6108
        %v6405 = vunpack.c.l.b16 %v6109
        %v6406 = vunpack.c.l.b16 %v6110
        %v6407 = vunpack.c.l.b16 %v6111
        %v6408 = vunpack.c.l.b16 %v6112
        %v6409 = vunpack.c.l.b16 %v6113
        %v6410 = vunpack.c.l.b16 %v6114
        %v6411 = vunpack.c.l.b16 %v6115
        %v6412 = vunpack.c.l.b16 %v6116
        %v6413 = vunpack.c.l.b16 %v6117
        %v6414 = vunpack.c.l.b16 %v6118
        %v6415 = vunpack.c.l.b16 %v6119
        %v6416 = vunpack.c.l.b16 %v6120
        %v6417 = vunpack.c.l.b16 %v6121
        %v6418 = vunpack.c.l.b16 %v6122
        %v6419 = vunpack.c.l.b16 %v6123
        %v6420 = vunpack.c.l.b16 %v6124
        %v6421 = vunpack.c.l.b16 %v6125
        %v6422 = vunpack.c.l.b16 %v6126
        %v6423 = vunpack.c.l.b16 %v6127
        %v6424 = vunpack.c.l.b16 %v6128
        %v6425 = vunpack.c.l.b16 %v6129
        %v6426 = vunpack.c.l.b16 %v6130
        %v6427 = vunpack.c.l.b16 %v6131
        %v6428 = vunpack.c.l.b16 %v6132
        %v6429 = vunpack.c.l.b16 %v6133
        %v6430 = vunpack.c.l.b16 %v6134
        %v6431 = vunpack.c.l.b16 %v6135
        %v6432 = vunpack.c.l.b16 %v6136
        %v6433 = vunpack.c.l.b16 %v6137
        %v6434 = vunpack.c.l.b16 %v6138
        %v6435 = vunpack.c.l.b16 %v6139
        %v6436 = vunpack.c.l.b16 %v6140
        %v6437 = vunpack.c.l.b16 %v6141
        %v6438 = vunpack.c.l.b16 %v6142
        %v6439 = vunpack.c.l.b16 %v6143
        %v6440 = vunpack.c.l.b16 %v6144
        %v6441 = vunpack.c.l.b16 %v6145
        %v6442 = vunpack.c.l.b16 %v6146
        %v6443 = vunpack.c.l.b16 %v6147
        %v6444 = vunpack.c.l.b16 %v6148
        %v6445 = vunpack.c.l.b16 %v6149
        %v6446 = vunpack.c.l.b16 %v6150
        %v6447 = vunpack.c.l.b16 %v6151
        %v6448 = vunpack.c.l.b16 %v6152
        %v6449 = vunpack.c.l.b16 %v6153
        %v6450 = vunpack.c.l.b16 %v6154
        %v6451 = vunpack.c.l.b16 %v6155
        %v6452 = vunpack.c.l.b16 %v6156
        %v6453 = vunpack.c.l.b16 %v6157
        %v6454 = vunpack.c.l.b16 %v6158
        %v6455 = vunpack.c.l.b16 %v6159
        %v6456 = vunpack.c.l.b16 %v6160
        %v6457 = vunpack.c.l.b16 %v6161
        %v6458 = vunpack.c.l.b16 %v6162
        %v6459 = vunpack.c.l.b16 %v6163
        %v6460 = vpack.c.b16 %v6317, %v6316
        %v6461 = vpack.c.b16 %v6319, %v6318
        %v6462 = vpack.c.b16 %v6321, %v6320
        %v6463 = vpack.c.b16 %v6323, %v6322
        %v6464 = vpack.c.b16 %v6325, %v6324
        %v6465 = vpack.c.b16 %v6327, %v6326
        %v6466 = vpack.c.b16 %v6329, %v6328
        %v6467 = vpack.c.b16 %v6331, %v6330
        %v6468 = vpack.c.b16 %v6333, %v6332
        %v6469 = vpack.c.b16 %v6335, %v6334
        %v6470 = vpack.c.b16 %v6337, %v6336
        %v6471 = vpack.c.b16 %v6339, %v6338
        %v6472 = vpack.c.b16 %v6341, %v6340
        %v6473 = vpack.c.b16 %v6343, %v6342
        %v6474 = vpack.c.b16 %v6345, %v6344
        %v6475 = vpack.c.b16 %v6347, %v6346
        %v6476 = vpack.c.b16 %v6349, %v6348
        %v6477 = vpack.c.b16 %v6351, %v6350
        %v6478 = vpack.c.b16 %v6353, %v6352
        %v6479 = vpack.c.b16 %v6355, %v6354
        %v6480 = vpack.c.b16 %v6357, %v6356
        %v6481 = vpack.c.b16 %v6359, %v6358
        %v6482 = vpack.c.b16 %v6361, %v6360
        %v6483 = vpack.c.b16 %v6363, %v6362
        %v6484 = vpack.c.b16 %v6365, %v6364
        %v6485 = vpack.c.b16 %v6367, %v6366
        %v6486 = vpack.c.b16 %v6369, %v6368
        %v6487 = vpack.c.b16 %v6371, %v6370
        %v6488 = vpack.c.b16 %v6373, %v6372
        %v6489 = vpack.c.b16 %v6375, %v6374
        %v6490 = vpack.c.b16 %v6377, %v6376
        %v6491 = vpack.c.b16 %v6379, %v6378
        %v6492 = vpack.c.b16 %v6381, %v6380
        %v6493 = vpack.c.b16 %v6383, %v6382
        %v6494 = vpack.c.b16 %v6385, %v6384
        %v6495 = vpack.c.b16 %v6387, %v6386
        %v6496 = vpack.c.b16 %v6389, %v6388
        %v6497 = vpack.c.b16 %v6391, %v6390
        %v6498 = vpack.c.b16 %v6393, %v6392
        %v6499 = vpack.c.b16 %v6395, %v6394
        %v6500 = vpack.c.b16 %v6397, %v6396
        %v6501 = vpack.c.b16 %v6399, %v6398
        %v6502 = vpack.c.b16 %v6401, %v6400
        %v6503 = vpack.c.b16 %v6403, %v6402
        %v6504 = vpack.c.b16 %v6405, %v6404
        %v6505 = vpack.c.b16 %v6407, %v6406
        %v6506 = vpack.c.b16 %v6409, %v6408
        %v6507 = vpack.c.b16 %v6411, %v6410
        %v6508 = vpack.c.b16 %v6413, %v6412
        %v6509 = vpack.c.b16 %v6415, %v6414
        %v6510 = vpack.c.b16 %v6417, %v6416
        %v6511 = vpack.c.b16 %v6419, %v6418
        %v6512 = vpack.c.b16 %v6421, %v6420
        %v6513 = vpack.c.b16 %v6423, %v6422
        %v6514 = vpack.c.b16 %v6425, %v6424
        %v6515 = vpack.c.b16 %v6427, %v6426
        %v6516 = vpack.c.b16 %v6429, %v6428
        %v6517 = vpack.c.b16 %v6431, %v6430
        %v6518 = vpack.c.b16 %v6433, %v6432
        %v6519 = vpack.c.b16 %v6435, %v6434
        %v6520 = vpack.c.b16 %v6437, %v6436
        %v6521 = vpack.c.b16 %v6439, %v6438
        %v6522 = vpack.c.b16 %v6441, %v6440
        %v6523 = vpack.c.b16 %v6443, %v6442
        %v6524 = vpack.c.b16 %v6445, %v6444
        %v6525 = vpack.c.b16 %v6447, %v6446
        %v6526 = vpack.c.b16 %v6449, %v6448
        %v6527 = vpack.c.b16 %v6451, %v6450
        %v6528 = vpack.c.b16 %v6453, %v6452
        %v6529 = vpack.c.b16 %v6455, %v6454
        %v6530 = vpack.c.b16 %v6457, %v6456
        %v6531 = vpack.c.b16 %v6459, %v6458
        %6604 = vmatprep.subr.bf16.mxu0 0
        %6605 = vmatpush1.bf16.msra.mxu0 %v6460
        %6606 = vmatprep.subr.bf16.mxu0 0
        %6607 = vmatpush1.bf16.msra.mxu0 %v6461
        %6608 = vmatprep.subr.bf16.mxu0 0
        %6609 = vmatpush1.bf16.msra.mxu0 %v6462
        %6610 = vmatprep.subr.bf16.mxu0 0
        %6611 = vmatpush1.bf16.msra.mxu0 %v6463
        %6612 = vmatprep.subr.bf16.mxu0 0
        %6613 = vmatpush1.bf16.msra.mxu0 %v6464
        %6614 = vmatprep.subr.bf16.mxu0 0
        %6615 = vmatpush1.bf16.msra.mxu0 %v6465
        %6616 = vmatprep.subr.bf16.mxu0 0
        %6617 = vmatpush1.bf16.msra.mxu0 %v6466
        %6618 = vmatprep.subr.bf16.mxu0 0
        %6619 = vmatpush1.bf16.msra.mxu0 %v6467
        %6620 = vmatprep.subr.bf16.mxu0 0
        %6621 = vmatpush1.bf16.msra.mxu0 %v6468
        %6622 = vmatprep.subr.bf16.mxu0 0
        %6623 = vmatpush1.bf16.msra.mxu0 %v6469
        %6624 = vmatprep.subr.bf16.mxu0 0
        %6625 = vmatpush1.bf16.msra.mxu0 %v6470
        %6626 = vmatprep.subr.bf16.mxu0 0
        %6627 = vmatpush1.bf16.msra.mxu0 %v6471
        %6628 = vmatprep.subr.bf16.mxu0 0
        %6629 = vmatpush1.bf16.msra.mxu0 %v6472
        %6630 = vmatprep.subr.bf16.mxu0 0
        %6631 = vmatpush1.bf16.msra.mxu0 %v6473
        %6632 = vmatprep.subr.bf16.mxu0 0
        %6633 = vmatpush1.bf16.msra.mxu0 %v6474
        %6634 = vmatprep.subr.bf16.mxu0 0
        %6635 = vmatpush1.bf16.msra.mxu0 %v6475
        %6636 = vmatprep.mubr.bf16.mxu0 %v5876
        %6637 = vmatmul.mubr.bf16.gmra.mrb[0].mxu0 %v5875
        %v6638 = vpop.f32.mrb[0].mxu0
        %v6639 = vadd.f32 %v6170, %v6638
        %v6640 = vpop.f32.mrb[0].mxu0
        %v6641 = vpop.f32.mrb[0].mxu0
        %v6642 = vadd.f32 %v6170, %v6641
        %v6643 = vpop.f32.mrb[0].mxu0
        %6644 = vmatprep.mubr.bf16.mxu0 %v5885
        %6645 = vmatmul.mubr.bf16.gmra.mrb[0].mxu0 %v5884
        %v6646 = vpop.f32.mrb[0].mxu0
        %v6647 = vadd.f32 %v6170, %v6646
        %v6648 = vpop.f32.mrb[0].mxu0
        %v6649 = vpop.f32.mrb[0].mxu0
        %v6650 = vadd.f32 %v6170, %v6649
        %v6651 = vpop.f32.mrb[0].mxu0
        %6652 = vmatprep.mubr.bf16.mxu0 %v5894
        %6653 = vmatmul.mubr.bf16.gmra.mrb[0].mxu0 %v5893
        %v6654 = vpop.f32.mrb[0].mxu0
        %v6655 = vadd.f32 %v6170, %v6654
        %v6656 = vpop.f32.mrb[0].mxu0
        %v6657 = vpop.f32.mrb[0].mxu0
        %v6658 = vadd.f32 %v6170, %v6657
        %v6659 = vpop.f32.mrb[0].mxu0
        %6660 = vmatprep.mubr.bf16.mxu0 %v5903
        %6661 = vmatmul.mubr.bf16.gmra.mrb[0].mxu0 %v5902
        %v6662 = vpop.f32.mrb[0].mxu0
        %v6663 = vadd.f32 %v6170, %v6662
        %v6664 = vpop.f32.mrb[0].mxu0
        %v6665 = vpop.f32.mrb[0].mxu0
        %v6666 = vadd.f32 %v6170, %v6665
        %v6667 = vpop.f32.mrb[0].mxu0
        %6668 = vmatprep.mubr.bf16.mxu0 %v5912
        %6669 = vmatmul.mubr.bf16.gmra.mrb[0].mxu0 %v5911
        %v6670 = vpop.f32.mrb[0].mxu0
        %v6671 = vadd.f32 %v6170, %v6670
        %v6672 = vpop.f32.mrb[0].mxu0
        %v6673 = vpop.f32.mrb[0].mxu0
        %v6674 = vadd.f32 %v6170, %v6673
        %v6675 = vpop.f32.mrb[0].mxu0
        %6676 = vmatprep.mubr.bf16.mxu0 %v5921
        %6677 = vmatmul.mubr.bf16.gmra.mrb[0].mxu0 %v5920
        %v6678 = vpop.f32.mrb[0].mxu0
        %v6679 = vadd.f32 %v6170, %v6678
        %v6680 = vpop.f32.mrb[0].mxu0
        %v6681 = vpop.f32.mrb[0].mxu0
        %v6682 = vadd.f32 %v6170, %v6681
        %v6683 = vpop.f32.mrb[0].mxu0
        %6684 = vmatprep.mubr.bf16.mxu0 %v5930
        %6685 = vmatmul.mubr.bf16.gmra.mrb[0].mxu0 %v5929
        %v6686 = vpop.f32.mrb[0].mxu0
        %v6687 = vadd.f32 %v6170, %v6686
        %v6688 = vpop.f32.mrb[0].mxu0
        %v6689 = vpop.f32.mrb[0].mxu0
        %v6690 = vadd.f32 %v6170, %v6689
        %v6691 = vpop.f32.mrb[0].mxu0
        %6692 = vmatprep.mubr.bf16.mxu0 %v5939
        %6693 = vmatmul.mubr.bf16.gmra.mrb[0].mxu0 %v5938
        %v6694 = vpop.f32.mrb[0].mxu0
        %v6695 = vadd.f32 %v6170, %v6694
        %v6696 = vpop.f32.mrb[0].mxu0
        %v6697 = vpop.f32.mrb[0].mxu0
        %v6698 = vadd.f32 %v6170, %v6697
        %v6699 = vpop.f32.mrb[0].mxu0
        %6700 = vmatprep.mubr.bf16.mxu0 %v5948
        %6701 = vmatmul.mubr.bf16.gmra.mrb[0].mxu0 %v5947
        %v6702 = vpop.f32.mrb[0].mxu0
        %v6703 = vadd.f32 %v6170, %v6702
        %v6704 = vpop.f32.mrb[0].mxu0
        %v6705 = vpop.f32.mrb[0].mxu0
        %v6706 = vadd.f32 %v6170, %v6705
        %v6707 = vpop.f32.mrb[0].mxu0
        %6708 = vmatprep.mubr.bf16.mxu0 %v5957
        %6709 = vmatmul.mubr.bf16.gmra.mrb[0].mxu0 %v5956
        %v6710 = vpop.f32.mrb[0].mxu0
        %v6711 = vadd.f32 %v6170, %v6710
        %v6712 = vpop.f32.mrb[0].mxu0
        %v6713 = vpop.f32.mrb[0].mxu0
        %v6714 = vadd.f32 %v6170, %v6713
        %v6715 = vpop.f32.mrb[0].mxu0
        %6716 = vmatprep.mubr.bf16.mxu0 %v5966
        %6717 = vmatmul.mubr.bf16.gmra.mrb[0].mxu0 %v5965
        %v6718 = vpop.f32.mrb[0].mxu0
        %v6719 = vadd.f32 %v6170, %v6718
        %v6720 = vpop.f32.mrb[0].mxu0
        %v6721 = vpop.f32.mrb[0].mxu0
        %v6722 = vadd.f32 %v6170, %v6721
        %v6723 = vpop.f32.mrb[0].mxu0
        %6724 = vmatprep.mubr.bf16.mxu0 %v5975
        %6725 = vmatmul.mubr.bf16.gmra.mrb[0].mxu0 %v5974
        %v6726 = vpop.f32.mrb[0].mxu0
        %v6727 = vadd.f32 %v6170, %v6726
        %v6728 = vpop.f32.mrb[0].mxu0
        %v6729 = vpop.f32.mrb[0].mxu0
        %v6730 = vadd.f32 %v6170, %v6729
        %v6731 = vpop.f32.mrb[0].mxu0
        %6732 = vmatprep.mubr.bf16.mxu0 %v5984
        %6733 = vmatmul.mubr.bf16.gmra.mrb[0].mxu0 %v5983
        %v6734 = vpop.f32.mrb[0].mxu0
        %v6735 = vadd.f32 %v6170, %v6734
        %v6736 = vpop.f32.mrb[0].mxu0
        %v6737 = vpop.f32.mrb[0].mxu0
        %v6738 = vadd.f32 %v6170, %v6737
        %v6739 = vpop.f32.mrb[0].mxu0
        %6740 = vmatprep.mubr.bf16.mxu0 %v5993
        %6741 = vmatmul.mubr.bf16.gmra.mrb[0].mxu0 %v5992
        %v6742 = vpop.f32.mrb[0].mxu0
        %v6743 = vadd.f32 %v6170, %v6742
        %v6744 = vpop.f32.mrb[0].mxu0
        %v6745 = vpop.f32.mrb[0].mxu0
        %v6746 = vadd.f32 %v6170, %v6745
        %v6747 = vpop.f32.mrb[0].mxu0
        %6748 = vmatprep.mubr.bf16.mxu0 %v6002
        %6749 = vmatmul.mubr.bf16.gmra.mrb[0].mxu0 %v6001
        %v6750 = vpop.f32.mrb[0].mxu0
        %v6751 = vadd.f32 %v6170, %v6750
        %v6752 = vpop.f32.mrb[0].mxu0
        %v6753 = vpop.f32.mrb[0].mxu0
        %v6754 = vadd.f32 %v6170, %v6753
        %v6755 = vpop.f32.mrb[0].mxu0
        %6756 = vmatprep.mubr.bf16.mxu0 %v6011
        %6757 = vmatmul.mubr.bf16.gmra.mrb[0].mxu0 %v6010
        %v6758 = vpop.f32.mrb[0].mxu0
        %v6759 = vadd.f32 %v6170, %v6758
        %v6760 = vpop.f32.mrb[0].mxu0
        %v6761 = vpop.f32.mrb[0].mxu0
        %v6762 = vadd.f32 %v6170, %v6761
        %v6763 = vpop.f32.mrb[0].mxu0
        %6764 = vdwg.mxu0
        %6765 = vmatprep.subr.bf16.mxu0 0
        %6766 = vmatpush1.bf16.msra.mxu0 %v6476
        %6767 = vmatprep.subr.bf16.mxu0 0
        %6768 = vmatpush1.bf16.msra.mxu0 %v6477
        %6769 = vmatprep.subr.bf16.mxu0 0
        %6770 = vmatpush1.bf16.msra.mxu0 %v6478
        %6771 = vmatprep.subr.bf16.mxu0 0
        %6772 = vmatpush1.bf16.msra.mxu0 %v6479
        %6773 = vmatprep.subr.bf16.mxu0 0
        %6774 = vmatpush1.bf16.msra.mxu0 %v6480
        %6775 = vmatprep.subr.bf16.mxu0 0
        %6776 = vmatpush1.bf16.msra.mxu0 %v6481
        %6777 = vmatprep.subr.bf16.mxu0 0
        %6778 = vmatpush1.bf16.msra.mxu0 %v6482
        %6779 = vmatprep.subr.bf16.mxu0 0
        %6780 = vmatpush1.bf16.msra.mxu0 %v6483
        %6781 = vmatprep.subr.bf16.mxu0 0
        %6782 = vmatpush1.bf16.msra.mxu0 %v6484
        %6783 = vmatprep.subr.bf16.mxu0 0
        %6784 = vmatpush1.bf16.msra.mxu0 %v6485
        %6785 = vmatprep.subr.bf16.mxu0 0
        %6786 = vmatpush1.bf16.msra.mxu0 %v6486
        %6787 = vmatprep.subr.bf16.mxu0 0
        %6788 = vmatpush1.bf16.msra.mxu0 %v6487
        %6789 = vmatprep.subr.bf16.mxu0 0
        %6790 = vmatpush1.bf16.msra.mxu0 %v6488
        %6791 = vmatprep.subr.bf16.mxu0 0
        %6792 = vmatpush1.bf16.msra.mxu0 %v6489
        %6793 = vmatprep.subr.bf16.mxu0 0
        %6794 = vmatpush1.bf16.msra.mxu0 %v6490
        %6795 = vmatprep.subr.bf16.mxu0 0
        %6796 = vmatpush1.bf16.msra.mxu0 %v6491
        %6797 = vmatprep.mubr.bf16.mxu0 %v5878
        %6798 = vmatmul.mubr.bf16.gmra.mrb[0].mxu0 %v5877
        %v6799 = vpop.f32.mrb[0].mxu0
        %v6800 = vadd.f32 %v6639, %v6799
        %v6801 = vpop.f32.mrb[0].mxu0
        %v6802 = vpop.f32.mrb[0].mxu0
        %v6803 = vadd.f32 %v6642, %v6802
        %v6804 = vpop.f32.mrb[0].mxu0
        %6805 = vmatprep.mubr.bf16.mxu0 %v5887
        %6806 = vmatmul.mubr.bf16.gmra.mrb[0].mxu0 %v5886
        %v6807 = vpop.f32.mrb[0].mxu0
        %v6808 = vadd.f32 %v6647, %v6807
        %v6809 = vpop.f32.mrb[0].mxu0
        %v6810 = vpop.f32.mrb[0].mxu0
        %v6811 = vadd.f32 %v6650, %v6810
        %v6812 = vpop.f32.mrb[0].mxu0
        %6813 = vmatprep.mubr.bf16.mxu0 %v5896
        %6814 = vmatmul.mubr.bf16.gmra.mrb[0].mxu0 %v5895
        %v6815 = vpop.f32.mrb[0].mxu0
        %v6816 = vadd.f32 %v6655, %v6815
        %v6817 = vpop.f32.mrb[0].mxu0
        %v6818 = vpop.f32.mrb[0].mxu0
        %v6819 = vadd.f32 %v6658, %v6818
        %v6820 = vpop.f32.mrb[0].mxu0
        %6821 = vmatprep.mubr.bf16.mxu0 %v5905
        %6822 = vmatmul.mubr.bf16.gmra.mrb[0].mxu0 %v5904
        %v6823 = vpop.f32.mrb[0].mxu0
        %v6824 = vadd.f32 %v6663, %v6823
        %v6825 = vpop.f32.mrb[0].mxu0
        %v6826 = vpop.f32.mrb[0].mxu0
        %v6827 = vadd.f32 %v6666, %v6826
        %v6828 = vpop.f32.mrb[0].mxu0
        %6829 = vmatprep.mubr.bf16.mxu0 %v5914
        %6830 = vmatmul.mubr.bf16.gmra.mrb[0].mxu0 %v5913
        %v6831 = vpop.f32.mrb[0].mxu0
        %v6832 = vadd.f32 %v6671, %v6831
        %v6833 = vpop.f32.mrb[0].mxu0
        %v6834 = vpop.f32.mrb[0].mxu0
        %v6835 = vadd.f32 %v6674, %v6834
        %v6836 = vpop.f32.mrb[0].mxu0
        %6837 = vmatprep.mubr.bf16.mxu0 %v5923
        %6838 = vmatmul.mubr.bf16.gmra.mrb[0].mxu0 %v5922
        %v6839 = vpop.f32.mrb[0].mxu0
        %v6840 = vadd.f32 %v6679, %v6839
        %v6841 = vpop.f32.mrb[0].mxu0
        %v6842 = vpop.f32.mrb[0].mxu0
        %v6843 = vadd.f32 %v6682, %v6842
        %v6844 = vpop.f32.mrb[0].mxu0
        %6845 = vmatprep.mubr.bf16.mxu0 %v5932
        %6846 = vmatmul.mubr.bf16.gmra.mrb[0].mxu0 %v5931
        %v6847 = vpop.f32.mrb[0].mxu0
        %v6848 = vadd.f32 %v6687, %v6847
        %v6849 = vpop.f32.mrb[0].mxu0
        %v6850 = vpop.f32.mrb[0].mxu0
        %v6851 = vadd.f32 %v6690, %v6850
        %v6852 = vpop.f32.mrb[0].mxu0
        %6853 = vmatprep.mubr.bf16.mxu0 %v5941
        %6854 = vmatmul.mubr.bf16.gmra.mrb[0].mxu0 %v5940
        %v6855 = vpop.f32.mrb[0].mxu0
        %v6856 = vadd.f32 %v6695, %v6855
        %v6857 = vpop.f32.mrb[0].mxu0
        %v6858 = vpop.f32.mrb[0].mxu0
        %v6859 = vadd.f32 %v6698, %v6858
        %v6860 = vpop.f32.mrb[0].mxu0
        %6861 = vmatprep.mubr.bf16.mxu0 %v5950
        %6862 = vmatmul.mubr.bf16.gmra.mrb[0].mxu0 %v5949
        %v6863 = vpop.f32.mrb[0].mxu0
        %v6864 = vadd.f32 %v6703, %v6863
        %v6865 = vpop.f32.mrb[0].mxu0
        %v6866 = vpop.f32.mrb[0].mxu0
        %v6867 = vadd.f32 %v6706, %v6866
        %v6868 = vpop.f32.mrb[0].mxu0
        %6869 = vmatprep.mubr.bf16.mxu0 %v5959
        %6870 = vmatmul.mubr.bf16.gmra.mrb[0].mxu0 %v5958
        %v6871 = vpop.f32.mrb[0].mxu0
        %v6872 = vadd.f32 %v6711, %v6871
        %v6873 = vpop.f32.mrb[0].mxu0
        %v6874 = vpop.f32.mrb[0].mxu0
        %v6875 = vadd.f32 %v6714, %v6874
        %v6876 = vpop.f32.mrb[0].mxu0
        %6877 = vmatprep.mubr.bf16.mxu0 %v5968
        %6878 = vmatmul.mubr.bf16.gmra.mrb[0].mxu0 %v5967
        %v6879 = vpop.f32.mrb[0].mxu0
        %v6880 = vadd.f32 %v6719, %v6879
        %v6881 = vpop.f32.mrb[0].mxu0
        %v6882 = vpop.f32.mrb[0].mxu0
        %v6883 = vadd.f32 %v6722, %v6882
        %v6884 = vpop.f32.mrb[0].mxu0
        %6885 = vmatprep.mubr.bf16.mxu0 %v5977
        %6886 = vmatmul.mubr.bf16.gmra.mrb[0].mxu0 %v5976
        %v6887 = vpop.f32.mrb[0].mxu0
        %v6888 = vadd.f32 %v6727, %v6887
        %v6889 = vpop.f32.mrb[0].mxu0
        %v6890 = vpop.f32.mrb[0].mxu0
        %v6891 = vadd.f32 %v6730, %v6890
        %v6892 = vpop.f32.mrb[0].mxu0
        %6893 = vmatprep.mubr.bf16.mxu0 %v5986
        %6894 = vmatmul.mubr.bf16.gmra.mrb[0].mxu0 %v5985
        %v6895 = vpop.f32.mrb[0].mxu0
        %v6896 = vadd.f32 %v6735, %v6895
        %v6897 = vpop.f32.mrb[0].mxu0
        %v6898 = vpop.f32.mrb[0].mxu0
        %v6899 = vadd.f32 %v6738, %v6898
        %v6900 = vpop.f32.mrb[0].mxu0
        %6901 = vmatprep.mubr.bf16.mxu0 %v5995
        %6902 = vmatmul.mubr.bf16.gmra.mrb[0].mxu0 %v5994
        %v6903 = vpop.f32.mrb[0].mxu0
        %v6904 = vadd.f32 %v6743, %v6903
        %v6905 = vpop.f32.mrb[0].mxu0
        %v6906 = vpop.f32.mrb[0].mxu0
        %v6907 = vadd.f32 %v6746, %v6906
        %v6908 = vpop.f32.mrb[0].mxu0
        %6909 = vmatprep.mubr.bf16.mxu0 %v6004
        %6910 = vmatmul.mubr.bf16.gmra.mrb[0].mxu0 %v6003
        %v6911 = vpop.f32.mrb[0].mxu0
        %v6912 = vadd.f32 %v6751, %v6911
        %v6913 = vpop.f32.mrb[0].mxu0
        %v6914 = vpop.f32.mrb[0].mxu0
        %v6915 = vadd.f32 %v6754, %v6914
        %v6916 = vpop.f32.mrb[0].mxu0
        %6917 = vmatprep.mubr.bf16.mxu0 %v6013
        %6918 = vmatmul.mubr.bf16.gmra.mrb[0].mxu0 %v6012
        %v6919 = vpop.f32.mrb[0].mxu0
        %v6920 = vadd.f32 %v6759, %v6919
        %v6921 = vpop.f32.mrb[0].mxu0
        %v6922 = vpop.f32.mrb[0].mxu0
        %v6923 = vadd.f32 %v6762, %v6922
        %v6924 = vpop.f32.mrb[0].mxu0
        %6925 = vdwg.mxu0
        %6926 = vmatprep.subr.bf16.mxu0 0
        %6927 = vmatpush1.bf16.msra.mxu0 %v6492
        %6928 = vmatprep.subr.bf16.mxu0 0
        %6929 = vmatpush1.bf16.msra.mxu0 %v6493
        %6930 = vmatprep.subr.bf16.mxu0 0
        %6931 = vmatpush1.bf16.msra.mxu0 %v6494
        %6932 = vmatprep.subr.bf16.mxu0 0
        %6933 = vmatpush1.bf16.msra.mxu0 %v6495
        %6934 = vmatprep.subr.bf16.mxu0 0
        %6935 = vmatpush1.bf16.msra.mxu0 %v6496
        %6936 = vmatprep.subr.bf16.mxu0 0
        %6937 = vmatpush1.bf16.msra.mxu0 %v6497
        %6938 = vmatprep.subr.bf16.mxu0 0
        %6939 = vmatpush1.bf16.msra.mxu0 %v6498
        %6940 = vmatprep.subr.bf16.mxu0 0
        %6941 = vmatpush1.bf16.msra.mxu0 %v6499
        %6942 = vmatprep.subr.bf16.mxu0 0
        %6943 = vmatpush1.bf16.msra.mxu0 %v6500
        %6944 = vmatprep.subr.bf16.mxu0 0
        %6945 = vmatpush1.bf16.msra.mxu0 %v6501
        %6946 = vmatprep.subr.bf16.mxu0 0
        %6947 = vmatpush1.bf16.msra.mxu0 %v6502
        %6948 = vmatprep.subr.bf16.mxu0 0
        %6949 = vmatpush1.bf16.msra.mxu0 %v6503
        %6950 = vmatprep.subr.bf16.mxu0 0
        %6951 = vmatpush1.bf16.msra.mxu0 %v6504
        %6952 = vmatprep.subr.bf16.mxu0 0
        %6953 = vmatpush1.bf16.msra.mxu0 %v6505
        %6954 = vmatprep.subr.bf16.mxu0 0
        %6955 = vmatpush1.bf16.msra.mxu0 %v6506
        %6956 = vmatprep.subr.bf16.mxu0 0
        %6957 = vmatpush1.bf16.msra.mxu0 %v6507
        %6958 = vmatprep.mubr.bf16.mxu0 %v5880
        %6959 = vmatmul.mubr.bf16.gmra.mrb[0].mxu0 %v5879
        %v6960 = vpop.f32.mrb[0].mxu0
        %v6961 = vadd.f32 %v6800, %v6960
        %v6962 = vpop.f32.mrb[0].mxu0
        %v6963 = vpop.f32.mrb[0].mxu0
        %v6964 = vadd.f32 %v6803, %v6963
        %v6965 = vpop.f32.mrb[0].mxu0
        %6966 = vmatprep.mubr.bf16.mxu0 %v5889
        %6967 = vmatmul.mubr.bf16.gmra.mrb[0].mxu0 %v5888
        %v6968 = vpop.f32.mrb[0].mxu0
        %v6969 = vadd.f32 %v6808, %v6968
        %v6970 = vpop.f32.mrb[0].mxu0
        %v6971 = vpop.f32.mrb[0].mxu0
        %v6972 = vadd.f32 %v6811, %v6971
        %v6973 = vpop.f32.mrb[0].mxu0
        %6974 = vmatprep.mubr.bf16.mxu0 %v5898
        %6975 = vmatmul.mubr.bf16.gmra.mrb[0].mxu0 %v5897
        %v6976 = vpop.f32.mrb[0].mxu0
        %v6977 = vadd.f32 %v6816, %v6976
        %v6978 = vpop.f32.mrb[0].mxu0
        %v6979 = vpop.f32.mrb[0].mxu0
        %v6980 = vadd.f32 %v6819, %v6979
        %v6981 = vpop.f32.mrb[0].mxu0
        %6982 = vmatprep.mubr.bf16.mxu0 %v5907
        %6983 = vmatmul.mubr.bf16.gmra.mrb[0].mxu0 %v5906
        %v6984 = vpop.f32.mrb[0].mxu0
        %v6985 = vadd.f32 %v6824, %v6984
        %v6986 = vpop.f32.mrb[0].mxu0
        %v6987 = vpop.f32.mrb[0].mxu0
        %v6988 = vadd.f32 %v6827, %v6987
        %v6989 = vpop.f32.mrb[0].mxu0
        %6990 = vmatprep.mubr.bf16.mxu0 %v5916
        %6991 = vmatmul.mubr.bf16.gmra.mrb[0].mxu0 %v5915
        %v6992 = vpop.f32.mrb[0].mxu0
        %v6993 = vadd.f32 %v6832, %v6992
        %v6994 = vpop.f32.mrb[0].mxu0
        %v6995 = vpop.f32.mrb[0].mxu0
        %v6996 = vadd.f32 %v6835, %v6995
        %v6997 = vpop.f32.mrb[0].mxu0
        %6998 = vmatprep.mubr.bf16.mxu0 %v5925
        %6999 = vmatmul.mubr.bf16.gmra.mrb[0].mxu0 %v5924
        %v7000 = vpop.f32.mrb[0].mxu0
        %v7001 = vadd.f32 %v6840, %v7000
        %v7002 = vpop.f32.mrb[0].mxu0
        %v7003 = vpop.f32.mrb[0].mxu0
        %v7004 = vadd.f32 %v6843, %v7003
        %v7005 = vpop.f32.mrb[0].mxu0
        %7006 = vmatprep.mubr.bf16.mxu0 %v5934
        %7007 = vmatmul.mubr.bf16.gmra.mrb[0].mxu0 %v5933
        %v7008 = vpop.f32.mrb[0].mxu0
        %v7009 = vadd.f32 %v6848, %v7008
        %v7010 = vpop.f32.mrb[0].mxu0
        %v7011 = vpop.f32.mrb[0].mxu0
        %v7012 = vadd.f32 %v6851, %v7011
        %v7013 = vpop.f32.mrb[0].mxu0
        %7014 = vmatprep.mubr.bf16.mxu0 %v5943
        %7015 = vmatmul.mubr.bf16.gmra.mrb[0].mxu0 %v5942
        %v7016 = vpop.f32.mrb[0].mxu0
        %v7017 = vadd.f32 %v6856, %v7016
        %v7018 = vpop.f32.mrb[0].mxu0
        %v7019 = vpop.f32.mrb[0].mxu0
        %v7020 = vadd.f32 %v6859, %v7019
        %v7021 = vpop.f32.mrb[0].mxu0
        %7022 = vmatprep.mubr.bf16.mxu0 %v5952
        %7023 = vmatmul.mubr.bf16.gmra.mrb[0].mxu0 %v5951
        %v7024 = vpop.f32.mrb[0].mxu0
        %v7025 = vadd.f32 %v6864, %v7024
        %v7026 = vpop.f32.mrb[0].mxu0
        %v7027 = vpop.f32.mrb[0].mxu0
        %v7028 = vadd.f32 %v6867, %v7027
        %v7029 = vpop.f32.mrb[0].mxu0
        %7030 = vmatprep.mubr.bf16.mxu0 %v5961
        %7031 = vmatmul.mubr.bf16.gmra.mrb[0].mxu0 %v5960
        %v7032 = vpop.f32.mrb[0].mxu0
        %v7033 = vadd.f32 %v6872, %v7032
        %v7034 = vpop.f32.mrb[0].mxu0
        %v7035 = vpop.f32.mrb[0].mxu0
        %v7036 = vadd.f32 %v6875, %v7035
        %v7037 = vpop.f32.mrb[0].mxu0
        %7038 = vmatprep.mubr.bf16.mxu0 %v5970
        %7039 = vmatmul.mubr.bf16.gmra.mrb[0].mxu0 %v5969
        %v7040 = vpop.f32.mrb[0].mxu0
        %v7041 = vadd.f32 %v6880, %v7040
        %v7042 = vpop.f32.mrb[0].mxu0
        %v7043 = vpop.f32.mrb[0].mxu0
        %v7044 = vadd.f32 %v6883, %v7043
        %v7045 = vpop.f32.mrb[0].mxu0
        %7046 = vmatprep.mubr.bf16.mxu0 %v5979
        %7047 = vmatmul.mubr.bf16.gmra.mrb[0].mxu0 %v5978
        %v7048 = vpop.f32.mrb[0].mxu0
        %v7049 = vadd.f32 %v6888, %v7048
        %v7050 = vpop.f32.mrb[0].mxu0
        %v7051 = vpop.f32.mrb[0].mxu0
        %v7052 = vadd.f32 %v6891, %v7051
        %v7053 = vpop.f32.mrb[0].mxu0
        %7054 = vmatprep.mubr.bf16.mxu0 %v5988
        %7055 = vmatmul.mubr.bf16.gmra.mrb[0].mxu0 %v5987
        %v7056 = vpop.f32.mrb[0].mxu0
        %v7057 = vadd.f32 %v6896, %v7056
        %v7058 = vpop.f32.mrb[0].mxu0
        %v7059 = vpop.f32.mrb[0].mxu0
        %v7060 = vadd.f32 %v6899, %v7059
        %v7061 = vpop.f32.mrb[0].mxu0
        %7062 = vmatprep.mubr.bf16.mxu0 %v5997
        %7063 = vmatmul.mubr.bf16.gmra.mrb[0].mxu0 %v5996
        %v7064 = vpop.f32.mrb[0].mxu0
        %v7065 = vadd.f32 %v6904, %v7064
        %v7066 = vpop.f32.mrb[0].mxu0
        %v7067 = vpop.f32.mrb[0].mxu0
        %v7068 = vadd.f32 %v6907, %v7067
        %v7069 = vpop.f32.mrb[0].mxu0
        %7070 = vmatprep.mubr.bf16.mxu0 %v6006
        %7071 = vmatmul.mubr.bf16.gmra.mrb[0].mxu0 %v6005
        %v7072 = vpop.f32.mrb[0].mxu0
        %v7073 = vadd.f32 %v6912, %v7072
        %v7074 = vpop.f32.mrb[0].mxu0
        %v7075 = vpop.f32.mrb[0].mxu0
        %v7076 = vadd.f32 %v6915, %v7075
        %v7077 = vpop.f32.mrb[0].mxu0
        %7078 = vmatprep.mubr.bf16.mxu0 %v6015
        %7079 = vmatmul.mubr.bf16.gmra.mrb[0].mxu0 %v6014
        %v7080 = vpop.f32.mrb[0].mxu0
        %v7081 = vadd.f32 %v6920, %v7080
        %v7082 = vpop.f32.mrb[0].mxu0
        %v7083 = vpop.f32.mrb[0].mxu0
        %v7084 = vadd.f32 %v6923, %v7083
        %v7085 = vpop.f32.mrb[0].mxu0
        %7086 = vdwg.mxu0
        %7087 = vmatprep.subr.bf16.mxu0 0
        %7088 = vmatpush1.bf16.msra.mxu0 %v6508
        %7089 = vmatprep.subr.bf16.mxu0 0
        %7090 = vmatpush1.bf16.msra.mxu0 %v6509
        %7091 = vmatprep.subr.bf16.mxu0 0
        %7092 = vmatpush1.bf16.msra.mxu0 %v6510
        %7093 = vmatprep.subr.bf16.mxu0 0
        %7094 = vmatpush1.bf16.msra.mxu0 %v6511
        %7095 = vmatprep.subr.bf16.mxu0 0
        %7096 = vmatpush1.bf16.msra.mxu0 %v6512
        %7097 = vmatprep.subr.bf16.mxu0 0
        %7098 = vmatpush1.bf16.msra.mxu0 %v6513
        %7099 = vmatprep.subr.bf16.mxu0 0
        %7100 = vmatpush1.bf16.msra.mxu0 %v6514
        %7101 = vmatprep.subr.bf16.mxu0 0
        %7102 = vmatpush1.bf16.msra.mxu0 %v6515
        %7103 = vmatprep.subr.bf16.mxu0 0
        %7104 = vmatpush1.bf16.msra.mxu0 %v6516
        %7105 = vmatprep.subr.bf16.mxu0 0
        %7106 = vmatpush1.bf16.msra.mxu0 %v6517
        %7107 = vmatprep.subr.bf16.mxu0 0
        %7108 = vmatpush1.bf16.msra.mxu0 %v6518
        %7109 = vmatprep.subr.bf16.mxu0 0
        %7110 = vmatpush1.bf16.msra.mxu0 %v6519
        %7111 = vmatprep.subr.bf16.mxu0 0
        %7112 = vmatpush1.bf16.msra.mxu0 %v6520
        %7113 = vmatprep.subr.bf16.mxu0 0
        %7114 = vmatpush1.bf16.msra.mxu0 %v6521
        %7115 = vmatprep.subr.bf16.mxu0 0
        %7116 = vmatpush1.bf16.msra.mxu0 %v6522
        %7117 = vmatprep.subr.bf16.mxu0 0
        %7118 = vmatpush1.bf16.msra.mxu0 %v6523
        %7119 = vmatprep.mubr.bf16.mxu0 %v5882
        %7120 = vmatmul.mubr.bf16.gmra.mrb[0].mxu0 %v5881
        %v7121 = vpop.f32.mrb[0].mxu0
        %v7122 = vadd.f32 %v6961, %v7121
        %v7123 = vpop.f32.mrb[0].mxu0
        %v7124 = vpop.f32.mrb[0].mxu0
        %v7125 = vadd.f32 %v6964, %v7124
        %v7126 = vpop.f32.mrb[0].mxu0
        %7127 = vmatprep.mubr.bf16.mxu0 %v5891
        %7128 = vmatmul.mubr.bf16.gmra.mrb[0].mxu0 %v5890
        %v7129 = vpop.f32.mrb[0].mxu0
        %v7130 = vadd.f32 %v6969, %v7129
        %v7131 = vpop.f32.mrb[0].mxu0
        %v7132 = vpop.f32.mrb[0].mxu0
        %v7133 = vadd.f32 %v6972, %v7132
        %v7134 = vpop.f32.mrb[0].mxu0
        %7135 = vmatprep.mubr.bf16.mxu0 %v5900
        %7136 = vmatmul.mubr.bf16.gmra.mrb[0].mxu0 %v5899
        %v7137 = vpop.f32.mrb[0].mxu0
        %v7138 = vadd.f32 %v6977, %v7137
        %v7139 = vpop.f32.mrb[0].mxu0
        %v7140 = vpop.f32.mrb[0].mxu0
        %v7141 = vadd.f32 %v6980, %v7140
        %v7142 = vpop.f32.mrb[0].mxu0
        %7143 = vmatprep.mubr.bf16.mxu0 %v5909
        %7144 = vmatmul.mubr.bf16.gmra.mrb[0].mxu0 %v5908
        %v7145 = vpop.f32.mrb[0].mxu0
        %v7146 = vadd.f32 %v6985, %v7145
        %v7147 = vpop.f32.mrb[0].mxu0
        %v7148 = vpop.f32.mrb[0].mxu0
        %v7149 = vadd.f32 %v6988, %v7148
        %v7150 = vpop.f32.mrb[0].mxu0
        %7151 = vmatprep.mubr.bf16.mxu0 %v5918
        %7152 = vmatmul.mubr.bf16.gmra.mrb[0].mxu0 %v5917
        %v7153 = vpop.f32.mrb[0].mxu0
        %v7154 = vadd.f32 %v6993, %v7153
        %v7155 = vpop.f32.mrb[0].mxu0
        %v7156 = vpop.f32.mrb[0].mxu0
        %v7157 = vadd.f32 %v6996, %v7156
        %v7158 = vpop.f32.mrb[0].mxu0
        %7159 = vmatprep.mubr.bf16.mxu0 %v5927
        %7160 = vmatmul.mubr.bf16.gmra.mrb[0].mxu0 %v5926
        %v7161 = vpop.f32.mrb[0].mxu0
        %v7162 = vadd.f32 %v7001, %v7161
        %v7163 = vpop.f32.mrb[0].mxu0
        %v7164 = vpop.f32.mrb[0].mxu0
        %v7165 = vadd.f32 %v7004, %v7164
        %v7166 = vpop.f32.mrb[0].mxu0
        %7167 = vmatprep.mubr.bf16.mxu0 %v5936
        %7168 = vmatmul.mubr.bf16.gmra.mrb[0].mxu0 %v5935
        %v7169 = vpop.f32.mrb[0].mxu0
        %v7170 = vadd.f32 %v7009, %v7169
        %v7171 = vpop.f32.mrb[0].mxu0
        %v7172 = vpop.f32.mrb[0].mxu0
        %v7173 = vadd.f32 %v7012, %v7172
        %v7174 = vpop.f32.mrb[0].mxu0
        %7175 = vmatprep.mubr.bf16.mxu0 %v5945
        %7176 = vmatmul.mubr.bf16.gmra.mrb[0].mxu0 %v5944
        %v7177 = vpop.f32.mrb[0].mxu0
        %v7178 = vadd.f32 %v7017, %v7177
        %v7179 = vpop.f32.mrb[0].mxu0
        %v7180 = vpop.f32.mrb[0].mxu0
        %v7181 = vadd.f32 %v7020, %v7180
        %v7182 = vpop.f32.mrb[0].mxu0
        %7183 = vmatprep.mubr.bf16.mxu0 %v5954
        %7184 = vmatmul.mubr.bf16.gmra.mrb[0].mxu0 %v5953
        %v7185 = vpop.f32.mrb[0].mxu0
        %v7186 = vadd.f32 %v7025, %v7185
        %v7187 = vpop.f32.mrb[0].mxu0
        %v7188 = vpop.f32.mrb[0].mxu0
        %v7189 = vadd.f32 %v7028, %v7188
        %v7190 = vpop.f32.mrb[0].mxu0
        %7191 = vmatprep.mubr.bf16.mxu0 %v5963
        %7192 = vmatmul.mubr.bf16.gmra.mrb[0].mxu0 %v5962
        %v7193 = vpop.f32.mrb[0].mxu0
        %v7194 = vadd.f32 %v7033, %v7193
        %v7195 = vpop.f32.mrb[0].mxu0
        %v7196 = vpop.f32.mrb[0].mxu0
        %v7197 = vadd.f32 %v7036, %v7196
        %v7198 = vpop.f32.mrb[0].mxu0
        %7199 = vmatprep.mubr.bf16.mxu0 %v5972
        %7200 = vmatmul.mubr.bf16.gmra.mrb[0].mxu0 %v5971
        %v7201 = vpop.f32.mrb[0].mxu0
        %v7202 = vadd.f32 %v7041, %v7201
        %v7203 = vpop.f32.mrb[0].mxu0
        %v7204 = vpop.f32.mrb[0].mxu0
        %v7205 = vadd.f32 %v7044, %v7204
        %v7206 = vpop.f32.mrb[0].mxu0
        %7207 = vmatprep.mubr.bf16.mxu0 %v5981
        %7208 = vmatmul.mubr.bf16.gmra.mrb[0].mxu0 %v5980
        %v7209 = vpop.f32.mrb[0].mxu0
        %v7210 = vadd.f32 %v7049, %v7209
        %v7211 = vpop.f32.mrb[0].mxu0
        %v7212 = vpop.f32.mrb[0].mxu0
        %v7213 = vadd.f32 %v7052, %v7212
        %v7214 = vpop.f32.mrb[0].mxu0
        %7215 = vmatprep.mubr.bf16.mxu0 %v5990
        %7216 = vmatmul.mubr.bf16.gmra.mrb[0].mxu0 %v5989
        %v7217 = vpop.f32.mrb[0].mxu0
        %v7218 = vadd.f32 %v7057, %v7217
        %v7219 = vpop.f32.mrb[0].mxu0
        %v7220 = vpop.f32.mrb[0].mxu0
        %v7221 = vadd.f32 %v7060, %v7220
        %v7222 = vpop.f32.mrb[0].mxu0
        %7223 = vmatprep.mubr.bf16.mxu0 %v5999
        %7224 = vmatmul.mubr.bf16.gmra.mrb[0].mxu0 %v5998
        %v7225 = vpop.f32.mrb[0].mxu0
        %v7226 = vadd.f32 %v7065, %v7225
        %v7227 = vpop.f32.mrb[0].mxu0
        %v7228 = vpop.f32.mrb[0].mxu0
        %v7229 = vadd.f32 %v7068, %v7228
        %v7230 = vpop.f32.mrb[0].mxu0
        %7231 = vmatprep.mubr.bf16.mxu0 %v6008
        %7232 = vmatmul.mubr.bf16.gmra.mrb[0].mxu0 %v6007
        %v7233 = vpop.f32.mrb[0].mxu0
        %v7234 = vadd.f32 %v7073, %v7233
        %v7235 = vpop.f32.mrb[0].mxu0
        %v7236 = vpop.f32.mrb[0].mxu0
        %v7237 = vadd.f32 %v7076, %v7236
        %v7238 = vpop.f32.mrb[0].mxu0
        %7239 = vmatprep.mubr.bf16.mxu0 %v6017
        %7240 = vmatmul.mubr.bf16.gmra.mrb[0].mxu0 %v6016
        %v7241 = vpop.f32.mrb[0].mxu0
        %v7242 = vadd.f32 %v7081, %v7241
        %v7243 = vpop.f32.mrb[0].mxu0
        %v7244 = vpop.f32.mrb[0].mxu0
        %v7245 = vadd.f32 %v7084, %v7244
        %v7246 = vpop.f32.mrb[0].mxu0
        %7247 = vdwg.mxu0
        %7248 = vmatprep.subr.bf16.mxu0 0
        %7249 = vmatpush1.bf16.msra.mxu0 %v6524
        %7250 = vmatprep.subr.bf16.mxu0 0
        %7251 = vmatpush1.bf16.msra.mxu0 %v6525
        %7252 = vmatprep.subr.bf16.mxu0 0
        %7253 = vmatpush1.bf16.msra.mxu0 %v6526
        %7254 = vmatprep.subr.bf16.mxu0 0
        %7255 = vmatpush1.bf16.msra.mxu0 %v6527
        %7256 = vmatprep.subr.bf16.mxu0 0
        %7257 = vmatpush1.bf16.msra.mxu0 %v6528
        %7258 = vmatprep.subr.bf16.mxu0 0
        %7259 = vmatpush1.bf16.msra.mxu0 %v6529
        %7260 = vmatprep.subr.bf16.mxu0 0
        %7261 = vmatpush1.bf16.msra.mxu0 %v6530
        %7262 = vmatprep.subr.bf16.mxu0 0
        %7263 = vmatpush1.bf16.msra.mxu0 %v6531
        %7264 = vmatprep.subr.bf16.mxu0 0
        %7265 = vmatpush1.bf16.msra.mxu0 0
        %7266 = vmatprep.subr.bf16.mxu0 0
        %7267 = vmatpush1.bf16.msra.mxu0 0
        %7268 = vmatprep.subr.bf16.mxu0 0
        %7269 = vmatpush1.bf16.msra.mxu0 0
        %7270 = vmatprep.subr.bf16.mxu0 0
        %7271 = vmatpush1.bf16.msra.mxu0 0
        %7272 = vmatprep.subr.bf16.mxu0 0
        %7273 = vmatpush1.bf16.msra.mxu0 0
        %7274 = vmatprep.subr.bf16.mxu0 0
        %7275 = vmatpush1.bf16.msra.mxu0 0
        %7276 = vmatprep.subr.bf16.mxu0 0
        %7277 = vmatpush1.bf16.msra.mxu0 0
        %7278 = vmatprep.subr.bf16.mxu0 0
        %7279 = vmatpush1.bf16.msra.mxu0 0
        %7280 = vmatprep.mubr.bf16.mxu0 0
        %7281 = vmatmul.mubr.bf16.gmra.mrb[0].mxu0 %v5883
        %v7282 = vpop.f32.mrb[0].mxu0
        %v7283 = vadd.f32 %v7122, %v7282
        %v7284 = vpop.f32.mrb[0].mxu0
        %v7285 = vpop.f32.mrb[0].mxu0
        %v7286 = vadd.f32 %v7125, %v7285
        %v7287 = vpop.f32.mrb[0].mxu0
        %7288 = vmatprep.mubr.bf16.mxu0 0
        %7289 = vmatmul.mubr.bf16.gmra.mrb[0].mxu0 %v5892
        %v7290 = vpop.f32.mrb[0].mxu0
        %v7291 = vadd.f32 %v7130, %v7290
        %v7292 = vpop.f32.mrb[0].mxu0
        %v7293 = vpop.f32.mrb[0].mxu0
        %v7294 = vadd.f32 %v7133, %v7293
        %v7295 = vpop.f32.mrb[0].mxu0
        %7296 = vmatprep.mubr.bf16.mxu0 0
        %7297 = vmatmul.mubr.bf16.gmra.mrb[0].mxu0 %v5901
        %v7298 = vpop.f32.mrb[0].mxu0
        %v7299 = vadd.f32 %v7138, %v7298
        %v7300 = vpop.f32.mrb[0].mxu0
        %v7301 = vpop.f32.mrb[0].mxu0
        %v7302 = vadd.f32 %v7141, %v7301
        %v7303 = vpop.f32.mrb[0].mxu0
        %7304 = vmatprep.mubr.bf16.mxu0 0
        %7305 = vmatmul.mubr.bf16.gmra.mrb[0].mxu0 %v5910
        %v7306 = vpop.f32.mrb[0].mxu0
        %v7307 = vadd.f32 %v7146, %v7306
        %v7308 = vpop.f32.mrb[0].mxu0
        %v7309 = vpop.f32.mrb[0].mxu0
        %v7310 = vadd.f32 %v7149, %v7309
        %v7311 = vpop.f32.mrb[0].mxu0
        %7312 = vmatprep.mubr.bf16.mxu0 0
        %7313 = vmatmul.mubr.bf16.gmra.mrb[0].mxu0 %v5919
        %v7314 = vpop.f32.mrb[0].mxu0
        %v7315 = vadd.f32 %v7154, %v7314
        %v7316 = vpop.f32.mrb[0].mxu0
        %v7317 = vpop.f32.mrb[0].mxu0
        %v7318 = vadd.f32 %v7157, %v7317
        %v7319 = vpop.f32.mrb[0].mxu0
        %7320 = vmatprep.mubr.bf16.mxu0 0
        %7321 = vmatmul.mubr.bf16.gmra.mrb[0].mxu0 %v5928
        %v7322 = vpop.f32.mrb[0].mxu0
        %v7323 = vadd.f32 %v7162, %v7322
        %v7324 = vpop.f32.mrb[0].mxu0
        %v7325 = vpop.f32.mrb[0].mxu0
        %v7326 = vadd.f32 %v7165, %v7325
        %v7327 = vpop.f32.mrb[0].mxu0
        %7328 = vmatprep.mubr.bf16.mxu0 0
        %7329 = vmatmul.mubr.bf16.gmra.mrb[0].mxu0 %v5937
        %v7330 = vpop.f32.mrb[0].mxu0
        %v7331 = vadd.f32 %v7170, %v7330
        %v7332 = vpop.f32.mrb[0].mxu0
        %v7333 = vpop.f32.mrb[0].mxu0
        %v7334 = vadd.f32 %v7173, %v7333
        %v7335 = vpop.f32.mrb[0].mxu0
        %7336 = vmatprep.mubr.bf16.mxu0 0
        %7337 = vmatmul.mubr.bf16.gmra.mrb[0].mxu0 %v5946
        %v7338 = vpop.f32.mrb[0].mxu0
        %v7339 = vadd.f32 %v7178, %v7338
        %v7340 = vpop.f32.mrb[0].mxu0
        %v7341 = vpop.f32.mrb[0].mxu0
        %v7342 = vadd.f32 %v7181, %v7341
        %v7343 = vpop.f32.mrb[0].mxu0
        %7344 = vmatprep.mubr.bf16.mxu0 0
        %7345 = vmatmul.mubr.bf16.gmra.mrb[0].mxu0 %v5955
        %v7346 = vpop.f32.mrb[0].mxu0
        %v7347 = vadd.f32 %v7186, %v7346
        %v7348 = vpop.f32.mrb[0].mxu0
        %v7349 = vpop.f32.mrb[0].mxu0
        %v7350 = vadd.f32 %v7189, %v7349
        %v7351 = vpop.f32.mrb[0].mxu0
        %7352 = vmatprep.mubr.bf16.mxu0 0
        %7353 = vmatmul.mubr.bf16.gmra.mrb[0].mxu0 %v5964
        %v7354 = vpop.f32.mrb[0].mxu0
        %v7355 = vadd.f32 %v7194, %v7354
        %v7356 = vpop.f32.mrb[0].mxu0
        %v7357 = vpop.f32.mrb[0].mxu0
        %v7358 = vadd.f32 %v7197, %v7357
        %v7359 = vpop.f32.mrb[0].mxu0
        %7360 = vmatprep.mubr.bf16.mxu0 0
        %7361 = vmatmul.mubr.bf16.gmra.mrb[0].mxu0 %v5973
        %v7362 = vpop.f32.mrb[0].mxu0
        %v7363 = vadd.f32 %v7202, %v7362
        %v7364 = vpop.f32.mrb[0].mxu0
        %v7365 = vpop.f32.mrb[0].mxu0
        %v7366 = vadd.f32 %v7205, %v7365
        %v7367 = vpop.f32.mrb[0].mxu0
        %7368 = vmatprep.mubr.bf16.mxu0 0
        %7369 = vmatmul.mubr.bf16.gmra.mrb[0].mxu0 %v5982
        %v7370 = vpop.f32.mrb[0].mxu0
        %v7371 = vadd.f32 %v7210, %v7370
        %v7372 = vpop.f32.mrb[0].mxu0
        %v7373 = vpop.f32.mrb[0].mxu0
        %v7374 = vadd.f32 %v7213, %v7373
        %v7375 = vpop.f32.mrb[0].mxu0
        %7376 = vmatprep.mubr.bf16.mxu0 0
        %7377 = vmatmul.mubr.bf16.gmra.mrb[0].mxu0 %v5991
        %v7378 = vpop.f32.mrb[0].mxu0
        %v7379 = vadd.f32 %v7218, %v7378
        %v7380 = vpop.f32.mrb[0].mxu0
        %v7381 = vpop.f32.mrb[0].mxu0
        %v7382 = vadd.f32 %v7221, %v7381
        %v7383 = vpop.f32.mrb[0].mxu0
        %7384 = vmatprep.mubr.bf16.mxu0 0
        %7385 = vmatmul.mubr.bf16.gmra.mrb[0].mxu0 %v6000
        %v7386 = vpop.f32.mrb[0].mxu0
        %v7387 = vadd.f32 %v7226, %v7386
        %v7388 = vpop.f32.mrb[0].mxu0
        %v7389 = vpop.f32.mrb[0].mxu0
        %v7390 = vadd.f32 %v7229, %v7389
        %v7391 = vpop.f32.mrb[0].mxu0
        %7392 = vmatprep.mubr.bf16.mxu0 0
        %7393 = vmatmul.mubr.bf16.gmra.mrb[0].mxu0 %v6009
        %v7394 = vpop.f32.mrb[0].mxu0
        %v7395 = vadd.f32 %v7234, %v7394
        %v7396 = vpop.f32.mrb[0].mxu0
        %v7397 = vpop.f32.mrb[0].mxu0
        %v7398 = vadd.f32 %v7237, %v7397
        %v7399 = vpop.f32.mrb[0].mxu0
        %7400 = vmatprep.mubr.bf16.mxu0 0
        %7401 = vmatmul.mubr.bf16.gmra.mrb[0].mxu0 %v6018
        %v7402 = vpop.f32.mrb[0].mxu0
        %v7403 = vadd.f32 %v7242, %v7402
        %v7404 = vpop.f32.mrb[0].mxu0
        %v7405 = vpop.f32.mrb[0].mxu0
        %v7406 = vadd.f32 %v7245, %v7405
        %v7407 = vpop.f32.mrb[0].mxu0
        %7408 = vdwg.mxu0
        %v7409 = vmax.f32 %v7283, 0.0
        %v7410 = vmax.f32 %v7286, 0.0
        %v7411 = vmax.f32 %v7291, 0.0
        %v7412 = vmax.f32 %v7294, 0.0
        %v7413 = vmax.f32 %v7299, 0.0
        %v7414 = vmax.f32 %v7302, 0.0
        %v7415 = vmax.f32 %v7307, 0.0
        %v7416 = vmax.f32 %v7310, 0.0
        %v7417 = vmax.f32 %v7315, 0.0
        %v7418 = vmax.f32 %v7318, 0.0
        %v7419 = vmax.f32 %v7323, 0.0
        %v7420 = vmax.f32 %v7326, 0.0
        %v7421 = vmax.f32 %v7331, 0.0
        %v7422 = vmax.f32 %v7334, 0.0
        %v7423 = vmax.f32 %v7339, 0.0
        %v7424 = vmax.f32 %v7342, 0.0
        %v7425 = vmax.f32 %v7347, 0.0
        %v7426 = vmax.f32 %v7350, 0.0
        %v7427 = vmax.f32 %v7355, 0.0
        %v7428 = vmax.f32 %v7358, 0.0
        %v7429 = vmax.f32 %v7363, 0.0
        %v7430 = vmax.f32 %v7366, 0.0
        %v7431 = vmax.f32 %v7371, 0.0
        %v7432 = vmax.f32 %v7374, 0.0
        %v7433 = vmax.f32 %v7379, 0.0
        %v7434 = vmax.f32 %v7382, 0.0
        %v7435 = vmax.f32 %v7387, 0.0
        %v7436 = vmax.f32 %v7390, 0.0
        %v7437 = vmax.f32 %v7395, 0.0
        %v7438 = vmax.f32 %v7398, 0.0
        %v7439 = vmax.f32 %v7403, 0.0
        %v7440 = vmax.f32 %v7406, 0.0
        %v7441 = vpack.c.bf16 %v7410, %v7409
        %v7442 = vpack.c.bf16 %v7412, %v7411
        %v7443 = vpack.c.bf16 %v7414, %v7413
        %v7444 = vpack.c.bf16 %v7416, %v7415
        %v7445 = vpack.c.bf16 %v7418, %v7417
        %v7446 = vpack.c.bf16 %v7420, %v7419
        %v7447 = vpack.c.bf16 %v7422, %v7421
        %v7448 = vpack.c.bf16 %v7424, %v7423
        %v7449 = vpack.c.bf16 %v7426, %v7425
        %v7450 = vpack.c.bf16 %v7428, %v7427
        %v7451 = vpack.c.bf16 %v7430, %v7429
        %v7452 = vpack.c.bf16 %v7432, %v7431
        %v7453 = vpack.c.bf16 %v7434, %v7433
        %v7454 = vpack.c.bf16 %v7436, %v7435
        %v7455 = vpack.c.bf16 %v7438, %v7437
        %v7456 = vpack.c.bf16 %v7440, %v7439
        %v7473 = vrot.slane %v7441, 4
        %v7474 = vrot.slane %v7442, 4
        %v7475 = vrot.slane %v7443, 4
        %v7476 = vrot.slane %v7444, 4
        %v7477 = vrot.slane %v7445, 4
        %v7478 = vrot.slane %v7446, 4
        %v7479 = vrot.slane %v7447, 4
        %v7480 = vrot.slane %v7448, 4
        %v7481 = vrot.slane %v7449, 4
        %v7482 = vrot.slane %v7450, 4
        %v7483 = vrot.slane %v7451, 4
        %v7484 = vrot.slane %v7452, 4
        %v7485 = vrot.slane %v7453, 4
        %v7486 = vrot.slane %v7454, 4
        %v7487 = vrot.slane %v7455, 4
        %v7488 = vrot.slane %v7456, 4
        %7505 = vst.msk [vmem:[%s621] sm:$0xf0] %vm4065, %v7473
        %7506 = vst.msk [vmem:[%s621 + $0x8] sm:$0xf] %vm4067, %v7473
        %7507 = vst.msk [vmem:[%s621 + $0x10] sm:$0xf0] %vm4065, %v7474
        %7508 = vst.msk [vmem:[%s621 + $0x18] sm:$0xf] %vm4067, %v7474
        %7509 = vst.msk [vmem:[%s621 + $0x20] sm:$0xf0] %vm4065, %v7475
        %7510 = vst.msk [vmem:[%s621 + $0x28] sm:$0xf] %vm4067, %v7475
        %7511 = vst.msk [vmem:[%s621 + $0x30] sm:$0xf0] %vm4065, %v7476
        %7512 = vst.msk [vmem:[%s621 + $0x38] sm:$0xf] %vm4067, %v7476
        %7513 = vst.msk [vmem:[%s621 + $0x40] sm:$0xf0] %vm4065, %v7477
        %7514 = vst.msk [vmem:[%s621 + $0x48] sm:$0xf] %vm4067, %v7477
        %7515 = vst.msk [vmem:[%s621 + $0x50] sm:$0xf0] %vm4065, %v7478
        %7516 = vst.msk [vmem:[%s621 + $0x58] sm:$0xf] %vm4067, %v7478
        %7517 = vst.msk [vmem:[%s621 + $0x60] sm:$0xf0] %vm4065, %v7479
        %7518 = vst.msk [vmem:[%s621 + $0x68] sm:$0xf] %vm4067, %v7479
        %7519 = vst.msk [vmem:[%s621 + $0x70] sm:$0xf0] %vm4065, %v7480
        %7520 = vst.msk [vmem:[%s621 + $0x78] sm:$0xf] %vm4067, %v7480
        %7521 = vst.msk [vmem:[%s621 + $0x80] sm:$0xf0] %vm4065, %v7481
        %7522 = vst.msk [vmem:[%s621 + $0x88] sm:$0xf] %vm4067, %v7481
        %7523 = vst.msk [vmem:[%s621 + $0x90] sm:$0xf0] %vm4065, %v7482
        %7524 = vst.msk [vmem:[%s621 + $0x98] sm:$0xf] %vm4067, %v7482
        %7525 = vst.msk [vmem:[%s621 + $0xa0] sm:$0xf0] %vm4065, %v7483
        %7526 = vst.msk [vmem:[%s621 + $0xa8] sm:$0xf] %vm4067, %v7483
        %7527 = vst.msk [vmem:[%s621 + $0xb0] sm:$0xf0] %vm4065, %v7484
        %7528 = vst.msk [vmem:[%s621 + $0xb8] sm:$0xf] %vm4067, %v7484
        %7529 = vst.msk [vmem:[%s621 + $0xc0] sm:$0xf0] %vm4065, %v7485
        %7530 = vst.msk [vmem:[%s621 + $0xc8] sm:$0xf] %vm4067, %v7485
        %7531 = vst.msk [vmem:[%s621 + $0xd0] sm:$0xf0] %vm4065, %v7486
        %7532 = vst.msk [vmem:[%s621 + $0xd8] sm:$0xf] %vm4067, %v7486
        %7533 = vst.msk [vmem:[%s621 + $0xe0] sm:$0xf0] %vm4065, %v7487
        %7534 = vst.msk [vmem:[%s621 + $0xe8] sm:$0xf] %vm4067, %v7487
        %7535 = vst.msk [vmem:[%s621 + $0xf0] sm:$0xf0] %vm4065, %v7488
        %7536 = vst.msk [vmem:[%s621 + $0xf8] sm:$0xf] %vm4067, %v7488
        %v7537 = vld [vmem:[#allocation2] sm:$0xf8]
        %v7538 = vld [vmem:[#allocation2 + $0x8] sm:$0x1f]
        %v7539 = vld [vmem:[#allocation2 + $0x10] sm:$0xf8]
        %v7540 = vld [vmem:[#allocation2 + $0x18] sm:$0x1f]
        %v7541 = vld [vmem:[#allocation2 + $0x20] sm:$0xf8]
        %v7542 = vld [vmem:[#allocation2 + $0x28] sm:$0x1f]
        %v7543 = vld [vmem:[#allocation2 + $0x30] sm:$0xf8]
        %v7544 = vld [vmem:[#allocation2 + $0x38] sm:$0x1f]
        %v7545 = vld [vmem:[#allocation2 + $0x40] sm:$0xf8]
        %v7546 = vld [vmem:[#allocation2 + $0x48] sm:$0x1f]
        %v7547 = vld [vmem:[#allocation2 + $0x50] sm:$0xf8]
        %v7548 = vld [vmem:[#allocation2 + $0x58] sm:$0x1f]
        %v7549 = vld [vmem:[#allocation2 + $0x60] sm:$0xf8]
        %v7550 = vld [vmem:[#allocation2 + $0x68] sm:$0x1f]
        %v7551 = vld [vmem:[#allocation2 + $0x70] sm:$0xf8]
        %v7552 = vld [vmem:[#allocation2 + $0x78] sm:$0x1f]
        %v7553 = vld [vmem:[#allocation2 + $0x80] sm:$0xf8]
        %v7554 = vld [vmem:[#allocation2 + $0x88] sm:$0x1f]
        %v7555 = vld [vmem:[#allocation2 + $0x90] sm:$0xf8]
        %v7556 = vld [vmem:[#allocation2 + $0x98] sm:$0x1f]
        %v7557 = vld [vmem:[#allocation2 + $0xa0] sm:$0xf8]
        %v7558 = vld [vmem:[#allocation2 + $0xa8] sm:$0x1f]
        %v7559 = vld [vmem:[#allocation2 + $0xb0] sm:$0xf8]
        %v7560 = vld [vmem:[#allocation2 + $0xb8] sm:$0x1f]
        %v7561 = vld [vmem:[#allocation2 + $0xc0] sm:$0xf8]
        %v7562 = vld [vmem:[#allocation2 + $0xc8] sm:$0x1f]
        %v7563 = vld [vmem:[#allocation2 + $0xd0] sm:$0xf8]
        %v7564 = vld [vmem:[#allocation2 + $0xd8] sm:$0x1f]
        %v7565 = vld [vmem:[#allocation2 + $0xe0] sm:$0xf8]
        %v7566 = vld [vmem:[#allocation2 + $0xe8] sm:$0x1f]
        %v7567 = vld [vmem:[#allocation2 + $0xf0] sm:$0xf8]
        %v7568 = vld [vmem:[#allocation2 + $0xf8] sm:$0x1f]
        %v7570 = vshrl.u32 %v7537, 16
        %v7572 = vrot.slane %v7570, 3
        %v7573 = vshll.u32 %v7537, 16
        %v7575 = vrot.slane %v7573, 4
        %v7576 = vor.u32 %v7572, %v7575
        %v7578 = vshrl.u32 %v7538, 16
        %v7580 = vrot.slane %v7578, 3
        %v7581 = vshll.u32 %v7538, 16
        %v7583 = vrot.slane %v7581, 4
        %v7584 = vor.u32 %v7580, %v7583
        %v7585 = vsel %vm688, %v7576, %v7584
        %v7587 = vshrl.u32 %v7539, 16
        %v7589 = vrot.slane %v7587, 3
        %v7590 = vshll.u32 %v7539, 16
        %v7592 = vrot.slane %v7590, 4
        %v7593 = vor.u32 %v7589, %v7592
        %v7595 = vshrl.u32 %v7540, 16
        %v7597 = vrot.slane %v7595, 3
        %v7598 = vshll.u32 %v7540, 16
        %v7600 = vrot.slane %v7598, 4
        %v7601 = vor.u32 %v7597, %v7600
        %v7602 = vsel %vm688, %v7593, %v7601
        %v7604 = vshrl.u32 %v7541, 16
        %v7606 = vrot.slane %v7604, 3
        %v7607 = vshll.u32 %v7541, 16
        %v7609 = vrot.slane %v7607, 4
        %v7610 = vor.u32 %v7606, %v7609
        %v7612 = vshrl.u32 %v7542, 16
        %v7614 = vrot.slane %v7612, 3
        %v7615 = vshll.u32 %v7542, 16
        %v7617 = vrot.slane %v7615, 4
        %v7618 = vor.u32 %v7614, %v7617
        %v7619 = vsel %vm688, %v7610, %v7618
        %v7621 = vshrl.u32 %v7543, 16
        %v7623 = vrot.slane %v7621, 3
        %v7624 = vshll.u32 %v7543, 16
        %v7626 = vrot.slane %v7624, 4
        %v7627 = vor.u32 %v7623, %v7626
        %v7629 = vshrl.u32 %v7544, 16
        %v7631 = vrot.slane %v7629, 3
        %v7632 = vshll.u32 %v7544, 16
        %v7634 = vrot.slane %v7632, 4
        %v7635 = vor.u32 %v7631, %v7634
        %v7636 = vsel %vm688, %v7627, %v7635
        %v7638 = vshrl.u32 %v7545, 16
        %v7640 = vrot.slane %v7638, 3
        %v7641 = vshll.u32 %v7545, 16
        %v7643 = vrot.slane %v7641, 4
        %v7644 = vor.u32 %v7640, %v7643
        %v7646 = vshrl.u32 %v7546, 16
        %v7648 = vrot.slane %v7646, 3
        %v7649 = vshll.u32 %v7546, 16
        %v7651 = vrot.slane %v7649, 4
        %v7652 = vor.u32 %v7648, %v7651
        %v7653 = vsel %vm688, %v7644, %v7652
        %v7655 = vshrl.u32 %v7547, 16
        %v7657 = vrot.slane %v7655, 3
        %v7658 = vshll.u32 %v7547, 16
        %v7660 = vrot.slane %v7658, 4
        %v7661 = vor.u32 %v7657, %v7660
        %v7663 = vshrl.u32 %v7548, 16
        %v7665 = vrot.slane %v7663, 3
        %v7666 = vshll.u32 %v7548, 16
        %v7668 = vrot.slane %v7666, 4
        %v7669 = vor.u32 %v7665, %v7668
        %v7670 = vsel %vm688, %v7661, %v7669
        %v7672 = vshrl.u32 %v7549, 16
        %v7674 = vrot.slane %v7672, 3
        %v7675 = vshll.u32 %v7549, 16
        %v7677 = vrot.slane %v7675, 4
        %v7678 = vor.u32 %v7674, %v7677
        %v7680 = vshrl.u32 %v7550, 16
        %v7682 = vrot.slane %v7680, 3
        %v7683 = vshll.u32 %v7550, 16
        %v7685 = vrot.slane %v7683, 4
        %v7686 = vor.u32 %v7682, %v7685
        %v7687 = vsel %vm688, %v7678, %v7686
        %v7689 = vshrl.u32 %v7551, 16
        %v7691 = vrot.slane %v7689, 3
        %v7692 = vshll.u32 %v7551, 16
        %v7694 = vrot.slane %v7692, 4
        %v7695 = vor.u32 %v7691, %v7694
        %v7697 = vshrl.u32 %v7552, 16
        %v7699 = vrot.slane %v7697, 3
        %v7700 = vshll.u32 %v7552, 16
        %v7702 = vrot.slane %v7700, 4
        %v7703 = vor.u32 %v7699, %v7702
        %v7704 = vsel %vm688, %v7695, %v7703
        %v7706 = vshrl.u32 %v7553, 16
        %v7708 = vrot.slane %v7706, 3
        %v7709 = vshll.u32 %v7553, 16
        %v7711 = vrot.slane %v7709, 4
        %v7712 = vor.u32 %v7708, %v7711
        %v7714 = vshrl.u32 %v7554, 16
        %v7716 = vrot.slane %v7714, 3
        %v7717 = vshll.u32 %v7554, 16
        %v7719 = vrot.slane %v7717, 4
        %v7720 = vor.u32 %v7716, %v7719
        %v7721 = vsel %vm688, %v7712, %v7720
        %v7723 = vshrl.u32 %v7555, 16
        %v7725 = vrot.slane %v7723, 3
        %v7726 = vshll.u32 %v7555, 16
        %v7728 = vrot.slane %v7726, 4
        %v7729 = vor.u32 %v7725, %v7728
        %v7731 = vshrl.u32 %v7556, 16
        %v7733 = vrot.slane %v7731, 3
        %v7734 = vshll.u32 %v7556, 16
        %v7736 = vrot.slane %v7734, 4
        %v7737 = vor.u32 %v7733, %v7736
        %v7738 = vsel %vm688, %v7729, %v7737
        %v7740 = vshrl.u32 %v7557, 16
        %v7742 = vrot.slane %v7740, 3
        %v7743 = vshll.u32 %v7557, 16
        %v7745 = vrot.slane %v7743, 4
        %v7746 = vor.u32 %v7742, %v7745
        %v7748 = vshrl.u32 %v7558, 16
        %v7750 = vrot.slane %v7748, 3
        %v7751 = vshll.u32 %v7558, 16
        %v7753 = vrot.slane %v7751, 4
        %v7754 = vor.u32 %v7750, %v7753
        %v7755 = vsel %vm688, %v7746, %v7754
        %v7757 = vshrl.u32 %v7559, 16
        %v7759 = vrot.slane %v7757, 3
        %v7760 = vshll.u32 %v7559, 16
        %v7762 = vrot.slane %v7760, 4
        %v7763 = vor.u32 %v7759, %v7762
        %v7765 = vshrl.u32 %v7560, 16
        %v7767 = vrot.slane %v7765, 3
        %v7768 = vshll.u32 %v7560, 16
        %v7770 = vrot.slane %v7768, 4
        %v7771 = vor.u32 %v7767, %v7770
        %v7772 = vsel %vm688, %v7763, %v7771
        %v7774 = vshrl.u32 %v7561, 16
        %v7776 = vrot.slane %v7774, 3
        %v7777 = vshll.u32 %v7561, 16
        %v7779 = vrot.slane %v7777, 4
        %v7780 = vor.u32 %v7776, %v7779
        %v7782 = vshrl.u32 %v7562, 16
        %v7784 = vrot.slane %v7782, 3
        %v7785 = vshll.u32 %v7562, 16
        %v7787 = vrot.slane %v7785, 4
        %v7788 = vor.u32 %v7784, %v7787
        %v7789 = vsel %vm688, %v7780, %v7788
        %v7791 = vshrl.u32 %v7563, 16
        %v7793 = vrot.slane %v7791, 3
        %v7794 = vshll.u32 %v7563, 16
        %v7796 = vrot.slane %v7794, 4
        %v7797 = vor.u32 %v7793, %v7796
        %v7799 = vshrl.u32 %v7564, 16
        %v7801 = vrot.slane %v7799, 3
        %v7802 = vshll.u32 %v7564, 16
        %v7804 = vrot.slane %v7802, 4
        %v7805 = vor.u32 %v7801, %v7804
        %v7806 = vsel %vm688, %v7797, %v7805
        %v7808 = vshrl.u32 %v7565, 16
        %v7810 = vrot.slane %v7808, 3
        %v7811 = vshll.u32 %v7565, 16
        %v7813 = vrot.slane %v7811, 4
        %v7814 = vor.u32 %v7810, %v7813
        %v7816 = vshrl.u32 %v7566, 16
        %v7818 = vrot.slane %v7816, 3
        %v7819 = vshll.u32 %v7566, 16
        %v7821 = vrot.slane %v7819, 4
        %v7822 = vor.u32 %v7818, %v7821
        %v7823 = vsel %vm688, %v7814, %v7822
        %v7825 = vshrl.u32 %v7567, 16
        %v7827 = vrot.slane %v7825, 3
        %v7828 = vshll.u32 %v7567, 16
        %v7830 = vrot.slane %v7828, 4
        %v7831 = vor.u32 %v7827, %v7830
        %v7833 = vshrl.u32 %v7568, 16
        %v7835 = vrot.slane %v7833, 3
        %v7836 = vshll.u32 %v7568, 16
        %v7838 = vrot.slane %v7836, 4
        %v7839 = vor.u32 %v7835, %v7838
        %v7840 = vsel %vm688, %v7831, %v7839
        %7857 = vst.msk [vmem:[#allocation3] sm:$0xff] %vm977, %v7585
        %7858 = vst.msk [vmem:[#allocation3 + $0x48] sm:$0xff] %vm977, %v7602
        %7859 = vst.msk [vmem:[#allocation3 + $0x90] sm:$0xff] %vm977, %v7619
        %7860 = vst.msk [vmem:[#allocation3 + $0xd8] sm:$0xff] %vm977, %v7636
        %7861 = vst.msk [vmem:[#allocation3 + $0x120] sm:$0xff] %vm977, %v7653
        %7862 = vst.msk [vmem:[#allocation3 + $0x168] sm:$0xff] %vm977, %v7670
        %7863 = vst.msk [vmem:[#allocation3 + $0x1b0] sm:$0xff] %vm977, %v7687
        %7864 = vst.msk [vmem:[#allocation3 + $0x1f8] sm:$0xff] %vm977, %v7704
        %7865 = vst.msk [vmem:[#allocation3 + $0x240] sm:$0xff] %vm977, %v7721
        %7866 = vst.msk [vmem:[#allocation3 + $0x288] sm:$0xff] %vm977, %v7738
        %7867 = vst.msk [vmem:[#allocation3 + $0x2d0] sm:$0xff] %vm977, %v7755
        %7868 = vst.msk [vmem:[#allocation3 + $0x318] sm:$0xff] %vm977, %v7772
        %7869 = vst.msk [vmem:[#allocation3 + $0x360] sm:$0xff] %vm977, %v7789
        %7870 = vst.msk [vmem:[#allocation3 + $0x3a8] sm:$0xff] %vm977, %v7806
        %7871 = vst.msk [vmem:[#allocation3 + $0x3f0] sm:$0xff] %vm977, %v7823
        %7872 = vst.msk [vmem:[#allocation3 + $0x438] sm:$0xff] %vm977, %v7840
        %v7905 = vrot.slane %v7537, 4
        %v7906 = vrot.slane %v7538, 4
        %v7907 = vsel %vm1026, %v7905, %v7906
        %v7908 = vrot.slane %v7539, 4
        %v7909 = vrot.slane %v7540, 4
        %v7910 = vsel %vm1026, %v7908, %v7909
        %v7911 = vrot.slane %v7541, 4
        %v7912 = vrot.slane %v7542, 4
        %v7913 = vsel %vm1026, %v7911, %v7912
        %v7914 = vrot.slane %v7543, 4
        %v7915 = vrot.slane %v7544, 4
        %v7916 = vsel %vm1026, %v7914, %v7915
        %v7917 = vrot.slane %v7545, 4
        %v7918 = vrot.slane %v7546, 4
        %v7919 = vsel %vm1026, %v7917, %v7918
        %v7920 = vrot.slane %v7547, 4
        %v7921 = vrot.slane %v7548, 4
        %v7922 = vsel %vm1026, %v7920, %v7921
        %v7923 = vrot.slane %v7549, 4
        %v7924 = vrot.slane %v7550, 4
        %v7925 = vsel %vm1026, %v7923, %v7924
        %v7926 = vrot.slane %v7551, 4
        %v7927 = vrot.slane %v7552, 4
        %v7928 = vsel %vm1026, %v7926, %v7927
        %v7929 = vrot.slane %v7553, 4
        %v7930 = vrot.slane %v7554, 4
        %v7931 = vsel %vm1026, %v7929, %v7930
        %v7932 = vrot.slane %v7555, 4
        %v7933 = vrot.slane %v7556, 4
        %v7934 = vsel %vm1026, %v7932, %v7933
        %v7935 = vrot.slane %v7557, 4
        %v7936 = vrot.slane %v7558, 4
        %v7937 = vsel %vm1026, %v7935, %v7936
        %v7938 = vrot.slane %v7559, 4
        %v7939 = vrot.slane %v7560, 4
        %v7940 = vsel %vm1026, %v7938, %v7939
        %v7941 = vrot.slane %v7561, 4
        %v7942 = vrot.slane %v7562, 4
        %v7943 = vsel %vm1026, %v7941, %v7942
        %v7944 = vrot.slane %v7563, 4
        %v7945 = vrot.slane %v7564, 4
        %v7946 = vsel %vm1026, %v7944, %v7945
        %v7947 = vrot.slane %v7565, 4
        %v7948 = vrot.slane %v7566, 4
        %v7949 = vsel %vm1026, %v7947, %v7948
        %v7950 = vrot.slane %v7567, 4
        %v7951 = vrot.slane %v7568, 4
        %v7952 = vsel %vm1026, %v7950, %v7951
        %7969 = vst.msk [vmem:[#allocation3 + $0x8] sm:$0xff] %vm977, %v7907
        %7970 = vst.msk [vmem:[#allocation3 + $0x50] sm:$0xff] %vm977, %v7910
        %7971 = vst.msk [vmem:[#allocation3 + $0x98] sm:$0xff] %vm977, %v7913
        %7972 = vst.msk [vmem:[#allocation3 + $0xe0] sm:$0xff] %vm977, %v7916
        %7973 = vst.msk [vmem:[#allocation3 + $0x128] sm:$0xff] %vm977, %v7919
        %7974 = vst.msk [vmem:[#allocation3 + $0x170] sm:$0xff] %vm977, %v7922
        %7975 = vst.msk [vmem:[#allocation3 + $0x1b8] sm:$0xff] %vm977, %v7925
        %7976 = vst.msk [vmem:[#allocation3 + $0x200] sm:$0xff] %vm977, %v7928
        %7977 = vst.msk [vmem:[#allocation3 + $0x248] sm:$0xff] %vm977, %v7931
        %7978 = vst.msk [vmem:[#allocation3 + $0x290] sm:$0xff] %vm977, %v7934
        %7979 = vst.msk [vmem:[#allocation3 + $0x2d8] sm:$0xff] %vm977, %v7937
        %7980 = vst.msk [vmem:[#allocation3 + $0x320] sm:$0xff] %vm977, %v7940
        %7981 = vst.msk [vmem:[#allocation3 + $0x368] sm:$0xff] %vm977, %v7943
        %7982 = vst.msk [vmem:[#allocation3 + $0x3b0] sm:$0xff] %vm977, %v7946
        %7983 = vst.msk [vmem:[#allocation3 + $0x3f8] sm:$0xff] %vm977, %v7949
        %7984 = vst.msk [vmem:[#allocation3 + $0x440] sm:$0xff] %vm977, %v7952
        %v7985 = vrot.slane %v7570, 4
        %v7986 = vrot.slane %v7573, 5
        %v7987 = vor.u32 %v7985, %v7986
        %v7988 = vrot.slane %v7578, 4
        %v7989 = vrot.slane %v7581, 5
        %v7990 = vor.u32 %v7988, %v7989
        %v7991 = vsel %vm1107, %v7987, %v7990
        %v7992 = vrot.slane %v7587, 4
        %v7993 = vrot.slane %v7590, 5
        %v7994 = vor.u32 %v7992, %v7993
        %v7995 = vrot.slane %v7595, 4
        %v7996 = vrot.slane %v7598, 5
        %v7997 = vor.u32 %v7995, %v7996
        %v7998 = vsel %vm1107, %v7994, %v7997
        %v7999 = vrot.slane %v7604, 4
        %v8000 = vrot.slane %v7607, 5
        %v8001 = vor.u32 %v7999, %v8000
        %v8002 = vrot.slane %v7612, 4
        %v8003 = vrot.slane %v7615, 5
        %v8004 = vor.u32 %v8002, %v8003
        %v8005 = vsel %vm1107, %v8001, %v8004
        %v8006 = vrot.slane %v7621, 4
        %v8007 = vrot.slane %v7624, 5
        %v8008 = vor.u32 %v8006, %v8007
        %v8009 = vrot.slane %v7629, 4
        %v8010 = vrot.slane %v7632, 5
        %v8011 = vor.u32 %v8009, %v8010
        %v8012 = vsel %vm1107, %v8008, %v8011
        %v8013 = vrot.slane %v7638, 4
        %v8014 = vrot.slane %v7641, 5
        %v8015 = vor.u32 %v8013, %v8014
        %v8016 = vrot.slane %v7646, 4
        %v8017 = vrot.slane %v7649, 5
        %v8018 = vor.u32 %v8016, %v8017
        %v8019 = vsel %vm1107, %v8015, %v8018
        %v8020 = vrot.slane %v7655, 4
        %v8021 = vrot.slane %v7658, 5
        %v8022 = vor.u32 %v8020, %v8021
        %v8023 = vrot.slane %v7663, 4
        %v8024 = vrot.slane %v7666, 5
        %v8025 = vor.u32 %v8023, %v8024
        %v8026 = vsel %vm1107, %v8022, %v8025
        %v8027 = vrot.slane %v7672, 4
        %v8028 = vrot.slane %v7675, 5
        %v8029 = vor.u32 %v8027, %v8028
        %v8030 = vrot.slane %v7680, 4
        %v8031 = vrot.slane %v7683, 5
        %v8032 = vor.u32 %v8030, %v8031
        %v8033 = vsel %vm1107, %v8029, %v8032
        %v8034 = vrot.slane %v7689, 4
        %v8035 = vrot.slane %v7692, 5
        %v8036 = vor.u32 %v8034, %v8035
        %v8037 = vrot.slane %v7697, 4
        %v8038 = vrot.slane %v7700, 5
        %v8039 = vor.u32 %v8037, %v8038
        %v8040 = vsel %vm1107, %v8036, %v8039
        %v8041 = vrot.slane %v7706, 4
        %v8042 = vrot.slane %v7709, 5
        %v8043 = vor.u32 %v8041, %v8042
        %v8044 = vrot.slane %v7714, 4
        %v8045 = vrot.slane %v7717, 5
        %v8046 = vor.u32 %v8044, %v8045
        %v8047 = vsel %vm1107, %v8043, %v8046
        %v8048 = vrot.slane %v7723, 4
        %v8049 = vrot.slane %v7726, 5
        %v8050 = vor.u32 %v8048, %v8049
        %v8051 = vrot.slane %v7731, 4
        %v8052 = vrot.slane %v7734, 5
        %v8053 = vor.u32 %v8051, %v8052
        %v8054 = vsel %vm1107, %v8050, %v8053
        %v8055 = vrot.slane %v7740, 4
        %v8056 = vrot.slane %v7743, 5
        %v8057 = vor.u32 %v8055, %v8056
        %v8058 = vrot.slane %v7748, 4
        %v8059 = vrot.slane %v7751, 5
        %v8060 = vor.u32 %v8058, %v8059
        %v8061 = vsel %vm1107, %v8057, %v8060
        %v8062 = vrot.slane %v7757, 4
        %v8063 = vrot.slane %v7760, 5
        %v8064 = vor.u32 %v8062, %v8063
        %v8065 = vrot.slane %v7765, 4
        %v8066 = vrot.slane %v7768, 5
        %v8067 = vor.u32 %v8065, %v8066
        %v8068 = vsel %vm1107, %v8064, %v8067
        %v8069 = vrot.slane %v7774, 4
        %v8070 = vrot.slane %v7777, 5
        %v8071 = vor.u32 %v8069, %v8070
        %v8072 = vrot.slane %v7782, 4
        %v8073 = vrot.slane %v7785, 5
        %v8074 = vor.u32 %v8072, %v8073
        %v8075 = vsel %vm1107, %v8071, %v8074
        %v8076 = vrot.slane %v7791, 4
        %v8077 = vrot.slane %v7794, 5
        %v8078 = vor.u32 %v8076, %v8077
        %v8079 = vrot.slane %v7799, 4
        %v8080 = vrot.slane %v7802, 5
        %v8081 = vor.u32 %v8079, %v8080
        %v8082 = vsel %vm1107, %v8078, %v8081
        %v8083 = vrot.slane %v7808, 4
        %v8084 = vrot.slane %v7811, 5
        %v8085 = vor.u32 %v8083, %v8084
        %v8086 = vrot.slane %v7816, 4
        %v8087 = vrot.slane %v7819, 5
        %v8088 = vor.u32 %v8086, %v8087
        %v8089 = vsel %vm1107, %v8085, %v8088
        %v8090 = vrot.slane %v7825, 4
        %v8091 = vrot.slane %v7828, 5
        %v8092 = vor.u32 %v8090, %v8091
        %v8093 = vrot.slane %v7833, 4
        %v8094 = vrot.slane %v7836, 5
        %v8095 = vor.u32 %v8093, %v8094
        %v8096 = vsel %vm1107, %v8092, %v8095
        %8113 = vst.msk [vmem:[#allocation3 + $0x10] sm:$0xff] %vm977, %v7991
        %8114 = vst.msk [vmem:[#allocation3 + $0x58] sm:$0xff] %vm977, %v7998
        %8115 = vst.msk [vmem:[#allocation3 + $0xa0] sm:$0xff] %vm977, %v8005
        %8116 = vst.msk [vmem:[#allocation3 + $0xe8] sm:$0xff] %vm977, %v8012
        %8117 = vst.msk [vmem:[#allocation3 + $0x130] sm:$0xff] %vm977, %v8019
        %8118 = vst.msk [vmem:[#allocation3 + $0x178] sm:$0xff] %vm977, %v8026
        %8119 = vst.msk [vmem:[#allocation3 + $0x1c0] sm:$0xff] %vm977, %v8033
        %8120 = vst.msk [vmem:[#allocation3 + $0x208] sm:$0xff] %vm977, %v8040
        %8121 = vst.msk [vmem:[#allocation3 + $0x250] sm:$0xff] %vm977, %v8047
        %8122 = vst.msk [vmem:[#allocation3 + $0x298] sm:$0xff] %vm977, %v8054
        %8123 = vst.msk [vmem:[#allocation3 + $0x2e0] sm:$0xff] %vm977, %v8061
        %8124 = vst.msk [vmem:[#allocation3 + $0x328] sm:$0xff] %vm977, %v8068
        %8125 = vst.msk [vmem:[#allocation3 + $0x370] sm:$0xff] %vm977, %v8075
        %8126 = vst.msk [vmem:[#allocation3 + $0x3b8] sm:$0xff] %vm977, %v8082
        %8127 = vst.msk [vmem:[#allocation3 + $0x400] sm:$0xff] %vm977, %v8089
        %8128 = vst.msk [vmem:[#allocation3 + $0x448] sm:$0xff] %vm977, %v8096
        %v8129 = vld [vmem:[%s621] sm:$0xf8]
        %v8130 = vld [vmem:[%s621 + $0x8] sm:$0x1f]
        %v8131 = vld [vmem:[%s621 + $0x10] sm:$0xf8]
        %v8132 = vld [vmem:[%s621 + $0x18] sm:$0x1f]
        %v8133 = vld [vmem:[%s621 + $0x20] sm:$0xf8]
        %v8134 = vld [vmem:[%s621 + $0x28] sm:$0x1f]
        %v8135 = vld [vmem:[%s621 + $0x30] sm:$0xf8]
        %v8136 = vld [vmem:[%s621 + $0x38] sm:$0x1f]
        %v8137 = vld [vmem:[%s621 + $0x40] sm:$0xf8]
        %v8138 = vld [vmem:[%s621 + $0x48] sm:$0x1f]
        %v8139 = vld [vmem:[%s621 + $0x50] sm:$0xf8]
        %v8140 = vld [vmem:[%s621 + $0x58] sm:$0x1f]
        %v8141 = vld [vmem:[%s621 + $0x60] sm:$0xf8]
        %v8142 = vld [vmem:[%s621 + $0x68] sm:$0x1f]
        %v8143 = vld [vmem:[%s621 + $0x70] sm:$0xf8]
        %v8144 = vld [vmem:[%s621 + $0x78] sm:$0x1f]
        %v8145 = vld [vmem:[%s621 + $0x80] sm:$0xf8]
        %v8146 = vld [vmem:[%s621 + $0x88] sm:$0x1f]
        %v8147 = vld [vmem:[%s621 + $0x90] sm:$0xf8]
        %v8148 = vld [vmem:[%s621 + $0x98] sm:$0x1f]
        %v8149 = vld [vmem:[%s621 + $0xa0] sm:$0xf8]
        %v8150 = vld [vmem:[%s621 + $0xa8] sm:$0x1f]
        %v8151 = vld [vmem:[%s621 + $0xb0] sm:$0xf8]
        %v8152 = vld [vmem:[%s621 + $0xb8] sm:$0x1f]
        %v8153 = vld [vmem:[%s621 + $0xc0] sm:$0xf8]
        %v8154 = vld [vmem:[%s621 + $0xc8] sm:$0x1f]
        %v8155 = vld [vmem:[%s621 + $0xd0] sm:$0xf8]
        %v8156 = vld [vmem:[%s621 + $0xd8] sm:$0x1f]
        %v8157 = vld [vmem:[%s621 + $0xe0] sm:$0xf8]
        %v8158 = vld [vmem:[%s621 + $0xe8] sm:$0x1f]
        %v8159 = vld [vmem:[%s621 + $0xf0] sm:$0xf8]
        %v8160 = vld [vmem:[%s621 + $0xf8] sm:$0x1f]
        %v8162 = vshrl.u32 %v8129, 16
        %v8164 = vrot.slane %v8162, 3
        %v8165 = vshll.u32 %v8129, 16
        %v8167 = vrot.slane %v8165, 4
        %v8168 = vor.u32 %v8164, %v8167
        %v8170 = vshrl.u32 %v8130, 16
        %v8172 = vrot.slane %v8170, 3
        %v8173 = vshll.u32 %v8130, 16
        %v8175 = vrot.slane %v8173, 4
        %v8176 = vor.u32 %v8172, %v8175
        %v8177 = vsel %vm688, %v8168, %v8176
        %v8179 = vshrl.u32 %v8131, 16
        %v8181 = vrot.slane %v8179, 3
        %v8182 = vshll.u32 %v8131, 16
        %v8184 = vrot.slane %v8182, 4
        %v8185 = vor.u32 %v8181, %v8184
        %v8187 = vshrl.u32 %v8132, 16
        %v8189 = vrot.slane %v8187, 3
        %v8190 = vshll.u32 %v8132, 16
        %v8192 = vrot.slane %v8190, 4
        %v8193 = vor.u32 %v8189, %v8192
        %v8194 = vsel %vm688, %v8185, %v8193
        %v8196 = vshrl.u32 %v8133, 16
        %v8198 = vrot.slane %v8196, 3
        %v8199 = vshll.u32 %v8133, 16
        %v8201 = vrot.slane %v8199, 4
        %v8202 = vor.u32 %v8198, %v8201
        %v8204 = vshrl.u32 %v8134, 16
        %v8206 = vrot.slane %v8204, 3
        %v8207 = vshll.u32 %v8134, 16
        %v8209 = vrot.slane %v8207, 4
        %v8210 = vor.u32 %v8206, %v8209
        %v8211 = vsel %vm688, %v8202, %v8210
        %v8213 = vshrl.u32 %v8135, 16
        %v8215 = vrot.slane %v8213, 3
        %v8216 = vshll.u32 %v8135, 16
        %v8218 = vrot.slane %v8216, 4
        %v8219 = vor.u32 %v8215, %v8218
        %v8221 = vshrl.u32 %v8136, 16
        %v8223 = vrot.slane %v8221, 3
        %v8224 = vshll.u32 %v8136, 16
        %v8226 = vrot.slane %v8224, 4
        %v8227 = vor.u32 %v8223, %v8226
        %v8228 = vsel %vm688, %v8219, %v8227
        %v8230 = vshrl.u32 %v8137, 16
        %v8232 = vrot.slane %v8230, 3
        %v8233 = vshll.u32 %v8137, 16
        %v8235 = vrot.slane %v8233, 4
        %v8236 = vor.u32 %v8232, %v8235
        %v8238 = vshrl.u32 %v8138, 16
        %v8240 = vrot.slane %v8238, 3
        %v8241 = vshll.u32 %v8138, 16
        %v8243 = vrot.slane %v8241, 4
        %v8244 = vor.u32 %v8240, %v8243
        %v8245 = vsel %vm688, %v8236, %v8244
        %v8247 = vshrl.u32 %v8139, 16
        %v8249 = vrot.slane %v8247, 3
        %v8250 = vshll.u32 %v8139, 16
        %v8252 = vrot.slane %v8250, 4
        %v8253 = vor.u32 %v8249, %v8252
        %v8255 = vshrl.u32 %v8140, 16
        %v8257 = vrot.slane %v8255, 3
        %v8258 = vshll.u32 %v8140, 16
        %v8260 = vrot.slane %v8258, 4
        %v8261 = vor.u32 %v8257, %v8260
        %v8262 = vsel %vm688, %v8253, %v8261
        %v8264 = vshrl.u32 %v8141, 16
        %v8266 = vrot.slane %v8264, 3
        %v8267 = vshll.u32 %v8141, 16
        %v8269 = vrot.slane %v8267, 4
        %v8270 = vor.u32 %v8266, %v8269
        %v8272 = vshrl.u32 %v8142, 16
        %v8274 = vrot.slane %v8272, 3
        %v8275 = vshll.u32 %v8142, 16
        %v8277 = vrot.slane %v8275, 4
        %v8278 = vor.u32 %v8274, %v8277
        %v8279 = vsel %vm688, %v8270, %v8278
        %v8281 = vshrl.u32 %v8143, 16
        %v8283 = vrot.slane %v8281, 3
        %v8284 = vshll.u32 %v8143, 16
        %v8286 = vrot.slane %v8284, 4
        %v8287 = vor.u32 %v8283, %v8286
        %v8289 = vshrl.u32 %v8144, 16
        %v8291 = vrot.slane %v8289, 3
        %v8292 = vshll.u32 %v8144, 16
        %v8294 = vrot.slane %v8292, 4
        %v8295 = vor.u32 %v8291, %v8294
        %v8296 = vsel %vm688, %v8287, %v8295
        %v8298 = vshrl.u32 %v8145, 16
        %v8300 = vrot.slane %v8298, 3
        %v8301 = vshll.u32 %v8145, 16
        %v8303 = vrot.slane %v8301, 4
        %v8304 = vor.u32 %v8300, %v8303
        %v8306 = vshrl.u32 %v8146, 16
        %v8308 = vrot.slane %v8306, 3
        %v8309 = vshll.u32 %v8146, 16
        %v8311 = vrot.slane %v8309, 4
        %v8312 = vor.u32 %v8308, %v8311
        %v8313 = vsel %vm688, %v8304, %v8312
        %v8315 = vshrl.u32 %v8147, 16
        %v8317 = vrot.slane %v8315, 3
        %v8318 = vshll.u32 %v8147, 16
        %v8320 = vrot.slane %v8318, 4
        %v8321 = vor.u32 %v8317, %v8320
        %v8323 = vshrl.u32 %v8148, 16
        %v8325 = vrot.slane %v8323, 3
        %v8326 = vshll.u32 %v8148, 16
        %v8328 = vrot.slane %v8326, 4
        %v8329 = vor.u32 %v8325, %v8328
        %v8330 = vsel %vm688, %v8321, %v8329
        %v8332 = vshrl.u32 %v8149, 16
        %v8334 = vrot.slane %v8332, 3
        %v8335 = vshll.u32 %v8149, 16
        %v8337 = vrot.slane %v8335, 4
        %v8338 = vor.u32 %v8334, %v8337
        %v8340 = vshrl.u32 %v8150, 16
        %v8342 = vrot.slane %v8340, 3
        %v8343 = vshll.u32 %v8150, 16
        %v8345 = vrot.slane %v8343, 4
        %v8346 = vor.u32 %v8342, %v8345
        %v8347 = vsel %vm688, %v8338, %v8346
        %v8349 = vshrl.u32 %v8151, 16
        %v8351 = vrot.slane %v8349, 3
        %v8352 = vshll.u32 %v8151, 16
        %v8354 = vrot.slane %v8352, 4
        %v8355 = vor.u32 %v8351, %v8354
        %v8357 = vshrl.u32 %v8152, 16
        %v8359 = vrot.slane %v8357, 3
        %v8360 = vshll.u32 %v8152, 16
        %v8362 = vrot.slane %v8360, 4
        %v8363 = vor.u32 %v8359, %v8362
        %v8364 = vsel %vm688, %v8355, %v8363
        %v8366 = vshrl.u32 %v8153, 16
        %v8368 = vrot.slane %v8366, 3
        %v8369 = vshll.u32 %v8153, 16
        %v8371 = vrot.slane %v8369, 4
        %v8372 = vor.u32 %v8368, %v8371
        %v8374 = vshrl.u32 %v8154, 16
        %v8376 = vrot.slane %v8374, 3
        %v8377 = vshll.u32 %v8154, 16
        %v8379 = vrot.slane %v8377, 4
        %v8380 = vor.u32 %v8376, %v8379
        %v8381 = vsel %vm688, %v8372, %v8380
        %v8383 = vshrl.u32 %v8155, 16
        %v8385 = vrot.slane %v8383, 3
        %v8386 = vshll.u32 %v8155, 16
        %v8388 = vrot.slane %v8386, 4
        %v8389 = vor.u32 %v8385, %v8388
        %v8391 = vshrl.u32 %v8156, 16
        %v8393 = vrot.slane %v8391, 3
        %v8394 = vshll.u32 %v8156, 16
        %v8396 = vrot.slane %v8394, 4
        %v8397 = vor.u32 %v8393, %v8396
        %v8398 = vsel %vm688, %v8389, %v8397
        %v8400 = vshrl.u32 %v8157, 16
        %v8402 = vrot.slane %v8400, 3
        %v8403 = vshll.u32 %v8157, 16
        %v8405 = vrot.slane %v8403, 4
        %v8406 = vor.u32 %v8402, %v8405
        %v8408 = vshrl.u32 %v8158, 16
        %v8410 = vrot.slane %v8408, 3
        %v8411 = vshll.u32 %v8158, 16
        %v8413 = vrot.slane %v8411, 4
        %v8414 = vor.u32 %v8410, %v8413
        %v8415 = vsel %vm688, %v8406, %v8414
        %v8417 = vshrl.u32 %v8159, 16
        %v8419 = vrot.slane %v8417, 3
        %v8420 = vshll.u32 %v8159, 16
        %v8422 = vrot.slane %v8420, 4
        %v8423 = vor.u32 %v8419, %v8422
        %v8425 = vshrl.u32 %v8160, 16
        %v8427 = vrot.slane %v8425, 3
        %v8428 = vshll.u32 %v8160, 16
        %v8430 = vrot.slane %v8428, 4
        %v8431 = vor.u32 %v8427, %v8430
        %v8432 = vsel %vm688, %v8423, %v8431
        %8449 = vst.msk [vmem:[#allocation3 + $0x18] sm:$0xff] %vm977, %v8177
        %8450 = vst.msk [vmem:[#allocation3 + $0x60] sm:$0xff] %vm977, %v8194
        %8451 = vst.msk [vmem:[#allocation3 + $0xa8] sm:$0xff] %vm977, %v8211
        %8452 = vst.msk [vmem:[#allocation3 + $0xf0] sm:$0xff] %vm977, %v8228
        %8453 = vst.msk [vmem:[#allocation3 + $0x138] sm:$0xff] %vm977, %v8245
        %8454 = vst.msk [vmem:[#allocation3 + $0x180] sm:$0xff] %vm977, %v8262
        %8455 = vst.msk [vmem:[#allocation3 + $0x1c8] sm:$0xff] %vm977, %v8279
        %8456 = vst.msk [vmem:[#allocation3 + $0x210] sm:$0xff] %vm977, %v8296
        %8457 = vst.msk [vmem:[#allocation3 + $0x258] sm:$0xff] %vm977, %v8313
        %8458 = vst.msk [vmem:[#allocation3 + $0x2a0] sm:$0xff] %vm977, %v8330
        %8459 = vst.msk [vmem:[#allocation3 + $0x2e8] sm:$0xff] %vm977, %v8347
        %8460 = vst.msk [vmem:[#allocation3 + $0x330] sm:$0xff] %vm977, %v8364
        %8461 = vst.msk [vmem:[#allocation3 + $0x378] sm:$0xff] %vm977, %v8381
        %8462 = vst.msk [vmem:[#allocation3 + $0x3c0] sm:$0xff] %vm977, %v8398
        %8463 = vst.msk [vmem:[#allocation3 + $0x408] sm:$0xff] %vm977, %v8415
        %8464 = vst.msk [vmem:[#allocation3 + $0x450] sm:$0xff] %vm977, %v8432
        %v8497 = vrot.slane %v8129, 4
        %v8498 = vrot.slane %v8130, 4
        %v8499 = vsel %vm1026, %v8497, %v8498
        %v8500 = vrot.slane %v8131, 4
        %v8501 = vrot.slane %v8132, 4
        %v8502 = vsel %vm1026, %v8500, %v8501
        %v8503 = vrot.slane %v8133, 4
        %v8504 = vrot.slane %v8134, 4
        %v8505 = vsel %vm1026, %v8503, %v8504
        %v8506 = vrot.slane %v8135, 4
        %v8507 = vrot.slane %v8136, 4
        %v8508 = vsel %vm1026, %v8506, %v8507
        %v8509 = vrot.slane %v8137, 4
        %v8510 = vrot.slane %v8138, 4
        %v8511 = vsel %vm1026, %v8509, %v8510
        %v8512 = vrot.slane %v8139, 4
        %v8513 = vrot.slane %v8140, 4
        %v8514 = vsel %vm1026, %v8512, %v8513
        %v8515 = vrot.slane %v8141, 4
        %v8516 = vrot.slane %v8142, 4
        %v8517 = vsel %vm1026, %v8515, %v8516
        %v8518 = vrot.slane %v8143, 4
        %v8519 = vrot.slane %v8144, 4
        %v8520 = vsel %vm1026, %v8518, %v8519
        %v8521 = vrot.slane %v8145, 4
        %v8522 = vrot.slane %v8146, 4
        %v8523 = vsel %vm1026, %v8521, %v8522
        %v8524 = vrot.slane %v8147, 4
        %v8525 = vrot.slane %v8148, 4
        %v8526 = vsel %vm1026, %v8524, %v8525
        %v8527 = vrot.slane %v8149, 4
        %v8528 = vrot.slane %v8150, 4
        %v8529 = vsel %vm1026, %v8527, %v8528
        %v8530 = vrot.slane %v8151, 4
        %v8531 = vrot.slane %v8152, 4
        %v8532 = vsel %vm1026, %v8530, %v8531
        %v8533 = vrot.slane %v8153, 4
        %v8534 = vrot.slane %v8154, 4
        %v8535 = vsel %vm1026, %v8533, %v8534
        %v8536 = vrot.slane %v8155, 4
        %v8537 = vrot.slane %v8156, 4
        %v8538 = vsel %vm1026, %v8536, %v8537
        %v8539 = vrot.slane %v8157, 4
        %v8540 = vrot.slane %v8158, 4
        %v8541 = vsel %vm1026, %v8539, %v8540
        %v8542 = vrot.slane %v8159, 4
        %v8543 = vrot.slane %v8160, 4
        %v8544 = vsel %vm1026, %v8542, %v8543
        %8561 = vst.msk [vmem:[#allocation3 + $0x20] sm:$0xff] %vm977, %v8499
        %8562 = vst.msk [vmem:[#allocation3 + $0x68] sm:$0xff] %vm977, %v8502
        %8563 = vst.msk [vmem:[#allocation3 + $0xb0] sm:$0xff] %vm977, %v8505
        %8564 = vst.msk [vmem:[#allocation3 + $0xf8] sm:$0xff] %vm977, %v8508
        %8565 = vst.msk [vmem:[#allocation3 + $0x140] sm:$0xff] %vm977, %v8511
        %8566 = vst.msk [vmem:[#allocation3 + $0x188] sm:$0xff] %vm977, %v8514
        %8567 = vst.msk [vmem:[#allocation3 + $0x1d0] sm:$0xff] %vm977, %v8517
        %8568 = vst.msk [vmem:[#allocation3 + $0x218] sm:$0xff] %vm977, %v8520
        %8569 = vst.msk [vmem:[#allocation3 + $0x260] sm:$0xff] %vm977, %v8523
        %8570 = vst.msk [vmem:[#allocation3 + $0x2a8] sm:$0xff] %vm977, %v8526
        %8571 = vst.msk [vmem:[#allocation3 + $0x2f0] sm:$0xff] %vm977, %v8529
        %8572 = vst.msk [vmem:[#allocation3 + $0x338] sm:$0xff] %vm977, %v8532
        %8573 = vst.msk [vmem:[#allocation3 + $0x380] sm:$0xff] %vm977, %v8535
        %8574 = vst.msk [vmem:[#allocation3 + $0x3c8] sm:$0xff] %vm977, %v8538
        %8575 = vst.msk [vmem:[#allocation3 + $0x410] sm:$0xff] %vm977, %v8541
        %8576 = vst.msk [vmem:[#allocation3 + $0x458] sm:$0xff] %vm977, %v8544
        %v8577 = vrot.slane %v8162, 4
        %v8578 = vrot.slane %v8165, 5
        %v8579 = vor.u32 %v8577, %v8578
        %v8580 = vrot.slane %v8170, 4
        %v8581 = vrot.slane %v8173, 5
        %v8582 = vor.u32 %v8580, %v8581
        %v8583 = vsel %vm1107, %v8579, %v8582
        %v8584 = vrot.slane %v8179, 4
        %v8585 = vrot.slane %v8182, 5
        %v8586 = vor.u32 %v8584, %v8585
        %v8587 = vrot.slane %v8187, 4
        %v8588 = vrot.slane %v8190, 5
        %v8589 = vor.u32 %v8587, %v8588
        %v8590 = vsel %vm1107, %v8586, %v8589
        %v8591 = vrot.slane %v8196, 4
        %v8592 = vrot.slane %v8199, 5
        %v8593 = vor.u32 %v8591, %v8592
        %v8594 = vrot.slane %v8204, 4
        %v8595 = vrot.slane %v8207, 5
        %v8596 = vor.u32 %v8594, %v8595
        %v8597 = vsel %vm1107, %v8593, %v8596
        %v8598 = vrot.slane %v8213, 4
        %v8599 = vrot.slane %v8216, 5
        %v8600 = vor.u32 %v8598, %v8599
        %v8601 = vrot.slane %v8221, 4
        %v8602 = vrot.slane %v8224, 5
        %v8603 = vor.u32 %v8601, %v8602
        %v8604 = vsel %vm1107, %v8600, %v8603
        %v8605 = vrot.slane %v8230, 4
        %v8606 = vrot.slane %v8233, 5
        %v8607 = vor.u32 %v8605, %v8606
        %v8608 = vrot.slane %v8238, 4
        %v8609 = vrot.slane %v8241, 5
        %v8610 = vor.u32 %v8608, %v8609
        %v8611 = vsel %vm1107, %v8607, %v8610
        %v8612 = vrot.slane %v8247, 4
        %v8613 = vrot.slane %v8250, 5
        %v8614 = vor.u32 %v8612, %v8613
        %v8615 = vrot.slane %v8255, 4
        %v8616 = vrot.slane %v8258, 5
        %v8617 = vor.u32 %v8615, %v8616
        %v8618 = vsel %vm1107, %v8614, %v8617
        %v8619 = vrot.slane %v8264, 4
        %v8620 = vrot.slane %v8267, 5
        %v8621 = vor.u32 %v8619, %v8620
        %v8622 = vrot.slane %v8272, 4
        %v8623 = vrot.slane %v8275, 5
        %v8624 = vor.u32 %v8622, %v8623
        %v8625 = vsel %vm1107, %v8621, %v8624
        %v8626 = vrot.slane %v8281, 4
        %v8627 = vrot.slane %v8284, 5
        %v8628 = vor.u32 %v8626, %v8627
        %v8629 = vrot.slane %v8289, 4
        %v8630 = vrot.slane %v8292, 5
        %v8631 = vor.u32 %v8629, %v8630
        %v8632 = vsel %vm1107, %v8628, %v8631
        %v8633 = vrot.slane %v8298, 4
        %v8634 = vrot.slane %v8301, 5
        %v8635 = vor.u32 %v8633, %v8634
        %v8636 = vrot.slane %v8306, 4
        %v8637 = vrot.slane %v8309, 5
        %v8638 = vor.u32 %v8636, %v8637
        %v8639 = vsel %vm1107, %v8635, %v8638
        %v8640 = vrot.slane %v8315, 4
        %v8641 = vrot.slane %v8318, 5
        %v8642 = vor.u32 %v8640, %v8641
        %v8643 = vrot.slane %v8323, 4
        %v8644 = vrot.slane %v8326, 5
        %v8645 = vor.u32 %v8643, %v8644
        %v8646 = vsel %vm1107, %v8642, %v8645
        %v8647 = vrot.slane %v8332, 4
        %v8648 = vrot.slane %v8335, 5
        %v8649 = vor.u32 %v8647, %v8648
        %v8650 = vrot.slane %v8340, 4
        %v8651 = vrot.slane %v8343, 5
        %v8652 = vor.u32 %v8650, %v8651
        %v8653 = vsel %vm1107, %v8649, %v8652
        %v8654 = vrot.slane %v8349, 4
        %v8655 = vrot.slane %v8352, 5
        %v8656 = vor.u32 %v8654, %v8655
        %v8657 = vrot.slane %v8357, 4
        %v8658 = vrot.slane %v8360, 5
        %v8659 = vor.u32 %v8657, %v8658
        %v8660 = vsel %vm1107, %v8656, %v8659
        %v8661 = vrot.slane %v8366, 4
        %v8662 = vrot.slane %v8369, 5
        %v8663 = vor.u32 %v8661, %v8662
        %v8664 = vrot.slane %v8374, 4
        %v8665 = vrot.slane %v8377, 5
        %v8666 = vor.u32 %v8664, %v8665
        %v8667 = vsel %vm1107, %v8663, %v8666
        %v8668 = vrot.slane %v8383, 4
        %v8669 = vrot.slane %v8386, 5
        %v8670 = vor.u32 %v8668, %v8669
        %v8671 = vrot.slane %v8391, 4
        %v8672 = vrot.slane %v8394, 5
        %v8673 = vor.u32 %v8671, %v8672
        %v8674 = vsel %vm1107, %v8670, %v8673
        %v8675 = vrot.slane %v8400, 4
        %v8676 = vrot.slane %v8403, 5
        %v8677 = vor.u32 %v8675, %v8676
        %v8678 = vrot.slane %v8408, 4
        %v8679 = vrot.slane %v8411, 5
        %v8680 = vor.u32 %v8678, %v8679
        %v8681 = vsel %vm1107, %v8677, %v8680
        %v8682 = vrot.slane %v8417, 4
        %v8683 = vrot.slane %v8420, 5
        %v8684 = vor.u32 %v8682, %v8683
        %v8685 = vrot.slane %v8425, 4
        %v8686 = vrot.slane %v8428, 5
        %v8687 = vor.u32 %v8685, %v8686
        %v8688 = vsel %vm1107, %v8684, %v8687
        %8705 = vst.msk [vmem:[#allocation3 + $0x28] sm:$0xff] %vm977, %v8583
        %8706 = vst.msk [vmem:[#allocation3 + $0x70] sm:$0xff] %vm977, %v8590
        %8707 = vst.msk [vmem:[#allocation3 + $0xb8] sm:$0xff] %vm977, %v8597
        %8708 = vst.msk [vmem:[#allocation3 + $0x100] sm:$0xff] %vm977, %v8604
        %8709 = vst.msk [vmem:[#allocation3 + $0x148] sm:$0xff] %vm977, %v8611
        %8710 = vst.msk [vmem:[#allocation3 + $0x190] sm:$0xff] %vm977, %v8618
        %8711 = vst.msk [vmem:[#allocation3 + $0x1d8] sm:$0xff] %vm977, %v8625
        %8712 = vst.msk [vmem:[#allocation3 + $0x220] sm:$0xff] %vm977, %v8632
        %8713 = vst.msk [vmem:[#allocation3 + $0x268] sm:$0xff] %vm977, %v8639
        %8714 = vst.msk [vmem:[#allocation3 + $0x2b0] sm:$0xff] %vm977, %v8646
        %8715 = vst.msk [vmem:[#allocation3 + $0x2f8] sm:$0xff] %vm977, %v8653
        %8716 = vst.msk [vmem:[#allocation3 + $0x340] sm:$0xff] %vm977, %v8660
        %8717 = vst.msk [vmem:[#allocation3 + $0x388] sm:$0xff] %vm977, %v8667
        %8718 = vst.msk [vmem:[#allocation3 + $0x3d0] sm:$0xff] %vm977, %v8674
        %8719 = vst.msk [vmem:[#allocation3 + $0x418] sm:$0xff] %vm977, %v8681
        %8720 = vst.msk [vmem:[#allocation3 + $0x460] sm:$0xff] %vm977, %v8688
        %v8721 = vld [vmem:[%s1844] sm:$0xf8]
        %v8722 = vld [vmem:[%s1844 + $0x8] sm:$0x1f]
        %v8723 = vld [vmem:[%s1844 + $0x10] sm:$0xf8]
        %v8724 = vld [vmem:[%s1844 + $0x18] sm:$0x1f]
        %v8725 = vld [vmem:[%s1844 + $0x20] sm:$0xf8]
        %v8726 = vld [vmem:[%s1844 + $0x28] sm:$0x1f]
        %v8727 = vld [vmem:[%s1844 + $0x30] sm:$0xf8]
        %v8728 = vld [vmem:[%s1844 + $0x38] sm:$0x1f]
        %v8729 = vld [vmem:[%s1844 + $0x40] sm:$0xf8]
        %v8730 = vld [vmem:[%s1844 + $0x48] sm:$0x1f]
        %v8731 = vld [vmem:[%s1844 + $0x50] sm:$0xf8]
        %v8732 = vld [vmem:[%s1844 + $0x58] sm:$0x1f]
        %v8733 = vld [vmem:[%s1844 + $0x60] sm:$0xf8]
        %v8734 = vld [vmem:[%s1844 + $0x68] sm:$0x1f]
        %v8735 = vld [vmem:[%s1844 + $0x70] sm:$0xf8]
        %v8736 = vld [vmem:[%s1844 + $0x78] sm:$0x1f]
        %v8737 = vld [vmem:[%s1844 + $0x80] sm:$0xf8]
        %v8738 = vld [vmem:[%s1844 + $0x88] sm:$0x1f]
        %v8739 = vld [vmem:[%s1844 + $0x90] sm:$0xf8]
        %v8740 = vld [vmem:[%s1844 + $0x98] sm:$0x1f]
        %v8741 = vld [vmem:[%s1844 + $0xa0] sm:$0xf8]
        %v8742 = vld [vmem:[%s1844 + $0xa8] sm:$0x1f]
        %v8743 = vld [vmem:[%s1844 + $0xb0] sm:$0xf8]
        %v8744 = vld [vmem:[%s1844 + $0xb8] sm:$0x1f]
        %v8745 = vld [vmem:[%s1844 + $0xc0] sm:$0xf8]
        %v8746 = vld [vmem:[%s1844 + $0xc8] sm:$0x1f]
        %v8747 = vld [vmem:[%s1844 + $0xd0] sm:$0xf8]
        %v8748 = vld [vmem:[%s1844 + $0xd8] sm:$0x1f]
        %v8749 = vld [vmem:[%s1844 + $0xe0] sm:$0xf8]
        %v8750 = vld [vmem:[%s1844 + $0xe8] sm:$0x1f]
        %v8751 = vld [vmem:[%s1844 + $0xf0] sm:$0xf8]
        %v8752 = vld [vmem:[%s1844 + $0xf8] sm:$0x1f]
        %v8754 = vshrl.u32 %v8721, 16
        %v8756 = vrot.slane %v8754, 3
        %v8757 = vshll.u32 %v8721, 16
        %v8759 = vrot.slane %v8757, 4
        %v8760 = vor.u32 %v8756, %v8759
        %v8762 = vshrl.u32 %v8722, 16
        %v8764 = vrot.slane %v8762, 3
        %v8765 = vshll.u32 %v8722, 16
        %v8767 = vrot.slane %v8765, 4
        %v8768 = vor.u32 %v8764, %v8767
        %v8769 = vsel %vm688, %v8760, %v8768
        %v8771 = vshrl.u32 %v8723, 16
        %v8773 = vrot.slane %v8771, 3
        %v8774 = vshll.u32 %v8723, 16
        %v8776 = vrot.slane %v8774, 4
        %v8777 = vor.u32 %v8773, %v8776
        %v8779 = vshrl.u32 %v8724, 16
        %v8781 = vrot.slane %v8779, 3
        %v8782 = vshll.u32 %v8724, 16
        %v8784 = vrot.slane %v8782, 4
        %v8785 = vor.u32 %v8781, %v8784
        %v8786 = vsel %vm688, %v8777, %v8785
        %v8788 = vshrl.u32 %v8725, 16
        %v8790 = vrot.slane %v8788, 3
        %v8791 = vshll.u32 %v8725, 16
        %v8793 = vrot.slane %v8791, 4
        %v8794 = vor.u32 %v8790, %v8793
        %v8796 = vshrl.u32 %v8726, 16
        %v8798 = vrot.slane %v8796, 3
        %v8799 = vshll.u32 %v8726, 16
        %v8801 = vrot.slane %v8799, 4
        %v8802 = vor.u32 %v8798, %v8801
        %v8803 = vsel %vm688, %v8794, %v8802
        %v8805 = vshrl.u32 %v8727, 16
        %v8807 = vrot.slane %v8805, 3
        %v8808 = vshll.u32 %v8727, 16
        %v8810 = vrot.slane %v8808, 4
        %v8811 = vor.u32 %v8807, %v8810
        %v8813 = vshrl.u32 %v8728, 16
        %v8815 = vrot.slane %v8813, 3
        %v8816 = vshll.u32 %v8728, 16
        %v8818 = vrot.slane %v8816, 4
        %v8819 = vor.u32 %v8815, %v8818
        %v8820 = vsel %vm688, %v8811, %v8819
        %v8822 = vshrl.u32 %v8729, 16
        %v8824 = vrot.slane %v8822, 3
        %v8825 = vshll.u32 %v8729, 16
        %v8827 = vrot.slane %v8825, 4
        %v8828 = vor.u32 %v8824, %v8827
        %v8830 = vshrl.u32 %v8730, 16
        %v8832 = vrot.slane %v8830, 3
        %v8833 = vshll.u32 %v8730, 16
        %v8835 = vrot.slane %v8833, 4
        %v8836 = vor.u32 %v8832, %v8835
        %v8837 = vsel %vm688, %v8828, %v8836
        %v8839 = vshrl.u32 %v8731, 16
        %v8841 = vrot.slane %v8839, 3
        %v8842 = vshll.u32 %v8731, 16
        %v8844 = vrot.slane %v8842, 4
        %v8845 = vor.u32 %v8841, %v8844
        %v8847 = vshrl.u32 %v8732, 16
        %v8849 = vrot.slane %v8847, 3
        %v8850 = vshll.u32 %v8732, 16
        %v8852 = vrot.slane %v8850, 4
        %v8853 = vor.u32 %v8849, %v8852
        %v8854 = vsel %vm688, %v8845, %v8853
        %v8856 = vshrl.u32 %v8733, 16
        %v8858 = vrot.slane %v8856, 3
        %v8859 = vshll.u32 %v8733, 16
        %v8861 = vrot.slane %v8859, 4
        %v8862 = vor.u32 %v8858, %v8861
        %v8864 = vshrl.u32 %v8734, 16
        %v8866 = vrot.slane %v8864, 3
        %v8867 = vshll.u32 %v8734, 16
        %v8869 = vrot.slane %v8867, 4
        %v8870 = vor.u32 %v8866, %v8869
        %v8871 = vsel %vm688, %v8862, %v8870
        %v8873 = vshrl.u32 %v8735, 16
        %v8875 = vrot.slane %v8873, 3
        %v8876 = vshll.u32 %v8735, 16
        %v8878 = vrot.slane %v8876, 4
        %v8879 = vor.u32 %v8875, %v8878
        %v8881 = vshrl.u32 %v8736, 16
        %v8883 = vrot.slane %v8881, 3
        %v8884 = vshll.u32 %v8736, 16
        %v8886 = vrot.slane %v8884, 4
        %v8887 = vor.u32 %v8883, %v8886
        %v8888 = vsel %vm688, %v8879, %v8887
        %v8890 = vshrl.u32 %v8737, 16
        %v8892 = vrot.slane %v8890, 3
        %v8893 = vshll.u32 %v8737, 16
        %v8895 = vrot.slane %v8893, 4
        %v8896 = vor.u32 %v8892, %v8895
        %v8898 = vshrl.u32 %v8738, 16
        %v8900 = vrot.slane %v8898, 3
        %v8901 = vshll.u32 %v8738, 16
        %v8903 = vrot.slane %v8901, 4
        %v8904 = vor.u32 %v8900, %v8903
        %v8905 = vsel %vm688, %v8896, %v8904
        %v8907 = vshrl.u32 %v8739, 16
        %v8909 = vrot.slane %v8907, 3
        %v8910 = vshll.u32 %v8739, 16
        %v8912 = vrot.slane %v8910, 4
        %v8913 = vor.u32 %v8909, %v8912
        %v8915 = vshrl.u32 %v8740, 16
        %v8917 = vrot.slane %v8915, 3
        %v8918 = vshll.u32 %v8740, 16
        %v8920 = vrot.slane %v8918, 4
        %v8921 = vor.u32 %v8917, %v8920
        %v8922 = vsel %vm688, %v8913, %v8921
        %v8924 = vshrl.u32 %v8741, 16
        %v8926 = vrot.slane %v8924, 3
        %v8927 = vshll.u32 %v8741, 16
        %v8929 = vrot.slane %v8927, 4
        %v8930 = vor.u32 %v8926, %v8929
        %v8932 = vshrl.u32 %v8742, 16
        %v8934 = vrot.slane %v8932, 3
        %v8935 = vshll.u32 %v8742, 16
        %v8937 = vrot.slane %v8935, 4
        %v8938 = vor.u32 %v8934, %v8937
        %v8939 = vsel %vm688, %v8930, %v8938
        %v8941 = vshrl.u32 %v8743, 16
        %v8943 = vrot.slane %v8941, 3
        %v8944 = vshll.u32 %v8743, 16
        %v8946 = vrot.slane %v8944, 4
        %v8947 = vor.u32 %v8943, %v8946
        %v8949 = vshrl.u32 %v8744, 16
        %v8951 = vrot.slane %v8949, 3
        %v8952 = vshll.u32 %v8744, 16
        %v8954 = vrot.slane %v8952, 4
        %v8955 = vor.u32 %v8951, %v8954
        %v8956 = vsel %vm688, %v8947, %v8955
        %v8958 = vshrl.u32 %v8745, 16
        %v8960 = vrot.slane %v8958, 3
        %v8961 = vshll.u32 %v8745, 16
        %v8963 = vrot.slane %v8961, 4
        %v8964 = vor.u32 %v8960, %v8963
        %v8966 = vshrl.u32 %v8746, 16
        %v8968 = vrot.slane %v8966, 3
        %v8969 = vshll.u32 %v8746, 16
        %v8971 = vrot.slane %v8969, 4
        %v8972 = vor.u32 %v8968, %v8971
        %v8973 = vsel %vm688, %v8964, %v8972
        %v8975 = vshrl.u32 %v8747, 16
        %v8977 = vrot.slane %v8975, 3
        %v8978 = vshll.u32 %v8747, 16
        %v8980 = vrot.slane %v8978, 4
        %v8981 = vor.u32 %v8977, %v8980
        %v8983 = vshrl.u32 %v8748, 16
        %v8985 = vrot.slane %v8983, 3
        %v8986 = vshll.u32 %v8748, 16
        %v8988 = vrot.slane %v8986, 4
        %v8989 = vor.u32 %v8985, %v8988
        %v8990 = vsel %vm688, %v8981, %v8989
        %v8992 = vshrl.u32 %v8749, 16
        %v8994 = vrot.slane %v8992, 3
        %v8995 = vshll.u32 %v8749, 16
        %v8997 = vrot.slane %v8995, 4
        %v8998 = vor.u32 %v8994, %v8997
        %v9000 = vshrl.u32 %v8750, 16
        %v9002 = vrot.slane %v9000, 3
        %v9003 = vshll.u32 %v8750, 16
        %v9005 = vrot.slane %v9003, 4
        %v9006 = vor.u32 %v9002, %v9005
        %v9007 = vsel %vm688, %v8998, %v9006
        %v9009 = vshrl.u32 %v8751, 16
        %v9011 = vrot.slane %v9009, 3
        %v9012 = vshll.u32 %v8751, 16
        %v9014 = vrot.slane %v9012, 4
        %v9015 = vor.u32 %v9011, %v9014
        %v9017 = vshrl.u32 %v8752, 16
        %v9019 = vrot.slane %v9017, 3
        %v9020 = vshll.u32 %v8752, 16
        %v9022 = vrot.slane %v9020, 4
        %v9023 = vor.u32 %v9019, %v9022
        %v9024 = vsel %vm688, %v9015, %v9023
        %9041 = vst.msk [vmem:[#allocation3 + $0x30] sm:$0xff] %vm977, %v8769
        %9042 = vst.msk [vmem:[#allocation3 + $0x78] sm:$0xff] %vm977, %v8786
        %9043 = vst.msk [vmem:[#allocation3 + $0xc0] sm:$0xff] %vm977, %v8803
        %9044 = vst.msk [vmem:[#allocation3 + $0x108] sm:$0xff] %vm977, %v8820
        %9045 = vst.msk [vmem:[#allocation3 + $0x150] sm:$0xff] %vm977, %v8837
        %9046 = vst.msk [vmem:[#allocation3 + $0x198] sm:$0xff] %vm977, %v8854
        %9047 = vst.msk [vmem:[#allocation3 + $0x1e0] sm:$0xff] %vm977, %v8871
        %9048 = vst.msk [vmem:[#allocation3 + $0x228] sm:$0xff] %vm977, %v8888
        %9049 = vst.msk [vmem:[#allocation3 + $0x270] sm:$0xff] %vm977, %v8905
        %9050 = vst.msk [vmem:[#allocation3 + $0x2b8] sm:$0xff] %vm977, %v8922
        %9051 = vst.msk [vmem:[#allocation3 + $0x300] sm:$0xff] %vm977, %v8939
        %9052 = vst.msk [vmem:[#allocation3 + $0x348] sm:$0xff] %vm977, %v8956
        %9053 = vst.msk [vmem:[#allocation3 + $0x390] sm:$0xff] %vm977, %v8973
        %9054 = vst.msk [vmem:[#allocation3 + $0x3d8] sm:$0xff] %vm977, %v8990
        %9055 = vst.msk [vmem:[#allocation3 + $0x420] sm:$0xff] %vm977, %v9007
        %9056 = vst.msk [vmem:[#allocation3 + $0x468] sm:$0xff] %vm977, %v9024
        %v9089 = vrot.slane %v8721, 4
        %v9090 = vrot.slane %v8722, 4
        %v9091 = vsel %vm1026, %v9089, %v9090
        %v9092 = vrot.slane %v8723, 4
        %v9093 = vrot.slane %v8724, 4
        %v9094 = vsel %vm1026, %v9092, %v9093
        %v9095 = vrot.slane %v8725, 4
        %v9096 = vrot.slane %v8726, 4
        %v9097 = vsel %vm1026, %v9095, %v9096
        %v9098 = vrot.slane %v8727, 4
        %v9099 = vrot.slane %v8728, 4
        %v9100 = vsel %vm1026, %v9098, %v9099
        %v9101 = vrot.slane %v8729, 4
        %v9102 = vrot.slane %v8730, 4
        %v9103 = vsel %vm1026, %v9101, %v9102
        %v9104 = vrot.slane %v8731, 4
        %v9105 = vrot.slane %v8732, 4
        %v9106 = vsel %vm1026, %v9104, %v9105
        %v9107 = vrot.slane %v8733, 4
        %v9108 = vrot.slane %v8734, 4
        %v9109 = vsel %vm1026, %v9107, %v9108
        %v9110 = vrot.slane %v8735, 4
        %v9111 = vrot.slane %v8736, 4
        %v9112 = vsel %vm1026, %v9110, %v9111
        %v9113 = vrot.slane %v8737, 4
        %v9114 = vrot.slane %v8738, 4
        %v9115 = vsel %vm1026, %v9113, %v9114
        %v9116 = vrot.slane %v8739, 4
        %v9117 = vrot.slane %v8740, 4
        %v9118 = vsel %vm1026, %v9116, %v9117
        %v9119 = vrot.slane %v8741, 4
        %v9120 = vrot.slane %v8742, 4
        %v9121 = vsel %vm1026, %v9119, %v9120
        %v9122 = vrot.slane %v8743, 4
        %v9123 = vrot.slane %v8744, 4
        %v9124 = vsel %vm1026, %v9122, %v9123
        %v9125 = vrot.slane %v8745, 4
        %v9126 = vrot.slane %v8746, 4
        %v9127 = vsel %vm1026, %v9125, %v9126
        %v9128 = vrot.slane %v8747, 4
        %v9129 = vrot.slane %v8748, 4
        %v9130 = vsel %vm1026, %v9128, %v9129
        %v9131 = vrot.slane %v8749, 4
        %v9132 = vrot.slane %v8750, 4
        %v9133 = vsel %vm1026, %v9131, %v9132
        %v9134 = vrot.slane %v8751, 4
        %v9135 = vrot.slane %v8752, 4
        %v9136 = vsel %vm1026, %v9134, %v9135
        %9153 = vst.msk [vmem:[#allocation3 + $0x38] sm:$0xff] %vm977, %v9091
        %9154 = vst.msk [vmem:[#allocation3 + $0x80] sm:$0xff] %vm977, %v9094
        %9155 = vst.msk [vmem:[#allocation3 + $0xc8] sm:$0xff] %vm977, %v9097
        %9156 = vst.msk [vmem:[#allocation3 + $0x110] sm:$0xff] %vm977, %v9100
        %9157 = vst.msk [vmem:[#allocation3 + $0x158] sm:$0xff] %vm977, %v9103
        %9158 = vst.msk [vmem:[#allocation3 + $0x1a0] sm:$0xff] %vm977, %v9106
        %9159 = vst.msk [vmem:[#allocation3 + $0x1e8] sm:$0xff] %vm977, %v9109
        %9160 = vst.msk [vmem:[#allocation3 + $0x230] sm:$0xff] %vm977, %v9112
        %9161 = vst.msk [vmem:[#allocation3 + $0x278] sm:$0xff] %vm977, %v9115
        %9162 = vst.msk [vmem:[#allocation3 + $0x2c0] sm:$0xff] %vm977, %v9118
        %9163 = vst.msk [vmem:[#allocation3 + $0x308] sm:$0xff] %vm977, %v9121
        %9164 = vst.msk [vmem:[#allocation3 + $0x350] sm:$0xff] %vm977, %v9124
        %9165 = vst.msk [vmem:[#allocation3 + $0x398] sm:$0xff] %vm977, %v9127
        %9166 = vst.msk [vmem:[#allocation3 + $0x3e0] sm:$0xff] %vm977, %v9130
        %9167 = vst.msk [vmem:[#allocation3 + $0x428] sm:$0xff] %vm977, %v9133
        %9168 = vst.msk [vmem:[#allocation3 + $0x470] sm:$0xff] %vm977, %v9136
        %v9169 = vrot.slane %v8754, 4
        %v9170 = vrot.slane %v8757, 5
        %v9171 = vor.u32 %v9169, %v9170
        %v9172 = vrot.slane %v8762, 4
        %v9173 = vrot.slane %v8765, 5
        %v9174 = vor.u32 %v9172, %v9173
        %v9175 = vsel %vm1107, %v9171, %v9174
        %v9176 = vrot.slane %v8771, 4
        %v9177 = vrot.slane %v8774, 5
        %v9178 = vor.u32 %v9176, %v9177
        %v9179 = vrot.slane %v8779, 4
        %v9180 = vrot.slane %v8782, 5
        %v9181 = vor.u32 %v9179, %v9180
        %v9182 = vsel %vm1107, %v9178, %v9181
        %v9183 = vrot.slane %v8788, 4
        %v9184 = vrot.slane %v8791, 5
        %v9185 = vor.u32 %v9183, %v9184
        %v9186 = vrot.slane %v8796, 4
        %v9187 = vrot.slane %v8799, 5
        %v9188 = vor.u32 %v9186, %v9187
        %v9189 = vsel %vm1107, %v9185, %v9188
        %v9190 = vrot.slane %v8805, 4
        %v9191 = vrot.slane %v8808, 5
        %v9192 = vor.u32 %v9190, %v9191
        %v9193 = vrot.slane %v8813, 4
        %v9194 = vrot.slane %v8816, 5
        %v9195 = vor.u32 %v9193, %v9194
        %v9196 = vsel %vm1107, %v9192, %v9195
        %v9197 = vrot.slane %v8822, 4
        %v9198 = vrot.slane %v8825, 5
        %v9199 = vor.u32 %v9197, %v9198
        %v9200 = vrot.slane %v8830, 4
        %v9201 = vrot.slane %v8833, 5
        %v9202 = vor.u32 %v9200, %v9201
        %v9203 = vsel %vm1107, %v9199, %v9202
        %v9204 = vrot.slane %v8839, 4
        %v9205 = vrot.slane %v8842, 5
        %v9206 = vor.u32 %v9204, %v9205
        %v9207 = vrot.slane %v8847, 4
        %v9208 = vrot.slane %v8850, 5
        %v9209 = vor.u32 %v9207, %v9208
        %v9210 = vsel %vm1107, %v9206, %v9209
        %v9211 = vrot.slane %v8856, 4
        %v9212 = vrot.slane %v8859, 5
        %v9213 = vor.u32 %v9211, %v9212
        %v9214 = vrot.slane %v8864, 4
        %v9215 = vrot.slane %v8867, 5
        %v9216 = vor.u32 %v9214, %v9215
        %v9217 = vsel %vm1107, %v9213, %v9216
        %v9218 = vrot.slane %v8873, 4
        %v9219 = vrot.slane %v8876, 5
        %v9220 = vor.u32 %v9218, %v9219
        %v9221 = vrot.slane %v8881, 4
        %v9222 = vrot.slane %v8884, 5
        %v9223 = vor.u32 %v9221, %v9222
        %v9224 = vsel %vm1107, %v9220, %v9223
        %v9225 = vrot.slane %v8890, 4
        %v9226 = vrot.slane %v8893, 5
        %v9227 = vor.u32 %v9225, %v9226
        %v9228 = vrot.slane %v8898, 4
        %v9229 = vrot.slane %v8901, 5
        %v9230 = vor.u32 %v9228, %v9229
        %v9231 = vsel %vm1107, %v9227, %v9230
        %v9232 = vrot.slane %v8907, 4
        %v9233 = vrot.slane %v8910, 5
        %v9234 = vor.u32 %v9232, %v9233
        %v9235 = vrot.slane %v8915, 4
        %v9236 = vrot.slane %v8918, 5
        %v9237 = vor.u32 %v9235, %v9236
        %v9238 = vsel %vm1107, %v9234, %v9237
        %v9239 = vrot.slane %v8924, 4
        %v9240 = vrot.slane %v8927, 5
        %v9241 = vor.u32 %v9239, %v9240
        %v9242 = vrot.slane %v8932, 4
        %v9243 = vrot.slane %v8935, 5
        %v9244 = vor.u32 %v9242, %v9243
        %v9245 = vsel %vm1107, %v9241, %v9244
        %v9246 = vrot.slane %v8941, 4
        %v9247 = vrot.slane %v8944, 5
        %v9248 = vor.u32 %v9246, %v9247
        %v9249 = vrot.slane %v8949, 4
        %v9250 = vrot.slane %v8952, 5
        %v9251 = vor.u32 %v9249, %v9250
        %v9252 = vsel %vm1107, %v9248, %v9251
        %v9253 = vrot.slane %v8958, 4
        %v9254 = vrot.slane %v8961, 5
        %v9255 = vor.u32 %v9253, %v9254
        %v9256 = vrot.slane %v8966, 4
        %v9257 = vrot.slane %v8969, 5
        %v9258 = vor.u32 %v9256, %v9257
        %v9259 = vsel %vm1107, %v9255, %v9258
        %v9260 = vrot.slane %v8975, 4
        %v9261 = vrot.slane %v8978, 5
        %v9262 = vor.u32 %v9260, %v9261
        %v9263 = vrot.slane %v8983, 4
        %v9264 = vrot.slane %v8986, 5
        %v9265 = vor.u32 %v9263, %v9264
        %v9266 = vsel %vm1107, %v9262, %v9265
        %v9267 = vrot.slane %v8992, 4
        %v9268 = vrot.slane %v8995, 5
        %v9269 = vor.u32 %v9267, %v9268
        %v9270 = vrot.slane %v9000, 4
        %v9271 = vrot.slane %v9003, 5
        %v9272 = vor.u32 %v9270, %v9271
        %v9273 = vsel %vm1107, %v9269, %v9272
        %v9274 = vrot.slane %v9009, 4
        %v9275 = vrot.slane %v9012, 5
        %v9276 = vor.u32 %v9274, %v9275
        %v9277 = vrot.slane %v9017, 4
        %v9278 = vrot.slane %v9020, 5
        %v9279 = vor.u32 %v9277, %v9278
        %v9280 = vsel %vm1107, %v9276, %v9279
        %9297 = vst.msk [vmem:[#allocation3 + $0x40] sm:$0xff] %vm977, %v9175
        %9298 = vst.msk [vmem:[#allocation3 + $0x88] sm:$0xff] %vm977, %v9182
        %9299 = vst.msk [vmem:[#allocation3 + $0xd0] sm:$0xff] %vm977, %v9189
        %9300 = vst.msk [vmem:[#allocation3 + $0x118] sm:$0xff] %vm977, %v9196
        %9301 = vst.msk [vmem:[#allocation3 + $0x160] sm:$0xff] %vm977, %v9203
        %9302 = vst.msk [vmem:[#allocation3 + $0x1a8] sm:$0xff] %vm977, %v9210
        %9303 = vst.msk [vmem:[#allocation3 + $0x1f0] sm:$0xff] %vm977, %v9217
        %9304 = vst.msk [vmem:[#allocation3 + $0x238] sm:$0xff] %vm977, %v9224
        %9305 = vst.msk [vmem:[#allocation3 + $0x280] sm:$0xff] %vm977, %v9231
        %9306 = vst.msk [vmem:[#allocation3 + $0x2c8] sm:$0xff] %vm977, %v9238
        %9307 = vst.msk [vmem:[#allocation3 + $0x310] sm:$0xff] %vm977, %v9245
        %9308 = vst.msk [vmem:[#allocation3 + $0x358] sm:$0xff] %vm977, %v9252
        %9309 = vst.msk [vmem:[#allocation3 + $0x3a0] sm:$0xff] %vm977, %v9259
        %9310 = vst.msk [vmem:[#allocation3 + $0x3e8] sm:$0xff] %vm977, %v9266
        %9311 = vst.msk [vmem:[#allocation3 + $0x430] sm:$0xff] %vm977, %v9273
        %9312 = vst.msk [vmem:[#allocation3 + $0x478] sm:$0xff] %vm977, %v9280
        %v9313 = vld [vmem:[#allocation3] sm:$0xff]
        %v9314 = vld [vmem:[#allocation3 + $0x8] sm:$0xff]
        %v9315 = vld [vmem:[#allocation3 + $0x10] sm:$0xff]
        %v9316 = vld [vmem:[#allocation3 + $0x18] sm:$0xff]
        %v9317 = vld [vmem:[#allocation3 + $0x20] sm:$0xff]
        %v9318 = vld [vmem:[#allocation3 + $0x28] sm:$0xff]
        %v9319 = vld [vmem:[#allocation3 + $0x30] sm:$0xff]
        %v9320 = vld [vmem:[#allocation3 + $0x38] sm:$0xff]
        %v9321 = vld [vmem:[#allocation3 + $0x40] sm:$0xff]
        %v9322 = vld [vmem:[#allocation3 + $0x48] sm:$0xff]
        %v9323 = vld [vmem:[#allocation3 + $0x50] sm:$0xff]
        %v9324 = vld [vmem:[#allocation3 + $0x58] sm:$0xff]
        %v9325 = vld [vmem:[#allocation3 + $0x60] sm:$0xff]
        %v9326 = vld [vmem:[#allocation3 + $0x68] sm:$0xff]
        %v9327 = vld [vmem:[#allocation3 + $0x70] sm:$0xff]
        %v9328 = vld [vmem:[#allocation3 + $0x78] sm:$0xff]
        %v9329 = vld [vmem:[#allocation3 + $0x80] sm:$0xff]
        %v9330 = vld [vmem:[#allocation3 + $0x88] sm:$0xff]
        %v9331 = vld [vmem:[#allocation3 + $0x90] sm:$0xff]
        %v9332 = vld [vmem:[#allocation3 + $0x98] sm:$0xff]
        %v9333 = vld [vmem:[#allocation3 + $0xa0] sm:$0xff]
        %v9334 = vld [vmem:[#allocation3 + $0xa8] sm:$0xff]
        %v9335 = vld [vmem:[#allocation3 + $0xb0] sm:$0xff]
        %v9336 = vld [vmem:[#allocation3 + $0xb8] sm:$0xff]
        %v9337 = vld [vmem:[#allocation3 + $0xc0] sm:$0xff]
        %v9338 = vld [vmem:[#allocation3 + $0xc8] sm:$0xff]
        %v9339 = vld [vmem:[#allocation3 + $0xd0] sm:$0xff]
        %v9340 = vld [vmem:[#allocation3 + $0xd8] sm:$0xff]
        %v9341 = vld [vmem:[#allocation3 + $0xe0] sm:$0xff]
        %v9342 = vld [vmem:[#allocation3 + $0xe8] sm:$0xff]
        %v9343 = vld [vmem:[#allocation3 + $0xf0] sm:$0xff]
        %v9344 = vld [vmem:[#allocation3 + $0xf8] sm:$0xff]
        %v9345 = vld [vmem:[#allocation3 + $0x100] sm:$0xff]
        %v9346 = vld [vmem:[#allocation3 + $0x108] sm:$0xff]
        %v9347 = vld [vmem:[#allocation3 + $0x110] sm:$0xff]
        %v9348 = vld [vmem:[#allocation3 + $0x118] sm:$0xff]
        %v9349 = vld [vmem:[#allocation3 + $0x120] sm:$0xff]
        %v9350 = vld [vmem:[#allocation3 + $0x128] sm:$0xff]
        %v9351 = vld [vmem:[#allocation3 + $0x130] sm:$0xff]
        %v9352 = vld [vmem:[#allocation3 + $0x138] sm:$0xff]
        %v9353 = vld [vmem:[#allocation3 + $0x140] sm:$0xff]
        %v9354 = vld [vmem:[#allocation3 + $0x148] sm:$0xff]
        %v9355 = vld [vmem:[#allocation3 + $0x150] sm:$0xff]
        %v9356 = vld [vmem:[#allocation3 + $0x158] sm:$0xff]
        %v9357 = vld [vmem:[#allocation3 + $0x160] sm:$0xff]
        %v9358 = vld [vmem:[#allocation3 + $0x168] sm:$0xff]
        %v9359 = vld [vmem:[#allocation3 + $0x170] sm:$0xff]
        %v9360 = vld [vmem:[#allocation3 + $0x178] sm:$0xff]
        %v9361 = vld [vmem:[#allocation3 + $0x180] sm:$0xff]
        %v9362 = vld [vmem:[#allocation3 + $0x188] sm:$0xff]
        %v9363 = vld [vmem:[#allocation3 + $0x190] sm:$0xff]
        %v9364 = vld [vmem:[#allocation3 + $0x198] sm:$0xff]
        %v9365 = vld [vmem:[#allocation3 + $0x1a0] sm:$0xff]
        %v9366 = vld [vmem:[#allocation3 + $0x1a8] sm:$0xff]
        %v9367 = vld [vmem:[#allocation3 + $0x1b0] sm:$0xff]
        %v9368 = vld [vmem:[#allocation3 + $0x1b8] sm:$0xff]
        %v9369 = vld [vmem:[#allocation3 + $0x1c0] sm:$0xff]
        %v9370 = vld [vmem:[#allocation3 + $0x1c8] sm:$0xff]
        %v9371 = vld [vmem:[#allocation3 + $0x1d0] sm:$0xff]
        %v9372 = vld [vmem:[#allocation3 + $0x1d8] sm:$0xff]
        %v9373 = vld [vmem:[#allocation3 + $0x1e0] sm:$0xff]
        %v9374 = vld [vmem:[#allocation3 + $0x1e8] sm:$0xff]
        %v9375 = vld [vmem:[#allocation3 + $0x1f0] sm:$0xff]
        %v9376 = vld [vmem:[#allocation3 + $0x1f8] sm:$0xff]
        %v9377 = vld [vmem:[#allocation3 + $0x200] sm:$0xff]
        %v9378 = vld [vmem:[#allocation3 + $0x208] sm:$0xff]
        %v9379 = vld [vmem:[#allocation3 + $0x210] sm:$0xff]
        %v9380 = vld [vmem:[#allocation3 + $0x218] sm:$0xff]
        %v9381 = vld [vmem:[#allocation3 + $0x220] sm:$0xff]
        %v9382 = vld [vmem:[#allocation3 + $0x228] sm:$0xff]
        %v9383 = vld [vmem:[#allocation3 + $0x230] sm:$0xff]
        %v9384 = vld [vmem:[#allocation3 + $0x238] sm:$0xff]
        %v9385 = vld [vmem:[#allocation3 + $0x240] sm:$0xff]
        %v9386 = vld [vmem:[#allocation3 + $0x248] sm:$0xff]
        %v9387 = vld [vmem:[#allocation3 + $0x250] sm:$0xff]
        %v9388 = vld [vmem:[#allocation3 + $0x258] sm:$0xff]
        %v9389 = vld [vmem:[#allocation3 + $0x260] sm:$0xff]
        %v9390 = vld [vmem:[#allocation3 + $0x268] sm:$0xff]
        %v9391 = vld [vmem:[#allocation3 + $0x270] sm:$0xff]
        %v9392 = vld [vmem:[#allocation3 + $0x278] sm:$0xff]
        %v9393 = vld [vmem:[#allocation3 + $0x280] sm:$0xff]
        %v9394 = vld [vmem:[#allocation3 + $0x288] sm:$0xff]
        %v9395 = vld [vmem:[#allocation3 + $0x290] sm:$0xff]
        %v9396 = vld [vmem:[#allocation3 + $0x298] sm:$0xff]
        %v9397 = vld [vmem:[#allocation3 + $0x2a0] sm:$0xff]
        %v9398 = vld [vmem:[#allocation3 + $0x2a8] sm:$0xff]
        %v9399 = vld [vmem:[#allocation3 + $0x2b0] sm:$0xff]
        %v9400 = vld [vmem:[#allocation3 + $0x2b8] sm:$0xff]
        %v9401 = vld [vmem:[#allocation3 + $0x2c0] sm:$0xff]
        %v9402 = vld [vmem:[#allocation3 + $0x2c8] sm:$0xff]
        %v9403 = vld [vmem:[#allocation3 + $0x2d0] sm:$0xff]
        %v9404 = vld [vmem:[#allocation3 + $0x2d8] sm:$0xff]
        %v9405 = vld [vmem:[#allocation3 + $0x2e0] sm:$0xff]
        %v9406 = vld [vmem:[#allocation3 + $0x2e8] sm:$0xff]
        %v9407 = vld [vmem:[#allocation3 + $0x2f0] sm:$0xff]
        %v9408 = vld [vmem:[#allocation3 + $0x2f8] sm:$0xff]
        %v9409 = vld [vmem:[#allocation3 + $0x300] sm:$0xff]
        %v9410 = vld [vmem:[#allocation3 + $0x308] sm:$0xff]
        %v9411 = vld [vmem:[#allocation3 + $0x310] sm:$0xff]
        %v9412 = vld [vmem:[#allocation3 + $0x318] sm:$0xff]
        %v9413 = vld [vmem:[#allocation3 + $0x320] sm:$0xff]
        %v9414 = vld [vmem:[#allocation3 + $0x328] sm:$0xff]
        %v9415 = vld [vmem:[#allocation3 + $0x330] sm:$0xff]
        %v9416 = vld [vmem:[#allocation3 + $0x338] sm:$0xff]
        %v9417 = vld [vmem:[#allocation3 + $0x340] sm:$0xff]
        %v9418 = vld [vmem:[#allocation3 + $0x348] sm:$0xff]
        %v9419 = vld [vmem:[#allocation3 + $0x350] sm:$0xff]
        %v9420 = vld [vmem:[#allocation3 + $0x358] sm:$0xff]
        %v9421 = vld [vmem:[#allocation3 + $0x360] sm:$0xff]
        %v9422 = vld [vmem:[#allocation3 + $0x368] sm:$0xff]
        %v9423 = vld [vmem:[#allocation3 + $0x370] sm:$0xff]
        %v9424 = vld [vmem:[#allocation3 + $0x378] sm:$0xff]
        %v9425 = vld [vmem:[#allocation3 + $0x380] sm:$0xff]
        %v9426 = vld [vmem:[#allocation3 + $0x388] sm:$0xff]
        %v9427 = vld [vmem:[#allocation3 + $0x390] sm:$0xff]
        %v9428 = vld [vmem:[#allocation3 + $0x398] sm:$0xff]
        %v9429 = vld [vmem:[#allocation3 + $0x3a0] sm:$0xff]
        %v9430 = vld [vmem:[#allocation3 + $0x3a8] sm:$0xff]
        %v9431 = vld [vmem:[#allocation3 + $0x3b0] sm:$0xff]
        %v9432 = vld [vmem:[#allocation3 + $0x3b8] sm:$0xff]
        %v9433 = vld [vmem:[#allocation3 + $0x3c0] sm:$0xff]
        %v9434 = vld [vmem:[#allocation3 + $0x3c8] sm:$0xff]
        %v9435 = vld [vmem:[#allocation3 + $0x3d0] sm:$0xff]
        %v9436 = vld [vmem:[#allocation3 + $0x3d8] sm:$0xff]
        %v9437 = vld [vmem:[#allocation3 + $0x3e0] sm:$0xff]
        %v9438 = vld [vmem:[#allocation3 + $0x3e8] sm:$0xff]
        %v9439 = vld [vmem:[#allocation3 + $0x3f0] sm:$0xff]
        %v9440 = vld [vmem:[#allocation3 + $0x3f8] sm:$0xff]
        %v9441 = vld [vmem:[#allocation3 + $0x400] sm:$0xff]
        %v9442 = vld [vmem:[#allocation3 + $0x408] sm:$0xff]
        %v9443 = vld [vmem:[#allocation3 + $0x410] sm:$0xff]
        %v9444 = vld [vmem:[#allocation3 + $0x418] sm:$0xff]
        %v9445 = vld [vmem:[#allocation3 + $0x420] sm:$0xff]
        %v9446 = vld [vmem:[#allocation3 + $0x428] sm:$0xff]
        %v9447 = vld [vmem:[#allocation3 + $0x430] sm:$0xff]
        %v9448 = vld [vmem:[#allocation3 + $0x438] sm:$0xff]
        %v9449 = vld [vmem:[#allocation3 + $0x440] sm:$0xff]
        %v9450 = vld [vmem:[#allocation3 + $0x448] sm:$0xff]
        %v9451 = vld [vmem:[#allocation3 + $0x450] sm:$0xff]
        %v9452 = vld [vmem:[#allocation3 + $0x458] sm:$0xff]
        %v9453 = vld [vmem:[#allocation3 + $0x460] sm:$0xff]
        %v9454 = vld [vmem:[#allocation3 + $0x468] sm:$0xff]
        %v9455 = vld [vmem:[#allocation3 + $0x470] sm:$0xff]
        %v9456 = vld [vmem:[#allocation3 + $0x478] sm:$0xff]
        %v9457 = vld [vmem:[#allocation10] sm:$0xf]
        %v9458 = vld [vmem:[#allocation10 + $0x4] sm:$0xf]
        %v9459 = vld [vmem:[#allocation10 + $0x8] sm:$0xf]
        %v9460 = vld [vmem:[#allocation10 + $0xc] sm:$0xf]
        %v9461 = vld [vmem:[#allocation10 + $0x10] sm:$0xf]
        %v9462 = vld [vmem:[#allocation10 + $0x14] sm:$0xf]
        %v9463 = vld [vmem:[#allocation10 + $0x18] sm:$0xf]
        %v9464 = vld [vmem:[#allocation10 + $0x1c] sm:$0xf]
        %v9465 = vld [vmem:[#allocation10 + $0x20] sm:$0xf]
        %v9466 = vld [vmem:[#allocation10 + $0x24] sm:$0xf]
        %v9467 = vld [vmem:[#allocation10 + $0x28] sm:$0xf]
        %v9468 = vld [vmem:[#allocation10 + $0x2c] sm:$0xf]
        %v9469 = vld [vmem:[#allocation10 + $0x30] sm:$0xf]
        %v9470 = vld [vmem:[#allocation10 + $0x34] sm:$0xf]
        %v9471 = vld [vmem:[#allocation10 + $0x38] sm:$0xf]
        %v9472 = vld [vmem:[#allocation10 + $0x3c] sm:$0xf]
        %v9473 = vld [vmem:[#allocation10 + $0x40] sm:$0xf]
        %v9474 = vld [vmem:[#allocation10 + $0x44] sm:$0xf]
        %v9475 = vld [vmem:[#allocation10 + $0x48] sm:$0xf]
        %v9476 = vld [vmem:[#allocation10 + $0x4c] sm:$0xf]
        %v9477 = vld [vmem:[#allocation10 + $0x50] sm:$0xf]
        %v9478 = vld [vmem:[#allocation10 + $0x54] sm:$0xf]
        %v9479 = vld [vmem:[#allocation10 + $0x58] sm:$0xf]
        %v9480 = vld [vmem:[#allocation10 + $0x5c] sm:$0xf]
        %v9481 = vld [vmem:[#allocation10 + $0x60] sm:$0xf]
        %v9482 = vld [vmem:[#allocation10 + $0x64] sm:$0xf]
        %v9483 = vld [vmem:[#allocation10 + $0x68] sm:$0xf]
        %v9484 = vld [vmem:[#allocation10 + $0x6c] sm:$0xf]
        %v9485 = vld [vmem:[#allocation10 + $0x70] sm:$0xf]
        %v9486 = vld [vmem:[#allocation10 + $0x74] sm:$0xf]
        %v9487 = vld [vmem:[#allocation10 + $0x78] sm:$0xf]
        %v9488 = vld [vmem:[#allocation10 + $0x7c] sm:$0xf]
        %v9489 = vld [vmem:[#allocation10 + $0x80] sm:$0xf]
        %v9490 = vld [vmem:[#allocation10 + $0x84] sm:$0xf]
        %v9491 = vld [vmem:[#allocation10 + $0x88] sm:$0xf]
        %v9492 = vld [vmem:[#allocation10 + $0x8c] sm:$0xf]
        %v9493 = vld [vmem:[#allocation10 + $0x90] sm:$0xf]
        %v9494 = vld [vmem:[#allocation10 + $0x94] sm:$0xf]
        %v9495 = vld [vmem:[#allocation10 + $0x98] sm:$0xf]
        %v9496 = vld [vmem:[#allocation10 + $0x9c] sm:$0xf]
        %v9497 = vld [vmem:[#allocation10 + $0xa0] sm:$0xf]
        %v9498 = vld [vmem:[#allocation10 + $0xa4] sm:$0xf]
        %v9499 = vld [vmem:[#allocation10 + $0xa8] sm:$0xf]
        %v9500 = vld [vmem:[#allocation10 + $0xac] sm:$0xf]
        %v9501 = vld [vmem:[#allocation10 + $0xb0] sm:$0xf]
        %v9502 = vld [vmem:[#allocation10 + $0xb4] sm:$0xf]
        %v9503 = vld [vmem:[#allocation10 + $0xb8] sm:$0xf]
        %v9504 = vld [vmem:[#allocation10 + $0xbc] sm:$0xf]
        %v9505 = vld [vmem:[#allocation10 + $0xc0] sm:$0xf]
        %v9506 = vld [vmem:[#allocation10 + $0xc4] sm:$0xf]
        %v9507 = vld [vmem:[#allocation10 + $0xc8] sm:$0xf]
        %v9508 = vld [vmem:[#allocation10 + $0xcc] sm:$0xf]
        %v9509 = vld [vmem:[#allocation10 + $0xd0] sm:$0xf]
        %v9510 = vld [vmem:[#allocation10 + $0xd4] sm:$0xf]
        %v9511 = vld [vmem:[#allocation10 + $0xd8] sm:$0xf]
        %v9512 = vld [vmem:[#allocation10 + $0xdc] sm:$0xf]
        %v9513 = vld [vmem:[#allocation10 + $0xe0] sm:$0xf]
        %v9514 = vld [vmem:[#allocation10 + $0xe4] sm:$0xf]
        %v9515 = vld [vmem:[#allocation10 + $0xe8] sm:$0xf]
        %v9516 = vld [vmem:[#allocation10 + $0xec] sm:$0xf]
        %v9517 = vld [vmem:[#allocation10 + $0xf0] sm:$0xf]
        %v9518 = vld [vmem:[#allocation10 + $0xf4] sm:$0xf]
        %v9519 = vld [vmem:[#allocation10 + $0xf8] sm:$0xf]
        %v9520 = vld [vmem:[#allocation10 + $0xfc] sm:$0xf]
        %v9521 = vld [vmem:[#allocation10 + $0x100] sm:$0xf]
        %v9522 = vld [vmem:[#allocation10 + $0x104] sm:$0xf]
        %v9523 = vld [vmem:[#allocation10 + $0x108] sm:$0xf]
        %v9524 = vld [vmem:[#allocation10 + $0x10c] sm:$0xf]
        %v9525 = vld [vmem:[#allocation10 + $0x110] sm:$0xf]
        %v9526 = vld [vmem:[#allocation10 + $0x114] sm:$0xf]
        %v9527 = vld [vmem:[#allocation10 + $0x118] sm:$0xf]
        %v9528 = vld [vmem:[#allocation10 + $0x11c] sm:$0xf]
        %v9529 = vld [vmem:[#allocation10 + $0x120] sm:$0xf]
        %v9530 = vld [vmem:[#allocation10 + $0x124] sm:$0xf]
        %v9531 = vld [vmem:[#allocation10 + $0x128] sm:$0xf]
        %v9532 = vld [vmem:[#allocation10 + $0x12c] sm:$0xf]
        %v9533 = vld [vmem:[#allocation10 + $0x130] sm:$0xf]
        %v9534 = vld [vmem:[#allocation10 + $0x134] sm:$0xf]
        %v9535 = vld [vmem:[#allocation10 + $0x138] sm:$0xf]
        %v9536 = vld [vmem:[#allocation10 + $0x13c] sm:$0xf]
        %v9537 = vld [vmem:[#allocation10 + $0x140] sm:$0xf]
        %v9538 = vld [vmem:[#allocation10 + $0x144] sm:$0xf]
        %v9539 = vld [vmem:[#allocation10 + $0x148] sm:$0xf]
        %v9540 = vld [vmem:[#allocation10 + $0x14c] sm:$0xf]
        %v9541 = vld [vmem:[#allocation10 + $0x150] sm:$0xf]
        %v9542 = vld [vmem:[#allocation10 + $0x154] sm:$0xf]
        %v9543 = vld [vmem:[#allocation10 + $0x158] sm:$0xf]
        %v9544 = vld [vmem:[#allocation10 + $0x15c] sm:$0xf]
        %v9545 = vld [vmem:[#allocation10 + $0x160] sm:$0xf]
        %v9546 = vld [vmem:[#allocation10 + $0x164] sm:$0xf]
        %v9547 = vld [vmem:[#allocation10 + $0x168] sm:$0xf]
        %v9548 = vld [vmem:[#allocation10 + $0x16c] sm:$0xf]
        %v9549 = vld [vmem:[#allocation10 + $0x170] sm:$0xf]
        %v9550 = vld [vmem:[#allocation10 + $0x174] sm:$0xf]
        %v9551 = vld [vmem:[#allocation10 + $0x178] sm:$0xf]
        %v9552 = vld [vmem:[#allocation10 + $0x17c] sm:$0xf]
        %v9553 = vld [vmem:[#allocation10 + $0x180] sm:$0xf]
        %v9554 = vld [vmem:[#allocation10 + $0x184] sm:$0xf]
        %v9555 = vld [vmem:[#allocation10 + $0x188] sm:$0xf]
        %v9556 = vld [vmem:[#allocation10 + $0x18c] sm:$0xf]
        %v9557 = vld [vmem:[#allocation10 + $0x190] sm:$0xf]
        %v9558 = vld [vmem:[#allocation10 + $0x194] sm:$0xf]
        %v9559 = vld [vmem:[#allocation10 + $0x198] sm:$0xf]
        %v9560 = vld [vmem:[#allocation10 + $0x19c] sm:$0xf]
        %v9561 = vld [vmem:[#allocation10 + $0x1a0] sm:$0xf]
        %v9562 = vld [vmem:[#allocation10 + $0x1a4] sm:$0xf]
        %v9563 = vld [vmem:[#allocation10 + $0x1a8] sm:$0xf]
        %v9564 = vld [vmem:[#allocation10 + $0x1ac] sm:$0xf]
        %v9565 = vld [vmem:[#allocation10 + $0x1b0] sm:$0xf]
        %v9566 = vld [vmem:[#allocation10 + $0x1b4] sm:$0xf]
        %v9567 = vld [vmem:[#allocation10 + $0x1b8] sm:$0xf]
        %v9568 = vld [vmem:[#allocation10 + $0x1bc] sm:$0xf]
        %v9569 = vld [vmem:[#allocation10 + $0x1c0] sm:$0xf]
        %v9570 = vld [vmem:[#allocation10 + $0x1c4] sm:$0xf]
        %v9571 = vld [vmem:[#allocation10 + $0x1c8] sm:$0xf]
        %v9572 = vld [vmem:[#allocation10 + $0x1cc] sm:$0xf]
        %v9573 = vld [vmem:[#allocation10 + $0x1d0] sm:$0xf]
        %v9574 = vld [vmem:[#allocation10 + $0x1d4] sm:$0xf]
        %v9575 = vld [vmem:[#allocation10 + $0x1d8] sm:$0xf]
        %v9576 = vld [vmem:[#allocation10 + $0x1dc] sm:$0xf]
        %v9577 = vld [vmem:[#allocation10 + $0x1e0] sm:$0xf]
        %v9578 = vld [vmem:[#allocation10 + $0x1e4] sm:$0xf]
        %v9579 = vld [vmem:[#allocation10 + $0x1e8] sm:$0xf]
        %v9580 = vld [vmem:[#allocation10 + $0x1ec] sm:$0xf]
        %v9581 = vld [vmem:[#allocation10 + $0x1f0] sm:$0xf]
        %v9582 = vld [vmem:[#allocation10 + $0x1f4] sm:$0xf]
        %v9583 = vld [vmem:[#allocation10 + $0x1f8] sm:$0xf]
        %v9584 = vld [vmem:[#allocation10 + $0x1fc] sm:$0xf]
        %v9585 = vld [vmem:[#allocation10 + $0x200] sm:$0xf]
        %v9586 = vld [vmem:[#allocation10 + $0x204] sm:$0xf]
        %v9587 = vld [vmem:[#allocation10 + $0x208] sm:$0xf]
        %v9588 = vld [vmem:[#allocation10 + $0x20c] sm:$0xf]
        %v9589 = vld [vmem:[#allocation10 + $0x210] sm:$0xf]
        %v9590 = vld [vmem:[#allocation10 + $0x214] sm:$0xf]
        %v9591 = vld [vmem:[#allocation10 + $0x218] sm:$0xf]
        %v9592 = vld [vmem:[#allocation10 + $0x21c] sm:$0xf]
        %v9593 = vld [vmem:[#allocation10 + $0x220] sm:$0xf]
        %v9594 = vld [vmem:[#allocation10 + $0x224] sm:$0xf]
        %v9595 = vld [vmem:[#allocation10 + $0x228] sm:$0xf]
        %v9596 = vld [vmem:[#allocation10 + $0x22c] sm:$0xf]
        %v9597 = vld [vmem:[#allocation10 + $0x230] sm:$0xf]
        %v9598 = vld [vmem:[#allocation10 + $0x234] sm:$0xf]
        %v9599 = vld [vmem:[#allocation10 + $0x238] sm:$0xf]
        %v9600 = vld [vmem:[#allocation10 + $0x23c] sm:$0xf]
        %v9601 = vld [vmem:[#allocation12] sm:$0x1]
        %v9603 = vlaneseq
        %v9604 = vshrl.u32 %v9603, 7
        %v9605 = vsub.s32 0, %v9604
        %v9606 = vrot.slane %v9601, %v9605
        %v9752 = vunpack.c.l.b16 %v9457
        %v9753 = vunpack.c.l.b16 %v9458
        %v9754 = vunpack.c.l.b16 %v9459
        %v9755 = vunpack.c.l.b16 %v9460
        %v9756 = vunpack.c.l.b16 %v9461
        %v9757 = vunpack.c.l.b16 %v9462
        %v9758 = vunpack.c.l.b16 %v9463
        %v9759 = vunpack.c.l.b16 %v9464
        %v9760 = vunpack.c.l.b16 %v9465
        %v9761 = vunpack.c.l.b16 %v9466
        %v9762 = vunpack.c.l.b16 %v9467
        %v9763 = vunpack.c.l.b16 %v9468
        %v9764 = vunpack.c.l.b16 %v9469
        %v9765 = vunpack.c.l.b16 %v9470
        %v9766 = vunpack.c.l.b16 %v9471
        %v9767 = vunpack.c.l.b16 %v9472
        %v9768 = vunpack.c.l.b16 %v9473
        %v9769 = vunpack.c.l.b16 %v9474
        %v9770 = vunpack.c.l.b16 %v9475
        %v9771 = vunpack.c.l.b16 %v9476
        %v9772 = vunpack.c.l.b16 %v9477
        %v9773 = vunpack.c.l.b16 %v9478
        %v9774 = vunpack.c.l.b16 %v9479
        %v9775 = vunpack.c.l.b16 %v9480
        %v9776 = vunpack.c.l.b16 %v9481
        %v9777 = vunpack.c.l.b16 %v9482
        %v9778 = vunpack.c.l.b16 %v9483
        %v9779 = vunpack.c.l.b16 %v9484
        %v9780 = vunpack.c.l.b16 %v9485
        %v9781 = vunpack.c.l.b16 %v9486
        %v9782 = vunpack.c.l.b16 %v9487
        %v9783 = vunpack.c.l.b16 %v9488
        %v9784 = vunpack.c.l.b16 %v9489
        %v9785 = vunpack.c.l.b16 %v9490
        %v9786 = vunpack.c.l.b16 %v9491
        %v9787 = vunpack.c.l.b16 %v9492
        %v9788 = vunpack.c.l.b16 %v9493
        %v9789 = vunpack.c.l.b16 %v9494
        %v9790 = vunpack.c.l.b16 %v9495
        %v9791 = vunpack.c.l.b16 %v9496
        %v9792 = vunpack.c.l.b16 %v9497
        %v9793 = vunpack.c.l.b16 %v9498
        %v9794 = vunpack.c.l.b16 %v9499
        %v9795 = vunpack.c.l.b16 %v9500
        %v9796 = vunpack.c.l.b16 %v9501
        %v9797 = vunpack.c.l.b16 %v9502
        %v9798 = vunpack.c.l.b16 %v9503
        %v9799 = vunpack.c.l.b16 %v9504
        %v9800 = vunpack.c.l.b16 %v9505
        %v9801 = vunpack.c.l.b16 %v9506
        %v9802 = vunpack.c.l.b16 %v9507
        %v9803 = vunpack.c.l.b16 %v9508
        %v9804 = vunpack.c.l.b16 %v9509
        %v9805 = vunpack.c.l.b16 %v9510
        %v9806 = vunpack.c.l.b16 %v9511
        %v9807 = vunpack.c.l.b16 %v9512
        %v9808 = vunpack.c.l.b16 %v9513
        %v9809 = vunpack.c.l.b16 %v9514
        %v9810 = vunpack.c.l.b16 %v9515
        %v9811 = vunpack.c.l.b16 %v9516
        %v9812 = vunpack.c.l.b16 %v9517
        %v9813 = vunpack.c.l.b16 %v9518
        %v9814 = vunpack.c.l.b16 %v9519
        %v9815 = vunpack.c.l.b16 %v9520
        %v9816 = vunpack.c.l.b16 %v9521
        %v9817 = vunpack.c.l.b16 %v9522
        %v9818 = vunpack.c.l.b16 %v9523
        %v9819 = vunpack.c.l.b16 %v9524
        %v9820 = vunpack.c.l.b16 %v9525
        %v9821 = vunpack.c.l.b16 %v9526
        %v9822 = vunpack.c.l.b16 %v9527
        %v9823 = vunpack.c.l.b16 %v9528
        %v9824 = vunpack.c.l.b16 %v9529
        %v9825 = vunpack.c.l.b16 %v9530
        %v9826 = vunpack.c.l.b16 %v9531
        %v9827 = vunpack.c.l.b16 %v9532
        %v9828 = vunpack.c.l.b16 %v9533
        %v9829 = vunpack.c.l.b16 %v9534
        %v9830 = vunpack.c.l.b16 %v9535
        %v9831 = vunpack.c.l.b16 %v9536
        %v9832 = vunpack.c.l.b16 %v9537
        %v9833 = vunpack.c.l.b16 %v9538
        %v9834 = vunpack.c.l.b16 %v9539
        %v9835 = vunpack.c.l.b16 %v9540
        %v9836 = vunpack.c.l.b16 %v9541
        %v9837 = vunpack.c.l.b16 %v9542
        %v9838 = vunpack.c.l.b16 %v9543
        %v9839 = vunpack.c.l.b16 %v9544
        %v9840 = vunpack.c.l.b16 %v9545
        %v9841 = vunpack.c.l.b16 %v9546
        %v9842 = vunpack.c.l.b16 %v9547
        %v9843 = vunpack.c.l.b16 %v9548
        %v9844 = vunpack.c.l.b16 %v9549
        %v9845 = vunpack.c.l.b16 %v9550
        %v9846 = vunpack.c.l.b16 %v9551
        %v9847 = vunpack.c.l.b16 %v9552
        %v9848 = vunpack.c.l.b16 %v9553
        %v9849 = vunpack.c.l.b16 %v9554
        %v9850 = vunpack.c.l.b16 %v9555
        %v9851 = vunpack.c.l.b16 %v9556
        %v9852 = vunpack.c.l.b16 %v9557
        %v9853 = vunpack.c.l.b16 %v9558
        %v9854 = vunpack.c.l.b16 %v9559
        %v9855 = vunpack.c.l.b16 %v9560
        %v9856 = vunpack.c.l.b16 %v9561
        %v9857 = vunpack.c.l.b16 %v9562
        %v9858 = vunpack.c.l.b16 %v9563
        %v9859 = vunpack.c.l.b16 %v9564
        %v9860 = vunpack.c.l.b16 %v9565
        %v9861 = vunpack.c.l.b16 %v9566
        %v9862 = vunpack.c.l.b16 %v9567
        %v9863 = vunpack.c.l.b16 %v9568
        %v9864 = vunpack.c.l.b16 %v9569
        %v9865 = vunpack.c.l.b16 %v9570
        %v9866 = vunpack.c.l.b16 %v9571
        %v9867 = vunpack.c.l.b16 %v9572
        %v9868 = vunpack.c.l.b16 %v9573
        %v9869 = vunpack.c.l.b16 %v9574
        %v9870 = vunpack.c.l.b16 %v9575
        %v9871 = vunpack.c.l.b16 %v9576
        %v9872 = vunpack.c.l.b16 %v9577
        %v9873 = vunpack.c.l.b16 %v9578
        %v9874 = vunpack.c.l.b16 %v9579
        %v9875 = vunpack.c.l.b16 %v9580
        %v9876 = vunpack.c.l.b16 %v9581
        %v9877 = vunpack.c.l.b16 %v9582
        %v9878 = vunpack.c.l.b16 %v9583
        %v9879 = vunpack.c.l.b16 %v9584
        %v9880 = vunpack.c.l.b16 %v9585
        %v9881 = vunpack.c.l.b16 %v9586
        %v9882 = vunpack.c.l.b16 %v9587
        %v9883 = vunpack.c.l.b16 %v9588
        %v9884 = vunpack.c.l.b16 %v9589
        %v9885 = vunpack.c.l.b16 %v9590
        %v9886 = vunpack.c.l.b16 %v9591
        %v9887 = vunpack.c.l.b16 %v9592
        %v9888 = vunpack.c.l.b16 %v9593
        %v9889 = vunpack.c.l.b16 %v9594
        %v9890 = vunpack.c.l.b16 %v9595
        %v9891 = vunpack.c.l.b16 %v9596
        %v9892 = vunpack.c.l.b16 %v9597
        %v9893 = vunpack.c.l.b16 %v9598
        %v9894 = vunpack.c.l.b16 %v9599
        %v9895 = vunpack.c.l.b16 %v9600
        %v9896 = vpack.c.b16 %v9753, %v9752
        %v9897 = vpack.c.b16 %v9755, %v9754
        %v9898 = vpack.c.b16 %v9757, %v9756
        %v9899 = vpack.c.b16 %v9759, %v9758
        %v9900 = vpack.c.b16 %v9761, %v9760
        %v9901 = vpack.c.b16 %v9763, %v9762
        %v9902 = vpack.c.b16 %v9765, %v9764
        %v9903 = vpack.c.b16 %v9767, %v9766
        %v9904 = vpack.c.b16 %v9769, %v9768
        %v9905 = vpack.c.b16 %v9771, %v9770
        %v9906 = vpack.c.b16 %v9773, %v9772
        %v9907 = vpack.c.b16 %v9775, %v9774
        %v9908 = vpack.c.b16 %v9777, %v9776
        %v9909 = vpack.c.b16 %v9779, %v9778
        %v9910 = vpack.c.b16 %v9781, %v9780
        %v9911 = vpack.c.b16 %v9783, %v9782
        %v9912 = vpack.c.b16 %v9785, %v9784
        %v9913 = vpack.c.b16 %v9787, %v9786
        %v9914 = vpack.c.b16 %v9789, %v9788
        %v9915 = vpack.c.b16 %v9791, %v9790
        %v9916 = vpack.c.b16 %v9793, %v9792
        %v9917 = vpack.c.b16 %v9795, %v9794
        %v9918 = vpack.c.b16 %v9797, %v9796
        %v9919 = vpack.c.b16 %v9799, %v9798
        %v9920 = vpack.c.b16 %v9801, %v9800
        %v9921 = vpack.c.b16 %v9803, %v9802
        %v9922 = vpack.c.b16 %v9805, %v9804
        %v9923 = vpack.c.b16 %v9807, %v9806
        %v9924 = vpack.c.b16 %v9809, %v9808
        %v9925 = vpack.c.b16 %v9811, %v9810
        %v9926 = vpack.c.b16 %v9813, %v9812
        %v9927 = vpack.c.b16 %v9815, %v9814
        %v9928 = vpack.c.b16 %v9817, %v9816
        %v9929 = vpack.c.b16 %v9819, %v9818
        %v9930 = vpack.c.b16 %v9821, %v9820
        %v9931 = vpack.c.b16 %v9823, %v9822
        %v9932 = vpack.c.b16 %v9825, %v9824
        %v9933 = vpack.c.b16 %v9827, %v9826
        %v9934 = vpack.c.b16 %v9829, %v9828
        %v9935 = vpack.c.b16 %v9831, %v9830
        %v9936 = vpack.c.b16 %v9833, %v9832
        %v9937 = vpack.c.b16 %v9835, %v9834
        %v9938 = vpack.c.b16 %v9837, %v9836
        %v9939 = vpack.c.b16 %v9839, %v9838
        %v9940 = vpack.c.b16 %v9841, %v9840
        %v9941 = vpack.c.b16 %v9843, %v9842
        %v9942 = vpack.c.b16 %v9845, %v9844
        %v9943 = vpack.c.b16 %v9847, %v9846
        %v9944 = vpack.c.b16 %v9849, %v9848
        %v9945 = vpack.c.b16 %v9851, %v9850
        %v9946 = vpack.c.b16 %v9853, %v9852
        %v9947 = vpack.c.b16 %v9855, %v9854
        %v9948 = vpack.c.b16 %v9857, %v9856
        %v9949 = vpack.c.b16 %v9859, %v9858
        %v9950 = vpack.c.b16 %v9861, %v9860
        %v9951 = vpack.c.b16 %v9863, %v9862
        %v9952 = vpack.c.b16 %v9865, %v9864
        %v9953 = vpack.c.b16 %v9867, %v9866
        %v9954 = vpack.c.b16 %v9869, %v9868
        %v9955 = vpack.c.b16 %v9871, %v9870
        %v9956 = vpack.c.b16 %v9873, %v9872
        %v9957 = vpack.c.b16 %v9875, %v9874
        %v9958 = vpack.c.b16 %v9877, %v9876
        %v9959 = vpack.c.b16 %v9879, %v9878
        %v9960 = vpack.c.b16 %v9881, %v9880
        %v9961 = vpack.c.b16 %v9883, %v9882
        %v9962 = vpack.c.b16 %v9885, %v9884
        %v9963 = vpack.c.b16 %v9887, %v9886
        %v9964 = vpack.c.b16 %v9889, %v9888
        %v9965 = vpack.c.b16 %v9891, %v9890
        %v9966 = vpack.c.b16 %v9893, %v9892
        %v9967 = vpack.c.b16 %v9895, %v9894
        %10040 = vmatprep.subr.bf16.mxu0 0
        %10041 = vmatpush1.bf16.msra.mxu0 %v9896
        %10042 = vmatprep.subr.bf16.mxu0 0
        %10043 = vmatpush1.bf16.msra.mxu0 %v9897
        %10044 = vmatprep.subr.bf16.mxu0 0
        %10045 = vmatpush1.bf16.msra.mxu0 %v9898
        %10046 = vmatprep.subr.bf16.mxu0 0
        %10047 = vmatpush1.bf16.msra.mxu0 %v9899
        %10048 = vmatprep.subr.bf16.mxu0 0
        %10049 = vmatpush1.bf16.msra.mxu0 %v9900
        %10050 = vmatprep.subr.bf16.mxu0 0
        %10051 = vmatpush1.bf16.msra.mxu0 %v9901
        %10052 = vmatprep.subr.bf16.mxu0 0
        %10053 = vmatpush1.bf16.msra.mxu0 %v9902
        %10054 = vmatprep.subr.bf16.mxu0 0
        %10055 = vmatpush1.bf16.msra.mxu0 %v9903
        %10056 = vmatprep.subr.bf16.mxu0 0
        %10057 = vmatpush1.bf16.msra.mxu0 %v9904
        %10058 = vmatprep.subr.bf16.mxu0 0
        %10059 = vmatpush1.bf16.msra.mxu0 %v9905
        %10060 = vmatprep.subr.bf16.mxu0 0
        %10061 = vmatpush1.bf16.msra.mxu0 %v9906
        %10062 = vmatprep.subr.bf16.mxu0 0
        %10063 = vmatpush1.bf16.msra.mxu0 %v9907
        %10064 = vmatprep.subr.bf16.mxu0 0
        %10065 = vmatpush1.bf16.msra.mxu0 %v9908
        %10066 = vmatprep.subr.bf16.mxu0 0
        %10067 = vmatpush1.bf16.msra.mxu0 %v9909
        %10068 = vmatprep.subr.bf16.mxu0 0
        %10069 = vmatpush1.bf16.msra.mxu0 %v9910
        %10070 = vmatprep.subr.bf16.mxu0 0
        %10071 = vmatpush1.bf16.msra.mxu0 %v9911
        %10072 = vmatprep.mubr.bf16.mxu0 %v9314
        %10073 = vmatmul.mubr.bf16.gmra.mrb[0].mxu0 %v9313
        %v10074 = vpop.f32.mrb[0].mxu0
        %v10075 = vadd.f32 %v9606, %v10074
        %v10076 = vpop.f32.mrb[0].mxu0
        %v10077 = vpop.f32.mrb[0].mxu0
        %v10078 = vadd.f32 %v9606, %v10077
        %v10079 = vpop.f32.mrb[0].mxu0
        %10080 = vmatprep.mubr.bf16.mxu0 %v9323
        %10081 = vmatmul.mubr.bf16.gmra.mrb[0].mxu0 %v9322
        %v10082 = vpop.f32.mrb[0].mxu0
        %v10083 = vadd.f32 %v9606, %v10082
        %v10084 = vpop.f32.mrb[0].mxu0
        %v10085 = vpop.f32.mrb[0].mxu0
        %v10086 = vadd.f32 %v9606, %v10085
        %v10087 = vpop.f32.mrb[0].mxu0
        %10088 = vmatprep.mubr.bf16.mxu0 %v9332
        %10089 = vmatmul.mubr.bf16.gmra.mrb[0].mxu0 %v9331
        %v10090 = vpop.f32.mrb[0].mxu0
        %v10091 = vadd.f32 %v9606, %v10090
        %v10092 = vpop.f32.mrb[0].mxu0
        %v10093 = vpop.f32.mrb[0].mxu0
        %v10094 = vadd.f32 %v9606, %v10093
        %v10095 = vpop.f32.mrb[0].mxu0
        %10096 = vmatprep.mubr.bf16.mxu0 %v9341
        %10097 = vmatmul.mubr.bf16.gmra.mrb[0].mxu0 %v9340
        %v10098 = vpop.f32.mrb[0].mxu0
        %v10099 = vadd.f32 %v9606, %v10098
        %v10100 = vpop.f32.mrb[0].mxu0
        %v10101 = vpop.f32.mrb[0].mxu0
        %v10102 = vadd.f32 %v9606, %v10101
        %v10103 = vpop.f32.mrb[0].mxu0
        %10104 = vmatprep.mubr.bf16.mxu0 %v9350
        %10105 = vmatmul.mubr.bf16.gmra.mrb[0].mxu0 %v9349
        %v10106 = vpop.f32.mrb[0].mxu0
        %v10107 = vadd.f32 %v9606, %v10106
        %v10108 = vpop.f32.mrb[0].mxu0
        %v10109 = vpop.f32.mrb[0].mxu0
        %v10110 = vadd.f32 %v9606, %v10109
        %v10111 = vpop.f32.mrb[0].mxu0
        %10112 = vmatprep.mubr.bf16.mxu0 %v9359
        %10113 = vmatmul.mubr.bf16.gmra.mrb[0].mxu0 %v9358
        %v10114 = vpop.f32.mrb[0].mxu0
        %v10115 = vadd.f32 %v9606, %v10114
        %v10116 = vpop.f32.mrb[0].mxu0
        %v10117 = vpop.f32.mrb[0].mxu0
        %v10118 = vadd.f32 %v9606, %v10117
        %v10119 = vpop.f32.mrb[0].mxu0
        %10120 = vmatprep.mubr.bf16.mxu0 %v9368
        %10121 = vmatmul.mubr.bf16.gmra.mrb[0].mxu0 %v9367
        %v10122 = vpop.f32.mrb[0].mxu0
        %v10123 = vadd.f32 %v9606, %v10122
        %v10124 = vpop.f32.mrb[0].mxu0
        %v10125 = vpop.f32.mrb[0].mxu0
        %v10126 = vadd.f32 %v9606, %v10125
        %v10127 = vpop.f32.mrb[0].mxu0
        %10128 = vmatprep.mubr.bf16.mxu0 %v9377
        %10129 = vmatmul.mubr.bf16.gmra.mrb[0].mxu0 %v9376
        %v10130 = vpop.f32.mrb[0].mxu0
        %v10131 = vadd.f32 %v9606, %v10130
        %v10132 = vpop.f32.mrb[0].mxu0
        %v10133 = vpop.f32.mrb[0].mxu0
        %v10134 = vadd.f32 %v9606, %v10133
        %v10135 = vpop.f32.mrb[0].mxu0
        %10136 = vmatprep.mubr.bf16.mxu0 %v9386
        %10137 = vmatmul.mubr.bf16.gmra.mrb[0].mxu0 %v9385
        %v10138 = vpop.f32.mrb[0].mxu0
        %v10139 = vadd.f32 %v9606, %v10138
        %v10140 = vpop.f32.mrb[0].mxu0
        %v10141 = vpop.f32.mrb[0].mxu0
        %v10142 = vadd.f32 %v9606, %v10141
        %v10143 = vpop.f32.mrb[0].mxu0
        %10144 = vmatprep.mubr.bf16.mxu0 %v9395
        %10145 = vmatmul.mubr.bf16.gmra.mrb[0].mxu0 %v9394
        %v10146 = vpop.f32.mrb[0].mxu0
        %v10147 = vadd.f32 %v9606, %v10146
        %v10148 = vpop.f32.mrb[0].mxu0
        %v10149 = vpop.f32.mrb[0].mxu0
        %v10150 = vadd.f32 %v9606, %v10149
        %v10151 = vpop.f32.mrb[0].mxu0
        %10152 = vmatprep.mubr.bf16.mxu0 %v9404
        %10153 = vmatmul.mubr.bf16.gmra.mrb[0].mxu0 %v9403
        %v10154 = vpop.f32.mrb[0].mxu0
        %v10155 = vadd.f32 %v9606, %v10154
        %v10156 = vpop.f32.mrb[0].mxu0
        %v10157 = vpop.f32.mrb[0].mxu0
        %v10158 = vadd.f32 %v9606, %v10157
        %v10159 = vpop.f32.mrb[0].mxu0
        %10160 = vmatprep.mubr.bf16.mxu0 %v9413
        %10161 = vmatmul.mubr.bf16.gmra.mrb[0].mxu0 %v9412
        %v10162 = vpop.f32.mrb[0].mxu0
        %v10163 = vadd.f32 %v9606, %v10162
        %v10164 = vpop.f32.mrb[0].mxu0
        %v10165 = vpop.f32.mrb[0].mxu0
        %v10166 = vadd.f32 %v9606, %v10165
        %v10167 = vpop.f32.mrb[0].mxu0
        %10168 = vmatprep.mubr.bf16.mxu0 %v9422
        %10169 = vmatmul.mubr.bf16.gmra.mrb[0].mxu0 %v9421
        %v10170 = vpop.f32.mrb[0].mxu0
        %v10171 = vadd.f32 %v9606, %v10170
        %v10172 = vpop.f32.mrb[0].mxu0
        %v10173 = vpop.f32.mrb[0].mxu0
        %v10174 = vadd.f32 %v9606, %v10173
        %v10175 = vpop.f32.mrb[0].mxu0
        %10176 = vmatprep.mubr.bf16.mxu0 %v9431
        %10177 = vmatmul.mubr.bf16.gmra.mrb[0].mxu0 %v9430
        %v10178 = vpop.f32.mrb[0].mxu0
        %v10179 = vadd.f32 %v9606, %v10178
        %v10180 = vpop.f32.mrb[0].mxu0
        %v10181 = vpop.f32.mrb[0].mxu0
        %v10182 = vadd.f32 %v9606, %v10181
        %v10183 = vpop.f32.mrb[0].mxu0
        %10184 = vmatprep.mubr.bf16.mxu0 %v9440
        %10185 = vmatmul.mubr.bf16.gmra.mrb[0].mxu0 %v9439
        %v10186 = vpop.f32.mrb[0].mxu0
        %v10187 = vadd.f32 %v9606, %v10186
        %v10188 = vpop.f32.mrb[0].mxu0
        %v10189 = vpop.f32.mrb[0].mxu0
        %v10190 = vadd.f32 %v9606, %v10189
        %v10191 = vpop.f32.mrb[0].mxu0
        %10192 = vmatprep.mubr.bf16.mxu0 %v9449
        %10193 = vmatmul.mubr.bf16.gmra.mrb[0].mxu0 %v9448
        %v10194 = vpop.f32.mrb[0].mxu0
        %v10195 = vadd.f32 %v9606, %v10194
        %v10196 = vpop.f32.mrb[0].mxu0
        %v10197 = vpop.f32.mrb[0].mxu0
        %v10198 = vadd.f32 %v9606, %v10197
        %v10199 = vpop.f32.mrb[0].mxu0
        %10200 = vdwg.mxu0
        %10201 = vmatprep.subr.bf16.mxu0 0
        %10202 = vmatpush1.bf16.msra.mxu0 %v9912
        %10203 = vmatprep.subr.bf16.mxu0 0
        %10204 = vmatpush1.bf16.msra.mxu0 %v9913
        %10205 = vmatprep.subr.bf16.mxu0 0
        %10206 = vmatpush1.bf16.msra.mxu0 %v9914
        %10207 = vmatprep.subr.bf16.mxu0 0
        %10208 = vmatpush1.bf16.msra.mxu0 %v9915
        %10209 = vmatprep.subr.bf16.mxu0 0
        %10210 = vmatpush1.bf16.msra.mxu0 %v9916
        %10211 = vmatprep.subr.bf16.mxu0 0
        %10212 = vmatpush1.bf16.msra.mxu0 %v9917
        %10213 = vmatprep.subr.bf16.mxu0 0
        %10214 = vmatpush1.bf16.msra.mxu0 %v9918
        %10215 = vmatprep.subr.bf16.mxu0 0
        %10216 = vmatpush1.bf16.msra.mxu0 %v9919
        %10217 = vmatprep.subr.bf16.mxu0 0
        %10218 = vmatpush1.bf16.msra.mxu0 %v9920
        %10219 = vmatprep.subr.bf16.mxu0 0
        %10220 = vmatpush1.bf16.msra.mxu0 %v9921
        %10221 = vmatprep.subr.bf16.mxu0 0
        %10222 = vmatpush1.bf16.msra.mxu0 %v9922
        %10223 = vmatprep.subr.bf16.mxu0 0
        %10224 = vmatpush1.bf16.msra.mxu0 %v9923
        %10225 = vmatprep.subr.bf16.mxu0 0
        %10226 = vmatpush1.bf16.msra.mxu0 %v9924
        %10227 = vmatprep.subr.bf16.mxu0 0
        %10228 = vmatpush1.bf16.msra.mxu0 %v9925
        %10229 = vmatprep.subr.bf16.mxu0 0
        %10230 = vmatpush1.bf16.msra.mxu0 %v9926
        %10231 = vmatprep.subr.bf16.mxu0 0
        %10232 = vmatpush1.bf16.msra.mxu0 %v9927
        %10233 = vmatprep.mubr.bf16.mxu0 %v9316
        %10234 = vmatmul.mubr.bf16.gmra.mrb[0].mxu0 %v9315
        %v10235 = vpop.f32.mrb[0].mxu0
        %v10236 = vadd.f32 %v10075, %v10235
        %v10237 = vpop.f32.mrb[0].mxu0
        %v10238 = vpop.f32.mrb[0].mxu0
        %v10239 = vadd.f32 %v10078, %v10238
        %v10240 = vpop.f32.mrb[0].mxu0
        %10241 = vmatprep.mubr.bf16.mxu0 %v9325
        %10242 = vmatmul.mubr.bf16.gmra.mrb[0].mxu0 %v9324
        %v10243 = vpop.f32.mrb[0].mxu0
        %v10244 = vadd.f32 %v10083, %v10243
        %v10245 = vpop.f32.mrb[0].mxu0
        %v10246 = vpop.f32.mrb[0].mxu0
        %v10247 = vadd.f32 %v10086, %v10246
        %v10248 = vpop.f32.mrb[0].mxu0
        %10249 = vmatprep.mubr.bf16.mxu0 %v9334
        %10250 = vmatmul.mubr.bf16.gmra.mrb[0].mxu0 %v9333
        %v10251 = vpop.f32.mrb[0].mxu0
        %v10252 = vadd.f32 %v10091, %v10251
        %v10253 = vpop.f32.mrb[0].mxu0
        %v10254 = vpop.f32.mrb[0].mxu0
        %v10255 = vadd.f32 %v10094, %v10254
        %v10256 = vpop.f32.mrb[0].mxu0
        %10257 = vmatprep.mubr.bf16.mxu0 %v9343
        %10258 = vmatmul.mubr.bf16.gmra.mrb[0].mxu0 %v9342
        %v10259 = vpop.f32.mrb[0].mxu0
        %v10260 = vadd.f32 %v10099, %v10259
        %v10261 = vpop.f32.mrb[0].mxu0
        %v10262 = vpop.f32.mrb[0].mxu0
        %v10263 = vadd.f32 %v10102, %v10262
        %v10264 = vpop.f32.mrb[0].mxu0
        %10265 = vmatprep.mubr.bf16.mxu0 %v9352
        %10266 = vmatmul.mubr.bf16.gmra.mrb[0].mxu0 %v9351
        %v10267 = vpop.f32.mrb[0].mxu0
        %v10268 = vadd.f32 %v10107, %v10267
        %v10269 = vpop.f32.mrb[0].mxu0
        %v10270 = vpop.f32.mrb[0].mxu0
        %v10271 = vadd.f32 %v10110, %v10270
        %v10272 = vpop.f32.mrb[0].mxu0
        %10273 = vmatprep.mubr.bf16.mxu0 %v9361
        %10274 = vmatmul.mubr.bf16.gmra.mrb[0].mxu0 %v9360
        %v10275 = vpop.f32.mrb[0].mxu0
        %v10276 = vadd.f32 %v10115, %v10275
        %v10277 = vpop.f32.mrb[0].mxu0
        %v10278 = vpop.f32.mrb[0].mxu0
        %v10279 = vadd.f32 %v10118, %v10278
        %v10280 = vpop.f32.mrb[0].mxu0
        %10281 = vmatprep.mubr.bf16.mxu0 %v9370
        %10282 = vmatmul.mubr.bf16.gmra.mrb[0].mxu0 %v9369
        %v10283 = vpop.f32.mrb[0].mxu0
        %v10284 = vadd.f32 %v10123, %v10283
        %v10285 = vpop.f32.mrb[0].mxu0
        %v10286 = vpop.f32.mrb[0].mxu0
        %v10287 = vadd.f32 %v10126, %v10286
        %v10288 = vpop.f32.mrb[0].mxu0
        %10289 = vmatprep.mubr.bf16.mxu0 %v9379
        %10290 = vmatmul.mubr.bf16.gmra.mrb[0].mxu0 %v9378
        %v10291 = vpop.f32.mrb[0].mxu0
        %v10292 = vadd.f32 %v10131, %v10291
        %v10293 = vpop.f32.mrb[0].mxu0
        %v10294 = vpop.f32.mrb[0].mxu0
        %v10295 = vadd.f32 %v10134, %v10294
        %v10296 = vpop.f32.mrb[0].mxu0
        %10297 = vmatprep.mubr.bf16.mxu0 %v9388
        %10298 = vmatmul.mubr.bf16.gmra.mrb[0].mxu0 %v9387
        %v10299 = vpop.f32.mrb[0].mxu0
        %v10300 = vadd.f32 %v10139, %v10299
        %v10301 = vpop.f32.mrb[0].mxu0
        %v10302 = vpop.f32.mrb[0].mxu0
        %v10303 = vadd.f32 %v10142, %v10302
        %v10304 = vpop.f32.mrb[0].mxu0
        %10305 = vmatprep.mubr.bf16.mxu0 %v9397
        %10306 = vmatmul.mubr.bf16.gmra.mrb[0].mxu0 %v9396
        %v10307 = vpop.f32.mrb[0].mxu0
        %v10308 = vadd.f32 %v10147, %v10307
        %v10309 = vpop.f32.mrb[0].mxu0
        %v10310 = vpop.f32.mrb[0].mxu0
        %v10311 = vadd.f32 %v10150, %v10310
        %v10312 = vpop.f32.mrb[0].mxu0
        %10313 = vmatprep.mubr.bf16.mxu0 %v9406
        %10314 = vmatmul.mubr.bf16.gmra.mrb[0].mxu0 %v9405
        %v10315 = vpop.f32.mrb[0].mxu0
        %v10316 = vadd.f32 %v10155, %v10315
        %v10317 = vpop.f32.mrb[0].mxu0
        %v10318 = vpop.f32.mrb[0].mxu0
        %v10319 = vadd.f32 %v10158, %v10318
        %v10320 = vpop.f32.mrb[0].mxu0
        %10321 = vmatprep.mubr.bf16.mxu0 %v9415
        %10322 = vmatmul.mubr.bf16.gmra.mrb[0].mxu0 %v9414
        %v10323 = vpop.f32.mrb[0].mxu0
        %v10324 = vadd.f32 %v10163, %v10323
        %v10325 = vpop.f32.mrb[0].mxu0
        %v10326 = vpop.f32.mrb[0].mxu0
        %v10327 = vadd.f32 %v10166, %v10326
        %v10328 = vpop.f32.mrb[0].mxu0
        %10329 = vmatprep.mubr.bf16.mxu0 %v9424
        %10330 = vmatmul.mubr.bf16.gmra.mrb[0].mxu0 %v9423
        %v10331 = vpop.f32.mrb[0].mxu0
        %v10332 = vadd.f32 %v10171, %v10331
        %v10333 = vpop.f32.mrb[0].mxu0
        %v10334 = vpop.f32.mrb[0].mxu0
        %v10335 = vadd.f32 %v10174, %v10334
        %v10336 = vpop.f32.mrb[0].mxu0
        %10337 = vmatprep.mubr.bf16.mxu0 %v9433
        %10338 = vmatmul.mubr.bf16.gmra.mrb[0].mxu0 %v9432
        %v10339 = vpop.f32.mrb[0].mxu0
        %v10340 = vadd.f32 %v10179, %v10339
        %v10341 = vpop.f32.mrb[0].mxu0
        %v10342 = vpop.f32.mrb[0].mxu0
        %v10343 = vadd.f32 %v10182, %v10342
        %v10344 = vpop.f32.mrb[0].mxu0
        %10345 = vmatprep.mubr.bf16.mxu0 %v9442
        %10346 = vmatmul.mubr.bf16.gmra.mrb[0].mxu0 %v9441
        %v10347 = vpop.f32.mrb[0].mxu0
        %v10348 = vadd.f32 %v10187, %v10347
        %v10349 = vpop.f32.mrb[0].mxu0
        %v10350 = vpop.f32.mrb[0].mxu0
        %v10351 = vadd.f32 %v10190, %v10350
        %v10352 = vpop.f32.mrb[0].mxu0
        %10353 = vmatprep.mubr.bf16.mxu0 %v9451
        %10354 = vmatmul.mubr.bf16.gmra.mrb[0].mxu0 %v9450
        %v10355 = vpop.f32.mrb[0].mxu0
        %v10356 = vadd.f32 %v10195, %v10355
        %v10357 = vpop.f32.mrb[0].mxu0
        %v10358 = vpop.f32.mrb[0].mxu0
        %v10359 = vadd.f32 %v10198, %v10358
        %v10360 = vpop.f32.mrb[0].mxu0
        %10361 = vdwg.mxu0
        %10362 = vmatprep.subr.bf16.mxu0 0
        %10363 = vmatpush1.bf16.msra.mxu0 %v9928
        %10364 = vmatprep.subr.bf16.mxu0 0
        %10365 = vmatpush1.bf16.msra.mxu0 %v9929
        %10366 = vmatprep.subr.bf16.mxu0 0
        %10367 = vmatpush1.bf16.msra.mxu0 %v9930
        %10368 = vmatprep.subr.bf16.mxu0 0
        %10369 = vmatpush1.bf16.msra.mxu0 %v9931
        %10370 = vmatprep.subr.bf16.mxu0 0
        %10371 = vmatpush1.bf16.msra.mxu0 %v9932
        %10372 = vmatprep.subr.bf16.mxu0 0
        %10373 = vmatpush1.bf16.msra.mxu0 %v9933
        %10374 = vmatprep.subr.bf16.mxu0 0
        %10375 = vmatpush1.bf16.msra.mxu0 %v9934
        %10376 = vmatprep.subr.bf16.mxu0 0
        %10377 = vmatpush1.bf16.msra.mxu0 %v9935
        %10378 = vmatprep.subr.bf16.mxu0 0
        %10379 = vmatpush1.bf16.msra.mxu0 %v9936
        %10380 = vmatprep.subr.bf16.mxu0 0
        %10381 = vmatpush1.bf16.msra.mxu0 %v9937
        %10382 = vmatprep.subr.bf16.mxu0 0
        %10383 = vmatpush1.bf16.msra.mxu0 %v9938
        %10384 = vmatprep.subr.bf16.mxu0 0
        %10385 = vmatpush1.bf16.msra.mxu0 %v9939
        %10386 = vmatprep.subr.bf16.mxu0 0
        %10387 = vmatpush1.bf16.msra.mxu0 %v9940
        %10388 = vmatprep.subr.bf16.mxu0 0
        %10389 = vmatpush1.bf16.msra.mxu0 %v9941
        %10390 = vmatprep.subr.bf16.mxu0 0
        %10391 = vmatpush1.bf16.msra.mxu0 %v9942
        %10392 = vmatprep.subr.bf16.mxu0 0
        %10393 = vmatpush1.bf16.msra.mxu0 %v9943
        %10394 = vmatprep.mubr.bf16.mxu0 %v9318
        %10395 = vmatmul.mubr.bf16.gmra.mrb[0].mxu0 %v9317
        %v10396 = vpop.f32.mrb[0].mxu0
        %v10397 = vadd.f32 %v10236, %v10396
        %v10398 = vpop.f32.mrb[0].mxu0
        %v10399 = vpop.f32.mrb[0].mxu0
        %v10400 = vadd.f32 %v10239, %v10399
        %v10401 = vpop.f32.mrb[0].mxu0
        %10402 = vmatprep.mubr.bf16.mxu0 %v9327
        %10403 = vmatmul.mubr.bf16.gmra.mrb[0].mxu0 %v9326
        %v10404 = vpop.f32.mrb[0].mxu0
        %v10405 = vadd.f32 %v10244, %v10404
        %v10406 = vpop.f32.mrb[0].mxu0
        %v10407 = vpop.f32.mrb[0].mxu0
        %v10408 = vadd.f32 %v10247, %v10407
        %v10409 = vpop.f32.mrb[0].mxu0
        %10410 = vmatprep.mubr.bf16.mxu0 %v9336
        %10411 = vmatmul.mubr.bf16.gmra.mrb[0].mxu0 %v9335
        %v10412 = vpop.f32.mrb[0].mxu0
        %v10413 = vadd.f32 %v10252, %v10412
        %v10414 = vpop.f32.mrb[0].mxu0
        %v10415 = vpop.f32.mrb[0].mxu0
        %v10416 = vadd.f32 %v10255, %v10415
        %v10417 = vpop.f32.mrb[0].mxu0
        %10418 = vmatprep.mubr.bf16.mxu0 %v9345
        %10419 = vmatmul.mubr.bf16.gmra.mrb[0].mxu0 %v9344
        %v10420 = vpop.f32.mrb[0].mxu0
        %v10421 = vadd.f32 %v10260, %v10420
        %v10422 = vpop.f32.mrb[0].mxu0
        %v10423 = vpop.f32.mrb[0].mxu0
        %v10424 = vadd.f32 %v10263, %v10423
        %v10425 = vpop.f32.mrb[0].mxu0
        %10426 = vmatprep.mubr.bf16.mxu0 %v9354
        %10427 = vmatmul.mubr.bf16.gmra.mrb[0].mxu0 %v9353
        %v10428 = vpop.f32.mrb[0].mxu0
        %v10429 = vadd.f32 %v10268, %v10428
        %v10430 = vpop.f32.mrb[0].mxu0
        %v10431 = vpop.f32.mrb[0].mxu0
        %v10432 = vadd.f32 %v10271, %v10431
        %v10433 = vpop.f32.mrb[0].mxu0
        %10434 = vmatprep.mubr.bf16.mxu0 %v9363
        %10435 = vmatmul.mubr.bf16.gmra.mrb[0].mxu0 %v9362
        %v10436 = vpop.f32.mrb[0].mxu0
        %v10437 = vadd.f32 %v10276, %v10436
        %v10438 = vpop.f32.mrb[0].mxu0
        %v10439 = vpop.f32.mrb[0].mxu0
        %v10440 = vadd.f32 %v10279, %v10439
        %v10441 = vpop.f32.mrb[0].mxu0
        %10442 = vmatprep.mubr.bf16.mxu0 %v9372
        %10443 = vmatmul.mubr.bf16.gmra.mrb[0].mxu0 %v9371
        %v10444 = vpop.f32.mrb[0].mxu0
        %v10445 = vadd.f32 %v10284, %v10444
        %v10446 = vpop.f32.mrb[0].mxu0
        %v10447 = vpop.f32.mrb[0].mxu0
        %v10448 = vadd.f32 %v10287, %v10447
        %v10449 = vpop.f32.mrb[0].mxu0
        %10450 = vmatprep.mubr.bf16.mxu0 %v9381
        %10451 = vmatmul.mubr.bf16.gmra.mrb[0].mxu0 %v9380
        %v10452 = vpop.f32.mrb[0].mxu0
        %v10453 = vadd.f32 %v10292, %v10452
        %v10454 = vpop.f32.mrb[0].mxu0
        %v10455 = vpop.f32.mrb[0].mxu0
        %v10456 = vadd.f32 %v10295, %v10455
        %v10457 = vpop.f32.mrb[0].mxu0
        %10458 = vmatprep.mubr.bf16.mxu0 %v9390
        %10459 = vmatmul.mubr.bf16.gmra.mrb[0].mxu0 %v9389
        %v10460 = vpop.f32.mrb[0].mxu0
        %v10461 = vadd.f32 %v10300, %v10460
        %v10462 = vpop.f32.mrb[0].mxu0
        %v10463 = vpop.f32.mrb[0].mxu0
        %v10464 = vadd.f32 %v10303, %v10463
        %v10465 = vpop.f32.mrb[0].mxu0
        %10466 = vmatprep.mubr.bf16.mxu0 %v9399
        %10467 = vmatmul.mubr.bf16.gmra.mrb[0].mxu0 %v9398
        %v10468 = vpop.f32.mrb[0].mxu0
        %v10469 = vadd.f32 %v10308, %v10468
        %v10470 = vpop.f32.mrb[0].mxu0
        %v10471 = vpop.f32.mrb[0].mxu0
        %v10472 = vadd.f32 %v10311, %v10471
        %v10473 = vpop.f32.mrb[0].mxu0
        %10474 = vmatprep.mubr.bf16.mxu0 %v9408
        %10475 = vmatmul.mubr.bf16.gmra.mrb[0].mxu0 %v9407
        %v10476 = vpop.f32.mrb[0].mxu0
        %v10477 = vadd.f32 %v10316, %v10476
        %v10478 = vpop.f32.mrb[0].mxu0
        %v10479 = vpop.f32.mrb[0].mxu0
        %v10480 = vadd.f32 %v10319, %v10479
        %v10481 = vpop.f32.mrb[0].mxu0
        %10482 = vmatprep.mubr.bf16.mxu0 %v9417
        %10483 = vmatmul.mubr.bf16.gmra.mrb[0].mxu0 %v9416
        %v10484 = vpop.f32.mrb[0].mxu0
        %v10485 = vadd.f32 %v10324, %v10484
        %v10486 = vpop.f32.mrb[0].mxu0
        %v10487 = vpop.f32.mrb[0].mxu0
        %v10488 = vadd.f32 %v10327, %v10487
        %v10489 = vpop.f32.mrb[0].mxu0
        %10490 = vmatprep.mubr.bf16.mxu0 %v9426
        %10491 = vmatmul.mubr.bf16.gmra.mrb[0].mxu0 %v9425
        %v10492 = vpop.f32.mrb[0].mxu0
        %v10493 = vadd.f32 %v10332, %v10492
        %v10494 = vpop.f32.mrb[0].mxu0
        %v10495 = vpop.f32.mrb[0].mxu0
        %v10496 = vadd.f32 %v10335, %v10495
        %v10497 = vpop.f32.mrb[0].mxu0
        %10498 = vmatprep.mubr.bf16.mxu0 %v9435
        %10499 = vmatmul.mubr.bf16.gmra.mrb[0].mxu0 %v9434
        %v10500 = vpop.f32.mrb[0].mxu0
        %v10501 = vadd.f32 %v10340, %v10500
        %v10502 = vpop.f32.mrb[0].mxu0
        %v10503 = vpop.f32.mrb[0].mxu0
        %v10504 = vadd.f32 %v10343, %v10503
        %v10505 = vpop.f32.mrb[0].mxu0
        %10506 = vmatprep.mubr.bf16.mxu0 %v9444
        %10507 = vmatmul.mubr.bf16.gmra.mrb[0].mxu0 %v9443
        %v10508 = vpop.f32.mrb[0].mxu0
        %v10509 = vadd.f32 %v10348, %v10508
        %v10510 = vpop.f32.mrb[0].mxu0
        %v10511 = vpop.f32.mrb[0].mxu0
        %v10512 = vadd.f32 %v10351, %v10511
        %v10513 = vpop.f32.mrb[0].mxu0
        %10514 = vmatprep.mubr.bf16.mxu0 %v9453
        %10515 = vmatmul.mubr.bf16.gmra.mrb[0].mxu0 %v9452
        %v10516 = vpop.f32.mrb[0].mxu0
        %v10517 = vadd.f32 %v10356, %v10516
        %v10518 = vpop.f32.mrb[0].mxu0
        %v10519 = vpop.f32.mrb[0].mxu0
        %v10520 = vadd.f32 %v10359, %v10519
        %v10521 = vpop.f32.mrb[0].mxu0
        %10522 = vdwg.mxu0
        %10523 = vmatprep.subr.bf16.mxu0 0
        %10524 = vmatpush1.bf16.msra.mxu0 %v9944
        %10525 = vmatprep.subr.bf16.mxu0 0
        %10526 = vmatpush1.bf16.msra.mxu0 %v9945
        %10527 = vmatprep.subr.bf16.mxu0 0
        %10528 = vmatpush1.bf16.msra.mxu0 %v9946
        %10529 = vmatprep.subr.bf16.mxu0 0
        %10530 = vmatpush1.bf16.msra.mxu0 %v9947
        %10531 = vmatprep.subr.bf16.mxu0 0
        %10532 = vmatpush1.bf16.msra.mxu0 %v9948
        %10533 = vmatprep.subr.bf16.mxu0 0
        %10534 = vmatpush1.bf16.msra.mxu0 %v9949
        %10535 = vmatprep.subr.bf16.mxu0 0
        %10536 = vmatpush1.bf16.msra.mxu0 %v9950
        %10537 = vmatprep.subr.bf16.mxu0 0
        %10538 = vmatpush1.bf16.msra.mxu0 %v9951
        %10539 = vmatprep.subr.bf16.mxu0 0
        %10540 = vmatpush1.bf16.msra.mxu0 %v9952
        %10541 = vmatprep.subr.bf16.mxu0 0
        %10542 = vmatpush1.bf16.msra.mxu0 %v9953
        %10543 = vmatprep.subr.bf16.mxu0 0
        %10544 = vmatpush1.bf16.msra.mxu0 %v9954
        %10545 = vmatprep.subr.bf16.mxu0 0
        %10546 = vmatpush1.bf16.msra.mxu0 %v9955
        %10547 = vmatprep.subr.bf16.mxu0 0
        %10548 = vmatpush1.bf16.msra.mxu0 %v9956
        %10549 = vmatprep.subr.bf16.mxu0 0
        %10550 = vmatpush1.bf16.msra.mxu0 %v9957
        %10551 = vmatprep.subr.bf16.mxu0 0
        %10552 = vmatpush1.bf16.msra.mxu0 %v9958
        %10553 = vmatprep.subr.bf16.mxu0 0
        %10554 = vmatpush1.bf16.msra.mxu0 %v9959
        %10555 = vmatprep.mubr.bf16.mxu0 %v9320
        %10556 = vmatmul.mubr.bf16.gmra.mrb[0].mxu0 %v9319
        %v10557 = vpop.f32.mrb[0].mxu0
        %v10558 = vadd.f32 %v10397, %v10557
        %v10559 = vpop.f32.mrb[0].mxu0
        %v10560 = vpop.f32.mrb[0].mxu0
        %v10561 = vadd.f32 %v10400, %v10560
        %v10562 = vpop.f32.mrb[0].mxu0
        %10563 = vmatprep.mubr.bf16.mxu0 %v9329
        %10564 = vmatmul.mubr.bf16.gmra.mrb[0].mxu0 %v9328
        %v10565 = vpop.f32.mrb[0].mxu0
        %v10566 = vadd.f32 %v10405, %v10565
        %v10567 = vpop.f32.mrb[0].mxu0
        %v10568 = vpop.f32.mrb[0].mxu0
        %v10569 = vadd.f32 %v10408, %v10568
        %v10570 = vpop.f32.mrb[0].mxu0
        %10571 = vmatprep.mubr.bf16.mxu0 %v9338
        %10572 = vmatmul.mubr.bf16.gmra.mrb[0].mxu0 %v9337
        %v10573 = vpop.f32.mrb[0].mxu0
        %v10574 = vadd.f32 %v10413, %v10573
        %v10575 = vpop.f32.mrb[0].mxu0
        %v10576 = vpop.f32.mrb[0].mxu0
        %v10577 = vadd.f32 %v10416, %v10576
        %v10578 = vpop.f32.mrb[0].mxu0
        %10579 = vmatprep.mubr.bf16.mxu0 %v9347
        %10580 = vmatmul.mubr.bf16.gmra.mrb[0].mxu0 %v9346
        %v10581 = vpop.f32.mrb[0].mxu0
        %v10582 = vadd.f32 %v10421, %v10581
        %v10583 = vpop.f32.mrb[0].mxu0
        %v10584 = vpop.f32.mrb[0].mxu0
        %v10585 = vadd.f32 %v10424, %v10584
        %v10586 = vpop.f32.mrb[0].mxu0
        %10587 = vmatprep.mubr.bf16.mxu0 %v9356
        %10588 = vmatmul.mubr.bf16.gmra.mrb[0].mxu0 %v9355
        %v10589 = vpop.f32.mrb[0].mxu0
        %v10590 = vadd.f32 %v10429, %v10589
        %v10591 = vpop.f32.mrb[0].mxu0
        %v10592 = vpop.f32.mrb[0].mxu0
        %v10593 = vadd.f32 %v10432, %v10592
        %v10594 = vpop.f32.mrb[0].mxu0
        %10595 = vmatprep.mubr.bf16.mxu0 %v9365
        %10596 = vmatmul.mubr.bf16.gmra.mrb[0].mxu0 %v9364
        %v10597 = vpop.f32.mrb[0].mxu0
        %v10598 = vadd.f32 %v10437, %v10597
        %v10599 = vpop.f32.mrb[0].mxu0
        %v10600 = vpop.f32.mrb[0].mxu0
        %v10601 = vadd.f32 %v10440, %v10600
        %v10602 = vpop.f32.mrb[0].mxu0
        %10603 = vmatprep.mubr.bf16.mxu0 %v9374
        %10604 = vmatmul.mubr.bf16.gmra.mrb[0].mxu0 %v9373
        %v10605 = vpop.f32.mrb[0].mxu0
        %v10606 = vadd.f32 %v10445, %v10605
        %v10607 = vpop.f32.mrb[0].mxu0
        %v10608 = vpop.f32.mrb[0].mxu0
        %v10609 = vadd.f32 %v10448, %v10608
        %v10610 = vpop.f32.mrb[0].mxu0
        %10611 = vmatprep.mubr.bf16.mxu0 %v9383
        %10612 = vmatmul.mubr.bf16.gmra.mrb[0].mxu0 %v9382
        %v10613 = vpop.f32.mrb[0].mxu0
        %v10614 = vadd.f32 %v10453, %v10613
        %v10615 = vpop.f32.mrb[0].mxu0
        %v10616 = vpop.f32.mrb[0].mxu0
        %v10617 = vadd.f32 %v10456, %v10616
        %v10618 = vpop.f32.mrb[0].mxu0
        %10619 = vmatprep.mubr.bf16.mxu0 %v9392
        %10620 = vmatmul.mubr.bf16.gmra.mrb[0].mxu0 %v9391
        %v10621 = vpop.f32.mrb[0].mxu0
        %v10622 = vadd.f32 %v10461, %v10621
        %v10623 = vpop.f32.mrb[0].mxu0
        %v10624 = vpop.f32.mrb[0].mxu0
        %v10625 = vadd.f32 %v10464, %v10624
        %v10626 = vpop.f32.mrb[0].mxu0
        %10627 = vmatprep.mubr.bf16.mxu0 %v9401
        %10628 = vmatmul.mubr.bf16.gmra.mrb[0].mxu0 %v9400
        %v10629 = vpop.f32.mrb[0].mxu0
        %v10630 = vadd.f32 %v10469, %v10629
        %v10631 = vpop.f32.mrb[0].mxu0
        %v10632 = vpop.f32.mrb[0].mxu0
        %v10633 = vadd.f32 %v10472, %v10632
        %v10634 = vpop.f32.mrb[0].mxu0
        %10635 = vmatprep.mubr.bf16.mxu0 %v9410
        %10636 = vmatmul.mubr.bf16.gmra.mrb[0].mxu0 %v9409
        %v10637 = vpop.f32.mrb[0].mxu0
        %v10638 = vadd.f32 %v10477, %v10637
        %v10639 = vpop.f32.mrb[0].mxu0
        %v10640 = vpop.f32.mrb[0].mxu0
        %v10641 = vadd.f32 %v10480, %v10640
        %v10642 = vpop.f32.mrb[0].mxu0
        %10643 = vmatprep.mubr.bf16.mxu0 %v9419
        %10644 = vmatmul.mubr.bf16.gmra.mrb[0].mxu0 %v9418
        %v10645 = vpop.f32.mrb[0].mxu0
        %v10646 = vadd.f32 %v10485, %v10645
        %v10647 = vpop.f32.mrb[0].mxu0
        %v10648 = vpop.f32.mrb[0].mxu0
        %v10649 = vadd.f32 %v10488, %v10648
        %v10650 = vpop.f32.mrb[0].mxu0
        %10651 = vmatprep.mubr.bf16.mxu0 %v9428
        %10652 = vmatmul.mubr.bf16.gmra.mrb[0].mxu0 %v9427
        %v10653 = vpop.f32.mrb[0].mxu0
        %v10654 = vadd.f32 %v10493, %v10653
        %v10655 = vpop.f32.mrb[0].mxu0
        %v10656 = vpop.f32.mrb[0].mxu0
        %v10657 = vadd.f32 %v10496, %v10656
        %v10658 = vpop.f32.mrb[0].mxu0
        %10659 = vmatprep.mubr.bf16.mxu0 %v9437
        %10660 = vmatmul.mubr.bf16.gmra.mrb[0].mxu0 %v9436
        %v10661 = vpop.f32.mrb[0].mxu0
        %v10662 = vadd.f32 %v10501, %v10661
        %v10663 = vpop.f32.mrb[0].mxu0
        %v10664 = vpop.f32.mrb[0].mxu0
        %v10665 = vadd.f32 %v10504, %v10664
        %v10666 = vpop.f32.mrb[0].mxu0
        %10667 = vmatprep.mubr.bf16.mxu0 %v9446
        %10668 = vmatmul.mubr.bf16.gmra.mrb[0].mxu0 %v9445
        %v10669 = vpop.f32.mrb[0].mxu0
        %v10670 = vadd.f32 %v10509, %v10669
        %v10671 = vpop.f32.mrb[0].mxu0
        %v10672 = vpop.f32.mrb[0].mxu0
        %v10673 = vadd.f32 %v10512, %v10672
        %v10674 = vpop.f32.mrb[0].mxu0
        %10675 = vmatprep.mubr.bf16.mxu0 %v9455
        %10676 = vmatmul.mubr.bf16.gmra.mrb[0].mxu0 %v9454
        %v10677 = vpop.f32.mrb[0].mxu0
        %v10678 = vadd.f32 %v10517, %v10677
        %v10679 = vpop.f32.mrb[0].mxu0
        %v10680 = vpop.f32.mrb[0].mxu0
        %v10681 = vadd.f32 %v10520, %v10680
        %v10682 = vpop.f32.mrb[0].mxu0
        %10683 = vdwg.mxu0
        %10684 = vmatprep.subr.bf16.mxu0 0
        %10685 = vmatpush1.bf16.msra.mxu0 %v9960
        %10686 = vmatprep.subr.bf16.mxu0 0
        %10687 = vmatpush1.bf16.msra.mxu0 %v9961
        %10688 = vmatprep.subr.bf16.mxu0 0
        %10689 = vmatpush1.bf16.msra.mxu0 %v9962
        %10690 = vmatprep.subr.bf16.mxu0 0
        %10691 = vmatpush1.bf16.msra.mxu0 %v9963
        %10692 = vmatprep.subr.bf16.mxu0 0
        %10693 = vmatpush1.bf16.msra.mxu0 %v9964
        %10694 = vmatprep.subr.bf16.mxu0 0
        %10695 = vmatpush1.bf16.msra.mxu0 %v9965
        %10696 = vmatprep.subr.bf16.mxu0 0
        %10697 = vmatpush1.bf16.msra.mxu0 %v9966
        %10698 = vmatprep.subr.bf16.mxu0 0
        %10699 = vmatpush1.bf16.msra.mxu0 %v9967
        %10700 = vmatprep.subr.bf16.mxu0 0
        %10701 = vmatpush1.bf16.msra.mxu0 0
        %10702 = vmatprep.subr.bf16.mxu0 0
        %10703 = vmatpush1.bf16.msra.mxu0 0
        %10704 = vmatprep.subr.bf16.mxu0 0
        %10705 = vmatpush1.bf16.msra.mxu0 0
        %10706 = vmatprep.subr.bf16.mxu0 0
        %10707 = vmatpush1.bf16.msra.mxu0 0
        %10708 = vmatprep.subr.bf16.mxu0 0
        %10709 = vmatpush1.bf16.msra.mxu0 0
        %10710 = vmatprep.subr.bf16.mxu0 0
        %10711 = vmatpush1.bf16.msra.mxu0 0
        %10712 = vmatprep.subr.bf16.mxu0 0
        %10713 = vmatpush1.bf16.msra.mxu0 0
        %10714 = vmatprep.subr.bf16.mxu0 0
        %10715 = vmatpush1.bf16.msra.mxu0 0
        %10716 = vmatprep.mubr.bf16.mxu0 0
        %10717 = vmatmul.mubr.bf16.gmra.mrb[0].mxu0 %v9321
        %v10718 = vpop.f32.mrb[0].mxu0
        %v10719 = vadd.f32 %v10558, %v10718
        %v10720 = vpop.f32.mrb[0].mxu0
        %v10721 = vpop.f32.mrb[0].mxu0
        %v10722 = vadd.f32 %v10561, %v10721
        %v10723 = vpop.f32.mrb[0].mxu0
        %10724 = vmatprep.mubr.bf16.mxu0 0
        %10725 = vmatmul.mubr.bf16.gmra.mrb[0].mxu0 %v9330
        %v10726 = vpop.f32.mrb[0].mxu0
        %v10727 = vadd.f32 %v10566, %v10726
        %v10728 = vpop.f32.mrb[0].mxu0
        %v10729 = vpop.f32.mrb[0].mxu0
        %v10730 = vadd.f32 %v10569, %v10729
        %v10731 = vpop.f32.mrb[0].mxu0
        %10732 = vmatprep.mubr.bf16.mxu0 0
        %10733 = vmatmul.mubr.bf16.gmra.mrb[0].mxu0 %v9339
        %v10734 = vpop.f32.mrb[0].mxu0
        %v10735 = vadd.f32 %v10574, %v10734
        %v10736 = vpop.f32.mrb[0].mxu0
        %v10737 = vpop.f32.mrb[0].mxu0
        %v10738 = vadd.f32 %v10577, %v10737
        %v10739 = vpop.f32.mrb[0].mxu0
        %10740 = vmatprep.mubr.bf16.mxu0 0
        %10741 = vmatmul.mubr.bf16.gmra.mrb[0].mxu0 %v9348
        %v10742 = vpop.f32.mrb[0].mxu0
        %v10743 = vadd.f32 %v10582, %v10742
        %v10744 = vpop.f32.mrb[0].mxu0
        %v10745 = vpop.f32.mrb[0].mxu0
        %v10746 = vadd.f32 %v10585, %v10745
        %v10747 = vpop.f32.mrb[0].mxu0
        %10748 = vmatprep.mubr.bf16.mxu0 0
        %10749 = vmatmul.mubr.bf16.gmra.mrb[0].mxu0 %v9357
        %v10750 = vpop.f32.mrb[0].mxu0
        %v10751 = vadd.f32 %v10590, %v10750
        %v10752 = vpop.f32.mrb[0].mxu0
        %v10753 = vpop.f32.mrb[0].mxu0
        %v10754 = vadd.f32 %v10593, %v10753
        %v10755 = vpop.f32.mrb[0].mxu0
        %10756 = vmatprep.mubr.bf16.mxu0 0
        %10757 = vmatmul.mubr.bf16.gmra.mrb[0].mxu0 %v9366
        %v10758 = vpop.f32.mrb[0].mxu0
        %v10759 = vadd.f32 %v10598, %v10758
        %v10760 = vpop.f32.mrb[0].mxu0
        %v10761 = vpop.f32.mrb[0].mxu0
        %v10762 = vadd.f32 %v10601, %v10761
        %v10763 = vpop.f32.mrb[0].mxu0
        %10764 = vmatprep.mubr.bf16.mxu0 0
        %10765 = vmatmul.mubr.bf16.gmra.mrb[0].mxu0 %v9375
        %v10766 = vpop.f32.mrb[0].mxu0
        %v10767 = vadd.f32 %v10606, %v10766
        %v10768 = vpop.f32.mrb[0].mxu0
        %v10769 = vpop.f32.mrb[0].mxu0
        %v10770 = vadd.f32 %v10609, %v10769
        %v10771 = vpop.f32.mrb[0].mxu0
        %10772 = vmatprep.mubr.bf16.mxu0 0
        %10773 = vmatmul.mubr.bf16.gmra.mrb[0].mxu0 %v9384
        %v10774 = vpop.f32.mrb[0].mxu0
        %v10775 = vadd.f32 %v10614, %v10774
        %v10776 = vpop.f32.mrb[0].mxu0
        %v10777 = vpop.f32.mrb[0].mxu0
        %v10778 = vadd.f32 %v10617, %v10777
        %v10779 = vpop.f32.mrb[0].mxu0
        %10780 = vmatprep.mubr.bf16.mxu0 0
        %10781 = vmatmul.mubr.bf16.gmra.mrb[0].mxu0 %v9393
        %v10782 = vpop.f32.mrb[0].mxu0
        %v10783 = vadd.f32 %v10622, %v10782
        %v10784 = vpop.f32.mrb[0].mxu0
        %v10785 = vpop.f32.mrb[0].mxu0
        %v10786 = vadd.f32 %v10625, %v10785
        %v10787 = vpop.f32.mrb[0].mxu0
        %10788 = vmatprep.mubr.bf16.mxu0 0
        %10789 = vmatmul.mubr.bf16.gmra.mrb[0].mxu0 %v9402
        %v10790 = vpop.f32.mrb[0].mxu0
        %v10791 = vadd.f32 %v10630, %v10790
        %v10792 = vpop.f32.mrb[0].mxu0
        %v10793 = vpop.f32.mrb[0].mxu0
        %v10794 = vadd.f32 %v10633, %v10793
        %v10795 = vpop.f32.mrb[0].mxu0
        %10796 = vmatprep.mubr.bf16.mxu0 0
        %10797 = vmatmul.mubr.bf16.gmra.mrb[0].mxu0 %v9411
        %v10798 = vpop.f32.mrb[0].mxu0
        %v10799 = vadd.f32 %v10638, %v10798
        %v10800 = vpop.f32.mrb[0].mxu0
        %v10801 = vpop.f32.mrb[0].mxu0
        %v10802 = vadd.f32 %v10641, %v10801
        %v10803 = vpop.f32.mrb[0].mxu0
        %10804 = vmatprep.mubr.bf16.mxu0 0
        %10805 = vmatmul.mubr.bf16.gmra.mrb[0].mxu0 %v9420
        %v10806 = vpop.f32.mrb[0].mxu0
        %v10807 = vadd.f32 %v10646, %v10806
        %v10808 = vpop.f32.mrb[0].mxu0
        %v10809 = vpop.f32.mrb[0].mxu0
        %v10810 = vadd.f32 %v10649, %v10809
        %v10811 = vpop.f32.mrb[0].mxu0
        %10812 = vmatprep.mubr.bf16.mxu0 0
        %10813 = vmatmul.mubr.bf16.gmra.mrb[0].mxu0 %v9429
        %v10814 = vpop.f32.mrb[0].mxu0
        %v10815 = vadd.f32 %v10654, %v10814
        %v10816 = vpop.f32.mrb[0].mxu0
        %v10817 = vpop.f32.mrb[0].mxu0
        %v10818 = vadd.f32 %v10657, %v10817
        %v10819 = vpop.f32.mrb[0].mxu0
        %10820 = vmatprep.mubr.bf16.mxu0 0
        %10821 = vmatmul.mubr.bf16.gmra.mrb[0].mxu0 %v9438
        %v10822 = vpop.f32.mrb[0].mxu0
        %v10823 = vadd.f32 %v10662, %v10822
        %v10824 = vpop.f32.mrb[0].mxu0
        %v10825 = vpop.f32.mrb[0].mxu0
        %v10826 = vadd.f32 %v10665, %v10825
        %v10827 = vpop.f32.mrb[0].mxu0
        %10828 = vmatprep.mubr.bf16.mxu0 0
        %10829 = vmatmul.mubr.bf16.gmra.mrb[0].mxu0 %v9447
        %v10830 = vpop.f32.mrb[0].mxu0
        %v10831 = vadd.f32 %v10670, %v10830
        %v10832 = vpop.f32.mrb[0].mxu0
        %v10833 = vpop.f32.mrb[0].mxu0
        %v10834 = vadd.f32 %v10673, %v10833
        %v10835 = vpop.f32.mrb[0].mxu0
        %10836 = vmatprep.mubr.bf16.mxu0 0
        %10837 = vmatmul.mubr.bf16.gmra.mrb[0].mxu0 %v9456
        %v10838 = vpop.f32.mrb[0].mxu0
        %v10839 = vadd.f32 %v10678, %v10838
        %v10840 = vpop.f32.mrb[0].mxu0
        %v10841 = vpop.f32.mrb[0].mxu0
        %v10842 = vadd.f32 %v10681, %v10841
        %v10843 = vpop.f32.mrb[0].mxu0
        %10844 = vdwg.mxu0
        %10845 = vst [vmem:[%s298] sm:$0xff] %v10719
        %10846 = vst [vmem:[%s298 + $0x8] sm:$0xff] %v10722
        %10847 = vst [vmem:[%s298 + $0x10] sm:$0xff] %v10727
        %10848 = vst [vmem:[%s298 + $0x18] sm:$0xff] %v10730
        %10849 = vst [vmem:[%s298 + $0x20] sm:$0xff] %v10735
        %10850 = vst [vmem:[%s298 + $0x28] sm:$0xff] %v10738
        %10851 = vst [vmem:[%s298 + $0x30] sm:$0xff] %v10743
        %10852 = vst [vmem:[%s298 + $0x38] sm:$0xff] %v10746
        %10853 = vst [vmem:[%s298 + $0x40] sm:$0xff] %v10751
        %10854 = vst [vmem:[%s298 + $0x48] sm:$0xff] %v10754
        %10855 = vst [vmem:[%s298 + $0x50] sm:$0xff] %v10759
        %10856 = vst [vmem:[%s298 + $0x58] sm:$0xff] %v10762
        %10857 = vst [vmem:[%s298 + $0x60] sm:$0xff] %v10767
        %10858 = vst [vmem:[%s298 + $0x68] sm:$0xff] %v10770
        %10859 = vst [vmem:[%s298 + $0x70] sm:$0xff] %v10775
        %10860 = vst [vmem:[%s298 + $0x78] sm:$0xff] %v10778
        %10861 = vst [vmem:[%s298 + $0x80] sm:$0xff] %v10783
        %10862 = vst [vmem:[%s298 + $0x88] sm:$0xff] %v10786
        %10863 = vst [vmem:[%s298 + $0x90] sm:$0xff] %v10791
        %10864 = vst [vmem:[%s298 + $0x98] sm:$0xff] %v10794
        %10865 = vst [vmem:[%s298 + $0xa0] sm:$0xff] %v10799
        %10866 = vst [vmem:[%s298 + $0xa8] sm:$0xff] %v10802
        %10867 = vst [vmem:[%s298 + $0xb0] sm:$0xff] %v10807
        %10868 = vst [vmem:[%s298 + $0xb8] sm:$0xff] %v10810
        %10869 = vst [vmem:[%s298 + $0xc0] sm:$0xff] %v10815
        %10870 = vst [vmem:[%s298 + $0xc8] sm:$0xff] %v10818
        %10871 = vst [vmem:[%s298 + $0xd0] sm:$0xff] %v10823
        %10872 = vst [vmem:[%s298 + $0xd8] sm:$0xff] %v10826
        %10873 = vst [vmem:[%s298 + $0xe0] sm:$0xff] %v10831
        %10874 = vst [vmem:[%s298 + $0xe8] sm:$0xff] %v10834
        %10875 = vst [vmem:[%s298 + $0xf0] sm:$0xff] %v10839
        %10876 = vst [vmem:[%s298 + $0xf8] sm:$0xff] %v10842
        %s10877 = sand.u32 %s142, 1
        %s10878 = scalar_lea.sflag [#allocation6], %s10877
        %s10879 = sand.u32 %s142, 1
        %s10880 = smul.addr %s10879, 256
        %s10881 = scalar_lea.vmem [#allocation13], %s10880
        // Predicated region
        $region65: #{tpu_custom_call.1} parent=39 // pred_check
          %p10882 = pneg %p152
        $region66: #{tpu_custom_call.1} parent=39 // pred_check_branch
          %10884 = sbr.rel (%p10882) target = $region68
        $region67: #{tpu_custom_call.1} parent=39 // pred_region
          %s10886 = ssub.s32 4096, 4096
          %10887 = vsyncadd %s10878, %s10886
          %s10888 = smul.addr %s24, 32
          %s10889 = smul.addr %s10888, 128
          %s10890 = scalar_lea.hbm %s5, %s10889
          %s10891 = sshll.u32 %s10881, 4
          %s10892 = int_to_ptr.vmem [resolvable:$true] %s10891
          %10897 = dma.vmem_to_hbm [thread:$0]  %s10892, 4096, %s10890, %s10878, 128, 128, 8
        $region68: #{tpu_custom_call.1} parent=39 // pred_fallthru
          _
      $region40: #{tpu_custom_call.1} parent=5 // pred_fallthru
        _
      %p10898 = scmp.le.s32.totalorder 2, %s19
      // Predicated region
      $region69: #{tpu_custom_call.1} parent=5 // pred_check
        %p10899 = pneg %p10898
      $region70: #{tpu_custom_call.1} parent=5 // pred_check_branch
        %10901 = sbr.rel (%p10899) target = $region72
      $region71: #{tpu_custom_call.1} parent=5 // pred_region
        %s10902 = ssub.s32 %s19, 2
        // Predicated region
        $region73: #{tpu_custom_call.1} parent=71 // pred_check
          %p10903 = pneg %p158
        $region74: #{tpu_custom_call.1} parent=71 // pred_check_branch
          %10905 = sbr.rel (%p10903) target = $region76
        $region75: #{tpu_custom_call.1} parent=71 // pred_region
          %s10906 = sand.u32 %s143, 1
          %s10907 = scalar_lea.sflag [#allocation6], %s10906
          %s10908 = sand.u32 %s143, 1
          %s10909 = smul.addr %s10908, 256
          %s10910 = scalar_lea.vmem [#allocation13], %s10909
          %10911 = dma.done %s10907, 4096
        $region76: #{tpu_custom_call.1} parent=71 // pred_fallthru
          _
      $region72: #{tpu_custom_call.1} parent=5 // pred_fallthru
        _
    $region6: #{tpu_custom_call.1} parent=1 // loop_footer
      %s23 = sadd.s32 1, %s19
    $region7: #{tpu_custom_call.1} parent=1 // loop_footer_branch
      %18 = sbr.rel target = $region3
    $region8: #{tpu_custom_call.1} parent=1 // loop_exit
      _
    %10912 = vsyncpa [#allocation5], 1
    %s10913 = scalar_lea.sflag [#allocation5], 1
    %10914 = vsyncpa %s10913, 1
    %10915 = vsyncpa [#allocation8], 1
    %10916 = vsyncpa [#allocation11], 1
    %10917 = vsyncpa [#allocation6], 1
    %s10918 = scalar_lea.sflag [#allocation6], 1
    %10919 = vsyncpa %s10918, 1

</llo_original>
